<compile_context>
chip_gen: v7x
topology: tpu7x:2x2x1
jax: 0.10.0
libtpu: 0.0.40
codegen_flags: <defaults>
</compile_context>

<pallas_src>
import math

import jax
import jax.numpy as jnp
from jax.experimental import pallas as pl
from jax.experimental.pallas import tpu as pltpu

# ----------------------------- config (small) -----------------------------
N_SLOTS = 3    # config['model']['n_slots']
LATENT  = 16   # config['vae']['latent_dim']
GRU_DIM = 32   # config['gru']['latent_dim']
SIGMA   = (0.09,) + (0.11,) * (N_SLOTS - 1)   # per-slot decoder sigma (static buffer)


# =========================================================================================
# Fused recurrent kernel: one grid point per time step t, K slots unrolled inside the body.
# =========================================================================================
def _make_vimon_step_kernel(B, C, HW, K, L, G):
    CHW = C * HW
    KB = K * B
    KBp = ((KB + 7) // 8) * 8      # sublane-aligned row count for the stacked decoder matmul

    def kernel(x_ref, eps_ref,
               attn_w_ref, attn_b_ref,
               enc_W_ref, enc_b_ref,
               gru_Wih_ref, gru_Whh_ref, gru_bih_ref, gru_bhh_ref,
               mlp_W_ref, mlp_b_ref,
               lin_W_ref, lin_b_ref,
               dec_W_ref, dec_b_ref,
               # outputs (per-t slabs)
               alm_ref, cs_ref, cm_ref, ns_ref, nm_ref, mulv_ref,
               # scratch (persists across grid steps)
               pmask_scr, hid_scr):
        t = pl.program_id(0)

        # ---- recurrent-state init at t == 0 -------------------------------------------
        @pl.when(t == 0)
        def _():
            pmask_scr[...] = jnp.zeros_like(pmask_scr)   # prev next-mask logits (K, B, HW)
            hid_scr[...] = jnp.zeros_like(hid_scr)       # GRU hidden (K*B, G)

        # ---- prev_masks = log_softmax(prev_masks) over slots, only for t > 0 -----------
        @pl.when(t > 0)
        def _():
            pm = pmask_scr[...]
            mx = jnp.max(pm, axis=0, keepdims=True)
            sh = pm - mx
            pmask_scr[...] = sh - jnp.log(jnp.sum(jnp.exp(sh), axis=0, keepdims=True))

        x_t = x_ref[t]              # (B, C*HW)  NCHW-flattened, lane-dense
        pm = pmask_scr[...]         # (K, B, HW)

        def logsig(v):              # numerically stable log(sigmoid(v))
            return jnp.minimum(v, 0.0) - jnp.log1p(jnp.exp(-jnp.abs(v)))

        # ---- attention scope recursion (pure VPU), statically unrolled over slots ------
        log_s = jnp.zeros((B, HW), jnp.float32)
        log_m_list = []
        for k in range(K):
            if k < K - 1:
                alpha = (attn_b_ref[0]
                         + attn_w_ref[C] * log_s
                         + attn_w_ref[C + 1] * pm[k])
                for ci in range(C):
                    alpha = alpha + attn_w_ref[ci] * x_t[:, ci * HW:(ci + 1) * HW]
                log_m_k = log_s + logsig(alpha)
                log_s = log_s + logsig(-alpha)
            else:                   # last slot takes the remaining scope (no attention)
                log_m_k = log_s
            alm_ref[k] = log_m_k
            log_m_list.append(log_m_k)

        # ---- slot-batched encoder: rows are (slot-major, batch-minor), M = K*B ---------
        lm_flat = jnp.concatenate(log_m_list, axis=0)          # (K*B, HW)
        x_rep = jnp.concatenate([x_t] * K, axis=0)             # (K*B, C*HW)
        enc_in = jnp.concatenate([x_rep, lm_flat], axis=1)     # (K*B, (C+1)*HW)
        z_k = (jnp.dot(enc_in.astype(jnp.bfloat16), enc_W_ref[...],
                       preferred_element_type=jnp.float32) + enc_b_ref[...])
        z_in = z_k * 0.2                                       # (K*B, 2L)

        # ---- GRU cell, gate weights packed along the output dim (r|z|n) ----------------
        h = hid_scr[...]                                       # (K*B, G)
        gi = (jnp.dot(z_in.astype(jnp.bfloat16), gru_Wih_ref[...],
                      preferred_element_type=jnp.float32) + gru_bih_ref[...])
        gh = (jnp.dot(h.astype(jnp.bfloat16), gru_Whh_ref[...],
                      preferred_element_type=jnp.float32) + gru_bhh_ref[...])
        r = jax.nn.sigmoid(gi[:, 0:G] + gh[:, 0:G])
        zg = jax.nn.sigmoid(gi[:, G:2 * G] + gh[:, G:2 * G])
        n = jnp.tanh(gi[:, 2 * G:3 * G] + r * gh[:, 2 * G:3 * G])
        h_new = (1.0 - zg) * n + zg * h
        hid_scr[...] = h_new

        # ---- packed MLP -> [mu | logvar]; reparameterize; prediction linear ------------
        out = h_new * 5.0
        ml = (jnp.dot(out.astype(jnp.bfloat16), mlp_W_ref[...],
                      preferred_element_type=jnp.float32) + mlp_b_ref[...])   # (K*B, 2L)
        mulv_ref[...] = ml.reshape(K, B, 2 * L)
        mu = ml[:, 0:L]
        logvar = ml[:, L:2 * L]
        std = jnp.exp(0.5 * logvar)
        eps = eps_ref[t].reshape(KB, L)
        z_t = mu + eps * std
        z_pred = (jnp.dot(z_t.astype(jnp.bfloat16), lin_W_ref[...],
                          preferred_element_type=jnp.float32) + lin_b_ref[...])

        # ---- single decoder matmul on stacked [z_t ; z_pred] (M = 2*K*B rows) ----------
        if KBp != KB:
            pad = jnp.zeros((KBp - KB, L), jnp.float32)
            z_t_p = jnp.concatenate([z_t, pad], axis=0)
            z_pred_p = jnp.concatenate([z_pred, pad], axis=0)
        else:
            z_t_p, z_pred_p = z_t, z_pred
        zz = jnp.concatenate([z_t_p, z_pred_p], axis=0)        # (2*KBp, L)
        dec = (jnp.dot(zz.astype(jnp.bfloat16), dec_W_ref[...],
                       preferred_element_type=jnp.float32) + dec_b_ref[...])  # (2*KBp, 4*HW)
        dec_c = dec[0:KB]
        dec_n = dec[KBp:KBp + KB]
        cs_ref[...] = dec_c[:, 0:3 * HW].reshape(K, B, 3 * HW)   # lane-aligned slices
        cm_ref[...] = dec_c[:, 3 * HW:4 * HW].reshape(K, B, HW)
        ns_ref[...] = dec_n[:, 0:3 * HW].reshape(K, B, 3 * HW)
        nm_r = dec_n[:, 3 * HW:4 * HW].reshape(K, B, HW)
        nm_ref[...] = nm_r
        pmask_scr[...] = nm_r                                    # becomes prev_masks at t+1

    return kernel


# =========================================================================================
# Single-block fused epilogue: softmaxes, masked reconstructions and all five losses.
# =========================================================================================
def _make_epilogue_kernel(Tn, T, K, B, HW, L, sigma):
    inv = [1.0 / (2.0 * s * s) for s in sigma]                     # baked constants
    nrm = [1.0 / math.sqrt(2.0 * math.pi * s * s) for s in sigma]

    def kernel(x_ref, alm_ref, cm_ref, nm_ref, cs_ref, ns_ref, mulv_ref,
               cmsm_ref, nmsm_ref, attn_ref, rv_ref, ra_ref, pv_ref,
               recon_ref, pred_ref, cml_ref, nml_ref, kl_ref):
        x_all = x_ref[...]          # (T, B, 3*HW)
        alm = alm_ref[...]          # (Tn, K, B, HW)   attention log masks
        cm = cm_ref[...]            # (Tn, K, B, HW)   curr mask logits
        nm = nm_ref[...]            # (Tn, K, B, HW)   next mask logits
        cs = cs_ref[...]            # (Tn, K, B, 3*HW) curr slots
        ns = ns_ref[...]            # (Tn, K, B, 3*HW) next slots
        ml = mulv_ref[...]          # (Tn, K, B, 2L)   [mu | logvar]

        def softmax_slots(v):
            mx = jnp.max(v, axis=1, keepdims=True)
            e = jnp.exp(v - mx)
            s = jnp.sum(e, axis=1, keepdims=True)
            return e * pl.reciprocal(s, approx=True)

        def logsoftmax_slots(v):
            mx = jnp.max(v, axis=1, keepdims=True)
            sh = v - mx
            return sh - jnp.log(jnp.sum(jnp.exp(sh), axis=1, keepdims=True))

        cm_sm = softmax_slots(cm)
        nm_sm = softmax_slots(nm)
        attn = jnp.exp(alm)
        cmsm_ref[...] = cm_sm
        nmsm_ref[...] = nm_sm
        attn_ref[...] = attn

        # ---- masked reconstructions (sum over slots), per RGB channel lane block -------
        for ch in range(3):
            lo, hi = ch * HW, (ch + 1) * HW
            cs_ch = cs[:, :, :, lo:hi]
            ns_ch = ns[:, :, :, lo:hi]
            rv_ref[:, :, lo:hi] = jnp.sum(cm_sm * cs_ch, axis=1)
            ra_ref[:, :, lo:hi] = jnp.sum(attn * cs_ch, axis=1)
            pv_ref[:, :, lo:hi] = jnp.sum(nm_sm * ns_ch, axis=1)

        # ---- recon loss: current reconstructions vs frames 0..Tn-1 ---------------------
        tgt_c = x_all[0:Tn]
        acc_c = jnp.zeros((Tn, B, 3 * HW), jnp.float32)
        for k in range(K):
            diff = cs[:, k] - tgt_c
            xp = jnp.exp(-(diff * diff) * inv[k]) * nrm[k]
            mk = cm_sm[:, k]
            acc_c = acc_c + jnp.concatenate([mk, mk, mk], axis=-1) * xp
        recon = -jnp.sum(jnp.log(jnp.maximum(acc_c, 1e-5))) / float(B * Tn)

        # ---- pred loss: next-step predictions (steps 1..Tn-1) vs frames 2..T-1 ---------
        Tp = Tn - 1
        tgt_p = x_all[2:2 + Tp]
        acc_p = jnp.zeros((Tp, B, 3 * HW), jnp.float32)
        for k in range(K):
            diff = ns[1:, k] - tgt_p
            xp = jnp.exp(-(diff * diff) * inv[k]) * nrm[k]
            mk = nm_sm[1:, k]
            acc_p = acc_p + jnp.concatenate([mk, mk, mk], axis=-1) * xp
        pred = -jnp.sum(jnp.log(jnp.maximum(acc_p, 1e-5))) / float(B * Tp)

        # ---- mask KL losses (KLDivLoss, reduction='batchmean' -> / B) ------------------
        logq_c = logsoftmax_slots(cm)
        cml = jnp.sum(attn * (alm - logq_c)) / float(B * (T - 1))
        logq_n = logsoftmax_slots(nm)
        nml = jnp.sum(attn[2:] * (alm[2:] - logq_n[1:-1])) / float(B * (T - 2))

        # ---- latent KL ------------------------------------------------------------------
        mu = ml[..., 0:L]
        logvar = ml[..., L:2 * L]
        kl = -0.5 * jnp.sum(1.0 + logvar - mu * mu - jnp.exp(logvar)) / float(B * Tn)

        one = jnp.ones((1, 1), jnp.float32)
        recon_ref[...] = one * recon
        pred_ref[...] = one * pred
        cml_ref[...] = one * cml
        nml_ref[...] = one * nml
        kl_ref[...] = one * kl

    return kernel


# =============================== ViMON forward ===============================
def vimon_forward(x, params, eps_all):
    """x: (b, T, c, h, w) float32.  Returns (results, losses), inference=False semantics."""
    b, T, c, h, w = x.shape
    n_steps = T - 1
    K, L, G = N_SLOTS, LATENT, GRU_DIM
    HW = h * w
    f32 = jnp.float32

    # Pixel-plane layout for the kernels: (T, B, C*HW), NCHW-flattened rows (lane-dense).
    x_k = jnp.transpose(x, (1, 0, 2, 3, 4)).reshape(T, b, c * HW)

    def w16(a):      # matmul weights go to the MXU in bf16; biases & activations stay f32
        return a.astype(jnp.bfloat16)

    step_kernel = _make_vimon_step_kernel(b, c, HW, K, L, G)

    def resident(a):  # whole-array block, constant index map -> DMA'd once, stays in VMEM
        nd = a.ndim
        return pl.BlockSpec(a.shape, lambda t, _nd=nd: (0,) * _nd)

    def outspec(tail):
        n = len(tail)
        return pl.BlockSpec((None,) + tuple(tail), lambda t, _n=n: (t,) + (0,) * _n)

    smem = pl.BlockSpec(memory_space=pltpu.MemorySpace.SMEM)

    enc_W, enc_b = w16(params['enc_W']), params['enc_b']
    gru_Wih, gru_Whh = w16(params['gru_Wih']), w16(params['gru_Whh'])
    gru_bih, gru_bhh = params['gru_bih'], params['gru_bhh']
    mlp_W, mlp_b = w16(params['mlp_W']), params['mlp_b']
    lin_W, lin_b = w16(params['lin_W']), params['lin_b']
    dec_W, dec_b = w16(params['dec_W']), params['dec_b']

    in_specs = [
        resident(x_k), resident(eps_all),
        smem, smem,                                   # attn conv weights / bias (scalars)
        resident(enc_W), resident(enc_b),
        resident(gru_Wih), resident(gru_Whh), resident(gru_bih), resident(gru_bhh),
        resident(mlp_W), resident(mlp_b),
        resident(lin_W), resident(lin_b),
        resident(dec_W), resident(dec_b),
    ]
    out_specs = (outspec((K, b, HW)), outspec((K, b, 3 * HW)), outspec((K, b, HW)),
                 outspec((K, b, 3 * HW)), outspec((K, b, HW)), outspec((K, b, 2 * L)))
    out_shape = (
        jax.ShapeDtypeStruct((n_steps, K, b, HW), f32),       # attention log masks
        jax.ShapeDtypeStruct((n_steps, K, b, 3 * HW), f32),   # curr slots
        jax.ShapeDtypeStruct((n_steps, K, b, HW), f32),       # curr mask logits
        jax.ShapeDtypeStruct((n_steps, K, b, 3 * HW), f32),   # next slots
        jax.ShapeDtypeStruct((n_steps, K, b, HW), f32),       # next mask logits
        jax.ShapeDtypeStruct((n_steps, K, b, 2 * L), f32),    # packed [mu | logvar]
    )

    alm, cs, cm, ns, nm, mulv = pl.pallas_call(
        step_kernel,
        grid=(n_steps,),
        in_specs=in_specs,
        out_specs=out_specs,
        out_shape=out_shape,
        scratch_shapes=[
            pltpu.VMEM((K, b, HW), f32),      # prev next-mask logits
            pltpu.VMEM((K * b, G), f32),      # GRU hidden, slot-major rows
        ],
        compiler_params=pltpu.CompilerParams(dimension_semantics=("arbitrary",)),
    )(x_k, eps_all,
      params['attn_W'], params['attn_b'],
      enc_W, enc_b,
      gru_Wih, gru_Whh, gru_bih, gru_bhh,
      mlp_W, mlp_b,
      lin_W, lin_b,
      dec_W, dec_b)

    # -------- fused epilogue: results + all five losses in one single-block kernel --------
    epilogue = _make_epilogue_kernel(n_steps, T, K, b, HW, L, SIGMA)
    (cm_sm, nm_sm, attn_m, rv, ra, pv,
     recon, pred, cml, nml, kl) = pl.pallas_call(
        epilogue,
        out_shape=(
            jax.ShapeDtypeStruct((n_steps, K, b, HW), f32),
            jax.ShapeDtypeStruct((n_steps, K, b, HW), f32),
            jax.ShapeDtypeStruct((n_steps, K, b, HW), f32),
            jax.ShapeDtypeStruct((n_steps, b, 3 * HW), f32),
            jax.ShapeDtypeStruct((n_steps, b, 3 * HW), f32),
            jax.ShapeDtypeStruct((n_steps, b, 3 * HW), f32),
            jax.ShapeDtypeStruct((1, 1), f32),
            jax.ShapeDtypeStruct((1, 1), f32),
            jax.ShapeDtypeStruct((1, 1), f32),
            jax.ShapeDtypeStruct((1, 1), f32),
            jax.ShapeDtypeStruct((1, 1), f32),
        ),
    )(x_k, alm, cm, nm, cs, ns, mulv)

    # -------- final layout plumbing to the PyTorch (b, n_steps, K, C, h, w) layout --------
    def masks_to_btk(a):
        return jnp.transpose(a, (2, 0, 1, 3)).reshape(b, n_steps, K, 1, h, w)

    def slots_to_btk(a):
        return jnp.transpose(a, (2, 0, 1, 3)).reshape(b, n_steps, K, 3, h, w)

    def frames_to_bt(a):
        return jnp.transpose(a, (1, 0, 2)).reshape(b, n_steps, 3, h, w)

    results = {
        'curr_masks': masks_to_btk(cm_sm),
        'next_masks': masks_to_btk(nm_sm),
        'attn_masks': masks_to_btk(attn_m),
        'recon_vae': frames_to_bt(rv),
        'recon_attn': frames_to_bt(ra),
        'pred_vae': frames_to_bt(pv),
        'curr_slots': slots_to_btk(cs),
        'next_slots': slots_to_btk(ns),
    }
    losses = {
        'recon_loss': recon[0, 0],
        'pred_loss': pred[0, 0],
        'curr_mask_loss': cml[0, 0],
        'next_mask_loss': nml[0, 0],
        'kl_loss': kl[0, 0],
    }
    return results, losses


# =============================== params / main ===============================
def init_params(key, c, h, w):
    HW = h * w
    enc_in = (c + 1) * HW
    ks = jax.random.split(key, 8)

    def nrm(k, shape, scale=0.1):
        return scale * jax.random.normal(k, shape, dtype=jnp.float32)

    return {
        # attn 1x1 conv stand-in: per-channel scalar weights (SMEM in the kernel)
        'attn_W': nrm(ks[0], (c + 2,), 0.2),
        'attn_b': jnp.zeros((1,), jnp.float32),
        # vae_encoder stand-in: linear (c+1)*HW -> 2*latent
        'enc_W': nrm(ks[1], (enc_in, 2 * LATENT), 0.02),
        'enc_b': jnp.zeros((1, 2 * LATENT), jnp.float32),
        # GRU gate weights packed along the output dim (columns: [r | z | n])
        'gru_Wih': nrm(ks[2], (2 * LATENT, 3 * GRU_DIM), 0.1),
        'gru_Whh': nrm(ks[3], (GRU_DIM, 3 * GRU_DIM), 0.1),
        'gru_bih': jnp.zeros((1, 3 * GRU_DIM), jnp.float32),
        'gru_bhh': jnp.zeros((1, 3 * GRU_DIM), jnp.float32),
        # mlp packed along the output dim (columns: [mu | logvar])
        'mlp_W': nrm(ks[4], (GRU_DIM, 2 * LATENT), 0.1),
        'mlp_b': jnp.zeros((1, 2 * LATENT), jnp.float32),
        'lin_W': nrm(ks[5], (LATENT, LATENT), 0.1),
        'lin_b': jnp.zeros((1, LATENT), jnp.float32),
        # vae_decoder stand-in: linear latent -> 4*HW (channel-major: [0:3]=RGB, [3]=mask)
        'dec_W': nrm(ks[6], (LATENT, 4 * HW), 0.05),
        'dec_b': jnp.zeros((1, 4 * HW), jnp.float32),
    }


if __name__ == "__main__":
    B, T, C, H, W = 2, 4, 3, 16, 16
    n_steps = T - 1

    root = jax.random.PRNGKey(0)
    k_x, k_eps, k_p = jax.random.split(root, 3)

    x = jax.random.uniform(k_x, (B, T, C, H, W), dtype=jnp.float32)
    eps_all = jax.random.normal(k_eps, (n_steps, N_SLOTS, B, LATENT), dtype=jnp.float32)
    params = init_params(k_p, C, H, W)

    results, losses = jax.jit(vimon_forward)(x, params, eps_all)
    jax.block_until_ready((results, losses))
    print("KERNEL_OK")
</pallas_src>

<mosaic_0001>
module attributes {stable_mosaic.version = 11 : i64} {
  func.func @kernel(%arg0: memref<4x2x768xf32, #tpu.memory_space<vmem>>, %arg1: memref<3x3x2x256xf32, #tpu.memory_space<vmem>>, %arg2: memref<3x3x2x256xf32, #tpu.memory_space<vmem>>, %arg3: memref<3x3x2x256xf32, #tpu.memory_space<vmem>>, %arg4: memref<3x3x2x768xf32, #tpu.memory_space<vmem>>, %arg5: memref<3x3x2x768xf32, #tpu.memory_space<vmem>>, %arg6: memref<3x3x2x32xf32, #tpu.memory_space<vmem>>, %arg7: memref<3x3x2x256xf32, #tpu.memory_space<vmem>>, %arg8: memref<3x3x2x256xf32, #tpu.memory_space<vmem>>, %arg9: memref<3x3x2x256xf32, #tpu.memory_space<vmem>>, %arg10: memref<3x2x768xf32, #tpu.memory_space<vmem>>, %arg11: memref<3x2x768xf32, #tpu.memory_space<vmem>>, %arg12: memref<3x2x768xf32, #tpu.memory_space<vmem>>, %arg13: memref<1x1xf32, #tpu.memory_space<vmem>>, %arg14: memref<1x1xf32, #tpu.memory_space<vmem>>, %arg15: memref<1x1xf32, #tpu.memory_space<vmem>>, %arg16: memref<1x1xf32, #tpu.memory_space<vmem>>, %arg17: memref<1x1xf32, #tpu.memory_space<vmem>>) attributes {dimension_semantics = [], scalar_prefetch = 0 : i64, scratch_operands = 0 : i64, tpu.core_type = #tpu.core_type<tc>} {
    %c0 = arith.constant 0 : index
    %c0_0 = arith.constant 0 : index
    %c0_1 = arith.constant 0 : index
    %0 = vector.load %arg0[%c0, %c0_0, %c0_1] : memref<4x2x768xf32, #tpu.memory_space<vmem>>, vector<4x2x768xf32>
    %c0_2 = arith.constant 0 : index
    %c0_3 = arith.constant 0 : index
    %c0_4 = arith.constant 0 : index
    %c0_5 = arith.constant 0 : index
    %1 = vector.load %arg1[%c0_2, %c0_3, %c0_4, %c0_5] : memref<3x3x2x256xf32, #tpu.memory_space<vmem>>, vector<3x3x2x256xf32>
    %c0_6 = arith.constant 0 : index
    %c0_7 = arith.constant 0 : index
    %c0_8 = arith.constant 0 : index
    %c0_9 = arith.constant 0 : index
    %2 = vector.load %arg2[%c0_6, %c0_7, %c0_8, %c0_9] : memref<3x3x2x256xf32, #tpu.memory_space<vmem>>, vector<3x3x2x256xf32>
    %c0_10 = arith.constant 0 : index
    %c0_11 = arith.constant 0 : index
    %c0_12 = arith.constant 0 : index
    %c0_13 = arith.constant 0 : index
    %3 = vector.load %arg3[%c0_10, %c0_11, %c0_12, %c0_13] : memref<3x3x2x256xf32, #tpu.memory_space<vmem>>, vector<3x3x2x256xf32>
    %c0_14 = arith.constant 0 : index
    %c0_15 = arith.constant 0 : index
    %c0_16 = arith.constant 0 : index
    %c0_17 = arith.constant 0 : index
    %4 = vector.load %arg4[%c0_14, %c0_15, %c0_16, %c0_17] : memref<3x3x2x768xf32, #tpu.memory_space<vmem>>, vector<3x3x2x768xf32>
    %c0_18 = arith.constant 0 : index
    %c0_19 = arith.constant 0 : index
    %c0_20 = arith.constant 0 : index
    %c0_21 = arith.constant 0 : index
    %5 = vector.load %arg5[%c0_18, %c0_19, %c0_20, %c0_21] : memref<3x3x2x768xf32, #tpu.memory_space<vmem>>, vector<3x3x2x768xf32>
    %c0_22 = arith.constant 0 : index
    %c0_23 = arith.constant 0 : index
    %c0_24 = arith.constant 0 : index
    %c0_25 = arith.constant 0 : index
    %6 = vector.load %arg6[%c0_22, %c0_23, %c0_24, %c0_25] : memref<3x3x2x32xf32, #tpu.memory_space<vmem>>, vector<3x3x2x32xf32>
    %cst = arith.constant dense<0xFF800000> : vector<3x2x256xf32>
    %7 = vector.multi_reduction <maximumf>, %2, %cst [1] : vector<3x3x2x256xf32> to vector<3x2x256xf32>
    %8 = vector.shape_cast %7 : vector<3x2x256xf32> to vector<3x1x2x256xf32>
    %9 = vector.broadcast %8 : vector<3x1x2x256xf32> to vector<3x3x2x256xf32>
    %10 = arith.subf %2, %9 : vector<3x3x2x256xf32>
    %11 = math.exp %10 : vector<3x3x2x256xf32>
    %cst_26 = arith.constant dense<0.000000e+00> : vector<3x2x256xf32>
    %12 = vector.multi_reduction <add>, %11, %cst_26 [1] : vector<3x3x2x256xf32> to vector<3x2x256xf32>
    %13 = vector.shape_cast %12 : vector<3x2x256xf32> to vector<3x1x2x256xf32>
    %14 = tpu.reciprocal %13 {approx = true} : vector<3x1x2x256xf32> -> vector<3x1x2x256xf32>
    %15 = vector.broadcast %14 : vector<3x1x2x256xf32> to vector<3x3x2x256xf32>
    %16 = arith.mulf %11, %15 : vector<3x3x2x256xf32>
    %cst_27 = arith.constant dense<0xFF800000> : vector<3x2x256xf32>
    %17 = vector.multi_reduction <maximumf>, %3, %cst_27 [1] : vector<3x3x2x256xf32> to vector<3x2x256xf32>
    %18 = vector.shape_cast %17 : vector<3x2x256xf32> to vector<3x1x2x256xf32>
    %19 = vector.broadcast %18 : vector<3x1x2x256xf32> to vector<3x3x2x256xf32>
    %20 = arith.subf %3, %19 : vector<3x3x2x256xf32>
    %21 = math.exp %20 : vector<3x3x2x256xf32>
    %cst_28 = arith.constant dense<0.000000e+00> : vector<3x2x256xf32>
    %22 = vector.multi_reduction <add>, %21, %cst_28 [1] : vector<3x3x2x256xf32> to vector<3x2x256xf32>
    %23 = vector.shape_cast %22 : vector<3x2x256xf32> to vector<3x1x2x256xf32>
    %24 = tpu.reciprocal %23 {approx = true} : vector<3x1x2x256xf32> -> vector<3x1x2x256xf32>
    %25 = vector.broadcast %24 : vector<3x1x2x256xf32> to vector<3x3x2x256xf32>
    %26 = arith.mulf %21, %25 : vector<3x3x2x256xf32>
    %27 = math.exp %1 : vector<3x3x2x256xf32>
    %c0_29 = arith.constant 0 : index
    %c0_30 = arith.constant 0 : index
    %c0_31 = arith.constant 0 : index
    %c0_32 = arith.constant 0 : index
    %28 = vector.load %arg7[%c0_29, %c0_30, %c0_31, %c0_32] : memref<3x3x2x256xf32, #tpu.memory_space<vmem>>, vector<3x3x2x256xf32>
    tpu.vector_store %arg7[%c0_29, %c0_30, %c0_31, %c0_32], %16 {strides = array<i32>} : memref<3x3x2x256xf32, #tpu.memory_space<vmem>>, vector<3x3x2x256xf32>,
    %c0_33 = arith.constant 0 : index
    %c0_34 = arith.constant 0 : index
    %c0_35 = arith.constant 0 : index
    %c0_36 = arith.constant 0 : index
    %29 = vector.load %arg8[%c0_33, %c0_34, %c0_35, %c0_36] : memref<3x3x2x256xf32, #tpu.memory_space<vmem>>, vector<3x3x2x256xf32>
    tpu.vector_store %arg8[%c0_33, %c0_34, %c0_35, %c0_36], %26 {strides = array<i32>} : memref<3x3x2x256xf32, #tpu.memory_space<vmem>>, vector<3x3x2x256xf32>,
    %c0_37 = arith.constant 0 : index
    %c0_38 = arith.constant 0 : index
    %c0_39 = arith.constant 0 : index
    %c0_40 = arith.constant 0 : index
    %30 = vector.load %arg9[%c0_37, %c0_38, %c0_39, %c0_40] : memref<3x3x2x256xf32, #tpu.memory_space<vmem>>, vector<3x3x2x256xf32>
    tpu.vector_store %arg9[%c0_37, %c0_38, %c0_39, %c0_40], %27 {strides = array<i32>} : memref<3x3x2x256xf32, #tpu.memory_space<vmem>>, vector<3x3x2x256xf32>,
    %31 = vector.extract_strided_slice %4 {offsets = [0, 0, 0, 0], sizes = [3, 3, 2, 256], strides = [1, 1, 1, 1]} : vector<3x3x2x768xf32> to vector<3x3x2x256xf32>
    %32 = vector.extract_strided_slice %5 {offsets = [0, 0, 0, 0], sizes = [3, 3, 2, 256], strides = [1, 1, 1, 1]} : vector<3x3x2x768xf32> to vector<3x3x2x256xf32>
    %33 = arith.mulf %16, %31 : vector<3x3x2x256xf32>
    %cst_41 = arith.constant dense<0.000000e+00> : vector<3x2x256xf32>
    %34 = vector.multi_reduction <add>, %33, %cst_41 [1] : vector<3x3x2x256xf32> to vector<3x2x256xf32>
    %c0_42 = arith.constant 0 : index
    %c0_43 = arith.constant 0 : index
    %c0_44 = arith.constant 0 : index
    %35 = vector.load %arg10[%c0_42, %c0_43, %c0_44] : memref<3x2x768xf32, #tpu.memory_space<vmem>>, vector<3x2x256xf32>
    tpu.vector_store %arg10[%c0_42, %c0_43, %c0_44], %34 {strides = array<i32>} : memref<3x2x768xf32, #tpu.memory_space<vmem>>, vector<3x2x256xf32>,
    %36 = arith.mulf %27, %31 : vector<3x3x2x256xf32>
    %cst_45 = arith.constant dense<0.000000e+00> : vector<3x2x256xf32>
    %37 = vector.multi_reduction <add>, %36, %cst_45 [1] : vector<3x3x2x256xf32> to vector<3x2x256xf32>
    %c0_46 = arith.constant 0 : index
    %c0_47 = arith.constant 0 : index
    %c0_48 = arith.constant 0 : index
    %38 = vector.load %arg11[%c0_46, %c0_47, %c0_48] : memref<3x2x768xf32, #tpu.memory_space<vmem>>, vector<3x2x256xf32>
    tpu.vector_store %arg11[%c0_46, %c0_47, %c0_48], %37 {strides = array<i32>} : memref<3x2x768xf32, #tpu.memory_space<vmem>>, vector<3x2x256xf32>,
    %39 = arith.mulf %26, %32 : vector<3x3x2x256xf32>
    %cst_49 = arith.constant dense<0.000000e+00> : vector<3x2x256xf32>
    %40 = vector.multi_reduction <add>, %39, %cst_49 [1] : vector<3x3x2x256xf32> to vector<3x2x256xf32>
    %c0_50 = arith.constant 0 : index
    %c0_51 = arith.constant 0 : index
    %c0_52 = arith.constant 0 : index
    %41 = vector.load %arg12[%c0_50, %c0_51, %c0_52] : memref<3x2x768xf32, #tpu.memory_space<vmem>>, vector<3x2x256xf32>
    tpu.vector_store %arg12[%c0_50, %c0_51, %c0_52], %40 {strides = array<i32>} : memref<3x2x768xf32, #tpu.memory_space<vmem>>, vector<3x2x256xf32>,
    %42 = vector.extract_strided_slice %4 {offsets = [0, 0, 0, 256], sizes = [3, 3, 2, 256], strides = [1, 1, 1, 1]} : vector<3x3x2x768xf32> to vector<3x3x2x256xf32>
    %43 = vector.extract_strided_slice %5 {offsets = [0, 0, 0, 256], sizes = [3, 3, 2, 256], strides = [1, 1, 1, 1]} : vector<3x3x2x768xf32> to vector<3x3x2x256xf32>
    %44 = arith.mulf %16, %42 : vector<3x3x2x256xf32>
    %cst_53 = arith.constant dense<0.000000e+00> : vector<3x2x256xf32>
    %45 = vector.multi_reduction <add>, %44, %cst_53 [1] : vector<3x3x2x256xf32> to vector<3x2x256xf32>
    %c0_54 = arith.constant 0 : index
    %c0_55 = arith.constant 0 : index
    %c256 = arith.constant 256 : index
    %46 = vector.load %arg10[%c0_54, %c0_55, %c256] : memref<3x2x768xf32, #tpu.memory_space<vmem>>, vector<3x2x256xf32>
    tpu.vector_store %arg10[%c0_54, %c0_55, %c256], %45 {strides = array<i32>} : memref<3x2x768xf32, #tpu.memory_space<vmem>>, vector<3x2x256xf32>,
    %47 = arith.mulf %27, %42 : vector<3x3x2x256xf32>
    %cst_56 = arith.constant dense<0.000000e+00> : vector<3x2x256xf32>
    %48 = vector.multi_reduction <add>, %47, %cst_56 [1] : vector<3x3x2x256xf32> to vector<3x2x256xf32>
    %c0_57 = arith.constant 0 : index
    %c0_58 = arith.constant 0 : index
    %c256_59 = arith.constant 256 : index
    %49 = vector.load %arg11[%c0_57, %c0_58, %c256_59] : memref<3x2x768xf32, #tpu.memory_space<vmem>>, vector<3x2x256xf32>
    tpu.vector_store %arg11[%c0_57, %c0_58, %c256_59], %48 {strides = array<i32>} : memref<3x2x768xf32, #tpu.memory_space<vmem>>, vector<3x2x256xf32>,
    %50 = arith.mulf %26, %43 : vector<3x3x2x256xf32>
    %cst_60 = arith.constant dense<0.000000e+00> : vector<3x2x256xf32>
    %51 = vector.multi_reduction <add>, %50, %cst_60 [1] : vector<3x3x2x256xf32> to vector<3x2x256xf32>
    %c0_61 = arith.constant 0 : index
    %c0_62 = arith.constant 0 : index
    %c256_63 = arith.constant 256 : index
    %52 = vector.load %arg12[%c0_61, %c0_62, %c256_63] : memref<3x2x768xf32, #tpu.memory_space<vmem>>, vector<3x2x256xf32>
    tpu.vector_store %arg12[%c0_61, %c0_62, %c256_63], %51 {strides = array<i32>} : memref<3x2x768xf32, #tpu.memory_space<vmem>>, vector<3x2x256xf32>,
    %53 = vector.extract_strided_slice %4 {offsets = [0, 0, 0, 512], sizes = [3, 3, 2, 256], strides = [1, 1, 1, 1]} : vector<3x3x2x768xf32> to vector<3x3x2x256xf32>
    %54 = vector.extract_strided_slice %5 {offsets = [0, 0, 0, 512], sizes = [3, 3, 2, 256], strides = [1, 1, 1, 1]} : vector<3x3x2x768xf32> to vector<3x3x2x256xf32>
    %55 = arith.mulf %16, %53 : vector<3x3x2x256xf32>
    %cst_64 = arith.constant dense<0.000000e+00> : vector<3x2x256xf32>
    %56 = vector.multi_reduction <add>, %55, %cst_64 [1] : vector<3x3x2x256xf32> to vector<3x2x256xf32>
    %c0_65 = arith.constant 0 : index
    %c0_66 = arith.constant 0 : index
    %c512 = arith.constant 512 : index
    %57 = vector.load %arg10[%c0_65, %c0_66, %c512] : memref<3x2x768xf32, #tpu.memory_space<vmem>>, vector<3x2x256xf32>
    tpu.vector_store %arg10[%c0_65, %c0_66, %c512], %56 {strides = array<i32>} : memref<3x2x768xf32, #tpu.memory_space<vmem>>, vector<3x2x256xf32>,
    %58 = arith.mulf %27, %53 : vector<3x3x2x256xf32>
    %cst_67 = arith.constant dense<0.000000e+00> : vector<3x2x256xf32>
    %59 = vector.multi_reduction <add>, %58, %cst_67 [1] : vector<3x3x2x256xf32> to vector<3x2x256xf32>
    %c0_68 = arith.constant 0 : index
    %c0_69 = arith.constant 0 : index
    %c512_70 = arith.constant 512 : index
    %60 = vector.load %arg11[%c0_68, %c0_69, %c512_70] : memref<3x2x768xf32, #tpu.memory_space<vmem>>, vector<3x2x256xf32>
    tpu.vector_store %arg11[%c0_68, %c0_69, %c512_70], %59 {strides = array<i32>} : memref<3x2x768xf32, #tpu.memory_space<vmem>>, vector<3x2x256xf32>,
    %61 = arith.mulf %26, %54 : vector<3x3x2x256xf32>
    %cst_71 = arith.constant dense<0.000000e+00> : vector<3x2x256xf32>
    %62 = vector.multi_reduction <add>, %61, %cst_71 [1] : vector<3x3x2x256xf32> to vector<3x2x256xf32>
    %c0_72 = arith.constant 0 : index
    %c0_73 = arith.constant 0 : index
    %c512_74 = arith.constant 512 : index
    %63 = vector.load %arg12[%c0_72, %c0_73, %c512_74] : memref<3x2x768xf32, #tpu.memory_space<vmem>>, vector<3x2x256xf32>
    tpu.vector_store %arg12[%c0_72, %c0_73, %c512_74], %62 {strides = array<i32>} : memref<3x2x768xf32, #tpu.memory_space<vmem>>, vector<3x2x256xf32>,
    %64 = vector.extract_strided_slice %0 {offsets = [0, 0, 0], sizes = [3, 2, 768], strides = [1, 1, 1]} : vector<4x2x768xf32> to vector<3x2x768xf32>
    %cst_75 = arith.constant 0.000000e+00 : f32
    %65 = vector.broadcast %cst_75 : f32 to vector<3x2x768xf32>
    %66 = vector.extract_strided_slice %4 {offsets = [0, 0, 0, 0], sizes = [3, 1, 2, 768], strides = [1, 1, 1, 1]} : vector<3x3x2x768xf32> to vector<3x1x2x768xf32>
    %67 = vector.shape_cast %66 : vector<3x1x2x768xf32> to vector<3x2x768xf32>
    %68 = arith.subf %67, %64 : vector<3x2x768xf32>
    %69 = arith.mulf %68, %68 : vector<3x2x768xf32>
    %cst_76 = arith.constant 0.000000e+00 : f32
    %70 = vector.broadcast %cst_76 : f32 to vector<3x2x768xf32>
    %71 = arith.subf %70, %69 : vector<3x2x768xf32>
    %cst_77 = arith.constant 61.7283935 : f32
    %72 = vector.broadcast %cst_77 : f32 to vector<3x2x768xf32>
    %73 = arith.mulf %71, %72 : vector<3x2x768xf32>
    %74 = math.exp %73 : vector<3x2x768xf32>
    %cst_78 = arith.constant 4.43269205 : f32
    %75 = vector.broadcast %cst_78 : f32 to vector<3x2x768xf32>
    %76 = arith.mulf %74, %75 : vector<3x2x768xf32>
    %77 = vector.extract_strided_slice %16 {offsets = [0, 0, 0, 0], sizes = [3, 1, 2, 256], strides = [1, 1, 1, 1]} : vector<3x3x2x256xf32> to vector<3x1x2x256xf32>
    %78 = vector.shape_cast %77 : vector<3x1x2x256xf32> to vector<3x2x256xf32>
    %79 = tpu.concatenate %78, %78, %78 in 2 : vector<3x2x256xf32>, vector<3x2x256xf32>, vector<3x2x256xf32> -> vector<3x2x768xf32>
    %80 = arith.mulf %79, %76 : vector<3x2x768xf32>
    %81 = arith.addf %65, %80 : vector<3x2x768xf32>
    %82 = vector.extract_strided_slice %4 {offsets = [0, 1, 0, 0], sizes = [3, 1, 2, 768], strides = [1, 1, 1, 1]} : vector<3x3x2x768xf32> to vector<3x1x2x768xf32>
    %83 = vector.shape_cast %82 : vector<3x1x2x768xf32> to vector<3x2x768xf32>
    %84 = arith.subf %83, %64 : vector<3x2x768xf32>
    %85 = arith.mulf %84, %84 : vector<3x2x768xf32>
    %cst_79 = arith.constant 0.000000e+00 : f32
    %86 = vector.broadcast %cst_79 : f32 to vector<3x2x768xf32>
    %87 = arith.subf %86, %85 : vector<3x2x768xf32>
    %cst_80 = arith.constant 41.3223152 : f32
    %88 = vector.broadcast %cst_80 : f32 to vector<3x2x768xf32>
    %89 = arith.mulf %87, %88 : vector<3x2x768xf32>
    %90 = math.exp %89 : vector<3x2x768xf32>
    %cst_81 = arith.constant 3.62674809 : f32
    %91 = vector.broadcast %cst_81 : f32 to vector<3x2x768xf32>
    %92 = arith.mulf %90, %91 : vector<3x2x768xf32>
    %93 = vector.extract_strided_slice %16 {offsets = [0, 1, 0, 0], sizes = [3, 1, 2, 256], strides = [1, 1, 1, 1]} : vector<3x3x2x256xf32> to vector<3x1x2x256xf32>
    %94 = vector.shape_cast %93 : vector<3x1x2x256xf32> to vector<3x2x256xf32>
    %95 = tpu.concatenate %94, %94, %94 in 2 : vector<3x2x256xf32>, vector<3x2x256xf32>, vector<3x2x256xf32> -> vector<3x2x768xf32>
    %96 = arith.mulf %95, %92 : vector<3x2x768xf32>
    %97 = arith.addf %81, %96 : vector<3x2x768xf32>
    %98 = vector.extract_strided_slice %4 {offsets = [0, 2, 0, 0], sizes = [3, 1, 2, 768], strides = [1, 1, 1, 1]} : vector<3x3x2x768xf32> to vector<3x1x2x768xf32>
    %99 = vector.shape_cast %98 : vector<3x1x2x768xf32> to vector<3x2x768xf32>
    %100 = arith.subf %99, %64 : vector<3x2x768xf32>
    %101 = arith.mulf %100, %100 : vector<3x2x768xf32>
    %cst_82 = arith.constant 0.000000e+00 : f32
    %102 = vector.broadcast %cst_82 : f32 to vector<3x2x768xf32>
    %103 = arith.subf %102, %101 : vector<3x2x768xf32>
    %cst_83 = arith.constant 41.3223152 : f32
    %104 = vector.broadcast %cst_83 : f32 to vector<3x2x768xf32>
    %105 = arith.mulf %103, %104 : vector<3x2x768xf32>
    %106 = math.exp %105 : vector<3x2x768xf32>
    %cst_84 = arith.constant 3.62674809 : f32
    %107 = vector.broadcast %cst_84 : f32 to vector<3x2x768xf32>
    %108 = arith.mulf %106, %107 : vector<3x2x768xf32>
    %109 = vector.extract_strided_slice %16 {offsets = [0, 2, 0, 0], sizes = [3, 1, 2, 256], strides = [1, 1, 1, 1]} : vector<3x3x2x256xf32> to vector<3x1x2x256xf32>
    %110 = vector.shape_cast %109 : vector<3x1x2x256xf32> to vector<3x2x256xf32>
    %111 = tpu.concatenate %110, %110, %110 in 2 : vector<3x2x256xf32>, vector<3x2x256xf32>, vector<3x2x256xf32> -> vector<3x2x768xf32>
    %112 = arith.mulf %111, %108 : vector<3x2x768xf32>
    %113 = arith.addf %97, %112 : vector<3x2x768xf32>
    %cst_85 = arith.constant 9.99999974E-6 : f32
    %114 = vector.broadcast %cst_85 : f32 to vector<3x2x768xf32>
    %115 = arith.maximumf %113, %114 : vector<3x2x768xf32>
    %116 = math.log %115 : vector<3x2x768xf32>
    %117 = vector.shape_cast %116 : vector<3x2x768xf32> to vector<1x3x2x768xf32>
    %cst_86 = arith.constant dense<0.000000e+00> : vector<1xf32>
    %118 = vector.multi_reduction <add>, %117, %cst_86 [1, 2, 3] : vector<1x3x2x768xf32> to vector<1xf32>
    %119 = vector.shape_cast %118 : vector<1xf32> to vector<1x1x1x1xf32>
    %120 = vector.extract %119[0, 0, 0, 0] : f32 from vector<1x1x1x1xf32>
    %cst_87 = arith.constant 0.000000e+00 : f32
    %121 = arith.subf %cst_87, %120 : f32
    %cst_88 = arith.constant 6.000000e+00 : f32
    %122 = arith.divf %121, %cst_88 : f32
    %123 = vector.extract_strided_slice %0 {offsets = [2, 0, 0], sizes = [2, 2, 768], strides = [1, 1, 1]} : vector<4x2x768xf32> to vector<2x2x768xf32>
    %cst_89 = arith.constant 0.000000e+00 : f32
    %124 = vector.broadcast %cst_89 : f32 to vector<2x2x768xf32>
    %125 = vector.extract_strided_slice %5 {offsets = [1, 0, 0, 0], sizes = [2, 1, 2, 768], strides = [1, 1, 1, 1]} : vector<3x3x2x768xf32> to vector<2x1x2x768xf32>
    %126 = vector.shape_cast %125 : vector<2x1x2x768xf32> to vector<2x2x768xf32>
    %127 = arith.subf %126, %123 : vector<2x2x768xf32>
    %128 = arith.mulf %127, %127 : vector<2x2x768xf32>
    %cst_90 = arith.constant 0.000000e+00 : f32
    %129 = vector.broadcast %cst_90 : f32 to vector<2x2x768xf32>
    %130 = arith.subf %129, %128 : vector<2x2x768xf32>
    %cst_91 = arith.constant 61.7283935 : f32
    %131 = vector.broadcast %cst_91 : f32 to vector<2x2x768xf32>
    %132 = arith.mulf %130, %131 : vector<2x2x768xf32>
    %133 = math.exp %132 : vector<2x2x768xf32>
    %cst_92 = arith.constant 4.43269205 : f32
    %134 = vector.broadcast %cst_92 : f32 to vector<2x2x768xf32>
    %135 = arith.mulf %133, %134 : vector<2x2x768xf32>
    %136 = vector.extract_strided_slice %26 {offsets = [1, 0, 0, 0], sizes = [2, 1, 2, 256], strides = [1, 1, 1, 1]} : vector<3x3x2x256xf32> to vector<2x1x2x256xf32>
    %137 = vector.shape_cast %136 : vector<2x1x2x256xf32> to vector<2x2x256xf32>
    %138 = tpu.concatenate %137, %137, %137 in 2 : vector<2x2x256xf32>, vector<2x2x256xf32>, vector<2x2x256xf32> -> vector<2x2x768xf32>
    %139 = arith.mulf %138, %135 : vector<2x2x768xf32>
    %140 = arith.addf %124, %139 : vector<2x2x768xf32>
    %141 = vector.extract_strided_slice %5 {offsets = [1, 1, 0, 0], sizes = [2, 1, 2, 768], strides = [1, 1, 1, 1]} : vector<3x3x2x768xf32> to vector<2x1x2x768xf32>
    %142 = vector.shape_cast %141 : vector<2x1x2x768xf32> to vector<2x2x768xf32>
    %143 = arith.subf %142, %123 : vector<2x2x768xf32>
    %144 = arith.mulf %143, %143 : vector<2x2x768xf32>
    %cst_93 = arith.constant 0.000000e+00 : f32
    %145 = vector.broadcast %cst_93 : f32 to vector<2x2x768xf32>
    %146 = arith.subf %145, %144 : vector<2x2x768xf32>
    %cst_94 = arith.constant 41.3223152 : f32
    %147 = vector.broadcast %cst_94 : f32 to vector<2x2x768xf32>
    %148 = arith.mulf %146, %147 : vector<2x2x768xf32>
    %149 = math.exp %148 : vector<2x2x768xf32>
    %cst_95 = arith.constant 3.62674809 : f32
    %150 = vector.broadcast %cst_95 : f32 to vector<2x2x768xf32>
    %151 = arith.mulf %149, %150 : vector<2x2x768xf32>
    %152 = vector.extract_strided_slice %26 {offsets = [1, 1, 0, 0], sizes = [2, 1, 2, 256], strides = [1, 1, 1, 1]} : vector<3x3x2x256xf32> to vector<2x1x2x256xf32>
    %153 = vector.shape_cast %152 : vector<2x1x2x256xf32> to vector<2x2x256xf32>
    %154 = tpu.concatenate %153, %153, %153 in 2 : vector<2x2x256xf32>, vector<2x2x256xf32>, vector<2x2x256xf32> -> vector<2x2x768xf32>
    %155 = arith.mulf %154, %151 : vector<2x2x768xf32>
    %156 = arith.addf %140, %155 : vector<2x2x768xf32>
    %157 = vector.extract_strided_slice %5 {offsets = [1, 2, 0, 0], sizes = [2, 1, 2, 768], strides = [1, 1, 1, 1]} : vector<3x3x2x768xf32> to vector<2x1x2x768xf32>
    %158 = vector.shape_cast %157 : vector<2x1x2x768xf32> to vector<2x2x768xf32>
    %159 = arith.subf %158, %123 : vector<2x2x768xf32>
    %160 = arith.mulf %159, %159 : vector<2x2x768xf32>
    %cst_96 = arith.constant 0.000000e+00 : f32
    %161 = vector.broadcast %cst_96 : f32 to vector<2x2x768xf32>
    %162 = arith.subf %161, %160 : vector<2x2x768xf32>
    %cst_97 = arith.constant 41.3223152 : f32
    %163 = vector.broadcast %cst_97 : f32 to vector<2x2x768xf32>
    %164 = arith.mulf %162, %163 : vector<2x2x768xf32>
    %165 = math.exp %164 : vector<2x2x768xf32>
    %cst_98 = arith.constant 3.62674809 : f32
    %166 = vector.broadcast %cst_98 : f32 to vector<2x2x768xf32>
    %167 = arith.mulf %165, %166 : vector<2x2x768xf32>
    %168 = vector.extract_strided_slice %26 {offsets = [1, 2, 0, 0], sizes = [2, 1, 2, 256], strides = [1, 1, 1, 1]} : vector<3x3x2x256xf32> to vector<2x1x2x256xf32>
    %169 = vector.shape_cast %168 : vector<2x1x2x256xf32> to vector<2x2x256xf32>
    %170 = tpu.concatenate %169, %169, %169 in 2 : vector<2x2x256xf32>, vector<2x2x256xf32>, vector<2x2x256xf32> -> vector<2x2x768xf32>
    %171 = arith.mulf %170, %167 : vector<2x2x768xf32>
    %172 = arith.addf %156, %171 : vector<2x2x768xf32>
    %cst_99 = arith.constant 9.99999974E-6 : f32
    %173 = vector.broadcast %cst_99 : f32 to vector<2x2x768xf32>
    %174 = arith.maximumf %172, %173 : vector<2x2x768xf32>
    %175 = math.log %174 : vector<2x2x768xf32>
    %176 = vector.shape_cast %175 : vector<2x2x768xf32> to vector<1x2x2x768xf32>
    %cst_100 = arith.constant dense<0.000000e+00> : vector<1xf32>
    %177 = vector.multi_reduction <add>, %176, %cst_100 [1, 2, 3] : vector<1x2x2x768xf32> to vector<1xf32>
    %178 = vector.shape_cast %177 : vector<1xf32> to vector<1x1x1x1xf32>
    %179 = vector.extract %178[0, 0, 0, 0] : f32 from vector<1x1x1x1xf32>
    %cst_101 = arith.constant 0.000000e+00 : f32
    %180 = arith.subf %cst_101, %179 : f32
    %cst_102 = arith.constant 4.000000e+00 : f32
    %181 = arith.divf %180, %cst_102 : f32
    %cst_103 = arith.constant dense<0xFF800000> : vector<3x2x256xf32>
    %182 = vector.multi_reduction <maximumf>, %2, %cst_103 [1] : vector<3x3x2x256xf32> to vector<3x2x256xf32>
    %183 = vector.shape_cast %182 : vector<3x2x256xf32> to vector<3x1x2x256xf32>
    %184 = vector.broadcast %183 : vector<3x1x2x256xf32> to vector<3x3x2x256xf32>
    %185 = arith.subf %2, %184 : vector<3x3x2x256xf32>
    %186 = math.exp %185 : vector<3x3x2x256xf32>
    %cst_104 = arith.constant dense<0.000000e+00> : vector<3x2x256xf32>
    %187 = vector.multi_reduction <add>, %186, %cst_104 [1] : vector<3x3x2x256xf32> to vector<3x2x256xf32>
    %188 = vector.shape_cast %187 : vector<3x2x256xf32> to vector<3x1x2x256xf32>
    %189 = math.log %188 : vector<3x1x2x256xf32>
    %190 = vector.broadcast %189 : vector<3x1x2x256xf32> to vector<3x3x2x256xf32>
    %191 = arith.subf %185, %190 : vector<3x3x2x256xf32>
    %192 = arith.subf %1, %191 : vector<3x3x2x256xf32>
    %193 = arith.mulf %27, %192 : vector<3x3x2x256xf32>
    %194 = vector.shape_cast %193 : vector<3x3x2x256xf32> to vector<1x3x3x2x256xf32>
    %cst_105 = arith.constant dense<0.000000e+00> : vector<1xf32>
    %195 = vector.multi_reduction <add>, %194, %cst_105 [1, 2, 3, 4] : vector<1x3x3x2x256xf32> to vector<1xf32>
    %196 = vector.shape_cast %195 : vector<1xf32> to vector<1x1x1x1x1xf32>
    %197 = vector.extract %196[0, 0, 0, 0, 0] : f32 from vector<1x1x1x1x1xf32>
    %cst_106 = arith.constant 6.000000e+00 : f32
    %198 = arith.divf %197, %cst_106 : f32
    %cst_107 = arith.constant dense<0xFF800000> : vector<3x2x256xf32>
    %199 = vector.multi_reduction <maximumf>, %3, %cst_107 [1] : vector<3x3x2x256xf32> to vector<3x2x256xf32>
    %200 = vector.shape_cast %199 : vector<3x2x256xf32> to vector<3x1x2x256xf32>
    %201 = vector.broadcast %200 : vector<3x1x2x256xf32> to vector<3x3x2x256xf32>
    %202 = arith.subf %3, %201 : vector<3x3x2x256xf32>
    %203 = math.exp %202 : vector<3x3x2x256xf32>
    %cst_108 = arith.constant dense<0.000000e+00> : vector<3x2x256xf32>
    %204 = vector.multi_reduction <add>, %203, %cst_108 [1] : vector<3x3x2x256xf32> to vector<3x2x256xf32>
    %205 = vector.shape_cast %204 : vector<3x2x256xf32> to vector<3x1x2x256xf32>
    %206 = math.log %205 : vector<3x1x2x256xf32>
    %207 = vector.broadcast %206 : vector<3x1x2x256xf32> to vector<3x3x2x256xf32>
    %208 = arith.subf %202, %207 : vector<3x3x2x256xf32>
    %209 = vector.extract_strided_slice %27 {offsets = [2, 0, 0, 0], sizes = [1, 3, 2, 256], strides = [1, 1, 1, 1]} : vector<3x3x2x256xf32> to vector<1x3x2x256xf32>
    %210 = vector.extract_strided_slice %1 {offsets = [2, 0, 0, 0], sizes = [1, 3, 2, 256], strides = [1, 1, 1, 1]} : vector<3x3x2x256xf32> to vector<1x3x2x256xf32>
    %211 = vector.extract_strided_slice %208 {offsets = [1, 0, 0, 0], sizes = [1, 3, 2, 256], strides = [1, 1, 1, 1]} : vector<3x3x2x256xf32> to vector<1x3x2x256xf32>
    %212 = arith.subf %210, %211 : vector<1x3x2x256xf32>
    %213 = arith.mulf %209, %212 : vector<1x3x2x256xf32>
    %214 = vector.shape_cast %213 : vector<1x3x2x256xf32> to vector<1x1x3x2x256xf32>
    %cst_109 = arith.constant dense<0.000000e+00> : vector<1xf32>
    %215 = vector.multi_reduction <add>, %214, %cst_109 [1, 2, 3, 4] : vector<1x1x3x2x256xf32> to vector<1xf32>
    %216 = vector.shape_cast %215 : vector<1xf32> to vector<1x1x1x1x1xf32>
    %217 = vector.extract %216[0, 0, 0, 0, 0] : f32 from vector<1x1x1x1x1xf32>
    %cst_110 = arith.constant 4.000000e+00 : f32
    %218 = arith.divf %217, %cst_110 : f32
    %219 = vector.extract_strided_slice %6 {offsets = [0, 0, 0, 0], sizes = [3, 3, 2, 16], strides = [1, 1, 1, 1]} : vector<3x3x2x32xf32> to vector<3x3x2x16xf32>
    %220 = vector.extract_strided_slice %6 {offsets = [0, 0, 0, 16], sizes = [3, 3, 2, 16], strides = [1, 1, 1, 1]} : vector<3x3x2x32xf32> to vector<3x3x2x16xf32>
    %cst_111 = arith.constant 1.000000e+00 : f32
    %221 = vector.broadcast %cst_111 : f32 to vector<3x3x2x16xf32>
    %222 = arith.addf %221, %220 : vector<3x3x2x16xf32>
    %223 = arith.mulf %219, %219 : vector<3x3x2x16xf32>
    %224 = arith.subf %222, %223 : vector<3x3x2x16xf32>
    %225 = math.exp %220 : vector<3x3x2x16xf32>
    %226 = arith.subf %224, %225 : vector<3x3x2x16xf32>
    %227 = vector.shape_cast %226 : vector<3x3x2x16xf32> to vector<1x3x3x2x16xf32>
    %cst_112 = arith.constant dense<0.000000e+00> : vector<1xf32>
    %228 = vector.multi_reduction <add>, %227, %cst_112 [1, 2, 3, 4] : vector<1x3x3x2x16xf32> to vector<1xf32>
    %229 = vector.shape_cast %228 : vector<1xf32> to vector<1x1x1x1x1xf32>
    %230 = vector.extract %229[0, 0, 0, 0, 0] : f32 from vector<1x1x1x1x1xf32>
    %cst_113 = arith.constant -5.000000e-01 : f32
    %231 = arith.mulf %cst_113, %230 : f32
    %cst_114 = arith.constant 6.000000e+00 : f32
    %232 = arith.divf %231, %cst_114 : f32
    %cst_115 = arith.constant 1.000000e+00 : f32
    %233 = vector.broadcast %cst_115 : f32 to vector<1x1xf32>
    %234 = vector.broadcast %122 : f32 to vector<1x1xf32>
    %235 = arith.mulf %233, %234 : vector<1x1xf32>
    %c0_116 = arith.constant 0 : index
    %c0_117 = arith.constant 0 : index
    %236 = vector.load %arg13[%c0_116, %c0_117] : memref<1x1xf32, #tpu.memory_space<vmem>>, vector<1x1xf32>
    tpu.vector_store %arg13[%c0_116, %c0_117], %235 {strides = array<i32>} : memref<1x1xf32, #tpu.memory_space<vmem>>, vector<1x1xf32>,
    %237 = vector.broadcast %181 : f32 to vector<1x1xf32>
    %238 = arith.mulf %233, %237 : vector<1x1xf32>
    %c0_118 = arith.constant 0 : index
    %c0_119 = arith.constant 0 : index
    %239 = vector.load %arg14[%c0_118, %c0_119] : memref<1x1xf32, #tpu.memory_space<vmem>>, vector<1x1xf32>
    tpu.vector_store %arg14[%c0_118, %c0_119], %238 {strides = array<i32>} : memref<1x1xf32, #tpu.memory_space<vmem>>, vector<1x1xf32>,
    %240 = vector.broadcast %198 : f32 to vector<1x1xf32>
    %241 = arith.mulf %233, %240 : vector<1x1xf32>
    %c0_120 = arith.constant 0 : index
    %c0_121 = arith.constant 0 : index
    %242 = vector.load %arg15[%c0_120, %c0_121] : memref<1x1xf32, #tpu.memory_space<vmem>>, vector<1x1xf32>
    tpu.vector_store %arg15[%c0_120, %c0_121], %241 {strides = array<i32>} : memref<1x1xf32, #tpu.memory_space<vmem>>, vector<1x1xf32>,
    %243 = vector.broadcast %218 : f32 to vector<1x1xf32>
    %244 = arith.mulf %233, %243 : vector<1x1xf32>
    %c0_122 = arith.constant 0 : index
    %c0_123 = arith.constant 0 : index
    %245 = vector.load %arg16[%c0_122, %c0_123] : memref<1x1xf32, #tpu.memory_space<vmem>>, vector<1x1xf32>
    tpu.vector_store %arg16[%c0_122, %c0_123], %244 {strides = array<i32>} : memref<1x1xf32, #tpu.memory_space<vmem>>, vector<1x1xf32>,
    %246 = vector.broadcast %232 : f32 to vector<1x1xf32>
    %247 = arith.mulf %233, %246 : vector<1x1xf32>
    %c0_124 = arith.constant 0 : index
    %c0_125 = arith.constant 0 : index
    %248 = vector.load %arg17[%c0_124, %c0_125] : memref<1x1xf32, #tpu.memory_space<vmem>>, vector<1x1xf32>
    tpu.vector_store %arg17[%c0_124, %c0_125], %247 {strides = array<i32>} : memref<1x1xf32, #tpu.memory_space<vmem>>, vector<1x1xf32>,
    return
  }
}

module attributes {stable_mosaic.version = 11 : i64} {
  func.func @kernel(%arg0: i32, %arg1: memref<4x2x768xf32, #tpu.memory_space<vmem>>, %arg2: memref<3x3x2x16xf32, #tpu.memory_space<vmem>>, %arg3: memref<5xf32, #tpu.memory_space<smem>>, %arg4: memref<1xf32, #tpu.memory_space<smem>>, %arg5: memref<1024x32xbf16, #tpu.memory_space<vmem>>, %arg6: memref<1x32xf32, #tpu.memory_space<vmem>>, %arg7: memref<32x96xbf16, #tpu.memory_space<vmem>>, %arg8: memref<32x96xbf16, #tpu.memory_space<vmem>>, %arg9: memref<1x96xf32, #tpu.memory_space<vmem>>, %arg10: memref<1x96xf32, #tpu.memory_space<vmem>>, %arg11: memref<32x32xbf16, #tpu.memory_space<vmem>>, %arg12: memref<1x32xf32, #tpu.memory_space<vmem>>, %arg13: memref<16x16xbf16, #tpu.memory_space<vmem>>, %arg14: memref<1x16xf32, #tpu.memory_space<vmem>>, %arg15: memref<16x1024xbf16, #tpu.memory_space<vmem>>, %arg16: memref<1x1024xf32, #tpu.memory_space<vmem>>, %arg17: memref<1x3x2x256xf32, #tpu.memory_space<vmem>>, %arg18: memref<1x3x2x768xf32, #tpu.memory_space<vmem>>, %arg19: memref<1x3x2x256xf32, #tpu.memory_space<vmem>>, %arg20: memref<1x3x2x768xf32, #tpu.memory_space<vmem>>, %arg21: memref<1x3x2x256xf32, #tpu.memory_space<vmem>>, %arg22: memref<1x3x2x32xf32, #tpu.memory_space<vmem>>, %arg23: memref<3x2x256xf32, #tpu.memory_space<vmem>>, %arg24: memref<6x32xf32, #tpu.memory_space<vmem>>) attributes {dimension_semantics = [#tpu.dimension_semantics<arbitrary>], iteration_bounds = array<i64: 3>, scalar_prefetch = 0 : i64, scratch_operands = 2 : i64, tpu.core_type = #tpu.core_type<tc>, window_params = [{pipeline_mode = #tpu.pipeline_mode<synchronous>, transform_indices = @transform_0, window_bounds = array<i64: 4, 2, 768>}, {pipeline_mode = #tpu.pipeline_mode<synchronous>, transform_indices = @transform_1, window_bounds = array<i64: 3, 3, 2, 16>}, {transform_indices = @transform_2, window_bounds = array<i64: 5>}, {transform_indices = @transform_3, window_bounds = array<i64: 1>}, {pipeline_mode = #tpu.pipeline_mode<synchronous>, transform_indices = @transform_4, window_bounds = array<i64: 1024, 32>}, {pipeline_mode = #tpu.pipeline_mode<synchronous>, transform_indices = @transform_5, window_bounds = array<i64: 1, 32>}, {pipeline_mode = #tpu.pipeline_mode<synchronous>, transform_indices = @transform_6, window_bounds = array<i64: 32, 96>}, {pipeline_mode = #tpu.pipeline_mode<synchronous>, transform_indices = @transform_7, window_bounds = array<i64: 32, 96>}, {pipeline_mode = #tpu.pipeline_mode<synchronous>, transform_indices = @transform_8, window_bounds = array<i64: 1, 96>}, {pipeline_mode = #tpu.pipeline_mode<synchronous>, transform_indices = @transform_9, window_bounds = array<i64: 1, 96>}, {pipeline_mode = #tpu.pipeline_mode<synchronous>, transform_indices = @transform_10, window_bounds = array<i64: 32, 32>}, {pipeline_mode = #tpu.pipeline_mode<synchronous>, transform_indices = @transform_11, window_bounds = array<i64: 1, 32>}, {pipeline_mode = #tpu.pipeline_mode<synchronous>, transform_indices = @transform_12, window_bounds = array<i64: 16, 16>}, {pipeline_mode = #tpu.pipeline_mode<synchronous>, transform_indices = @transform_13, window_bounds = array<i64: 1, 16>}, {pipeline_mode = #tpu.pipeline_mode<synchronous>, transform_indices = @transform_14, window_bounds = array<i64: 16, 1024>}, {pipeline_mode = #tpu.pipeline_mode<synchronous>, transform_indices = @transform_15, window_bounds = array<i64: 1, 1024>}, {transform_indices = @transform_16, window_bounds = array<i64: 1, 3, 2, 256>}, {transform_indices = @transform_17, window_bounds = array<i64: 1, 3, 2, 768>}, {transform_indices = @transform_18, window_bounds = array<i64: 1, 3, 2, 256>}, {transform_indices = @transform_19, window_bounds = array<i64: 1, 3, 2, 768>}, {transform_indices = @transform_20, window_bounds = array<i64: 1, 3, 2, 256>}, {transform_indices = @transform_21, window_bounds = array<i64: 1, 3, 2, 32>}]} {
    %c0_i32 = arith.constant 0 : i32
    %0 = arith.cmpi eq, %arg0, %c0_i32 : i32
    %1 = arith.extui %0 : i1 to i32
    %c0_i32_0 = arith.constant 0 : i32
    %2 = arith.cmpi ne, %1, %c0_i32_0 : i32
    scf.if %2 {
      %cst_104 = arith.constant 0.000000e+00 : f32
      %227 = vector.broadcast %cst_104 : f32 to vector<3x2x256xf32>
      %c0_105 = arith.constant 0 : index
      %c0_106 = arith.constant 0 : index
      %c0_107 = arith.constant 0 : index
      %228 = vector.load %arg23[%c0_105, %c0_106, %c0_107] : memref<3x2x256xf32, #tpu.memory_space<vmem>>, vector<3x2x256xf32>
      tpu.vector_store %arg23[%c0_105, %c0_106, %c0_107], %227 {strides = array<i32>} : memref<3x2x256xf32, #tpu.memory_space<vmem>>, vector<3x2x256xf32>,
      %cst_108 = arith.constant 0.000000e+00 : f32
      %229 = vector.broadcast %cst_108 : f32 to vector<6x32xf32>
      %c0_109 = arith.constant 0 : index
      %c0_110 = arith.constant 0 : index
      %230 = vector.load %arg24[%c0_109, %c0_110] : memref<6x32xf32, #tpu.memory_space<vmem>>, vector<6x32xf32>
      tpu.vector_store %arg24[%c0_109, %c0_110], %229 {strides = array<i32>} : memref<6x32xf32, #tpu.memory_space<vmem>>, vector<6x32xf32>,
    } else {
    }
    %c0_i32_1 = arith.constant 0 : i32
    %3 = arith.cmpi sgt, %arg0, %c0_i32_1 : i32
    %4 = arith.extui %3 : i1 to i32
    %c0_i32_2 = arith.constant 0 : i32
    %5 = arith.cmpi ne, %4, %c0_i32_2 : i32
    scf.if %5 {
      %c0_104 = arith.constant 0 : index
      %c0_105 = arith.constant 0 : index
      %c0_106 = arith.constant 0 : index
      %227 = vector.load %arg23[%c0_104, %c0_105, %c0_106] : memref<3x2x256xf32, #tpu.memory_space<vmem>>, vector<3x2x256xf32>
      %cst_107 = arith.constant dense<0xFF800000> : vector<2x256xf32>
      %228 = vector.multi_reduction <maximumf>, %227, %cst_107 [0] : vector<3x2x256xf32> to vector<2x256xf32>
      %229 = vector.shape_cast %228 : vector<2x256xf32> to vector<1x2x256xf32>
      %230 = vector.broadcast %229 : vector<1x2x256xf32> to vector<3x2x256xf32>
      %231 = arith.subf %227, %230 : vector<3x2x256xf32>
      %232 = math.exp %231 : vector<3x2x256xf32>
      %cst_108 = arith.constant dense<0.000000e+00> : vector<2x256xf32>
      %233 = vector.multi_reduction <add>, %232, %cst_108 [0] : vector<3x2x256xf32> to vector<2x256xf32>
      %234 = vector.shape_cast %233 : vector<2x256xf32> to vector<1x2x256xf32>
      %235 = math.log %234 : vector<1x2x256xf32>
      %236 = vector.broadcast %235 : vector<1x2x256xf32> to vector<3x2x256xf32>
      %237 = arith.subf %231, %236 : vector<3x2x256xf32>
      %c0_109 = arith.constant 0 : index
      %c0_110 = arith.constant 0 : index
      %c0_111 = arith.constant 0 : index
      %238 = vector.load %arg23[%c0_109, %c0_110, %c0_111] : memref<3x2x256xf32, #tpu.memory_space<vmem>>, vector<3x2x256xf32>
      tpu.vector_store %arg23[%c0_109, %c0_110, %c0_111], %237 {strides = array<i32>} : memref<3x2x256xf32, #tpu.memory_space<vmem>>, vector<3x2x256xf32>,
    } else {
    }
    %6 = arith.index_cast %arg0 : i32 to index
    %c0 = arith.constant 0 : index
    %c0_3 = arith.constant 0 : index
    %7 = vector.load %arg1[%6, %c0, %c0_3] : memref<4x2x768xf32, #tpu.memory_space<vmem>>, vector<1x2x768xf32>
    %8 = vector.shape_cast %7 : vector<1x2x768xf32> to vector<2x768xf32>
    %c0_4 = arith.constant 0 : index
    %c0_5 = arith.constant 0 : index
    %c0_6 = arith.constant 0 : index
    %9 = vector.load %arg23[%c0_4, %c0_5, %c0_6] : memref<3x2x256xf32, #tpu.memory_space<vmem>>, vector<3x2x256xf32>
    %cst = arith.constant 0.000000e+00 : f32
    %10 = vector.broadcast %cst : f32 to vector<2x256xf32>
    %c0_7 = arith.constant 0 : index
    %11 = memref.load %arg4[%c0_7] : memref<1xf32, #tpu.memory_space<smem>>
    %c3 = arith.constant 3 : index
    %12 = memref.load %arg3[%c3] : memref<5xf32, #tpu.memory_space<smem>>
    %13 = vector.broadcast %12 : f32 to vector<2x256xf32>
    %14 = arith.mulf %13, %10 : vector<2x256xf32>
    %15 = vector.broadcast %11 : f32 to vector<2x256xf32>
    %16 = arith.addf %15, %14 : vector<2x256xf32>
    %c4 = arith.constant 4 : index
    %17 = memref.load %arg3[%c4] : memref<5xf32, #tpu.memory_space<smem>>
    %18 = vector.extract_strided_slice %9 {offsets = [0, 0, 0], sizes = [1, 2, 256], strides = [1, 1, 1]} : vector<3x2x256xf32> to vector<1x2x256xf32>
    %19 = vector.shape_cast %18 : vector<1x2x256xf32> to vector<2x256xf32>
    %20 = vector.broadcast %17 : f32 to vector<2x256xf32>
    %21 = arith.mulf %20, %19 : vector<2x256xf32>
    %22 = arith.addf %16, %21 : vector<2x256xf32>
    %c0_8 = arith.constant 0 : index
    %23 = memref.load %arg3[%c0_8] : memref<5xf32, #tpu.memory_space<smem>>
    %24 = vector.extract_strided_slice %8 {offsets = [0, 0], sizes = [2, 256], strides = [1, 1]} : vector<2x768xf32> to vector<2x256xf32>
    %25 = vector.broadcast %23 : f32 to vector<2x256xf32>
    %26 = arith.mulf %25, %24 : vector<2x256xf32>
    %27 = arith.addf %22, %26 : vector<2x256xf32>
    %c1 = arith.constant 1 : index
    %28 = memref.load %arg3[%c1] : memref<5xf32, #tpu.memory_space<smem>>
    %29 = vector.extract_strided_slice %8 {offsets = [0, 256], sizes = [2, 256], strides = [1, 1]} : vector<2x768xf32> to vector<2x256xf32>
    %30 = vector.broadcast %28 : f32 to vector<2x256xf32>
    %31 = arith.mulf %30, %29 : vector<2x256xf32>
    %32 = arith.addf %27, %31 : vector<2x256xf32>
    %c2 = arith.constant 2 : index
    %33 = memref.load %arg3[%c2] : memref<5xf32, #tpu.memory_space<smem>>
    %34 = vector.extract_strided_slice %8 {offsets = [0, 512], sizes = [2, 256], strides = [1, 1]} : vector<2x768xf32> to vector<2x256xf32>
    %35 = vector.broadcast %33 : f32 to vector<2x256xf32>
    %36 = arith.mulf %35, %34 : vector<2x256xf32>
    %37 = arith.addf %32, %36 : vector<2x256xf32>
    %cst_9 = arith.constant 0.000000e+00 : f32
    %38 = vector.broadcast %cst_9 : f32 to vector<2x256xf32>
    %39 = arith.minimumf %37, %38 : vector<2x256xf32>
    %40 = math.absf %37 : vector<2x256xf32>
    %cst_10 = arith.constant 0.000000e+00 : f32
    %41 = vector.broadcast %cst_10 : f32 to vector<2x256xf32>
    %42 = arith.subf %41, %40 : vector<2x256xf32>
    %43 = math.exp %42 : vector<2x256xf32>
    %44 = math.log1p %43 : vector<2x256xf32>
    %45 = arith.subf %39, %44 : vector<2x256xf32>
    %46 = arith.addf %10, %45 : vector<2x256xf32>
    %cst_11 = arith.constant 0.000000e+00 : f32
    %47 = vector.broadcast %cst_11 : f32 to vector<2x256xf32>
    %48 = arith.subf %47, %37 : vector<2x256xf32>
    %cst_12 = arith.constant 0.000000e+00 : f32
    %49 = vector.broadcast %cst_12 : f32 to vector<2x256xf32>
    %50 = arith.minimumf %48, %49 : vector<2x256xf32>
    %51 = math.absf %48 : vector<2x256xf32>
    %cst_13 = arith.constant 0.000000e+00 : f32
    %52 = vector.broadcast %cst_13 : f32 to vector<2x256xf32>
    %53 = arith.subf %52, %51 : vector<2x256xf32>
    %54 = math.exp %53 : vector<2x256xf32>
    %55 = math.log1p %54 : vector<2x256xf32>
    %56 = arith.subf %50, %55 : vector<2x256xf32>
    %57 = arith.addf %10, %56 : vector<2x256xf32>
    %c0_14 = arith.constant 0 : index
    %c0_15 = arith.constant 0 : index
    %c0_16 = arith.constant 0 : index
    %c0_17 = arith.constant 0 : index
    %58 = vector.load %arg17[%c0_14, %c0_15, %c0_16, %c0_17] : memref<1x3x2x256xf32, #tpu.memory_space<vmem>>, vector<1x1x2x256xf32>
    %59 = vector.shape_cast %58 : vector<1x1x2x256xf32> to vector<2x256xf32>
    %60 = vector.shape_cast %46 : vector<2x256xf32> to vector<1x1x2x256xf32>
    tpu.vector_store %arg17[%c0_14, %c0_15, %c0_16, %c0_17], %60 {strides = array<i32>} : memref<1x3x2x256xf32, #tpu.memory_space<vmem>>, vector<1x1x2x256xf32>,
    %c0_18 = arith.constant 0 : index
    %61 = memref.load %arg4[%c0_18] : memref<1xf32, #tpu.memory_space<smem>>
    %c3_19 = arith.constant 3 : index
    %62 = memref.load %arg3[%c3_19] : memref<5xf32, #tpu.memory_space<smem>>
    %63 = vector.broadcast %62 : f32 to vector<2x256xf32>
    %64 = arith.mulf %63, %57 : vector<2x256xf32>
    %65 = vector.broadcast %61 : f32 to vector<2x256xf32>
    %66 = arith.addf %65, %64 : vector<2x256xf32>
    %c4_20 = arith.constant 4 : index
    %67 = memref.load %arg3[%c4_20] : memref<5xf32, #tpu.memory_space<smem>>
    %68 = vector.extract_strided_slice %9 {offsets = [1, 0, 0], sizes = [1, 2, 256], strides = [1, 1, 1]} : vector<3x2x256xf32> to vector<1x2x256xf32>
    %69 = vector.shape_cast %68 : vector<1x2x256xf32> to vector<2x256xf32>
    %70 = vector.broadcast %67 : f32 to vector<2x256xf32>
    %71 = arith.mulf %70, %69 : vector<2x256xf32>
    %72 = arith.addf %66, %71 : vector<2x256xf32>
    %c0_21 = arith.constant 0 : index
    %73 = memref.load %arg3[%c0_21] : memref<5xf32, #tpu.memory_space<smem>>
    %74 = vector.extract_strided_slice %8 {offsets = [0, 0], sizes = [2, 256], strides = [1, 1]} : vector<2x768xf32> to vector<2x256xf32>
    %75 = vector.broadcast %73 : f32 to vector<2x256xf32>
    %76 = arith.mulf %75, %74 : vector<2x256xf32>
    %77 = arith.addf %72, %76 : vector<2x256xf32>
    %c1_22 = arith.constant 1 : index
    %78 = memref.load %arg3[%c1_22] : memref<5xf32, #tpu.memory_space<smem>>
    %79 = vector.extract_strided_slice %8 {offsets = [0, 256], sizes = [2, 256], strides = [1, 1]} : vector<2x768xf32> to vector<2x256xf32>
    %80 = vector.broadcast %78 : f32 to vector<2x256xf32>
    %81 = arith.mulf %80, %79 : vector<2x256xf32>
    %82 = arith.addf %77, %81 : vector<2x256xf32>
    %c2_23 = arith.constant 2 : index
    %83 = memref.load %arg3[%c2_23] : memref<5xf32, #tpu.memory_space<smem>>
    %84 = vector.extract_strided_slice %8 {offsets = [0, 512], sizes = [2, 256], strides = [1, 1]} : vector<2x768xf32> to vector<2x256xf32>
    %85 = vector.broadcast %83 : f32 to vector<2x256xf32>
    %86 = arith.mulf %85, %84 : vector<2x256xf32>
    %87 = arith.addf %82, %86 : vector<2x256xf32>
    %cst_24 = arith.constant 0.000000e+00 : f32
    %88 = vector.broadcast %cst_24 : f32 to vector<2x256xf32>
    %89 = arith.minimumf %87, %88 : vector<2x256xf32>
    %90 = math.absf %87 : vector<2x256xf32>
    %cst_25 = arith.constant 0.000000e+00 : f32
    %91 = vector.broadcast %cst_25 : f32 to vector<2x256xf32>
    %92 = arith.subf %91, %90 : vector<2x256xf32>
    %93 = math.exp %92 : vector<2x256xf32>
    %94 = math.log1p %93 : vector<2x256xf32>
    %95 = arith.subf %89, %94 : vector<2x256xf32>
    %96 = arith.addf %57, %95 : vector<2x256xf32>
    %cst_26 = arith.constant 0.000000e+00 : f32
    %97 = vector.broadcast %cst_26 : f32 to vector<2x256xf32>
    %98 = arith.subf %97, %87 : vector<2x256xf32>
    %cst_27 = arith.constant 0.000000e+00 : f32
    %99 = vector.broadcast %cst_27 : f32 to vector<2x256xf32>
    %100 = arith.minimumf %98, %99 : vector<2x256xf32>
    %101 = math.absf %98 : vector<2x256xf32>
    %cst_28 = arith.constant 0.000000e+00 : f32
    %102 = vector.broadcast %cst_28 : f32 to vector<2x256xf32>
    %103 = arith.subf %102, %101 : vector<2x256xf32>
    %104 = math.exp %103 : vector<2x256xf32>
    %105 = math.log1p %104 : vector<2x256xf32>
    %106 = arith.subf %100, %105 : vector<2x256xf32>
    %107 = arith.addf %57, %106 : vector<2x256xf32>
    %c0_29 = arith.constant 0 : index
    %c1_30 = arith.constant 1 : index
    %c0_31 = arith.constant 0 : index
    %c0_32 = arith.constant 0 : index
    %108 = vector.load %arg17[%c0_29, %c1_30, %c0_31, %c0_32] : memref<1x3x2x256xf32, #tpu.memory_space<vmem>>, vector<1x1x2x256xf32>
    %109 = vector.shape_cast %108 : vector<1x1x2x256xf32> to vector<2x256xf32>
    %110 = vector.shape_cast %96 : vector<2x256xf32> to vector<1x1x2x256xf32>
    tpu.vector_store %arg17[%c0_29, %c1_30, %c0_31, %c0_32], %110 {strides = array<i32>} : memref<1x3x2x256xf32, #tpu.memory_space<vmem>>, vector<1x1x2x256xf32>,
    %c0_33 = arith.constant 0 : index
    %c2_34 = arith.constant 2 : index
    %c0_35 = arith.constant 0 : index
    %c0_36 = arith.constant 0 : index
    %111 = vector.load %arg17[%c0_33, %c2_34, %c0_35, %c0_36] : memref<1x3x2x256xf32, #tpu.memory_space<vmem>>, vector<1x1x2x256xf32>
    %112 = vector.shape_cast %111 : vector<1x1x2x256xf32> to vector<2x256xf32>
    %113 = vector.shape_cast %107 : vector<2x256xf32> to vector<1x1x2x256xf32>
    tpu.vector_store %arg17[%c0_33, %c2_34, %c0_35, %c0_36], %113 {strides = array<i32>} : memref<1x3x2x256xf32, #tpu.memory_space<vmem>>, vector<1x1x2x256xf32>,
    %114 = tpu.concatenate %46, %96, %107 in 0 : vector<2x256xf32>, vector<2x256xf32>, vector<2x256xf32> -> vector<6x256xf32>
    %115 = tpu.concatenate %8, %8, %8 in 0 : vector<2x768xf32>, vector<2x768xf32>, vector<2x768xf32> -> vector<6x768xf32>
    %116 = tpu.concatenate %115, %114 in 1 : vector<6x768xf32>, vector<6x256xf32> -> vector<6x1024xf32>
    %117 = arith.truncf %116 : vector<6x1024xf32> to vector<6x1024xbf16>
    %c0_37 = arith.constant 0 : index
    %c0_38 = arith.constant 0 : index
    %118 = vector.load %arg5[%c0_37, %c0_38] : memref<1024x32xbf16, #tpu.memory_space<vmem>>, vector<1024x32xbf16>
    %cst_39 = arith.constant dense<0.000000e+00> : vector<6x32xf32>
    %119 = tpu.matmul %117, %118, %cst_39 {dimension_numbers = #tpu.dot_dimension_numbers<[1], [0], [0], [1], [0, 0, 1, 1], [], []>} : vector<6x1024xbf16>, vector<1024x32xbf16>, vector<6x32xf32> -> vector<6x32xf32>
    %c0_40 = arith.constant 0 : index
    %c0_41 = arith.constant 0 : index
    %120 = vector.load %arg6[%c0_40, %c0_41] : memref<1x32xf32, #tpu.memory_space<vmem>>, vector<1x32xf32>
    %121 = vector.broadcast %120 : vector<1x32xf32> to vector<6x32xf32>
    %122 = arith.addf %119, %121 : vector<6x32xf32>
    %cst_42 = arith.constant 2.000000e-01 : f32
    %123 = vector.broadcast %cst_42 : f32 to vector<6x32xf32>
    %124 = arith.mulf %122, %123 : vector<6x32xf32>
    %c0_43 = arith.constant 0 : index
    %c0_44 = arith.constant 0 : index
    %125 = vector.load %arg24[%c0_43, %c0_44] : memref<6x32xf32, #tpu.memory_space<vmem>>, vector<6x32xf32>
    %126 = arith.truncf %124 : vector<6x32xf32> to vector<6x32xbf16>
    %c0_45 = arith.constant 0 : index
    %c0_46 = arith.constant 0 : index
    %127 = vector.load %arg7[%c0_45, %c0_46] : memref<32x96xbf16, #tpu.memory_space<vmem>>, vector<32x96xbf16>
    %cst_47 = arith.constant dense<0.000000e+00> : vector<6x96xf32>
    %128 = tpu.matmul %126, %127, %cst_47 {dimension_numbers = #tpu.dot_dimension_numbers<[1], [0], [0], [1], [0, 0, 1, 1], [], []>} : vector<6x32xbf16>, vector<32x96xbf16>, vector<6x96xf32> -> vector<6x96xf32>
    %c0_48 = arith.constant 0 : index
    %c0_49 = arith.constant 0 : index
    %129 = vector.load %arg9[%c0_48, %c0_49] : memref<1x96xf32, #tpu.memory_space<vmem>>, vector<1x96xf32>
    %130 = vector.broadcast %129 : vector<1x96xf32> to vector<6x96xf32>
    %131 = arith.addf %128, %130 : vector<6x96xf32>
    %132 = arith.truncf %125 : vector<6x32xf32> to vector<6x32xbf16>
    %c0_50 = arith.constant 0 : index
    %c0_51 = arith.constant 0 : index
    %133 = vector.load %arg8[%c0_50, %c0_51] : memref<32x96xbf16, #tpu.memory_space<vmem>>, vector<32x96xbf16>
    %cst_52 = arith.constant dense<0.000000e+00> : vector<6x96xf32>
    %134 = tpu.matmul %132, %133, %cst_52 {dimension_numbers = #tpu.dot_dimension_numbers<[1], [0], [0], [1], [0, 0, 1, 1], [], []>} : vector<6x32xbf16>, vector<32x96xbf16>, vector<6x96xf32> -> vector<6x96xf32>
    %c0_53 = arith.constant 0 : index
    %c0_54 = arith.constant 0 : index
    %135 = vector.load %arg10[%c0_53, %c0_54] : memref<1x96xf32, #tpu.memory_space<vmem>>, vector<1x96xf32>
    %136 = vector.broadcast %135 : vector<1x96xf32> to vector<6x96xf32>
    %137 = arith.addf %134, %136 : vector<6x96xf32>
    %138 = vector.extract_strided_slice %131 {offsets = [0, 0], sizes = [6, 32], strides = [1, 1]} : vector<6x96xf32> to vector<6x32xf32>
    %139 = vector.extract_strided_slice %137 {offsets = [0, 0], sizes = [6, 32], strides = [1, 1]} : vector<6x96xf32> to vector<6x32xf32>
    %140 = arith.addf %138, %139 : vector<6x32xf32>
    %141 = arith.negf %140 : vector<6x32xf32>
    %142 = math.exp %141 : vector<6x32xf32>
    %cst_55 = arith.constant 1.000000e+00 : f32
    %143 = vector.broadcast %cst_55 : f32 to vector<6x32xf32>
    %144 = arith.addf %143, %142 : vector<6x32xf32>
    %145 = arith.divf %143, %144 : vector<6x32xf32>
    %146 = vector.extract_strided_slice %131 {offsets = [0, 32], sizes = [6, 32], strides = [1, 1]} : vector<6x96xf32> to vector<6x32xf32>
    %147 = vector.extract_strided_slice %137 {offsets = [0, 32], sizes = [6, 32], strides = [1, 1]} : vector<6x96xf32> to vector<6x32xf32>
    %148 = arith.addf %146, %147 : vector<6x32xf32>
    %149 = arith.negf %148 : vector<6x32xf32>
    %150 = math.exp %149 : vector<6x32xf32>
    %cst_56 = arith.constant 1.000000e+00 : f32
    %151 = vector.broadcast %cst_56 : f32 to vector<6x32xf32>
    %152 = arith.addf %151, %150 : vector<6x32xf32>
    %153 = arith.divf %151, %152 : vector<6x32xf32>
    %154 = vector.extract_strided_slice %131 {offsets = [0, 64], sizes = [6, 32], strides = [1, 1]} : vector<6x96xf32> to vector<6x32xf32>
    %155 = vector.extract_strided_slice %137 {offsets = [0, 64], sizes = [6, 32], strides = [1, 1]} : vector<6x96xf32> to vector<6x32xf32>
    %156 = arith.mulf %145, %155 : vector<6x32xf32>
    %157 = arith.addf %154, %156 : vector<6x32xf32>
    %158 = math.tanh %157 : vector<6x32xf32>
    %cst_57 = arith.constant 1.000000e+00 : f32
    %159 = vector.broadcast %cst_57 : f32 to vector<6x32xf32>
    %160 = arith.subf %159, %153 : vector<6x32xf32>
    %161 = arith.mulf %160, %158 : vector<6x32xf32>
    %162 = arith.mulf %153, %125 : vector<6x32xf32>
    %163 = arith.addf %161, %162 : vector<6x32xf32>
    %c0_58 = arith.constant 0 : index
    %c0_59 = arith.constant 0 : index
    %164 = vector.load %arg24[%c0_58, %c0_59] : memref<6x32xf32, #tpu.memory_space<vmem>>, vector<6x32xf32>
    tpu.vector_store %arg24[%c0_58, %c0_59], %163 {strides = array<i32>} : memref<6x32xf32, #tpu.memory_space<vmem>>, vector<6x32xf32>,
    %cst_60 = arith.constant 5.000000e+00 : f32
    %165 = vector.broadcast %cst_60 : f32 to vector<6x32xf32>
    %166 = arith.mulf %163, %165 : vector<6x32xf32>
    %167 = arith.truncf %166 : vector<6x32xf32> to vector<6x32xbf16>
    %c0_61 = arith.constant 0 : index
    %c0_62 = arith.constant 0 : index
    %168 = vector.load %arg11[%c0_61, %c0_62] : memref<32x32xbf16, #tpu.memory_space<vmem>>, vector<32x32xbf16>
    %cst_63 = arith.constant dense<0.000000e+00> : vector<6x32xf32>
    %169 = tpu.matmul %167, %168, %cst_63 {dimension_numbers = #tpu.dot_dimension_numbers<[1], [0], [0], [1], [0, 0, 1, 1], [], []>} : vector<6x32xbf16>, vector<32x32xbf16>, vector<6x32xf32> -> vector<6x32xf32>
    %c0_64 = arith.constant 0 : index
    %c0_65 = arith.constant 0 : index
    %170 = vector.load %arg12[%c0_64, %c0_65] : memref<1x32xf32, #tpu.memory_space<vmem>>, vector<1x32xf32>
    %171 = vector.broadcast %170 : vector<1x32xf32> to vector<6x32xf32>
    %172 = arith.addf %169, %171 : vector<6x32xf32>
    %173 = vector.shape_cast %172 : vector<6x32xf32> to vector<3x2x32xf32>
    %c0_66 = arith.constant 0 : index
    %c0_67 = arith.constant 0 : index
    %c0_68 = arith.constant 0 : index
    %c0_69 = arith.constant 0 : index
    %174 = vector.load %arg22[%c0_66, %c0_67, %c0_68, %c0_69] : memref<1x3x2x32xf32, #tpu.memory_space<vmem>>, vector<1x3x2x32xf32>
    %175 = vector.shape_cast %174 : vector<1x3x2x32xf32> to vector<3x2x32xf32>
    %176 = vector.shape_cast %173 : vector<3x2x32xf32> to vector<1x3x2x32xf32>
    tpu.vector_store %arg22[%c0_66, %c0_67, %c0_68, %c0_69], %176 {strides = array<i32>} : memref<1x3x2x32xf32, #tpu.memory_space<vmem>>, vector<1x3x2x32xf32>,
    %177 = vector.extract_strided_slice %172 {offsets = [0, 0], sizes = [6, 16], strides = [1, 1]} : vector<6x32xf32> to vector<6x16xf32>
    %178 = vector.extract_strided_slice %172 {offsets = [0, 16], sizes = [6, 16], strides = [1, 1]} : vector<6x32xf32> to vector<6x16xf32>
    %cst_70 = arith.constant 5.000000e-01 : f32
    %179 = vector.broadcast %cst_70 : f32 to vector<6x16xf32>
    %180 = arith.mulf %179, %178 : vector<6x16xf32>
    %181 = math.exp %180 : vector<6x16xf32>
    %182 = arith.index_cast %arg0 : i32 to index
    %c0_71 = arith.constant 0 : index
    %c0_72 = arith.constant 0 : index
    %c0_73 = arith.constant 0 : index
    %183 = vector.load %arg2[%182, %c0_71, %c0_72, %c0_73] : memref<3x3x2x16xf32, #tpu.memory_space<vmem>>, vector<1x3x2x16xf32>
    %184 = vector.shape_cast %183 : vector<1x3x2x16xf32> to vector<3x2x16xf32>
    %185 = vector.shape_cast %184 : vector<3x2x16xf32> to vector<6x16xf32>
    %186 = arith.mulf %185, %181 : vector<6x16xf32>
    %187 = arith.addf %177, %186 : vector<6x16xf32>
    %188 = arith.truncf %187 : vector<6x16xf32> to vector<6x16xbf16>
    %c0_74 = arith.constant 0 : index
    %c0_75 = arith.constant 0 : index
    %189 = vector.load %arg13[%c0_74, %c0_75] : memref<16x16xbf16, #tpu.memory_space<vmem>>, vector<16x16xbf16>
    %cst_76 = arith.constant dense<0.000000e+00> : vector<6x16xf32>
    %190 = tpu.matmul %188, %189, %cst_76 {dimension_numbers = #tpu.dot_dimension_numbers<[1], [0], [0], [1], [0, 0, 1, 1], [], []>} : vector<6x16xbf16>, vector<16x16xbf16>, vector<6x16xf32> -> vector<6x16xf32>
    %c0_77 = arith.constant 0 : index
    %c0_78 = arith.constant 0 : index
    %191 = vector.load %arg14[%c0_77, %c0_78] : memref<1x16xf32, #tpu.memory_space<vmem>>, vector<1x16xf32>
    %192 = vector.broadcast %191 : vector<1x16xf32> to vector<6x16xf32>
    %193 = arith.addf %190, %192 : vector<6x16xf32>
    %cst_79 = arith.constant 0.000000e+00 : f32
    %194 = vector.broadcast %cst_79 : f32 to vector<2x16xf32>
    %195 = tpu.concatenate %187, %194 in 0 : vector<6x16xf32>, vector<2x16xf32> -> vector<8x16xf32>
    %196 = tpu.concatenate %193, %194 in 0 : vector<6x16xf32>, vector<2x16xf32> -> vector<8x16xf32>
    %197 = tpu.concatenate %195, %196 in 0 : vector<8x16xf32>, vector<8x16xf32> -> vector<16x16xf32>
    %198 = arith.truncf %197 : vector<16x16xf32> to vector<16x16xbf16>
    %c0_80 = arith.constant 0 : index
    %c0_81 = arith.constant 0 : index
    %199 = vector.load %arg15[%c0_80, %c0_81] : memref<16x1024xbf16, #tpu.memory_space<vmem>>, vector<16x1024xbf16>
    %cst_82 = arith.constant dense<0.000000e+00> : vector<16x1024xf32>
    %200 = tpu.matmul %198, %199, %cst_82 {dimension_numbers = #tpu.dot_dimension_numbers<[1], [0], [0], [1], [0, 0, 1, 1], [], []>} : vector<16x16xbf16>, vector<16x1024xbf16>, vector<16x1024xf32> -> vector<16x1024xf32>
    %c0_83 = arith.constant 0 : index
    %c0_84 = arith.constant 0 : index
    %201 = vector.load %arg16[%c0_83, %c0_84] : memref<1x1024xf32, #tpu.memory_space<vmem>>, vector<1x1024xf32>
    %202 = vector.broadcast %201 : vector<1x1024xf32> to vector<16x1024xf32>
    %203 = arith.addf %200, %202 : vector<16x1024xf32>
    %204 = vector.extract_strided_slice %203 {offsets = [0, 0], sizes = [6, 1024], strides = [1, 1]} : vector<16x1024xf32> to vector<6x1024xf32>
    %205 = vector.extract_strided_slice %203 {offsets = [8, 0], sizes = [6, 1024], strides = [1, 1]} : vector<16x1024xf32> to vector<6x1024xf32>
    %206 = vector.extract_strided_slice %204 {offsets = [0, 0], sizes = [6, 768], strides = [1, 1]} : vector<6x1024xf32> to vector<6x768xf32>
    %207 = vector.shape_cast %206 : vector<6x768xf32> to vector<3x2x768xf32>
    %c0_85 = arith.constant 0 : index
    %c0_86 = arith.constant 0 : index
    %c0_87 = arith.constant 0 : index
    %c0_88 = arith.constant 0 : index
    %208 = vector.load %arg18[%c0_85, %c0_86, %c0_87, %c0_88] : memref<1x3x2x768xf32, #tpu.memory_space<vmem>>, vector<1x3x2x768xf32>
    %209 = vector.shape_cast %208 : vector<1x3x2x768xf32> to vector<3x2x768xf32>
    %210 = vector.shape_cast %207 : vector<3x2x768xf32> to vector<1x3x2x768xf32>
    tpu.vector_store %arg18[%c0_85, %c0_86, %c0_87, %c0_88], %210 {strides = array<i32>} : memref<1x3x2x768xf32, #tpu.memory_space<vmem>>, vector<1x3x2x768xf32>,
    %211 = vector.extract_strided_slice %204 {offsets = [0, 768], sizes = [6, 256], strides = [1, 1]} : vector<6x1024xf32> to vector<6x256xf32>
    %212 = vector.shape_cast %211 : vector<6x256xf32> to vector<3x2x256xf32>
    %c0_89 = arith.constant 0 : index
    %c0_90 = arith.constant 0 : index
    %c0_91 = arith.constant 0 : index
    %c0_92 = arith.constant 0 : index
    %213 = vector.load %arg19[%c0_89, %c0_90, %c0_91, %c0_92] : memref<1x3x2x256xf32, #tpu.memory_space<vmem>>, vector<1x3x2x256xf32>
    %214 = vector.shape_cast %213 : vector<1x3x2x256xf32> to vector<3x2x256xf32>
    %215 = vector.shape_cast %212 : vector<3x2x256xf32> to vector<1x3x2x256xf32>
    tpu.vector_store %arg19[%c0_89, %c0_90, %c0_91, %c0_92], %215 {strides = array<i32>} : memref<1x3x2x256xf32, #tpu.memory_space<vmem>>, vector<1x3x2x256xf32>,
    %216 = vector.extract_strided_slice %205 {offsets = [0, 0], sizes = [6, 768], strides = [1, 1]} : vector<6x1024xf32> to vector<6x768xf32>
    %217 = vector.shape_cast %216 : vector<6x768xf32> to vector<3x2x768xf32>
    %c0_93 = arith.constant 0 : index
    %c0_94 = arith.constant 0 : index
    %c0_95 = arith.constant 0 : index
    %c0_96 = arith.constant 0 : index
    %218 = vector.load %arg20[%c0_93, %c0_94, %c0_95, %c0_96] : memref<1x3x2x768xf32, #tpu.memory_space<vmem>>, vector<1x3x2x768xf32>
    %219 = vector.shape_cast %218 : vector<1x3x2x768xf32> to vector<3x2x768xf32>
    %220 = vector.shape_cast %217 : vector<3x2x768xf32> to vector<1x3x2x768xf32>
    tpu.vector_store %arg20[%c0_93, %c0_94, %c0_95, %c0_96], %220 {strides = array<i32>} : memref<1x3x2x768xf32, #tpu.memory_space<vmem>>, vector<1x3x2x768xf32>,
    %221 = vector.extract_strided_slice %205 {offsets = [0, 768], sizes = [6, 256], strides = [1, 1]} : vector<6x1024xf32> to vector<6x256xf32>
    %222 = vector.shape_cast %221 : vector<6x256xf32> to vector<3x2x256xf32>
    %c0_97 = arith.constant 0 : index
    %c0_98 = arith.constant 0 : index
    %c0_99 = arith.constant 0 : index
    %c0_100 = arith.constant 0 : index
    %223 = vector.load %arg21[%c0_97, %c0_98, %c0_99, %c0_100] : memref<1x3x2x256xf32, #tpu.memory_space<vmem>>, vector<1x3x2x256xf32>
    %224 = vector.shape_cast %223 : vector<1x3x2x256xf32> to vector<3x2x256xf32>
    %225 = vector.shape_cast %222 : vector<3x2x256xf32> to vector<1x3x2x256xf32>
    tpu.vector_store %arg21[%c0_97, %c0_98, %c0_99, %c0_100], %225 {strides = array<i32>} : memref<1x3x2x256xf32, #tpu.memory_space<vmem>>, vector<1x3x2x256xf32>,
    %c0_101 = arith.constant 0 : index
    %c0_102 = arith.constant 0 : index
    %c0_103 = arith.constant 0 : index
    %226 = vector.load %arg23[%c0_101, %c0_102, %c0_103] : memref<3x2x256xf32, #tpu.memory_space<vmem>>, vector<3x2x256xf32>
    tpu.vector_store %arg23[%c0_101, %c0_102, %c0_103], %222 {strides = array<i32>} : memref<3x2x256xf32, #tpu.memory_space<vmem>>, vector<3x2x256xf32>,
    return
  }
  func.func @transform_0(%arg0: i32) -> (i32, i32, i32) {
    %c0_i32 = arith.constant 0 : i32
    %c0_i32_0 = arith.constant 0 : i32
    %c0_i32_1 = arith.constant 0 : i32
    %c0_i32_2 = arith.constant 0 : i32
    return %c0_i32, %c0_i32_0, %c0_i32_1 : i32, i32, i32
  }
  func.func @transform_1(%arg0: i32) -> (i32, i32, i32, i32) {
    %c0_i32 = arith.constant 0 : i32
    %c0_i32_0 = arith.constant 0 : i32
    %c0_i32_1 = arith.constant 0 : i32
    %c0_i32_2 = arith.constant 0 : i32
    %c0_i32_3 = arith.constant 0 : i32
    return %c0_i32, %c0_i32_0, %c0_i32_1, %c0_i32_2 : i32, i32, i32, i32
  }
  func.func @transform_2(%arg0: i32) -> i32 {
    %c0_i32 = arith.constant 0 : i32
    %c0_i32_0 = arith.constant 0 : i32
    return %c0_i32 : i32
  }
  func.func @transform_3(%arg0: i32) -> i32 {
    %c0_i32 = arith.constant 0 : i32
    %c0_i32_0 = arith.constant 0 : i32
    return %c0_i32 : i32
  }
  func.func @transform_4(%arg0: i32) -> (i32, i32) {
    %c0_i32 = arith.constant 0 : i32
    %c0_i32_0 = arith.constant 0 : i32
    %c0_i32_1 = arith.constant 0 : i32
    return %c0_i32, %c0_i32_0 : i32, i32
  }
  func.func @transform_5(%arg0: i32) -> (i32, i32) {
    %c0_i32 = arith.constant 0 : i32
    %c0_i32_0 = arith.constant 0 : i32
    %c0_i32_1 = arith.constant 0 : i32
    return %c0_i32, %c0_i32_0 : i32, i32
  }
  func.func @transform_6(%arg0: i32) -> (i32, i32) {
    %c0_i32 = arith.constant 0 : i32
    %c0_i32_0 = arith.constant 0 : i32
    %c0_i32_1 = arith.constant 0 : i32
    return %c0_i32, %c0_i32_0 : i32, i32
  }
  func.func @transform_7(%arg0: i32) -> (i32, i32) {
    %c0_i32 = arith.constant 0 : i32
    %c0_i32_0 = arith.constant 0 : i32
    %c0_i32_1 = arith.constant 0 : i32
    return %c0_i32, %c0_i32_0 : i32, i32
  }
  func.func @transform_8(%arg0: i32) -> (i32, i32) {
    %c0_i32 = arith.constant 0 : i32
    %c0_i32_0 = arith.constant 0 : i32
    %c0_i32_1 = arith.constant 0 : i32
    return %c0_i32, %c0_i32_0 : i32, i32
  }
  func.func @transform_9(%arg0: i32) -> (i32, i32) {
    %c0_i32 = arith.constant 0 : i32
    %c0_i32_0 = arith.constant 0 : i32
    %c0_i32_1 = arith.constant 0 : i32
    return %c0_i32, %c0_i32_0 : i32, i32
  }
  func.func @transform_10(%arg0: i32) -> (i32, i32) {
    %c0_i32 = arith.constant 0 : i32
    %c0_i32_0 = arith.constant 0 : i32
    %c0_i32_1 = arith.constant 0 : i32
    return %c0_i32, %c0_i32_0 : i32, i32
  }
  func.func @transform_11(%arg0: i32) -> (i32, i32) {
    %c0_i32 = arith.constant 0 : i32
    %c0_i32_0 = arith.constant 0 : i32
    %c0_i32_1 = arith.constant 0 : i32
    return %c0_i32, %c0_i32_0 : i32, i32
  }
  func.func @transform_12(%arg0: i32) -> (i32, i32) {
    %c0_i32 = arith.constant 0 : i32
    %c0_i32_0 = arith.constant 0 : i32
    %c0_i32_1 = arith.constant 0 : i32
    return %c0_i32, %c0_i32_0 : i32, i32
  }
  func.func @transform_13(%arg0: i32) -> (i32, i32) {
    %c0_i32 = arith.constant 0 : i32
    %c0_i32_0 = arith.constant 0 : i32
    %c0_i32_1 = arith.constant 0 : i32
    return %c0_i32, %c0_i32_0 : i32, i32
  }
  func.func @transform_14(%arg0: i32) -> (i32, i32) {
    %c0_i32 = arith.constant 0 : i32
    %c0_i32_0 = arith.constant 0 : i32
    %c0_i32_1 = arith.constant 0 : i32
    return %c0_i32, %c0_i32_0 : i32, i32
  }
  func.func @transform_15(%arg0: i32) -> (i32, i32) {
    %c0_i32 = arith.constant 0 : i32
    %c0_i32_0 = arith.constant 0 : i32
    %c0_i32_1 = arith.constant 0 : i32
    return %c0_i32, %c0_i32_0 : i32, i32
  }
  func.func @transform_16(%arg0: i32) -> (i32, i32, i32, i32) {
    %c0_i32 = arith.constant 0 : i32
    %c0_i32_0 = arith.constant 0 : i32
    %c0_i32_1 = arith.constant 0 : i32
    %c0_i32_2 = arith.constant 0 : i32
    return %arg0, %c0_i32, %c0_i32_0, %c0_i32_1 : i32, i32, i32, i32
  }
  func.func @transform_17(%arg0: i32) -> (i32, i32, i32, i32) {
    %c0_i32 = arith.constant 0 : i32
    %c0_i32_0 = arith.constant 0 : i32
    %c0_i32_1 = arith.constant 0 : i32
    %c0_i32_2 = arith.constant 0 : i32
    return %arg0, %c0_i32, %c0_i32_0, %c0_i32_1 : i32, i32, i32, i32
  }
  func.func @transform_18(%arg0: i32) -> (i32, i32, i32, i32) {
    %c0_i32 = arith.constant 0 : i32
    %c0_i32_0 = arith.constant 0 : i32
    %c0_i32_1 = arith.constant 0 : i32
    %c0_i32_2 = arith.constant 0 : i32
    return %arg0, %c0_i32, %c0_i32_0, %c0_i32_1 : i32, i32, i32, i32
  }
  func.func @transform_19(%arg0: i32) -> (i32, i32, i32, i32) {
    %c0_i32 = arith.constant 0 : i32
    %c0_i32_0 = arith.constant 0 : i32
    %c0_i32_1 = arith.constant 0 : i32
    %c0_i32_2 = arith.constant 0 : i32
    return %arg0, %c0_i32, %c0_i32_0, %c0_i32_1 : i32, i32, i32, i32
  }
  func.func @transform_20(%arg0: i32) -> (i32, i32, i32, i32) {
    %c0_i32 = arith.constant 0 : i32
    %c0_i32_0 = arith.constant 0 : i32
    %c0_i32_1 = arith.constant 0 : i32
    %c0_i32_2 = arith.constant 0 : i32
    return %arg0, %c0_i32, %c0_i32_0, %c0_i32_1 : i32, i32, i32, i32
  }
  func.func @transform_21(%arg0: i32) -> (i32, i32, i32, i32) {
    %c0_i32 = arith.constant 0 : i32
    %c0_i32_0 = arith.constant 0 : i32
    %c0_i32_1 = arith.constant 0 : i32
    %c0_i32_2 = arith.constant 0 : i32
    return %arg0, %c0_i32, %c0_i32_0, %c0_i32_1 : i32, i32, i32, i32
  }
}

</mosaic_0001>

<llo_original>
// kernel: vimon_forward.2
$region0: #{vimon_forward.2}
  #allocation0 [shape = 'u32[]', space=smem, size = 0x4, offset = 0x4, fixed_abs, tag = 'smem constant byte address 0x4 - core index']
  #allocation1 [shape = 'u32[144,128]{1,0:T(1,128)}', space=vmem, size = 0x12000, scoped, tag = 'internal scratch']
  #allocation2 [shape = 'f32[3,2,256]{2,1,0:T(2,128)}', space=vmem, size = 0x1800, scoped, tag = 'scratch operand']
  #allocation3 [shape = 'f32[6,32]{1,0:T(8,128)}', space=vmem, size = 0x1000, scoped, tag = 'scratch operand']
  #allocation4 [shape = 'f32[1]{0:T(128)S(6)}', space=smem, size = 0x200, scoped, tag = 'scoped memory for vimon_forward.2']
  %s0 = inlined_call_operand.vmem [shape: f32[4,2,768], index: 0, kind: input, shape index: {}]
  %s1 = inlined_call_operand.vmem [shape: f32[3,3,2,16], index: 1, kind: input, shape index: {}]
  %s2 = inlined_call_operand.vmem [shape: f32[5], index: 2, kind: input, shape index: {}]
  %s3 = inlined_call_operand.<no memory space> [shape: f32[1], index: 3, kind: input, shape index: {}]
  %s4 = inlined_call_operand.vmem [shape: bf16[1024,32], index: 4, kind: input, shape index: {}]
  %s5 = inlined_call_operand.vmem [shape: f32[1,32], index: 5, kind: input, shape index: {}]
  %s6 = inlined_call_operand.vmem [shape: bf16[32,96], index: 6, kind: input, shape index: {}]
  %s7 = inlined_call_operand.vmem [shape: bf16[32,96], index: 7, kind: input, shape index: {}]
  %s8 = inlined_call_operand.vmem [shape: f32[1,96], index: 8, kind: input, shape index: {}]
  %s9 = inlined_call_operand.vmem [shape: f32[1,96], index: 9, kind: input, shape index: {}]
  %s10 = inlined_call_operand.vmem [shape: bf16[32,32], index: 10, kind: input, shape index: {}]
  %s11 = inlined_call_operand.vmem [shape: f32[1,32], index: 11, kind: input, shape index: {}]
  %s12 = inlined_call_operand.vmem [shape: bf16[16,16], index: 12, kind: input, shape index: {}]
  %s13 = inlined_call_operand.vmem [shape: f32[1,16], index: 13, kind: input, shape index: {}]
  %s14 = inlined_call_operand.vmem [shape: bf16[16,1024], index: 14, kind: input, shape index: {}]
  %s15 = inlined_call_operand.vmem [shape: f32[1,1024], index: 15, kind: input, shape index: {}]
  %s16 = inlined_call_operand.vmem [shape: f32[3,3,2,256], index: 16, kind: output, shape index: {0}]
  %s17 = inlined_call_operand.vmem [shape: f32[3,3,2,768], index: 17, kind: output, shape index: {1}]
  %s18 = inlined_call_operand.vmem [shape: f32[3,3,2,256], index: 18, kind: output, shape index: {2}]
  %s19 = inlined_call_operand.vmem [shape: f32[3,3,2,768], index: 19, kind: output, shape index: {3}]
  %s20 = inlined_call_operand.vmem [shape: f32[3,3,2,256], index: 20, kind: output, shape index: {4}]
  %s21 = inlined_call_operand.vmem [shape: f32[3,3,2,32], index: 21, kind: output, shape index: {5}]
  %22 = xla_tuple %s16, %s17, %s18, %s19, %s20, %s21
  %s23 = sld [smem:[#allocation0]]
  $region149: #{vimon_forward.2} parent=0
    _
  %s25 = ssub.s32 1, %s23
  %s26 = scalar_select 0, %s25, %s23
  %27 = sst [smem:[#allocation4]] %s3
  $region1: #{vimon_forward.2} parent=0
    #allocation5 [shape = 'u8[512]{0}', space=smem, size = 0x200, scoped, tag = 'input window, operand 2, single buffered']
    #allocation6 [shape = 's32[2]{0}', space=sflag, size = 0x8, scoped, tag = 'scoped memory for vimon_forward.2']
    %28 = vsyncpa [#allocation6], 0
    loop: start=0, step=1, limit=5
    $region2: #{vimon_forward.2} parent=1 // loop_pre_header
      _
    $region3: #{vimon_forward.2} parent=1 // loop_header
      %s30 = sphi 0, %s34
      %p31 = scmp.ge.s32.totalorder %s30, 5
      %s38 = sphi 0, %s38
      %s40 = sphi 0, %s38
      %s41 = sphi 0, %s40
      %s55 = sphi 0, %s41
      %s59 = sphi 0, %s59
      %s61 = sphi 0, %s59
      %s62 = sphi 0, %s61
      %s76 = sphi 0, %s62
      %s80 = sphi 0, %s80
      %s82 = sphi 0, %s80
      %s83 = sphi 0, %s82
      %s97 = sphi 0, %s83
      %s101 = sphi 0, %s101
      %s103 = sphi 0, %s101
      %s104 = sphi 0, %s103
      %s118 = sphi 0, %s104
      %s122 = sphi 0, %s122
      %s124 = sphi 0, %s122
      %s125 = sphi 0, %s124
      %s139 = sphi 0, %s125
      %s143 = sphi 0, %s143
      %s145 = sphi 0, %s143
      %s146 = sphi 0, %s145
      %s160 = sphi 0, %s146
      %s164 = sphi 0, %s164
      %s166 = sphi 0, %s164
      %s167 = sphi 0, %s166
      %s181 = sphi 0, %s167
      %s185 = sphi 0, %s185
      %s187 = sphi 0, %s185
      %s188 = sphi 0, %s187
      %s202 = sphi 0, %s188
      %s206 = sphi 0, %s206
      %s208 = sphi 0, %s206
      %s209 = sphi 0, %s208
      %s223 = sphi 0, %s209
      %s227 = sphi 0, %s227
      %s229 = sphi 0, %s227
      %s230 = sphi 0, %s229
      %s244 = sphi 0, %s230
      %s248 = sphi 0, %s248
      %s250 = sphi 0, %s248
      %s251 = sphi 0, %s250
      %s265 = sphi 0, %s251
      %s269 = sphi 0, %s269
      %s271 = sphi 0, %s269
      %s272 = sphi 0, %s271
      %s286 = sphi 0, %s272
      %s290 = sphi 0, %s290
      %s292 = sphi 0, %s290
      %s293 = sphi 0, %s292
      %s307 = sphi 0, %s293
      %s311 = sphi 0, %s311
      %s313 = sphi 0, %s311
      %s314 = sphi 0, %s313
      %s328 = sphi 0, %s314
      %s332 = sphi 0, %s332
      %s334 = sphi 0, %s332
      %s335 = sphi 0, %s334
      %s349 = sphi 0, %s335
      %s353 = sphi 0, %s353
      %s355 = sphi 0, %s353
      %s356 = sphi 0, %s355
      %s370 = sphi 0, %s356
      %s376 = sphi 0, %s378
      %s379 = sphi 0, %s376
      %s380 = sphi 0, %s379
      %s396 = sphi 0, %s380
      %s402 = sphi 0, %s404
      %s405 = sphi 0, %s402
      %s406 = sphi 0, %s405
      %s422 = sphi 0, %s406
      %s428 = sphi 0, %s430
      %s431 = sphi 0, %s428
      %s432 = sphi 0, %s431
      %s448 = sphi 0, %s432
      %s454 = sphi 0, %s456
      %s457 = sphi 0, %s454
      %s458 = sphi 0, %s457
      %s474 = sphi 0, %s458
      %s480 = sphi 0, %s482
      %s483 = sphi 0, %s480
      %s484 = sphi 0, %s483
      %s500 = sphi 0, %s484
      %s506 = sphi 0, %s508
      %s509 = sphi 0, %s506
      %s510 = sphi 0, %s509
      %s526 = sphi 0, %s510
    $region4: #{vimon_forward.2} parent=1 // loop_header_branch
      %33 = sbr.rel (%p31) target = $region8
    $region5: #{vimon_forward.2} parent=1 // loop_body
      %s35 = ssub.s32 %s30, 1
      %s36 = ssub.s32 %s30, 2
      %s37 = sadd.s32 %s30, 1
      %s39 = sadd.s32 %s38, 1
      %p42 = scmp.eq.s32.totalorder %s30, 2
      %p43 = scmp.ne.s32.totalorder %s38, %s40
      %p44 = scmp.eq.s32.totalorder %s30, 0
      %p45 = por %p43, %p44
      %p46 = scmp.ne.s32.totalorder %s38, %s40
      %p47 = scmp.eq.s32.totalorder %s35, 2
      %p48 = por %p46, %p47
      %p49 = scmp.ne.s32.totalorder %s40, %s41
      %p50 = scmp.eq.s32.totalorder %s35, 0
      %p51 = por %p49, %p50
      %p52 = scmp.ne.s32.totalorder %s40, %s41
      %p53 = scmp.eq.s32.totalorder %s36, 2
      %p54 = por %p52, %p53
      %p56 = scmp.ne.s32.totalorder %s41, %s55
      %p57 = scmp.eq.s32.totalorder %s36, 0
      %p58 = por %p56, %p57
      %s60 = sadd.s32 %s59, 1
      %p63 = scmp.eq.s32.totalorder %s30, 2
      %p64 = scmp.ne.s32.totalorder %s59, %s61
      %p65 = scmp.eq.s32.totalorder %s30, 0
      %p66 = por %p64, %p65
      %p67 = scmp.ne.s32.totalorder %s59, %s61
      %p68 = scmp.eq.s32.totalorder %s35, 2
      %p69 = por %p67, %p68
      %p70 = scmp.ne.s32.totalorder %s61, %s62
      %p71 = scmp.eq.s32.totalorder %s35, 0
      %p72 = por %p70, %p71
      %p73 = scmp.ne.s32.totalorder %s61, %s62
      %p74 = scmp.eq.s32.totalorder %s36, 2
      %p75 = por %p73, %p74
      %p77 = scmp.ne.s32.totalorder %s62, %s76
      %p78 = scmp.eq.s32.totalorder %s36, 0
      %p79 = por %p77, %p78
      %s81 = sadd.s32 %s80, 1
      %p84 = scmp.eq.s32.totalorder %s30, 2
      %p85 = scmp.ne.s32.totalorder %s80, %s82
      %p86 = scmp.eq.s32.totalorder %s30, 0
      %p87 = por %p85, %p86
      %p88 = scmp.ne.s32.totalorder %s80, %s82
      %p89 = scmp.eq.s32.totalorder %s35, 2
      %p90 = por %p88, %p89
      %p91 = scmp.ne.s32.totalorder %s82, %s83
      %p92 = scmp.eq.s32.totalorder %s35, 0
      %p93 = por %p91, %p92
      %p94 = scmp.ne.s32.totalorder %s82, %s83
      %p95 = scmp.eq.s32.totalorder %s36, 2
      %p96 = por %p94, %p95
      %p98 = scmp.ne.s32.totalorder %s83, %s97
      %p99 = scmp.eq.s32.totalorder %s36, 0
      %p100 = por %p98, %p99
      %s102 = sadd.s32 %s101, 1
      %p105 = scmp.eq.s32.totalorder %s30, 2
      %p106 = scmp.ne.s32.totalorder %s101, %s103
      %p107 = scmp.eq.s32.totalorder %s30, 0
      %p108 = por %p106, %p107
      %p109 = scmp.ne.s32.totalorder %s101, %s103
      %p110 = scmp.eq.s32.totalorder %s35, 2
      %p111 = por %p109, %p110
      %p112 = scmp.ne.s32.totalorder %s103, %s104
      %p113 = scmp.eq.s32.totalorder %s35, 0
      %p114 = por %p112, %p113
      %p115 = scmp.ne.s32.totalorder %s103, %s104
      %p116 = scmp.eq.s32.totalorder %s36, 2
      %p117 = por %p115, %p116
      %p119 = scmp.ne.s32.totalorder %s104, %s118
      %p120 = scmp.eq.s32.totalorder %s36, 0
      %p121 = por %p119, %p120
      %s123 = sadd.s32 %s122, 1
      %p126 = scmp.eq.s32.totalorder %s30, 2
      %p127 = scmp.ne.s32.totalorder %s122, %s124
      %p128 = scmp.eq.s32.totalorder %s30, 0
      %p129 = por %p127, %p128
      %p130 = scmp.ne.s32.totalorder %s122, %s124
      %p131 = scmp.eq.s32.totalorder %s35, 2
      %p132 = por %p130, %p131
      %p133 = scmp.ne.s32.totalorder %s124, %s125
      %p134 = scmp.eq.s32.totalorder %s35, 0
      %p135 = por %p133, %p134
      %p136 = scmp.ne.s32.totalorder %s124, %s125
      %p137 = scmp.eq.s32.totalorder %s36, 2
      %p138 = por %p136, %p137
      %p140 = scmp.ne.s32.totalorder %s125, %s139
      %p141 = scmp.eq.s32.totalorder %s36, 0
      %p142 = por %p140, %p141
      %s144 = sadd.s32 %s143, 1
      %p147 = scmp.eq.s32.totalorder %s30, 2
      %p148 = scmp.ne.s32.totalorder %s143, %s145
      %p149 = scmp.eq.s32.totalorder %s30, 0
      %p150 = por %p148, %p149
      %p151 = scmp.ne.s32.totalorder %s143, %s145
      %p152 = scmp.eq.s32.totalorder %s35, 2
      %p153 = por %p151, %p152
      %p154 = scmp.ne.s32.totalorder %s145, %s146
      %p155 = scmp.eq.s32.totalorder %s35, 0
      %p156 = por %p154, %p155
      %p157 = scmp.ne.s32.totalorder %s145, %s146
      %p158 = scmp.eq.s32.totalorder %s36, 2
      %p159 = por %p157, %p158
      %p161 = scmp.ne.s32.totalorder %s146, %s160
      %p162 = scmp.eq.s32.totalorder %s36, 0
      %p163 = por %p161, %p162
      %s165 = sadd.s32 %s164, 1
      %p168 = scmp.eq.s32.totalorder %s30, 2
      %p169 = scmp.ne.s32.totalorder %s164, %s166
      %p170 = scmp.eq.s32.totalorder %s30, 0
      %p171 = por %p169, %p170
      %p172 = scmp.ne.s32.totalorder %s164, %s166
      %p173 = scmp.eq.s32.totalorder %s35, 2
      %p174 = por %p172, %p173
      %p175 = scmp.ne.s32.totalorder %s166, %s167
      %p176 = scmp.eq.s32.totalorder %s35, 0
      %p177 = por %p175, %p176
      %p178 = scmp.ne.s32.totalorder %s166, %s167
      %p179 = scmp.eq.s32.totalorder %s36, 2
      %p180 = por %p178, %p179
      %p182 = scmp.ne.s32.totalorder %s167, %s181
      %p183 = scmp.eq.s32.totalorder %s36, 0
      %p184 = por %p182, %p183
      %s186 = sadd.s32 %s185, 1
      %p189 = scmp.eq.s32.totalorder %s30, 2
      %p190 = scmp.ne.s32.totalorder %s185, %s187
      %p191 = scmp.eq.s32.totalorder %s30, 0
      %p192 = por %p190, %p191
      %p193 = scmp.ne.s32.totalorder %s185, %s187
      %p194 = scmp.eq.s32.totalorder %s35, 2
      %p195 = por %p193, %p194
      %p196 = scmp.ne.s32.totalorder %s187, %s188
      %p197 = scmp.eq.s32.totalorder %s35, 0
      %p198 = por %p196, %p197
      %p199 = scmp.ne.s32.totalorder %s187, %s188
      %p200 = scmp.eq.s32.totalorder %s36, 2
      %p201 = por %p199, %p200
      %p203 = scmp.ne.s32.totalorder %s188, %s202
      %p204 = scmp.eq.s32.totalorder %s36, 0
      %p205 = por %p203, %p204
      %s207 = sadd.s32 %s206, 1
      %p210 = scmp.eq.s32.totalorder %s30, 2
      %p211 = scmp.ne.s32.totalorder %s206, %s208
      %p212 = scmp.eq.s32.totalorder %s30, 0
      %p213 = por %p211, %p212
      %p214 = scmp.ne.s32.totalorder %s206, %s208
      %p215 = scmp.eq.s32.totalorder %s35, 2
      %p216 = por %p214, %p215
      %p217 = scmp.ne.s32.totalorder %s208, %s209
      %p218 = scmp.eq.s32.totalorder %s35, 0
      %p219 = por %p217, %p218
      %p220 = scmp.ne.s32.totalorder %s208, %s209
      %p221 = scmp.eq.s32.totalorder %s36, 2
      %p222 = por %p220, %p221
      %p224 = scmp.ne.s32.totalorder %s209, %s223
      %p225 = scmp.eq.s32.totalorder %s36, 0
      %p226 = por %p224, %p225
      %s228 = sadd.s32 %s227, 1
      %p231 = scmp.eq.s32.totalorder %s30, 2
      %p232 = scmp.ne.s32.totalorder %s227, %s229
      %p233 = scmp.eq.s32.totalorder %s30, 0
      %p234 = por %p232, %p233
      %p235 = scmp.ne.s32.totalorder %s227, %s229
      %p236 = scmp.eq.s32.totalorder %s35, 2
      %p237 = por %p235, %p236
      %p238 = scmp.ne.s32.totalorder %s229, %s230
      %p239 = scmp.eq.s32.totalorder %s35, 0
      %p240 = por %p238, %p239
      %p241 = scmp.ne.s32.totalorder %s229, %s230
      %p242 = scmp.eq.s32.totalorder %s36, 2
      %p243 = por %p241, %p242
      %p245 = scmp.ne.s32.totalorder %s230, %s244
      %p246 = scmp.eq.s32.totalorder %s36, 0
      %p247 = por %p245, %p246
      %s249 = sadd.s32 %s248, 1
      %p252 = scmp.eq.s32.totalorder %s30, 2
      %p253 = scmp.ne.s32.totalorder %s248, %s250
      %p254 = scmp.eq.s32.totalorder %s30, 0
      %p255 = por %p253, %p254
      %p256 = scmp.ne.s32.totalorder %s248, %s250
      %p257 = scmp.eq.s32.totalorder %s35, 2
      %p258 = por %p256, %p257
      %p259 = scmp.ne.s32.totalorder %s250, %s251
      %p260 = scmp.eq.s32.totalorder %s35, 0
      %p261 = por %p259, %p260
      %p262 = scmp.ne.s32.totalorder %s250, %s251
      %p263 = scmp.eq.s32.totalorder %s36, 2
      %p264 = por %p262, %p263
      %p266 = scmp.ne.s32.totalorder %s251, %s265
      %p267 = scmp.eq.s32.totalorder %s36, 0
      %p268 = por %p266, %p267
      %s270 = sadd.s32 %s269, 1
      %p273 = scmp.eq.s32.totalorder %s30, 2
      %p274 = scmp.ne.s32.totalorder %s269, %s271
      %p275 = scmp.eq.s32.totalorder %s30, 0
      %p276 = por %p274, %p275
      %p277 = scmp.ne.s32.totalorder %s269, %s271
      %p278 = scmp.eq.s32.totalorder %s35, 2
      %p279 = por %p277, %p278
      %p280 = scmp.ne.s32.totalorder %s271, %s272
      %p281 = scmp.eq.s32.totalorder %s35, 0
      %p282 = por %p280, %p281
      %p283 = scmp.ne.s32.totalorder %s271, %s272
      %p284 = scmp.eq.s32.totalorder %s36, 2
      %p285 = por %p283, %p284
      %p287 = scmp.ne.s32.totalorder %s272, %s286
      %p288 = scmp.eq.s32.totalorder %s36, 0
      %p289 = por %p287, %p288
      %s291 = sadd.s32 %s290, 1
      %p294 = scmp.eq.s32.totalorder %s30, 2
      %p295 = scmp.ne.s32.totalorder %s290, %s292
      %p296 = scmp.eq.s32.totalorder %s30, 0
      %p297 = por %p295, %p296
      %p298 = scmp.ne.s32.totalorder %s290, %s292
      %p299 = scmp.eq.s32.totalorder %s35, 2
      %p300 = por %p298, %p299
      %p301 = scmp.ne.s32.totalorder %s292, %s293
      %p302 = scmp.eq.s32.totalorder %s35, 0
      %p303 = por %p301, %p302
      %p304 = scmp.ne.s32.totalorder %s292, %s293
      %p305 = scmp.eq.s32.totalorder %s36, 2
      %p306 = por %p304, %p305
      %p308 = scmp.ne.s32.totalorder %s293, %s307
      %p309 = scmp.eq.s32.totalorder %s36, 0
      %p310 = por %p308, %p309
      %s312 = sadd.s32 %s311, 1
      %p315 = scmp.eq.s32.totalorder %s30, 2
      %p316 = scmp.ne.s32.totalorder %s311, %s313
      %p317 = scmp.eq.s32.totalorder %s30, 0
      %p318 = por %p316, %p317
      %p319 = scmp.ne.s32.totalorder %s311, %s313
      %p320 = scmp.eq.s32.totalorder %s35, 2
      %p321 = por %p319, %p320
      %p322 = scmp.ne.s32.totalorder %s313, %s314
      %p323 = scmp.eq.s32.totalorder %s35, 0
      %p324 = por %p322, %p323
      %p325 = scmp.ne.s32.totalorder %s313, %s314
      %p326 = scmp.eq.s32.totalorder %s36, 2
      %p327 = por %p325, %p326
      %p329 = scmp.ne.s32.totalorder %s314, %s328
      %p330 = scmp.eq.s32.totalorder %s36, 0
      %p331 = por %p329, %p330
      %s333 = sadd.s32 %s332, 1
      %p336 = scmp.eq.s32.totalorder %s30, 2
      %p337 = scmp.ne.s32.totalorder %s332, %s334
      %p338 = scmp.eq.s32.totalorder %s30, 0
      %p339 = por %p337, %p338
      %p340 = scmp.ne.s32.totalorder %s332, %s334
      %p341 = scmp.eq.s32.totalorder %s35, 2
      %p342 = por %p340, %p341
      %p343 = scmp.ne.s32.totalorder %s334, %s335
      %p344 = scmp.eq.s32.totalorder %s35, 0
      %p345 = por %p343, %p344
      %p346 = scmp.ne.s32.totalorder %s334, %s335
      %p347 = scmp.eq.s32.totalorder %s36, 2
      %p348 = por %p346, %p347
      %p350 = scmp.ne.s32.totalorder %s335, %s349
      %p351 = scmp.eq.s32.totalorder %s36, 0
      %p352 = por %p350, %p351
      %s354 = sadd.s32 %s353, 1
      %p357 = scmp.eq.s32.totalorder %s30, 2
      %p358 = scmp.ne.s32.totalorder %s353, %s355
      %p359 = scmp.eq.s32.totalorder %s30, 0
      %p360 = por %p358, %p359
      %p361 = scmp.ne.s32.totalorder %s353, %s355
      %p362 = scmp.eq.s32.totalorder %s35, 2
      %p363 = por %p361, %p362
      %p364 = scmp.ne.s32.totalorder %s355, %s356
      %p365 = scmp.eq.s32.totalorder %s35, 0
      %p366 = por %p364, %p365
      %p367 = scmp.ne.s32.totalorder %s355, %s356
      %p368 = scmp.eq.s32.totalorder %s36, 2
      %p369 = por %p367, %p368
      %p371 = scmp.ne.s32.totalorder %s356, %s370
      %p372 = scmp.eq.s32.totalorder %s36, 0
      %p373 = por %p371, %p372
      %s374 = ssub.s32 %s30, %s37
      %p375 = scmp.eq.s32.totalorder %s374, 0
      %s377 = sadd.s32 %s376, 1
      %s378 = scalar_select %p375, %s376, %s377
      %p381 = pneg %p375
      %p382 = scmp.eq.s32.totalorder %s30, 2
      %p383 = por %p381, %p382
      %p384 = scmp.ne.s32.totalorder %s376, %s379
      %p385 = scmp.eq.s32.totalorder %s30, 0
      %p386 = por %p384, %p385
      %p387 = scmp.ne.s32.totalorder %s376, %s379
      %p388 = scmp.eq.s32.totalorder %s35, 2
      %p389 = por %p387, %p388
      %p390 = scmp.ne.s32.totalorder %s379, %s380
      %p391 = scmp.eq.s32.totalorder %s35, 0
      %p392 = por %p390, %p391
      %p393 = scmp.ne.s32.totalorder %s379, %s380
      %p394 = scmp.eq.s32.totalorder %s36, 2
      %p395 = por %p393, %p394
      %p397 = scmp.ne.s32.totalorder %s380, %s396
      %p398 = scmp.eq.s32.totalorder %s36, 0
      %p399 = por %p397, %p398
      %s400 = ssub.s32 %s30, %s37
      %p401 = scmp.eq.s32.totalorder %s400, 0
      %s403 = sadd.s32 %s402, 1
      %s404 = scalar_select %p401, %s402, %s403
      %p407 = pneg %p401
      %p408 = scmp.eq.s32.totalorder %s30, 2
      %p409 = por %p407, %p408
      %p410 = scmp.ne.s32.totalorder %s402, %s405
      %p411 = scmp.eq.s32.totalorder %s30, 0
      %p412 = por %p410, %p411
      %p413 = scmp.ne.s32.totalorder %s402, %s405
      %p414 = scmp.eq.s32.totalorder %s35, 2
      %p415 = por %p413, %p414
      %p416 = scmp.ne.s32.totalorder %s405, %s406
      %p417 = scmp.eq.s32.totalorder %s35, 0
      %p418 = por %p416, %p417
      %p419 = scmp.ne.s32.totalorder %s405, %s406
      %p420 = scmp.eq.s32.totalorder %s36, 2
      %p421 = por %p419, %p420
      %p423 = scmp.ne.s32.totalorder %s406, %s422
      %p424 = scmp.eq.s32.totalorder %s36, 0
      %p425 = por %p423, %p424
      %s426 = ssub.s32 %s30, %s37
      %p427 = scmp.eq.s32.totalorder %s426, 0
      %s429 = sadd.s32 %s428, 1
      %s430 = scalar_select %p427, %s428, %s429
      %p433 = pneg %p427
      %p434 = scmp.eq.s32.totalorder %s30, 2
      %p435 = por %p433, %p434
      %p436 = scmp.ne.s32.totalorder %s428, %s431
      %p437 = scmp.eq.s32.totalorder %s30, 0
      %p438 = por %p436, %p437
      %p439 = scmp.ne.s32.totalorder %s428, %s431
      %p440 = scmp.eq.s32.totalorder %s35, 2
      %p441 = por %p439, %p440
      %p442 = scmp.ne.s32.totalorder %s431, %s432
      %p443 = scmp.eq.s32.totalorder %s35, 0
      %p444 = por %p442, %p443
      %p445 = scmp.ne.s32.totalorder %s431, %s432
      %p446 = scmp.eq.s32.totalorder %s36, 2
      %p447 = por %p445, %p446
      %p449 = scmp.ne.s32.totalorder %s432, %s448
      %p450 = scmp.eq.s32.totalorder %s36, 0
      %p451 = por %p449, %p450
      %s452 = ssub.s32 %s30, %s37
      %p453 = scmp.eq.s32.totalorder %s452, 0
      %s455 = sadd.s32 %s454, 1
      %s456 = scalar_select %p453, %s454, %s455
      %p459 = pneg %p453
      %p460 = scmp.eq.s32.totalorder %s30, 2
      %p461 = por %p459, %p460
      %p462 = scmp.ne.s32.totalorder %s454, %s457
      %p463 = scmp.eq.s32.totalorder %s30, 0
      %p464 = por %p462, %p463
      %p465 = scmp.ne.s32.totalorder %s454, %s457
      %p466 = scmp.eq.s32.totalorder %s35, 2
      %p467 = por %p465, %p466
      %p468 = scmp.ne.s32.totalorder %s457, %s458
      %p469 = scmp.eq.s32.totalorder %s35, 0
      %p470 = por %p468, %p469
      %p471 = scmp.ne.s32.totalorder %s457, %s458
      %p472 = scmp.eq.s32.totalorder %s36, 2
      %p473 = por %p471, %p472
      %p475 = scmp.ne.s32.totalorder %s458, %s474
      %p476 = scmp.eq.s32.totalorder %s36, 0
      %p477 = por %p475, %p476
      %s478 = ssub.s32 %s30, %s37
      %p479 = scmp.eq.s32.totalorder %s478, 0
      %s481 = sadd.s32 %s480, 1
      %s482 = scalar_select %p479, %s480, %s481
      %p485 = pneg %p479
      %p486 = scmp.eq.s32.totalorder %s30, 2
      %p487 = por %p485, %p486
      %p488 = scmp.ne.s32.totalorder %s480, %s483
      %p489 = scmp.eq.s32.totalorder %s30, 0
      %p490 = por %p488, %p489
      %p491 = scmp.ne.s32.totalorder %s480, %s483
      %p492 = scmp.eq.s32.totalorder %s35, 2
      %p493 = por %p491, %p492
      %p494 = scmp.ne.s32.totalorder %s483, %s484
      %p495 = scmp.eq.s32.totalorder %s35, 0
      %p496 = por %p494, %p495
      %p497 = scmp.ne.s32.totalorder %s483, %s484
      %p498 = scmp.eq.s32.totalorder %s36, 2
      %p499 = por %p497, %p498
      %p501 = scmp.ne.s32.totalorder %s484, %s500
      %p502 = scmp.eq.s32.totalorder %s36, 0
      %p503 = por %p501, %p502
      %s504 = ssub.s32 %s30, %s37
      %p505 = scmp.eq.s32.totalorder %s504, 0
      %s507 = sadd.s32 %s506, 1
      %s508 = scalar_select %p505, %s506, %s507
      %p511 = pneg %p505
      %p512 = scmp.eq.s32.totalorder %s30, 2
      %p513 = por %p511, %p512
      %p514 = scmp.ne.s32.totalorder %s506, %s509
      %p515 = scmp.eq.s32.totalorder %s30, 0
      %p516 = por %p514, %p515
      %p517 = scmp.ne.s32.totalorder %s506, %s509
      %p518 = scmp.eq.s32.totalorder %s35, 2
      %p519 = por %p517, %p518
      %p520 = scmp.ne.s32.totalorder %s509, %s510
      %p521 = scmp.eq.s32.totalorder %s35, 0
      %p522 = por %p520, %p521
      %p523 = scmp.ne.s32.totalorder %s509, %s510
      %p524 = scmp.eq.s32.totalorder %s36, 2
      %p525 = por %p523, %p524
      %p527 = scmp.ne.s32.totalorder %s510, %s526
      %p528 = scmp.eq.s32.totalorder %s36, 0
      %p529 = por %p527, %p528
      %p530 = scmp.le.s32.totalorder 1, %s30
      %p531 = scmp.lt.s32.totalorder %s30, 4
      %p532 = pnand %p530, %p531
      %p533 = pneg %p532
      // Predicated region
      $region9: #{vimon_forward.2} parent=5 // pred_check
        _
      $region10: #{vimon_forward.2} parent=5 // pred_check_branch
        %535 = sbr.rel (%p532) target = $region12
      $region11: #{vimon_forward.2} parent=5 // pred_region
        %s536 = ssub.s32 %s30, 1
        // Predicated region
        $region13: #{vimon_forward.2} parent=11 // pred_check
          %p537 = pneg %p51
        $region14: #{vimon_forward.2} parent=11 // pred_check_branch
          %539 = sbr.rel (%p537) target = $region16
        $region15: #{vimon_forward.2} parent=11 // pred_region
          _
        $region16: #{vimon_forward.2} parent=11 // pred_fallthru
          _
        // Predicated region
        $region17: #{vimon_forward.2} parent=11 // pred_check
          %p540 = pneg %p72
        $region18: #{vimon_forward.2} parent=11 // pred_check_branch
          %542 = sbr.rel (%p540) target = $region20
        $region19: #{vimon_forward.2} parent=11 // pred_region
          _
        $region20: #{vimon_forward.2} parent=11 // pred_fallthru
          _
        // Predicated region
        $region21: #{vimon_forward.2} parent=11 // pred_check
          %p543 = pneg %p93
        $region22: #{vimon_forward.2} parent=11 // pred_check_branch
          %545 = sbr.rel (%p543) target = $region24
        $region23: #{vimon_forward.2} parent=11 // pred_region
          %s547 = ssub.s32 16, 16
          %548 = vsyncadd [#allocation6], %s547
          %s550 = sshll.u32 %s2, 4
          %s551 = int_to_ptr.vmem [resolvable:$true] %s550
          %553 = dma.vmem_to_smem %s551, 16, [#allocation5], [#allocation6]
        $region24: #{vimon_forward.2} parent=11 // pred_fallthru
          _
        // Predicated region
        $region25: #{vimon_forward.2} parent=11 // pred_check
          %p554 = pneg %p114
        $region26: #{vimon_forward.2} parent=11 // pred_check_branch
          %556 = sbr.rel (%p554) target = $region28
        $region27: #{vimon_forward.2} parent=11 // pred_region
          _
        $region28: #{vimon_forward.2} parent=11 // pred_fallthru
          _
        // Predicated region
        $region29: #{vimon_forward.2} parent=11 // pred_check
          %p557 = pneg %p135
        $region30: #{vimon_forward.2} parent=11 // pred_check_branch
          %559 = sbr.rel (%p557) target = $region32
        $region31: #{vimon_forward.2} parent=11 // pred_region
          _
        $region32: #{vimon_forward.2} parent=11 // pred_fallthru
          _
        // Predicated region
        $region33: #{vimon_forward.2} parent=11 // pred_check
          %p560 = pneg %p156
        $region34: #{vimon_forward.2} parent=11 // pred_check_branch
          %562 = sbr.rel (%p560) target = $region36
        $region35: #{vimon_forward.2} parent=11 // pred_region
          _
        $region36: #{vimon_forward.2} parent=11 // pred_fallthru
          _
        // Predicated region
        $region37: #{vimon_forward.2} parent=11 // pred_check
          %p563 = pneg %p177
        $region38: #{vimon_forward.2} parent=11 // pred_check_branch
          %565 = sbr.rel (%p563) target = $region40
        $region39: #{vimon_forward.2} parent=11 // pred_region
          _
        $region40: #{vimon_forward.2} parent=11 // pred_fallthru
          _
        // Predicated region
        $region41: #{vimon_forward.2} parent=11 // pred_check
          %p566 = pneg %p198
        $region42: #{vimon_forward.2} parent=11 // pred_check_branch
          %568 = sbr.rel (%p566) target = $region44
        $region43: #{vimon_forward.2} parent=11 // pred_region
          _
        $region44: #{vimon_forward.2} parent=11 // pred_fallthru
          _
        // Predicated region
        $region45: #{vimon_forward.2} parent=11 // pred_check
          %p569 = pneg %p219
        $region46: #{vimon_forward.2} parent=11 // pred_check_branch
          %571 = sbr.rel (%p569) target = $region48
        $region47: #{vimon_forward.2} parent=11 // pred_region
          _
        $region48: #{vimon_forward.2} parent=11 // pred_fallthru
          _
        // Predicated region
        $region49: #{vimon_forward.2} parent=11 // pred_check
          %p572 = pneg %p240
        $region50: #{vimon_forward.2} parent=11 // pred_check_branch
          %574 = sbr.rel (%p572) target = $region52
        $region51: #{vimon_forward.2} parent=11 // pred_region
          _
        $region52: #{vimon_forward.2} parent=11 // pred_fallthru
          _
        // Predicated region
        $region53: #{vimon_forward.2} parent=11 // pred_check
          %p575 = pneg %p261
        $region54: #{vimon_forward.2} parent=11 // pred_check_branch
          %577 = sbr.rel (%p575) target = $region56
        $region55: #{vimon_forward.2} parent=11 // pred_region
          _
        $region56: #{vimon_forward.2} parent=11 // pred_fallthru
          _
        // Predicated region
        $region57: #{vimon_forward.2} parent=11 // pred_check
          %p578 = pneg %p282
        $region58: #{vimon_forward.2} parent=11 // pred_check_branch
          %580 = sbr.rel (%p578) target = $region60
        $region59: #{vimon_forward.2} parent=11 // pred_region
          _
        $region60: #{vimon_forward.2} parent=11 // pred_fallthru
          _
        // Predicated region
        $region61: #{vimon_forward.2} parent=11 // pred_check
          %p581 = pneg %p303
        $region62: #{vimon_forward.2} parent=11 // pred_check_branch
          %583 = sbr.rel (%p581) target = $region64
        $region63: #{vimon_forward.2} parent=11 // pred_region
          _
        $region64: #{vimon_forward.2} parent=11 // pred_fallthru
          _
        // Predicated region
        $region65: #{vimon_forward.2} parent=11 // pred_check
          %p584 = pneg %p324
        $region66: #{vimon_forward.2} parent=11 // pred_check_branch
          %586 = sbr.rel (%p584) target = $region68
        $region67: #{vimon_forward.2} parent=11 // pred_region
          _
        $region68: #{vimon_forward.2} parent=11 // pred_fallthru
          _
        // Predicated region
        $region69: #{vimon_forward.2} parent=11 // pred_check
          %p587 = pneg %p345
        $region70: #{vimon_forward.2} parent=11 // pred_check_branch
          %589 = sbr.rel (%p587) target = $region72
        $region71: #{vimon_forward.2} parent=11 // pred_region
          _
        $region72: #{vimon_forward.2} parent=11 // pred_fallthru
          _
        // Predicated region
        $region73: #{vimon_forward.2} parent=11 // pred_check
          %p590 = pneg %p366
        $region74: #{vimon_forward.2} parent=11 // pred_check_branch
          %592 = sbr.rel (%p590) target = $region76
        $region75: #{vimon_forward.2} parent=11 // pred_region
          _
        $region76: #{vimon_forward.2} parent=11 // pred_fallthru
          _
      $region12: #{vimon_forward.2} parent=5 // pred_fallthru
        _
      %p593 = scmp.lt.s32.totalorder %s30, 3
      // Predicated region
      $region77: #{vimon_forward.2} parent=5 // pred_check
        %p594 = pneg %p593
      $region78: #{vimon_forward.2} parent=5 // pred_check_branch
        %596 = sbr.rel (%p594) target = $region80
      $region79: #{vimon_forward.2} parent=5 // pred_region
        _
      $region80: #{vimon_forward.2} parent=5 // pred_fallthru
        _
      %p597 = scmp.le.s32.totalorder 1, %s30
      %p598 = scmp.lt.s32.totalorder %s30, 4
      %p599 = pnand %p597, %p598
      %p600 = pneg %p599
      // Predicated region
      $region81: #{vimon_forward.2} parent=5 // pred_check
        _
      $region82: #{vimon_forward.2} parent=5 // pred_check_branch
        %602 = sbr.rel (%p599) target = $region84
      $region83: #{vimon_forward.2} parent=5 // pred_region
        %s603 = ssub.s32 %s30, 1
        // Predicated region
        $region85: #{vimon_forward.2} parent=83 // pred_check
          %p604 = pneg %p93
        $region86: #{vimon_forward.2} parent=83 // pred_check_branch
          %606 = sbr.rel (%p604) target = $region88
        $region87: #{vimon_forward.2} parent=83 // pred_region
          %607 = dma.done [#allocation6], 16
        $region88: #{vimon_forward.2} parent=83 // pred_fallthru
          _
        %608 = sfence
        %p609 = pneg %p51
        %p610 = pneg %p48
        %p611 = pneg %p72
        %p612 = pneg %p69
        %p613 = pneg %p93
        %p614 = pneg %p90
        %p615 = pneg %p114
        %p616 = pneg %p111
        %p617 = pneg %p135
        %p618 = pneg %p132
        %p619 = pneg %p156
        %p620 = pneg %p153
        %p621 = pneg %p177
        %p622 = pneg %p174
        %p623 = pneg %p198
        %p624 = pneg %p195
        %p625 = pneg %p219
        %p626 = pneg %p216
        %p627 = pneg %p240
        %p628 = pneg %p237
        %p629 = pneg %p261
        %p630 = pneg %p258
        %p631 = pneg %p282
        %p632 = pneg %p279
        %p633 = pneg %p303
        %p634 = pneg %p300
        %p635 = pneg %p324
        %p636 = pneg %p321
        %p637 = pneg %p345
        %p638 = pneg %p342
        %p639 = pneg %p366
        %p640 = pneg %p363
        %p641 = pneg %p392
        %p642 = pneg %p389
        %p643 = scmp.lt.s32.totalorder %s35, 2
        %s644 = scalar_select %p643, %s35, 2
        %s645 = smul.addr %s644, 6
        %s646 = smul.addr %s645, 2
        %s647 = scalar_lea.vmem %s16, %s646
        %p648 = pneg %p418
        %p649 = pneg %p415
        %p650 = scmp.lt.s32.totalorder %s35, 2
        %s651 = scalar_select %p650, %s35, 2
        %s652 = smul.addr %s651, 18
        %s653 = smul.addr %s652, 2
        %s654 = scalar_lea.vmem %s17, %s653
        %p655 = pneg %p444
        %p656 = pneg %p441
        %p657 = scmp.lt.s32.totalorder %s35, 2
        %s658 = scalar_select %p657, %s35, 2
        %s659 = smul.addr %s658, 6
        %s660 = smul.addr %s659, 2
        %s661 = scalar_lea.vmem %s18, %s660
        %p662 = pneg %p470
        %p663 = pneg %p467
        %p664 = scmp.lt.s32.totalorder %s35, 2
        %s665 = scalar_select %p664, %s35, 2
        %s666 = smul.addr %s665, 18
        %s667 = smul.addr %s666, 2
        %s668 = scalar_lea.vmem %s19, %s667
        %p669 = pneg %p496
        %p670 = pneg %p493
        %p671 = scmp.lt.s32.totalorder %s35, 2
        %s672 = scalar_select %p671, %s35, 2
        %s673 = smul.addr %s672, 6
        %s674 = smul.addr %s673, 2
        %s675 = scalar_lea.vmem %s20, %s674
        %p676 = pneg %p522
        %p677 = pneg %p519
        %p678 = scmp.lt.s32.totalorder %s35, 2
        %s679 = scalar_select %p678, %s35, 2
        %s680 = smul.addr %s679, 3
        %s681 = smul.addr %s680, 2
        %s682 = scalar_lea.vmem %s21, %s681
        %p683 = scmp.lt.s32.totalorder %s35, 2
        %s684 = scalar_select %p683, %s35, 2
        %s685 = smul.addr %s684, 6
        %s686 = smul.addr %s685, 2
        %s687 = scalar_lea.vmem %s16, %s686
        %p688 = scmp.lt.s32.totalorder %s35, 2
        %s689 = scalar_select %p688, %s35, 2
        %s690 = smul.addr %s689, 18
        %s691 = smul.addr %s690, 2
        %s692 = scalar_lea.vmem %s17, %s691
        %p693 = scmp.lt.s32.totalorder %s35, 2
        %s694 = scalar_select %p693, %s35, 2
        %s695 = smul.addr %s694, 6
        %s696 = smul.addr %s695, 2
        %s697 = scalar_lea.vmem %s18, %s696
        %p698 = scmp.lt.s32.totalorder %s35, 2
        %s699 = scalar_select %p698, %s35, 2
        %s700 = smul.addr %s699, 18
        %s701 = smul.addr %s700, 2
        %s702 = scalar_lea.vmem %s19, %s701
        %p703 = scmp.lt.s32.totalorder %s35, 2
        %s704 = scalar_select %p703, %s35, 2
        %s705 = smul.addr %s704, 6
        %s706 = smul.addr %s705, 2
        %s707 = scalar_lea.vmem %s20, %s706
        %p708 = scmp.lt.s32.totalorder %s35, 2
        %s709 = scalar_select %p708, %s35, 2
        %s710 = smul.addr %s709, 3
        %s711 = smul.addr %s710, 2
        %s712 = scalar_lea.vmem %s21, %s711
        %p714 = scmp.eq.s32.totalorder %s35, 0
        // Predicated region
        $region89: #{vimon_forward.2} parent=83 // pred_check
          %p715 = pneg %p714
        $region90: #{vimon_forward.2} parent=83 // pred_check_branch
          %717 = sbr.rel (%p715) target = $region92
        $region91: #{vimon_forward.2} parent=83 // pred_region
          %718 = vst [vmem:[#allocation2] sm:$0xf] 0.0
          %719 = vst [vmem:[#allocation2 + $0x4] sm:$0xf] 0.0
          %720 = vst [vmem:[#allocation2 + $0x8] sm:$0xf] 0.0
          %vm721 = vcmask 259072
          %722 = vst.msk [vmem:[#allocation3] sm:$0x3f] %vm721, 0.0
        $region92: #{vimon_forward.2} parent=83 // pred_fallthru
          _
        %p723 = scmp.gt.s32.totalorder %s35, 0
        // Predicated region
        $region93: #{vimon_forward.2} parent=83 // pred_check
          %p724 = pneg %p723
        $region94: #{vimon_forward.2} parent=83 // pred_check_branch
          %726 = sbr.rel (%p724) target = $region96
        $region95: #{vimon_forward.2} parent=83 // pred_region
          %v727 = vld [vmem:[#allocation2] sm:$0xf]
          %v728 = vld [vmem:[#allocation2 + $0x4] sm:$0xf]
          %v729 = vld [vmem:[#allocation2 + $0x8] sm:$0xf]
          %vm730 = vcmask 1041408
          %vm731 = vcmask 1043458
          %vm732 = vmor %vm731, %vm730
          %v733 = vsel %vm732, %v727, -inf
          %v734 = vsel %vm732, %v728, -inf
          %v735 = vsel %vm732, %v729, -inf
          %v736 = vmax.f32 %v733, %v734
          %v737 = vmax.f32 %v736, %v735
          %v738 = vsub.f32 %v727, %v737
          %v739 = vsub.f32 %v728, %v737
          %v740 = vsub.f32 %v729, %v737
          %v741 = vmul.f32 %v738, 1.442695
          %v742 = vpow.pop %v741
          %v743 = vmul.f32 %v739, 1.442695
          %v744 = vpow.pop %v743
          %v745 = vmul.f32 %v740, 1.442695
          %v746 = vpow.pop %v745
          %v751 = vunpack.c.l.s4 1983009808
          %v752 = vunpack.c.0.s8 %v751
          %v753 = vlaneseq
          %v754 = vshrl.u32 %v753, 7
          %v755 = vsub.s32 %v752, %v754
          %v756 = vrot.slane %v742, %v755
          %v757 = vcombine.high %v756, %v756
          %v759 = vunpack.c.l.s4 1983009808
          %v760 = vunpack.c.0.s8 %v759
          %v761 = vlaneseq
          %v762 = vshrl.u32 %v761, 7
          %v763 = vsub.s32 %v760, %v762
          %v764 = vrot.slane %v744, %v763
          %v765 = vcombine.high %v764, %v764
          %v767 = vunpack.c.l.s4 1983009808
          %v768 = vunpack.c.0.s8 %v767
          %v769 = vlaneseq
          %v770 = vshrl.u32 %v769, 7
          %v771 = vsub.s32 %v768, %v770
          %v772 = vrot.slane %v746, %v771
          %v773 = vcombine.high %v772, %v772
          %v780 = vsel %vm730, %v756, 0.0
          %v781 = vsel %vm730, %v764, 0.0
          %v782 = vadd.f32 %v780, %v781
          %v783 = vsel %vm730, %v772, 0.0
          %v784 = vadd.f32 %v782, %v783
          %v785 = vsel %vm730, %v757, 0.0
          %v786 = vsel %vm730, %v765, 0.0
          %v787 = vadd.f32 %v785, %v786
          %v788 = vsel %vm730, %v773, 0.0
          %v789 = vadd.f32 %v787, %v788
          %v790 = vlog2.pop %v784
          %v791 = vmul.f32 %v790, 0.6931472
          %v792 = vlog2.pop %v789
          %v793 = vmul.f32 %v792, 0.6931472
          %v796 = vcombine.low %v791, %v793
          %v798 = vunpack.c.l.s4 1983009808
          %v799 = vunpack.c.0.s8 %v798
          %v800 = vlaneseq
          %v801 = vshrl.u32 %v800, 7
          %v802 = vsub.s32 %v799, %v801
          %v803 = vrot.slane %v796, %v802
          %v805 = vsub.f32 %v738, %v803
          %v806 = vsub.f32 %v739, %v803
          %v807 = vsub.f32 %v740, %v803
          %808 = vst [vmem:[#allocation2] sm:$0xf] %v805
          %809 = vst [vmem:[#allocation2 + $0x4] sm:$0xf] %v806
          %810 = vst [vmem:[#allocation2 + $0x8] sm:$0xf] %v807
        $region96: #{vimon_forward.2} parent=83 // pred_fallthru
          _
        %s811 = smul.u32 %s35, 6
        %s812 = smul.addr %s811, 2
        %s813 = scalar_lea.vmem %s0, %s812
        %v814 = vld [vmem:[%s813] sm:$0xff]
        %v815 = vld [vmem:[%s813 + $0x8] sm:$0xf]
        %v816 = vld [vmem:[#allocation2] sm:$0xf]
        %v817 = vld [vmem:[#allocation2 + $0x4] sm:$0xf]
        %s818 = sld [smem:[#allocation4]]
        %s819 = sld [smem:[#allocation5 + $0x3]]
        %v820 = vstv %s819
        %v821 = vmul.f32 %v820, 0.0
        %v822 = vstv %s818
        %v823 = vadd.f32 %v822, %v821
        %s824 = sld [smem:[#allocation5 + $0x4]]
        %v825 = vstv %s824
        %v826 = vmul.f32 %v825, %v816
        %v827 = vadd.f32 %v823, %v826
        %s828 = sld [smem:[#allocation5]]
        %v829 = vstv %s828
        %v830 = vmul.f32 %v829, %v814
        %v831 = vadd.f32 %v827, %v830
        %s832 = sld [smem:[#allocation5 + $0x1]]
        %v833 = vstv %s832
        %v835 = vrot.slane %v814, 4
        %v837 = vmul.f32 %v833, %v835
        %v838 = vadd.f32 %v831, %v837
        %s839 = sld [smem:[#allocation5 + $0x2]]
        %v840 = vstv %s839
        %v841 = vmul.f32 %v840, %v815
        %v842 = vadd.f32 %v838, %v841
        %v843 = vmin.f32 %v842, 0.0
        %v844 = vand.u32 2147483647, %v842
        %v845 = vsub.f32 0.0, %v844
        %v846 = vmul.f32 %v845, 1.442695
        %v847 = vpow.pop %v846
        %v848 = vadd.f32 %v847, 1.0
        %v849 = vlog2.pop %v848
        %v850 = vmul.f32 %v849, 0.6931472
        %v851 = vmul.f32 -0.5, %v847
        %v852 = vadd.f32 %v851, 1.0
        %v853 = vmul.f32 %v852, %v847
        %v854 = vand.u32 2147483647, %v847
        %vm855 = vcmp.lt.f32.partialorder %v854, 0.0004427343
        %v856 = vsel %vm855, %v853, %v850
        %v857 = vsub.f32 %v843, %v856
        %v858 = vadd.f32 %v857, 0.0
        %v859 = vsub.f32 0.0, %v842
        %v860 = vmin.f32 %v859, 0.0
        %v861 = vand.u32 2147483647, %v859
        %v862 = vsub.f32 0.0, %v861
        %v863 = vmul.f32 %v862, 1.442695
        %v864 = vpow.pop %v863
        %v865 = vadd.f32 %v864, 1.0
        %v866 = vlog2.pop %v865
        %v867 = vmul.f32 %v866, 0.6931472
        %v868 = vmul.f32 -0.5, %v864
        %v869 = vadd.f32 %v868, 1.0
        %v870 = vmul.f32 %v869, %v864
        %v871 = vand.u32 2147483647, %v864
        %vm872 = vcmp.lt.f32.partialorder %v871, 0.0004427343
        %v873 = vsel %vm872, %v870, %v867
        %v874 = vsub.f32 %v860, %v873
        %v875 = vadd.f32 %v874, 0.0
        %876 = vst [vmem:[%s687] sm:$0xf] %v858
        %s877 = sld [smem:[#allocation4]]
        %s878 = sld [smem:[#allocation5 + $0x3]]
        %v879 = vstv %s878
        %v880 = vmul.f32 %v879, %v875
        %v881 = vstv %s877
        %v882 = vadd.f32 %v881, %v880
        %s883 = sld [smem:[#allocation5 + $0x4]]
        %v884 = vstv %s883
        %v885 = vmul.f32 %v884, %v817
        %v886 = vadd.f32 %v882, %v885
        %s887 = sld [smem:[#allocation5]]
        %v888 = vstv %s887
        %v889 = vmul.f32 %v888, %v814
        %v890 = vadd.f32 %v886, %v889
        %s891 = sld [smem:[#allocation5 + $0x1]]
        %v892 = vstv %s891
        %v893 = vmul.f32 %v892, %v835
        %v894 = vadd.f32 %v890, %v893
        %s895 = sld [smem:[#allocation5 + $0x2]]
        %v896 = vstv %s895
        %v897 = vmul.f32 %v896, %v815
        %v898 = vadd.f32 %v894, %v897
        %v899 = vmin.f32 %v898, 0.0
        %v900 = vand.u32 2147483647, %v898
        %v901 = vsub.f32 0.0, %v900
        %v902 = vmul.f32 %v901, 1.442695
        %v903 = vpow.pop %v902
        %v904 = vadd.f32 %v903, 1.0
        %v905 = vlog2.pop %v904
        %v906 = vmul.f32 %v905, 0.6931472
        %v907 = vmul.f32 -0.5, %v903
        %v908 = vadd.f32 %v907, 1.0
        %v909 = vmul.f32 %v908, %v903
        %v910 = vand.u32 2147483647, %v903
        %vm911 = vcmp.lt.f32.partialorder %v910, 0.0004427343
        %v912 = vsel %vm911, %v909, %v906
        %v913 = vsub.f32 %v899, %v912
        %v914 = vadd.f32 %v875, %v913
        %v915 = vsub.f32 0.0, %v898
        %v916 = vmin.f32 %v915, 0.0
        %v917 = vand.u32 2147483647, %v915
        %v918 = vsub.f32 0.0, %v917
        %v919 = vmul.f32 %v918, 1.442695
        %v920 = vpow.pop %v919
        %v921 = vadd.f32 %v920, 1.0
        %v922 = vlog2.pop %v921
        %v923 = vmul.f32 %v922, 0.6931472
        %v924 = vmul.f32 -0.5, %v920
        %v925 = vadd.f32 %v924, 1.0
        %v926 = vmul.f32 %v925, %v920
        %v927 = vand.u32 2147483647, %v920
        %vm928 = vcmp.lt.f32.partialorder %v927, 0.0004427343
        %v929 = vsel %vm928, %v926, %v923
        %v930 = vsub.f32 %v916, %v929
        %v931 = vadd.f32 %v875, %v930
        %s932 = scalar_lea.vmem %s687, 4
        %933 = vst [vmem:[%s932] sm:$0xf] %v914
        %s934 = scalar_lea.vmem %s687, 8
        %935 = vst [vmem:[%s934] sm:$0xf] %v931
        %v938 = vunpack.c.l.s4 1983009808
        %v939 = vunpack.c.0.s8 %v938
        %v940 = vlaneseq
        %v941 = vshrl.u32 %v940, 7
        %v942 = vsub.s32 %v939, %v941
        %v943 = vrot.slane %v858, %v942
        %v944 = vcombine.high %v943, %v943
        %v948 = vcombine.low %v914, %v914
        %v950 = vunpack.c.l.s4 1983009808
        %v951 = vunpack.c.0.s8 %v950
        %v952 = vlaneseq
        %v953 = vshrl.u32 %v952, 7
        %v954 = vsub.s32 %v951, %v953
        %v955 = vrot.slane %v948, %v954
        %v956 = vcombine.high %v955, %v955
        %v961 = vunpack.c.l.s4 1983009808
        %v962 = vunpack.c.0.s8 %v961
        %v963 = vlaneseq
        %v964 = vshrl.u32 %v963, 7
        %v965 = vsub.s32 %v962, %v964
        %v966 = vrot.slane %v931, %v965
        %v967 = vcombine.low %v966, %v966
        %vm970 = vcmask 1041408
        %v971 = vsel %vm970, %v943, %v955
        %v972 = vsel %vm970, %v944, %v956
        %vm973 = vcmask 1043456
        %v974 = vsel %vm973, %v971, %v967
        %v975 = vsel %vm973, %v972, %v966
        %v977 = vcombine.high %v814, %v814
        %v979 = vunpack.c.l.s4 1983009808
        %v980 = vunpack.c.0.s8 %v979
        %v981 = vlaneseq
        %v982 = vshrl.u32 %v981, 7
        %v983 = vsub.s32 %v980, %v982
        %v984 = vrot.slane %v814, %v983
        %v986 = vunpack.c.l.s4 1983009808
        %v987 = vunpack.c.0.s8 %v986
        %v988 = vlaneseq
        %v989 = vshrl.u32 %v988, 7
        %v990 = vsub.s32 %v987, %v989
        %v991 = vrot.slane %v977, %v990
        %v992 = vcombine.high %v984, %v984
        %v993 = vcombine.high %v991, %v991
        %v995 = vunpack.c.l.s4 1983009808
        %v996 = vunpack.c.0.s8 %v995
        %v997 = vlaneseq
        %v998 = vshrl.u32 %v997, 7
        %v999 = vsub.s32 %v996, %v998
        %v1000 = vrot.slane %v815, %v999
        %v1001 = vcombine.high %v1000, %v1000
        %v1008 = vcombine.low %v814, %v814
        %v1010 = vunpack.c.l.s4 1983009808
        %v1011 = vunpack.c.0.s8 %v1010
        %v1012 = vlaneseq
        %v1013 = vshrl.u32 %v1012, 7
        %v1014 = vsub.s32 %v1011, %v1013
        %v1015 = vrot.slane %v1008, %v1014
        %v1016 = vcombine.high %v1015, %v1015
        %v1017 = vcombine.low %v815, %v815
        %v1019 = vunpack.c.l.s4 1983009808
        %v1020 = vunpack.c.0.s8 %v1019
        %v1021 = vlaneseq
        %v1022 = vshrl.u32 %v1021, 7
        %v1023 = vsub.s32 %v1020, %v1022
        %v1024 = vrot.slane %v1017, %v1023
        %v1025 = vcombine.high %v1024, %v1024
        %v1030 = vcombine.low %v984, %v984
        %v1031 = vcombine.low %v991, %v991
        %v1032 = vcombine.low %v1000, %v1000
        %v1036 = vsel %vm970, %v984, %v1015
        %v1037 = vsel %vm970, %v992, %v1016
        %v1038 = vsel %vm970, %v991, %v984
        %v1039 = vsel %vm970, %v993, %v992
        %v1040 = vsel %vm970, %v1000, %v1024
        %v1041 = vsel %vm970, %v1001, %v1025
        %v1042 = vsel %vm973, %v1036, %v1030
        %v1043 = vsel %vm973, %v1037, %v984
        %v1044 = vsel %vm973, %v1038, %v1031
        %v1045 = vsel %vm973, %v1039, %v991
        %v1046 = vsel %vm973, %v1040, %v1032
        %v1047 = vsel %vm973, %v1041, %v1000
        %v1048 = vpack.c.bf16 %v1042, %v1042
        %v1049 = vpack.c.bf16 %v1043, %v1043
        %v1050 = vpack.c.bf16 %v1044, %v1044
        %v1051 = vpack.c.bf16 %v1045, %v1045
        %v1052 = vpack.c.bf16 %v1046, %v1046
        %v1053 = vpack.c.bf16 %v1047, %v1047
        %v1054 = vpack.c.bf16 %v974, %v974
        %v1055 = vpack.c.bf16 %v975, %v975
        %v1056 = vld [vmem:[%s4] sm:$0xf]
        %v1057 = vld [vmem:[%s4 + $0x4] sm:$0xf]
        %v1058 = vld [vmem:[%s4 + $0x8] sm:$0xf]
        %v1059 = vld [vmem:[%s4 + $0xc] sm:$0xf]
        %v1060 = vld [vmem:[%s4 + $0x10] sm:$0xf]
        %v1061 = vld [vmem:[%s4 + $0x14] sm:$0xf]
        %v1062 = vld [vmem:[%s4 + $0x18] sm:$0xf]
        %v1063 = vld [vmem:[%s4 + $0x1c] sm:$0xf]
        %v1064 = vld [vmem:[%s4 + $0x20] sm:$0xf]
        %v1065 = vld [vmem:[%s4 + $0x24] sm:$0xf]
        %v1066 = vld [vmem:[%s4 + $0x28] sm:$0xf]
        %v1067 = vld [vmem:[%s4 + $0x2c] sm:$0xf]
        %v1068 = vld [vmem:[%s4 + $0x30] sm:$0xf]
        %v1069 = vld [vmem:[%s4 + $0x34] sm:$0xf]
        %v1070 = vld [vmem:[%s4 + $0x38] sm:$0xf]
        %v1071 = vld [vmem:[%s4 + $0x3c] sm:$0xf]
        %v1072 = vld [vmem:[%s4 + $0x40] sm:$0xf]
        %v1073 = vld [vmem:[%s4 + $0x44] sm:$0xf]
        %v1074 = vld [vmem:[%s4 + $0x48] sm:$0xf]
        %v1075 = vld [vmem:[%s4 + $0x4c] sm:$0xf]
        %v1076 = vld [vmem:[%s4 + $0x50] sm:$0xf]
        %v1077 = vld [vmem:[%s4 + $0x54] sm:$0xf]
        %v1078 = vld [vmem:[%s4 + $0x58] sm:$0xf]
        %v1079 = vld [vmem:[%s4 + $0x5c] sm:$0xf]
        %v1080 = vld [vmem:[%s4 + $0x60] sm:$0xf]
        %v1081 = vld [vmem:[%s4 + $0x64] sm:$0xf]
        %v1082 = vld [vmem:[%s4 + $0x68] sm:$0xf]
        %v1083 = vld [vmem:[%s4 + $0x6c] sm:$0xf]
        %v1084 = vld [vmem:[%s4 + $0x70] sm:$0xf]
        %v1085 = vld [vmem:[%s4 + $0x74] sm:$0xf]
        %v1086 = vld [vmem:[%s4 + $0x78] sm:$0xf]
        %v1087 = vld [vmem:[%s4 + $0x7c] sm:$0xf]
        %v1088 = vld [vmem:[%s4 + $0x80] sm:$0xf]
        %v1089 = vld [vmem:[%s4 + $0x84] sm:$0xf]
        %v1090 = vld [vmem:[%s4 + $0x88] sm:$0xf]
        %v1091 = vld [vmem:[%s4 + $0x8c] sm:$0xf]
        %v1092 = vld [vmem:[%s4 + $0x90] sm:$0xf]
        %v1093 = vld [vmem:[%s4 + $0x94] sm:$0xf]
        %v1094 = vld [vmem:[%s4 + $0x98] sm:$0xf]
        %v1095 = vld [vmem:[%s4 + $0x9c] sm:$0xf]
        %v1096 = vld [vmem:[%s4 + $0xa0] sm:$0xf]
        %v1097 = vld [vmem:[%s4 + $0xa4] sm:$0xf]
        %v1098 = vld [vmem:[%s4 + $0xa8] sm:$0xf]
        %v1099 = vld [vmem:[%s4 + $0xac] sm:$0xf]
        %v1100 = vld [vmem:[%s4 + $0xb0] sm:$0xf]
        %v1101 = vld [vmem:[%s4 + $0xb4] sm:$0xf]
        %v1102 = vld [vmem:[%s4 + $0xb8] sm:$0xf]
        %v1103 = vld [vmem:[%s4 + $0xbc] sm:$0xf]
        %v1104 = vld [vmem:[%s4 + $0xc0] sm:$0xf]
        %v1105 = vld [vmem:[%s4 + $0xc4] sm:$0xf]
        %v1106 = vld [vmem:[%s4 + $0xc8] sm:$0xf]
        %v1107 = vld [vmem:[%s4 + $0xcc] sm:$0xf]
        %v1108 = vld [vmem:[%s4 + $0xd0] sm:$0xf]
        %v1109 = vld [vmem:[%s4 + $0xd4] sm:$0xf]
        %v1110 = vld [vmem:[%s4 + $0xd8] sm:$0xf]
        %v1111 = vld [vmem:[%s4 + $0xdc] sm:$0xf]
        %v1112 = vld [vmem:[%s4 + $0xe0] sm:$0xf]
        %v1113 = vld [vmem:[%s4 + $0xe4] sm:$0xf]
        %v1114 = vld [vmem:[%s4 + $0xe8] sm:$0xf]
        %v1115 = vld [vmem:[%s4 + $0xec] sm:$0xf]
        %v1116 = vld [vmem:[%s4 + $0xf0] sm:$0xf]
        %v1117 = vld [vmem:[%s4 + $0xf4] sm:$0xf]
        %v1118 = vld [vmem:[%s4 + $0xf8] sm:$0xf]
        %v1119 = vld [vmem:[%s4 + $0xfc] sm:$0xf]
        %v1120 = vld [vmem:[%s4 + $0x100] sm:$0xf]
        %v1121 = vld [vmem:[%s4 + $0x104] sm:$0xf]
        %v1122 = vld [vmem:[%s4 + $0x108] sm:$0xf]
        %v1123 = vld [vmem:[%s4 + $0x10c] sm:$0xf]
        %v1124 = vld [vmem:[%s4 + $0x110] sm:$0xf]
        %v1125 = vld [vmem:[%s4 + $0x114] sm:$0xf]
        %v1126 = vld [vmem:[%s4 + $0x118] sm:$0xf]
        %v1127 = vld [vmem:[%s4 + $0x11c] sm:$0xf]
        %v1128 = vld [vmem:[%s4 + $0x120] sm:$0xf]
        %v1129 = vld [vmem:[%s4 + $0x124] sm:$0xf]
        %v1130 = vld [vmem:[%s4 + $0x128] sm:$0xf]
        %v1131 = vld [vmem:[%s4 + $0x12c] sm:$0xf]
        %v1132 = vld [vmem:[%s4 + $0x130] sm:$0xf]
        %v1133 = vld [vmem:[%s4 + $0x134] sm:$0xf]
        %v1134 = vld [vmem:[%s4 + $0x138] sm:$0xf]
        %v1135 = vld [vmem:[%s4 + $0x13c] sm:$0xf]
        %v1136 = vld [vmem:[%s4 + $0x140] sm:$0xf]
        %v1137 = vld [vmem:[%s4 + $0x144] sm:$0xf]
        %v1138 = vld [vmem:[%s4 + $0x148] sm:$0xf]
        %v1139 = vld [vmem:[%s4 + $0x14c] sm:$0xf]
        %v1140 = vld [vmem:[%s4 + $0x150] sm:$0xf]
        %v1141 = vld [vmem:[%s4 + $0x154] sm:$0xf]
        %v1142 = vld [vmem:[%s4 + $0x158] sm:$0xf]
        %v1143 = vld [vmem:[%s4 + $0x15c] sm:$0xf]
        %v1144 = vld [vmem:[%s4 + $0x160] sm:$0xf]
        %v1145 = vld [vmem:[%s4 + $0x164] sm:$0xf]
        %v1146 = vld [vmem:[%s4 + $0x168] sm:$0xf]
        %v1147 = vld [vmem:[%s4 + $0x16c] sm:$0xf]
        %v1148 = vld [vmem:[%s4 + $0x170] sm:$0xf]
        %v1149 = vld [vmem:[%s4 + $0x174] sm:$0xf]
        %v1150 = vld [vmem:[%s4 + $0x178] sm:$0xf]
        %v1151 = vld [vmem:[%s4 + $0x17c] sm:$0xf]
        %v1152 = vld [vmem:[%s4 + $0x180] sm:$0xf]
        %v1153 = vld [vmem:[%s4 + $0x184] sm:$0xf]
        %v1154 = vld [vmem:[%s4 + $0x188] sm:$0xf]
        %v1155 = vld [vmem:[%s4 + $0x18c] sm:$0xf]
        %v1156 = vld [vmem:[%s4 + $0x190] sm:$0xf]
        %v1157 = vld [vmem:[%s4 + $0x194] sm:$0xf]
        %v1158 = vld [vmem:[%s4 + $0x198] sm:$0xf]
        %v1159 = vld [vmem:[%s4 + $0x19c] sm:$0xf]
        %v1160 = vld [vmem:[%s4 + $0x1a0] sm:$0xf]
        %v1161 = vld [vmem:[%s4 + $0x1a4] sm:$0xf]
        %v1162 = vld [vmem:[%s4 + $0x1a8] sm:$0xf]
        %v1163 = vld [vmem:[%s4 + $0x1ac] sm:$0xf]
        %v1164 = vld [vmem:[%s4 + $0x1b0] sm:$0xf]
        %v1165 = vld [vmem:[%s4 + $0x1b4] sm:$0xf]
        %v1166 = vld [vmem:[%s4 + $0x1b8] sm:$0xf]
        %v1167 = vld [vmem:[%s4 + $0x1bc] sm:$0xf]
        %v1168 = vld [vmem:[%s4 + $0x1c0] sm:$0xf]
        %v1169 = vld [vmem:[%s4 + $0x1c4] sm:$0xf]
        %v1170 = vld [vmem:[%s4 + $0x1c8] sm:$0xf]
        %v1171 = vld [vmem:[%s4 + $0x1cc] sm:$0xf]
        %v1172 = vld [vmem:[%s4 + $0x1d0] sm:$0xf]
        %v1173 = vld [vmem:[%s4 + $0x1d4] sm:$0xf]
        %v1174 = vld [vmem:[%s4 + $0x1d8] sm:$0xf]
        %v1175 = vld [vmem:[%s4 + $0x1dc] sm:$0xf]
        %v1176 = vld [vmem:[%s4 + $0x1e0] sm:$0xf]
        %v1177 = vld [vmem:[%s4 + $0x1e4] sm:$0xf]
        %v1178 = vld [vmem:[%s4 + $0x1e8] sm:$0xf]
        %v1179 = vld [vmem:[%s4 + $0x1ec] sm:$0xf]
        %v1180 = vld [vmem:[%s4 + $0x1f0] sm:$0xf]
        %v1181 = vld [vmem:[%s4 + $0x1f4] sm:$0xf]
        %v1182 = vld [vmem:[%s4 + $0x1f8] sm:$0xf]
        %v1183 = vld [vmem:[%s4 + $0x1fc] sm:$0xf]
        %v1184 = vld [vmem:[%s5] sm:$0x1]
        %v1186 = vlaneseq
        %v1187 = vshrl.u32 %v1186, 7
        %v1188 = vsub.s32 0, %v1187
        %v1189 = vrot.slane %v1184, %v1188
        %v1319 = vunpack.c.l.b16 %v1056
        %v1320 = vunpack.c.l.b16 %v1057
        %v1321 = vunpack.c.l.b16 %v1058
        %v1322 = vunpack.c.l.b16 %v1059
        %v1323 = vunpack.c.l.b16 %v1060
        %v1324 = vunpack.c.l.b16 %v1061
        %v1325 = vunpack.c.l.b16 %v1062
        %v1326 = vunpack.c.l.b16 %v1063
        %v1327 = vunpack.c.l.b16 %v1064
        %v1328 = vunpack.c.l.b16 %v1065
        %v1329 = vunpack.c.l.b16 %v1066
        %v1330 = vunpack.c.l.b16 %v1067
        %v1331 = vunpack.c.l.b16 %v1068
        %v1332 = vunpack.c.l.b16 %v1069
        %v1333 = vunpack.c.l.b16 %v1070
        %v1334 = vunpack.c.l.b16 %v1071
        %v1335 = vunpack.c.l.b16 %v1072
        %v1336 = vunpack.c.l.b16 %v1073
        %v1337 = vunpack.c.l.b16 %v1074
        %v1338 = vunpack.c.l.b16 %v1075
        %v1339 = vunpack.c.l.b16 %v1076
        %v1340 = vunpack.c.l.b16 %v1077
        %v1341 = vunpack.c.l.b16 %v1078
        %v1342 = vunpack.c.l.b16 %v1079
        %v1343 = vunpack.c.l.b16 %v1080
        %v1344 = vunpack.c.l.b16 %v1081
        %v1345 = vunpack.c.l.b16 %v1082
        %v1346 = vunpack.c.l.b16 %v1083
        %v1347 = vunpack.c.l.b16 %v1084
        %v1348 = vunpack.c.l.b16 %v1085
        %v1349 = vunpack.c.l.b16 %v1086
        %v1350 = vunpack.c.l.b16 %v1087
        %v1351 = vunpack.c.l.b16 %v1088
        %v1352 = vunpack.c.l.b16 %v1089
        %v1353 = vunpack.c.l.b16 %v1090
        %v1354 = vunpack.c.l.b16 %v1091
        %v1355 = vunpack.c.l.b16 %v1092
        %v1356 = vunpack.c.l.b16 %v1093
        %v1357 = vunpack.c.l.b16 %v1094
        %v1358 = vunpack.c.l.b16 %v1095
        %v1359 = vunpack.c.l.b16 %v1096
        %v1360 = vunpack.c.l.b16 %v1097
        %v1361 = vunpack.c.l.b16 %v1098
        %v1362 = vunpack.c.l.b16 %v1099
        %v1363 = vunpack.c.l.b16 %v1100
        %v1364 = vunpack.c.l.b16 %v1101
        %v1365 = vunpack.c.l.b16 %v1102
        %v1366 = vunpack.c.l.b16 %v1103
        %v1367 = vunpack.c.l.b16 %v1104
        %v1368 = vunpack.c.l.b16 %v1105
        %v1369 = vunpack.c.l.b16 %v1106
        %v1370 = vunpack.c.l.b16 %v1107
        %v1371 = vunpack.c.l.b16 %v1108
        %v1372 = vunpack.c.l.b16 %v1109
        %v1373 = vunpack.c.l.b16 %v1110
        %v1374 = vunpack.c.l.b16 %v1111
        %v1375 = vunpack.c.l.b16 %v1112
        %v1376 = vunpack.c.l.b16 %v1113
        %v1377 = vunpack.c.l.b16 %v1114
        %v1378 = vunpack.c.l.b16 %v1115
        %v1379 = vunpack.c.l.b16 %v1116
        %v1380 = vunpack.c.l.b16 %v1117
        %v1381 = vunpack.c.l.b16 %v1118
        %v1382 = vunpack.c.l.b16 %v1119
        %v1383 = vunpack.c.l.b16 %v1120
        %v1384 = vunpack.c.l.b16 %v1121
        %v1385 = vunpack.c.l.b16 %v1122
        %v1386 = vunpack.c.l.b16 %v1123
        %v1387 = vunpack.c.l.b16 %v1124
        %v1388 = vunpack.c.l.b16 %v1125
        %v1389 = vunpack.c.l.b16 %v1126
        %v1390 = vunpack.c.l.b16 %v1127
        %v1391 = vunpack.c.l.b16 %v1128
        %v1392 = vunpack.c.l.b16 %v1129
        %v1393 = vunpack.c.l.b16 %v1130
        %v1394 = vunpack.c.l.b16 %v1131
        %v1395 = vunpack.c.l.b16 %v1132
        %v1396 = vunpack.c.l.b16 %v1133
        %v1397 = vunpack.c.l.b16 %v1134
        %v1398 = vunpack.c.l.b16 %v1135
        %v1399 = vunpack.c.l.b16 %v1136
        %v1400 = vunpack.c.l.b16 %v1137
        %v1401 = vunpack.c.l.b16 %v1138
        %v1402 = vunpack.c.l.b16 %v1139
        %v1403 = vunpack.c.l.b16 %v1140
        %v1404 = vunpack.c.l.b16 %v1141
        %v1405 = vunpack.c.l.b16 %v1142
        %v1406 = vunpack.c.l.b16 %v1143
        %v1407 = vunpack.c.l.b16 %v1144
        %v1408 = vunpack.c.l.b16 %v1145
        %v1409 = vunpack.c.l.b16 %v1146
        %v1410 = vunpack.c.l.b16 %v1147
        %v1411 = vunpack.c.l.b16 %v1148
        %v1412 = vunpack.c.l.b16 %v1149
        %v1413 = vunpack.c.l.b16 %v1150
        %v1414 = vunpack.c.l.b16 %v1151
        %v1415 = vunpack.c.l.b16 %v1152
        %v1416 = vunpack.c.l.b16 %v1153
        %v1417 = vunpack.c.l.b16 %v1154
        %v1418 = vunpack.c.l.b16 %v1155
        %v1419 = vunpack.c.l.b16 %v1156
        %v1420 = vunpack.c.l.b16 %v1157
        %v1421 = vunpack.c.l.b16 %v1158
        %v1422 = vunpack.c.l.b16 %v1159
        %v1423 = vunpack.c.l.b16 %v1160
        %v1424 = vunpack.c.l.b16 %v1161
        %v1425 = vunpack.c.l.b16 %v1162
        %v1426 = vunpack.c.l.b16 %v1163
        %v1427 = vunpack.c.l.b16 %v1164
        %v1428 = vunpack.c.l.b16 %v1165
        %v1429 = vunpack.c.l.b16 %v1166
        %v1430 = vunpack.c.l.b16 %v1167
        %v1431 = vunpack.c.l.b16 %v1168
        %v1432 = vunpack.c.l.b16 %v1169
        %v1433 = vunpack.c.l.b16 %v1170
        %v1434 = vunpack.c.l.b16 %v1171
        %v1435 = vunpack.c.l.b16 %v1172
        %v1436 = vunpack.c.l.b16 %v1173
        %v1437 = vunpack.c.l.b16 %v1174
        %v1438 = vunpack.c.l.b16 %v1175
        %v1439 = vunpack.c.l.b16 %v1176
        %v1440 = vunpack.c.l.b16 %v1177
        %v1441 = vunpack.c.l.b16 %v1178
        %v1442 = vunpack.c.l.b16 %v1179
        %v1443 = vunpack.c.l.b16 %v1180
        %v1444 = vunpack.c.l.b16 %v1181
        %v1445 = vunpack.c.l.b16 %v1182
        %v1446 = vunpack.c.l.b16 %v1183
        %v1447 = vpack.c.b16 %v1320, %v1319
        %v1448 = vpack.c.b16 %v1322, %v1321
        %v1449 = vpack.c.b16 %v1324, %v1323
        %v1450 = vpack.c.b16 %v1326, %v1325
        %v1451 = vpack.c.b16 %v1328, %v1327
        %v1452 = vpack.c.b16 %v1330, %v1329
        %v1453 = vpack.c.b16 %v1332, %v1331
        %v1454 = vpack.c.b16 %v1334, %v1333
        %v1455 = vpack.c.b16 %v1336, %v1335
        %v1456 = vpack.c.b16 %v1338, %v1337
        %v1457 = vpack.c.b16 %v1340, %v1339
        %v1458 = vpack.c.b16 %v1342, %v1341
        %v1459 = vpack.c.b16 %v1344, %v1343
        %v1460 = vpack.c.b16 %v1346, %v1345
        %v1461 = vpack.c.b16 %v1348, %v1347
        %v1462 = vpack.c.b16 %v1350, %v1349
        %v1463 = vpack.c.b16 %v1352, %v1351
        %v1464 = vpack.c.b16 %v1354, %v1353
        %v1465 = vpack.c.b16 %v1356, %v1355
        %v1466 = vpack.c.b16 %v1358, %v1357
        %v1467 = vpack.c.b16 %v1360, %v1359
        %v1468 = vpack.c.b16 %v1362, %v1361
        %v1469 = vpack.c.b16 %v1364, %v1363
        %v1470 = vpack.c.b16 %v1366, %v1365
        %v1471 = vpack.c.b16 %v1368, %v1367
        %v1472 = vpack.c.b16 %v1370, %v1369
        %v1473 = vpack.c.b16 %v1372, %v1371
        %v1474 = vpack.c.b16 %v1374, %v1373
        %v1475 = vpack.c.b16 %v1376, %v1375
        %v1476 = vpack.c.b16 %v1378, %v1377
        %v1477 = vpack.c.b16 %v1380, %v1379
        %v1478 = vpack.c.b16 %v1382, %v1381
        %v1479 = vpack.c.b16 %v1384, %v1383
        %v1480 = vpack.c.b16 %v1386, %v1385
        %v1481 = vpack.c.b16 %v1388, %v1387
        %v1482 = vpack.c.b16 %v1390, %v1389
        %v1483 = vpack.c.b16 %v1392, %v1391
        %v1484 = vpack.c.b16 %v1394, %v1393
        %v1485 = vpack.c.b16 %v1396, %v1395
        %v1486 = vpack.c.b16 %v1398, %v1397
        %v1487 = vpack.c.b16 %v1400, %v1399
        %v1488 = vpack.c.b16 %v1402, %v1401
        %v1489 = vpack.c.b16 %v1404, %v1403
        %v1490 = vpack.c.b16 %v1406, %v1405
        %v1491 = vpack.c.b16 %v1408, %v1407
        %v1492 = vpack.c.b16 %v1410, %v1409
        %v1493 = vpack.c.b16 %v1412, %v1411
        %v1494 = vpack.c.b16 %v1414, %v1413
        %v1495 = vpack.c.b16 %v1416, %v1415
        %v1496 = vpack.c.b16 %v1418, %v1417
        %v1497 = vpack.c.b16 %v1420, %v1419
        %v1498 = vpack.c.b16 %v1422, %v1421
        %v1499 = vpack.c.b16 %v1424, %v1423
        %v1500 = vpack.c.b16 %v1426, %v1425
        %v1501 = vpack.c.b16 %v1428, %v1427
        %v1502 = vpack.c.b16 %v1430, %v1429
        %v1503 = vpack.c.b16 %v1432, %v1431
        %v1504 = vpack.c.b16 %v1434, %v1433
        %v1505 = vpack.c.b16 %v1436, %v1435
        %v1506 = vpack.c.b16 %v1438, %v1437
        %v1507 = vpack.c.b16 %v1440, %v1439
        %v1508 = vpack.c.b16 %v1442, %v1441
        %v1509 = vpack.c.b16 %v1444, %v1443
        %v1510 = vpack.c.b16 %v1446, %v1445
        %1575 = vmatprep.subr.bf16.mxu0 0
        %1576 = vmatpush1.bf16.msra.mxu0 %v1447
        %1577 = vmatprep.subr.bf16.mxu0 0
        %1578 = vmatpush1.bf16.msra.mxu0 %v1448
        %1579 = vmatprep.subr.bf16.mxu0 0
        %1580 = vmatpush1.bf16.msra.mxu0 %v1449
        %1581 = vmatprep.subr.bf16.mxu0 0
        %1582 = vmatpush1.bf16.msra.mxu0 %v1450
        %1583 = vmatprep.subr.bf16.mxu0 0
        %1584 = vmatpush1.bf16.msra.mxu0 %v1451
        %1585 = vmatprep.subr.bf16.mxu0 0
        %1586 = vmatpush1.bf16.msra.mxu0 %v1452
        %1587 = vmatprep.subr.bf16.mxu0 0
        %1588 = vmatpush1.bf16.msra.mxu0 %v1453
        %1589 = vmatprep.subr.bf16.mxu0 0
        %1590 = vmatpush1.bf16.msra.mxu0 %v1454
        %1591 = vmatprep.subr.bf16.mxu0 0
        %1592 = vmatpush1.bf16.msra.mxu0 %v1455
        %1593 = vmatprep.subr.bf16.mxu0 0
        %1594 = vmatpush1.bf16.msra.mxu0 %v1456
        %1595 = vmatprep.subr.bf16.mxu0 0
        %1596 = vmatpush1.bf16.msra.mxu0 %v1457
        %1597 = vmatprep.subr.bf16.mxu0 0
        %1598 = vmatpush1.bf16.msra.mxu0 %v1458
        %1599 = vmatprep.subr.bf16.mxu0 0
        %1600 = vmatpush1.bf16.msra.mxu0 %v1459
        %1601 = vmatprep.subr.bf16.mxu0 0
        %1602 = vmatpush1.bf16.msra.mxu0 %v1460
        %1603 = vmatprep.subr.bf16.mxu0 0
        %1604 = vmatpush1.bf16.msra.mxu0 %v1461
        %1605 = vmatprep.subr.bf16.mxu0 0
        %1606 = vmatpush1.bf16.msra.mxu0 %v1462
        %1607 = vmatprep.mubr.bf16.mxu0 %v1049
        %1608 = vmatmul.mubr.bf16.gmra.mrb[0].mxu0 %v1048
        %v1609 = vpop.f32.mrb[0].mxu0
        %v1610 = vadd.f32 %v1189, %v1609
        %v1611 = vpop.f32.mrb[0].mxu0
        %v1612 = vpop.f32.mrb[0].mxu0
        %v1613 = vpop.f32.mrb[0].mxu0
        %1614 = vdwg.mxu0
        %1615 = vmatprep.subr.bf16.mxu0 0
        %1616 = vmatpush1.bf16.msra.mxu0 %v1463
        %1617 = vmatprep.subr.bf16.mxu0 0
        %1618 = vmatpush1.bf16.msra.mxu0 %v1464
        %1619 = vmatprep.subr.bf16.mxu0 0
        %1620 = vmatpush1.bf16.msra.mxu0 %v1465
        %1621 = vmatprep.subr.bf16.mxu0 0
        %1622 = vmatpush1.bf16.msra.mxu0 %v1466
        %1623 = vmatprep.subr.bf16.mxu0 0
        %1624 = vmatpush1.bf16.msra.mxu0 %v1467
        %1625 = vmatprep.subr.bf16.mxu0 0
        %1626 = vmatpush1.bf16.msra.mxu0 %v1468
        %1627 = vmatprep.subr.bf16.mxu0 0
        %1628 = vmatpush1.bf16.msra.mxu0 %v1469
        %1629 = vmatprep.subr.bf16.mxu0 0
        %1630 = vmatpush1.bf16.msra.mxu0 %v1470
        %1631 = vmatprep.subr.bf16.mxu0 0
        %1632 = vmatpush1.bf16.msra.mxu0 %v1471
        %1633 = vmatprep.subr.bf16.mxu0 0
        %1634 = vmatpush1.bf16.msra.mxu0 %v1472
        %1635 = vmatprep.subr.bf16.mxu0 0
        %1636 = vmatpush1.bf16.msra.mxu0 %v1473
        %1637 = vmatprep.subr.bf16.mxu0 0
        %1638 = vmatpush1.bf16.msra.mxu0 %v1474
        %1639 = vmatprep.subr.bf16.mxu0 0
        %1640 = vmatpush1.bf16.msra.mxu0 %v1475
        %1641 = vmatprep.subr.bf16.mxu0 0
        %1642 = vmatpush1.bf16.msra.mxu0 %v1476
        %1643 = vmatprep.subr.bf16.mxu0 0
        %1644 = vmatpush1.bf16.msra.mxu0 %v1477
        %1645 = vmatprep.subr.bf16.mxu0 0
        %1646 = vmatpush1.bf16.msra.mxu0 %v1478
        %1647 = vmatprep.mubr.bf16.mxu0 %v1051
        %1648 = vmatmul.mubr.bf16.gmra.mrb[0].mxu0 %v1050
        %v1649 = vpop.f32.mrb[0].mxu0
        %v1650 = vadd.f32 %v1610, %v1649
        %v1651 = vpop.f32.mrb[0].mxu0
        %v1652 = vpop.f32.mrb[0].mxu0
        %v1653 = vpop.f32.mrb[0].mxu0
        %1654 = vdwg.mxu0
        %1655 = vmatprep.subr.bf16.mxu0 0
        %1656 = vmatpush1.bf16.msra.mxu0 %v1479
        %1657 = vmatprep.subr.bf16.mxu0 0
        %1658 = vmatpush1.bf16.msra.mxu0 %v1480
        %1659 = vmatprep.subr.bf16.mxu0 0
        %1660 = vmatpush1.bf16.msra.mxu0 %v1481
        %1661 = vmatprep.subr.bf16.mxu0 0
        %1662 = vmatpush1.bf16.msra.mxu0 %v1482
        %1663 = vmatprep.subr.bf16.mxu0 0
        %1664 = vmatpush1.bf16.msra.mxu0 %v1483
        %1665 = vmatprep.subr.bf16.mxu0 0
        %1666 = vmatpush1.bf16.msra.mxu0 %v1484
        %1667 = vmatprep.subr.bf16.mxu0 0
        %1668 = vmatpush1.bf16.msra.mxu0 %v1485
        %1669 = vmatprep.subr.bf16.mxu0 0
        %1670 = vmatpush1.bf16.msra.mxu0 %v1486
        %1671 = vmatprep.subr.bf16.mxu0 0
        %1672 = vmatpush1.bf16.msra.mxu0 %v1487
        %1673 = vmatprep.subr.bf16.mxu0 0
        %1674 = vmatpush1.bf16.msra.mxu0 %v1488
        %1675 = vmatprep.subr.bf16.mxu0 0
        %1676 = vmatpush1.bf16.msra.mxu0 %v1489
        %1677 = vmatprep.subr.bf16.mxu0 0
        %1678 = vmatpush1.bf16.msra.mxu0 %v1490
        %1679 = vmatprep.subr.bf16.mxu0 0
        %1680 = vmatpush1.bf16.msra.mxu0 %v1491
        %1681 = vmatprep.subr.bf16.mxu0 0
        %1682 = vmatpush1.bf16.msra.mxu0 %v1492
        %1683 = vmatprep.subr.bf16.mxu0 0
        %1684 = vmatpush1.bf16.msra.mxu0 %v1493
        %1685 = vmatprep.subr.bf16.mxu0 0
        %1686 = vmatpush1.bf16.msra.mxu0 %v1494
        %1687 = vmatprep.mubr.bf16.mxu0 %v1053
        %1688 = vmatmul.mubr.bf16.gmra.mrb[0].mxu0 %v1052
        %v1689 = vpop.f32.mrb[0].mxu0
        %v1690 = vadd.f32 %v1650, %v1689
        %v1691 = vpop.f32.mrb[0].mxu0
        %v1692 = vpop.f32.mrb[0].mxu0
        %v1693 = vpop.f32.mrb[0].mxu0
        %1694 = vdwg.mxu0
        %1695 = vmatprep.subr.bf16.mxu0 0
        %1696 = vmatpush1.bf16.msra.mxu0 %v1495
        %1697 = vmatprep.subr.bf16.mxu0 0
        %1698 = vmatpush1.bf16.msra.mxu0 %v1496
        %1699 = vmatprep.subr.bf16.mxu0 0
        %1700 = vmatpush1.bf16.msra.mxu0 %v1497
        %1701 = vmatprep.subr.bf16.mxu0 0
        %1702 = vmatpush1.bf16.msra.mxu0 %v1498
        %1703 = vmatprep.subr.bf16.mxu0 0
        %1704 = vmatpush1.bf16.msra.mxu0 %v1499
        %1705 = vmatprep.subr.bf16.mxu0 0
        %1706 = vmatpush1.bf16.msra.mxu0 %v1500
        %1707 = vmatprep.subr.bf16.mxu0 0
        %1708 = vmatpush1.bf16.msra.mxu0 %v1501
        %1709 = vmatprep.subr.bf16.mxu0 0
        %1710 = vmatpush1.bf16.msra.mxu0 %v1502
        %1711 = vmatprep.subr.bf16.mxu0 0
        %1712 = vmatpush1.bf16.msra.mxu0 %v1503
        %1713 = vmatprep.subr.bf16.mxu0 0
        %1714 = vmatpush1.bf16.msra.mxu0 %v1504
        %1715 = vmatprep.subr.bf16.mxu0 0
        %1716 = vmatpush1.bf16.msra.mxu0 %v1505
        %1717 = vmatprep.subr.bf16.mxu0 0
        %1718 = vmatpush1.bf16.msra.mxu0 %v1506
        %1719 = vmatprep.subr.bf16.mxu0 0
        %1720 = vmatpush1.bf16.msra.mxu0 %v1507
        %1721 = vmatprep.subr.bf16.mxu0 0
        %1722 = vmatpush1.bf16.msra.mxu0 %v1508
        %1723 = vmatprep.subr.bf16.mxu0 0
        %1724 = vmatpush1.bf16.msra.mxu0 %v1509
        %1725 = vmatprep.subr.bf16.mxu0 0
        %1726 = vmatpush1.bf16.msra.mxu0 %v1510
        %1727 = vmatprep.mubr.bf16.mxu0 %v1055
        %1728 = vmatmul.mubr.bf16.gmra.mrb[0].mxu0 %v1054
        %v1729 = vpop.f32.mrb[0].mxu0
        %v1730 = vadd.f32 %v1690, %v1729
        %v1731 = vpop.f32.mrb[0].mxu0
        %v1732 = vpop.f32.mrb[0].mxu0
        %v1733 = vpop.f32.mrb[0].mxu0
        %1734 = vdwg.mxu0
        %v1735 = vmul.f32 %v1730, 0.2
        %v1736 = vld [vmem:[#allocation3] sm:$0x3f]
        %v1737 = vpack.c.bf16 %v1735, %v1735
        %v1738 = vld [vmem:[%s6] sm:$0xf]
        %v1739 = vld [vmem:[%s6 + $0x4] sm:$0xf]
        %v1740 = vld [vmem:[%s6 + $0x8] sm:$0xf]
        %v1741 = vld [vmem:[%s6 + $0xc] sm:$0xf]
        %v1742 = vld [vmem:[%s8] sm:$0x1]
        %v1744 = vlaneseq
        %v1745 = vshrl.u32 %v1744, 7
        %v1746 = vsub.s32 0, %v1745
        %v1747 = vrot.slane %v1742, %v1746
        %v1753 = vunpack.c.l.b16 %v1738
        %v1754 = vunpack.c.l.b16 %v1739
        %v1755 = vunpack.c.l.b16 %v1740
        %v1756 = vunpack.c.l.b16 %v1741
        %v1757 = vpack.c.b16 %v1754, %v1753
        %v1758 = vpack.c.b16 %v1756, %v1755
        %vm1761 = vcmask 261120
        %v1763 = vsel %vm1761, %v1737, 0
        %1765 = vmatprep.subr.bf16.mxu0 0
        %1766 = vmatpush1.bf16.msra.mxu0 %v1757
        %1767 = vmatprep.subr.bf16.mxu0 0
        %1768 = vmatpush1.bf16.msra.mxu0 %v1758
        %1769 = vmatprep.subr.bf16.mxu0 0
        %1770 = vmatpush1.bf16.msra.mxu0 0
        %1771 = vmatprep.subr.bf16.mxu0 0
        %1772 = vmatpush1.bf16.msra.mxu0 0
        %1773 = vmatprep.subr.bf16.mxu0 0
        %1774 = vmatpush1.bf16.msra.mxu0 0
        %1775 = vmatprep.subr.bf16.mxu0 0
        %1776 = vmatpush1.bf16.msra.mxu0 0
        %1777 = vmatprep.subr.bf16.mxu0 0
        %1778 = vmatpush1.bf16.msra.mxu0 0
        %1779 = vmatprep.subr.bf16.mxu0 0
        %1780 = vmatpush1.bf16.msra.mxu0 0
        %1781 = vmatprep.subr.bf16.mxu0 0
        %1782 = vmatpush1.bf16.msra.mxu0 0
        %1783 = vmatprep.subr.bf16.mxu0 0
        %1784 = vmatpush1.bf16.msra.mxu0 0
        %1785 = vmatprep.subr.bf16.mxu0 0
        %1786 = vmatpush1.bf16.msra.mxu0 0
        %1787 = vmatprep.subr.bf16.mxu0 0
        %1788 = vmatpush1.bf16.msra.mxu0 0
        %1789 = vmatprep.subr.bf16.mxu0 0
        %1790 = vmatpush1.bf16.msra.mxu0 0
        %1791 = vmatprep.subr.bf16.mxu0 0
        %1792 = vmatpush1.bf16.msra.mxu0 0
        %1793 = vmatprep.subr.bf16.mxu0 0
        %1794 = vmatpush1.bf16.msra.mxu0 0
        %1795 = vmatprep.subr.bf16.mxu0 0
        %1796 = vmatpush1.bf16.msra.mxu0 0
        %1797 = vmatprep.mubr.bf16.mxu0 0
        %1798 = vmatmul.mubr.bf16.gmra.mrb[0].mxu0 %v1763
        %v1799 = vpop.f32.mrb[0].mxu0
        %v1800 = vadd.f32 %v1747, %v1799
        %v1801 = vpop.f32.mrb[0].mxu0
        %v1802 = vpop.f32.mrb[0].mxu0
        %v1803 = vpop.f32.mrb[0].mxu0
        %1804 = vdwg.mxu0
        %v1805 = vpack.c.bf16 %v1736, %v1736
        %v1806 = vld [vmem:[%s7] sm:$0xf]
        %v1807 = vld [vmem:[%s7 + $0x4] sm:$0xf]
        %v1808 = vld [vmem:[%s7 + $0x8] sm:$0xf]
        %v1809 = vld [vmem:[%s7 + $0xc] sm:$0xf]
        %v1810 = vld [vmem:[%s9] sm:$0x1]
        %v1812 = vlaneseq
        %v1813 = vshrl.u32 %v1812, 7
        %v1814 = vsub.s32 0, %v1813
        %v1815 = vrot.slane %v1810, %v1814
        %v1821 = vunpack.c.l.b16 %v1806
        %v1822 = vunpack.c.l.b16 %v1807
        %v1823 = vunpack.c.l.b16 %v1808
        %v1824 = vunpack.c.l.b16 %v1809
        %v1825 = vpack.c.b16 %v1822, %v1821
        %v1826 = vpack.c.b16 %v1824, %v1823
        %v1830 = vsel %vm1761, %v1805, 0
        %1832 = vmatprep.subr.bf16.mxu0 0
        %1833 = vmatpush1.bf16.msra.mxu0 %v1825
        %1834 = vmatprep.subr.bf16.mxu0 0
        %1835 = vmatpush1.bf16.msra.mxu0 %v1826
        %1836 = vmatprep.subr.bf16.mxu0 0
        %1837 = vmatpush1.bf16.msra.mxu0 0
        %1838 = vmatprep.subr.bf16.mxu0 0
        %1839 = vmatpush1.bf16.msra.mxu0 0
        %1840 = vmatprep.subr.bf16.mxu0 0
        %1841 = vmatpush1.bf16.msra.mxu0 0
        %1842 = vmatprep.subr.bf16.mxu0 0
        %1843 = vmatpush1.bf16.msra.mxu0 0
        %1844 = vmatprep.subr.bf16.mxu0 0
        %1845 = vmatpush1.bf16.msra.mxu0 0
        %1846 = vmatprep.subr.bf16.mxu0 0
        %1847 = vmatpush1.bf16.msra.mxu0 0
        %1848 = vmatprep.subr.bf16.mxu0 0
        %1849 = vmatpush1.bf16.msra.mxu0 0
        %1850 = vmatprep.subr.bf16.mxu0 0
        %1851 = vmatpush1.bf16.msra.mxu0 0
        %1852 = vmatprep.subr.bf16.mxu0 0
        %1853 = vmatpush1.bf16.msra.mxu0 0
        %1854 = vmatprep.subr.bf16.mxu0 0
        %1855 = vmatpush1.bf16.msra.mxu0 0
        %1856 = vmatprep.subr.bf16.mxu0 0
        %1857 = vmatpush1.bf16.msra.mxu0 0
        %1858 = vmatprep.subr.bf16.mxu0 0
        %1859 = vmatpush1.bf16.msra.mxu0 0
        %1860 = vmatprep.subr.bf16.mxu0 0
        %1861 = vmatpush1.bf16.msra.mxu0 0
        %1862 = vmatprep.subr.bf16.mxu0 0
        %1863 = vmatpush1.bf16.msra.mxu0 0
        %1864 = vmatprep.mubr.bf16.mxu0 0
        %1865 = vmatmul.mubr.bf16.gmra.mrb[0].mxu0 %v1830
        %v1866 = vpop.f32.mrb[0].mxu0
        %v1867 = vadd.f32 %v1815, %v1866
        %v1868 = vpop.f32.mrb[0].mxu0
        %v1869 = vpop.f32.mrb[0].mxu0
        %v1870 = vpop.f32.mrb[0].mxu0
        %1871 = vdwg.mxu0
        %v1872 = vadd.f32 %v1800, %v1867
        %v1873 = vxor.u32 %v1872, 2147483648
        %v1874 = vmul.f32 %v1873, 1.442695
        %v1875 = vpow.pop %v1874
        %v1876 = vadd.f32 %v1875, 1.0
        %v1877 = vrcp.pop %v1876
        %v1878 = vmul.f32 1.0, %v1877
        %1880 = vrot.lane.b32.xlu0 %v1867, 64
        %v1881 = vpop.permute.xlu0 %1880
        %v1883 = vmul.f32 %v1878, %v1881
        %1885 = vrot.lane.b32.xlu0 %v1883, 64
        %v1886 = vpop.permute.xlu0 %1885
        %v1888 = vadd.f32 %v1800, %v1886
        %v1889 = vtanh.pop %v1888
        %v1890 = vsub.f32 1.0, %v1878
        %1892 = vrot.lane.b32.xlu0 %v1889, 96
        %v1893 = vpop.permute.xlu0 %1892
        %v1895 = vmul.f32 %v1890, %v1893
        %1897 = vrot.lane.b32.xlu0 %v1736, 32
        %v1898 = vpop.permute.xlu0 %1897
        %v1900 = vmul.f32 %v1878, %v1898
        %v1901 = vadd.f32 %v1895, %v1900
        %1903 = vrot.lane.b32.xlu0 %v1901, 96
        %v1904 = vpop.permute.xlu0 %1903
        %vm1906 = vcmask 259072
        %1907 = vst.msk [vmem:[#allocation3] sm:$0x3f] %vm1906, %v1904
        %v1908 = vmul.f32 %v1901, 5.0
        %v1909 = vpack.c.bf16 %v1908, %v1908
        %v1910 = vld [vmem:[%s10] sm:$0xf]
        %v1911 = vld [vmem:[%s10 + $0x4] sm:$0xf]
        %v1912 = vld [vmem:[%s10 + $0x8] sm:$0xf]
        %v1913 = vld [vmem:[%s10 + $0xc] sm:$0xf]
        %v1914 = vld [vmem:[%s11] sm:$0x1]
        %v1916 = vlaneseq
        %v1917 = vshrl.u32 %v1916, 7
        %v1918 = vsub.s32 0, %v1917
        %v1919 = vrot.slane %v1914, %v1918
        %1922 = vrot.lane.b32.xlu0 %v1909, 96
        %v1923 = vpop.permute.xlu0 %1922
        %v1928 = vunpack.c.l.b16 %v1910
        %v1929 = vunpack.c.l.b16 %v1911
        %v1930 = vunpack.c.l.b16 %v1912
        %v1931 = vunpack.c.l.b16 %v1913
        %v1932 = vpack.c.b16 %v1929, %v1928
        %v1933 = vpack.c.b16 %v1931, %v1930
        %v1937 = vsel %vm1761, %v1923, 0
        %1939 = vmatprep.subr.bf16.mxu0 0
        %1940 = vmatpush1.bf16.msra.mxu0 %v1932
        %1941 = vmatprep.subr.bf16.mxu0 0
        %1942 = vmatpush1.bf16.msra.mxu0 %v1933
        %1943 = vmatprep.subr.bf16.mxu0 0
        %1944 = vmatpush1.bf16.msra.mxu0 0
        %1945 = vmatprep.subr.bf16.mxu0 0
        %1946 = vmatpush1.bf16.msra.mxu0 0
        %1947 = vmatprep.subr.bf16.mxu0 0
        %1948 = vmatpush1.bf16.msra.mxu0 0
        %1949 = vmatprep.subr.bf16.mxu0 0
        %1950 = vmatpush1.bf16.msra.mxu0 0
        %1951 = vmatprep.subr.bf16.mxu0 0
        %1952 = vmatpush1.bf16.msra.mxu0 0
        %1953 = vmatprep.subr.bf16.mxu0 0
        %1954 = vmatpush1.bf16.msra.mxu0 0
        %1955 = vmatprep.subr.bf16.mxu0 0
        %1956 = vmatpush1.bf16.msra.mxu0 0
        %1957 = vmatprep.subr.bf16.mxu0 0
        %1958 = vmatpush1.bf16.msra.mxu0 0
        %1959 = vmatprep.subr.bf16.mxu0 0
        %1960 = vmatpush1.bf16.msra.mxu0 0
        %1961 = vmatprep.subr.bf16.mxu0 0
        %1962 = vmatpush1.bf16.msra.mxu0 0
        %1963 = vmatprep.subr.bf16.mxu0 0
        %1964 = vmatpush1.bf16.msra.mxu0 0
        %1965 = vmatprep.subr.bf16.mxu0 0
        %1966 = vmatpush1.bf16.msra.mxu0 0
        %1967 = vmatprep.subr.bf16.mxu0 0
        %1968 = vmatpush1.bf16.msra.mxu0 0
        %1969 = vmatprep.subr.bf16.mxu0 0
        %1970 = vmatpush1.bf16.msra.mxu0 0
        %1971 = vmatprep.mubr.bf16.mxu0 0
        %1972 = vmatmul.mubr.bf16.gmra.mrb[0].mxu0 %v1937
        %v1973 = vpop.f32.mrb[0].mxu0
        %v1974 = vadd.f32 %v1919, %v1973
        %v1975 = vpop.f32.mrb[0].mxu0
        %v1976 = vpop.f32.mrb[0].mxu0
        %v1977 = vpop.f32.mrb[0].mxu0
        %1978 = vdwg.mxu0
        %v1980 = vcombine.high %v1974, %v1974
        %v1982 = vunpack.c.l.s4 1983009808
        %v1983 = vunpack.c.0.s8 %v1982
        %v1984 = vlaneseq
        %v1985 = vshrl.u32 %v1984, 7
        %v1986 = vsub.s32 %v1983, %v1985
        %v1987 = vrot.slane %v1974, %v1986
        %v1989 = vunpack.c.l.s4 1983009808
        %v1990 = vunpack.c.0.s8 %v1989
        %v1991 = vlaneseq
        %v1992 = vshrl.u32 %v1991, 7
        %v1993 = vsub.s32 %v1990, %v1992
        %v1994 = vrot.slane %v1980, %v1993
        %v1995 = vcombine.high %v1987, %v1987
        %vm1999 = vcmask 254976
        %2000 = vst.msk [vmem:[%s712] sm:$0x3] %vm1999, %v1987
        %2001 = vst.msk [vmem:[%s712 + $0x2] sm:$0x3] %vm1999, %v1995
        %2002 = vst.msk [vmem:[%s712 + $0x4] sm:$0x3] %vm1999, %v1994
        %v2003 = vmul.f32 %v1974, 0.5
        %v2004 = vmul.f32 %v2003, 1.442695
        %v2005 = vpow.pop %v2004
        %s2006 = scalar_lea.vmem %s1, %s811
        %v2007 = vld [vmem:[%s2006] sm:$0x3]
        %v2008 = vld [vmem:[%s2006 + $0x2] sm:$0x3]
        %v2009 = vld [vmem:[%s2006 + $0x4] sm:$0x3]
        %v2011 = vcombine.high %v2005, %v2005
        %v2013 = vunpack.c.l.s4 1983009808
        %v2014 = vunpack.c.0.s8 %v2013
        %v2015 = vlaneseq
        %v2016 = vshrl.u32 %v2015, 7
        %v2017 = vsub.s32 %v2014, %v2016
        %v2018 = vrot.slane %v2005, %v2017
        %v2020 = vunpack.c.l.s4 1983009808
        %v2021 = vunpack.c.0.s8 %v2020
        %v2022 = vlaneseq
        %v2023 = vshrl.u32 %v2022, 7
        %v2024 = vsub.s32 %v2021, %v2023
        %v2025 = vrot.slane %v2011, %v2024
        %v2026 = vcombine.high %v2018, %v2018
        %2027 = vrot.lane.b32.xlu0 %v2018, 112
        %v2028 = vpop.permute.xlu0 %2027
        %2029 = vrot.lane.b32.xlu0 %v2026, 112
        %v2030 = vpop.permute.xlu0 %2029
        %2031 = vrot.lane.b32.xlu0 %v2025, 112
        %v2032 = vpop.permute.xlu0 %2031
        %v2036 = vmul.f32 %v2007, %v2028
        %v2037 = vmul.f32 %v2008, %v2030
        %v2038 = vmul.f32 %v2009, %v2032
        %v2042 = vcombine.low %v2036, %v2037
        %v2044 = vunpack.c.l.s4 1983009808
        %v2045 = vunpack.c.0.s8 %v2044
        %v2046 = vlaneseq
        %v2047 = vshrl.u32 %v2046, 7
        %v2048 = vsub.s32 %v2045, %v2047
        %v2049 = vrot.slane %v2042, %v2048
        %v2051 = vunpack.c.l.s4 1983009808
        %v2052 = vunpack.c.0.s8 %v2051
        %v2053 = vlaneseq
        %v2054 = vshrl.u32 %v2053, 7
        %v2055 = vsub.s32 %v2052, %v2054
        %v2056 = vrot.slane %v2038, %v2055
        %v2057 = vcombine.low %v2049, %v2056
        %v2059 = vadd.f32 %v1974, %v2057
        %v2060 = vpack.c.bf16 %v2059, %v2059
        %v2061 = vld [vmem:[%s12] sm:$0xf]
        %v2062 = vld [vmem:[%s12 + $0x4] sm:$0xf]
        %v2063 = vld [vmem:[%s13] sm:$0x1]
        %v2065 = vlaneseq
        %v2066 = vshrl.u32 %v2065, 7
        %v2067 = vsub.s32 0, %v2066
        %v2068 = vrot.slane %v2063, %v2067
        %v2072 = vunpack.c.l.b16 %v2061
        %v2073 = vunpack.c.l.b16 %v2062
        %v2074 = vpack.c.b16 %v2073, %v2072
        %vm2076 = vcmask 130048
        %v2078 = vsel %vm2076, %v2060, 0
        %2080 = vmatprep.subr.bf16.mxu0 0
        %2081 = vmatpush1.bf16.msra.mxu0 %v2074
        %2082 = vmatprep.subr.bf16.mxu0 0
        %2083 = vmatpush1.bf16.msra.mxu0 0
        %2084 = vmatprep.subr.bf16.mxu0 0
        %2085 = vmatpush1.bf16.msra.mxu0 0
        %2086 = vmatprep.subr.bf16.mxu0 0
        %2087 = vmatpush1.bf16.msra.mxu0 0
        %2088 = vmatprep.subr.bf16.mxu0 0
        %2089 = vmatpush1.bf16.msra.mxu0 0
        %2090 = vmatprep.subr.bf16.mxu0 0
        %2091 = vmatpush1.bf16.msra.mxu0 0
        %2092 = vmatprep.subr.bf16.mxu0 0
        %2093 = vmatpush1.bf16.msra.mxu0 0
        %2094 = vmatprep.subr.bf16.mxu0 0
        %2095 = vmatpush1.bf16.msra.mxu0 0
        %2096 = vmatprep.subr.bf16.mxu0 0
        %2097 = vmatpush1.bf16.msra.mxu0 0
        %2098 = vmatprep.subr.bf16.mxu0 0
        %2099 = vmatpush1.bf16.msra.mxu0 0
        %2100 = vmatprep.subr.bf16.mxu0 0
        %2101 = vmatpush1.bf16.msra.mxu0 0
        %2102 = vmatprep.subr.bf16.mxu0 0
        %2103 = vmatpush1.bf16.msra.mxu0 0
        %2104 = vmatprep.subr.bf16.mxu0 0
        %2105 = vmatpush1.bf16.msra.mxu0 0
        %2106 = vmatprep.subr.bf16.mxu0 0
        %2107 = vmatpush1.bf16.msra.mxu0 0
        %2108 = vmatprep.subr.bf16.mxu0 0
        %2109 = vmatpush1.bf16.msra.mxu0 0
        %2110 = vmatprep.subr.bf16.mxu0 0
        %2111 = vmatpush1.bf16.msra.mxu0 0
        %2112 = vmatprep.mubr.bf16.mxu0 0
        %2113 = vmatmul.mubr.bf16.gmra.mrb[0].mxu0 %v2078
        %v2114 = vpop.f32.mrb[0].mxu0
        %v2115 = vadd.f32 %v2068, %v2114
        %v2116 = vpop.f32.mrb[0].mxu0
        %v2117 = vpop.f32.mrb[0].mxu0
        %v2118 = vpop.f32.mrb[0].mxu0
        %2119 = vdwg.mxu0
        %vm2120 = vcmask 1045504
        %v2121 = vsel %vm2120, %v2059, 0.0
        %v2122 = vsel %vm2120, %v2115, 0.0
        %v2123 = vpack.c.bf16 %v2122, %v2121
        %v2124 = vld [vmem:[%s14] sm:$0xff]
        %v2125 = vld [vmem:[%s14 + $0x8] sm:$0xff]
        %v2126 = vld [vmem:[%s14 + $0x10] sm:$0xff]
        %v2127 = vld [vmem:[%s14 + $0x18] sm:$0xff]
        %v2128 = vld [vmem:[%s14 + $0x20] sm:$0xff]
        %v2129 = vld [vmem:[%s14 + $0x28] sm:$0xff]
        %v2130 = vld [vmem:[%s14 + $0x30] sm:$0xff]
        %v2131 = vld [vmem:[%s14 + $0x38] sm:$0xff]
        %v2132 = vld [vmem:[%s15] sm:$0xff]
        %v2134 = vlaneseq
        %v2135 = vshrl.u32 %v2134, 7
        %v2136 = vsub.s32 0, %v2135
        %v2137 = vrot.slane %v2132, %v2136
        %v2138 = vlaneseq
        %v2139 = vshrl.u32 %v2138, 7
        %v2140 = vsub.s32 1, %v2139
        %v2141 = vrot.slane %v2132, %v2140
        %v2142 = vlaneseq
        %v2143 = vshrl.u32 %v2142, 7
        %v2144 = vsub.s32 2, %v2143
        %v2145 = vrot.slane %v2132, %v2144
        %v2146 = vlaneseq
        %v2147 = vshrl.u32 %v2146, 7
        %v2148 = vsub.s32 3, %v2147
        %v2149 = vrot.slane %v2132, %v2148
        %v2150 = vlaneseq
        %v2151 = vshrl.u32 %v2150, 7
        %v2152 = vsub.s32 4, %v2151
        %v2153 = vrot.slane %v2132, %v2152
        %v2154 = vlaneseq
        %v2155 = vshrl.u32 %v2154, 7
        %v2156 = vsub.s32 5, %v2155
        %v2157 = vrot.slane %v2132, %v2156
        %v2158 = vlaneseq
        %v2159 = vshrl.u32 %v2158, 7
        %v2160 = vsub.s32 6, %v2159
        %v2161 = vrot.slane %v2132, %v2160
        %v2162 = vlaneseq
        %v2163 = vshrl.u32 %v2162, 7
        %v2164 = vsub.s32 7, %v2163
        %v2165 = vrot.slane %v2132, %v2164
        %v2182 = vunpack.c.l.b16 %v2124
        %v2183 = vunpack.c.h.b16 %v2124
        %v2184 = vunpack.c.l.b16 %v2125
        %v2185 = vunpack.c.h.b16 %v2125
        %v2186 = vunpack.c.l.b16 %v2126
        %v2187 = vunpack.c.h.b16 %v2126
        %v2188 = vunpack.c.l.b16 %v2127
        %v2189 = vunpack.c.h.b16 %v2127
        %v2190 = vunpack.c.l.b16 %v2128
        %v2191 = vunpack.c.h.b16 %v2128
        %v2192 = vunpack.c.l.b16 %v2129
        %v2193 = vunpack.c.h.b16 %v2129
        %v2194 = vunpack.c.l.b16 %v2130
        %v2195 = vunpack.c.h.b16 %v2130
        %v2196 = vunpack.c.l.b16 %v2131
        %v2197 = vunpack.c.h.b16 %v2131
        %v2198 = vpack.c.b16 %v2190, %v2182
        %v2199 = vpack.c.b16 %v2191, %v2183
        %v2200 = vpack.c.b16 %v2192, %v2184
        %v2201 = vpack.c.b16 %v2193, %v2185
        %v2202 = vpack.c.b16 %v2194, %v2186
        %v2203 = vpack.c.b16 %v2195, %v2187
        %v2204 = vpack.c.b16 %v2196, %v2188
        %v2205 = vpack.c.b16 %v2197, %v2189
        %v2215 = vsel %vm2076, %v2123, 0
        %2217 = vmatprep.subr.bf16.mxu0 %v2199
        %2218 = vmatpush1.bf16.msra.mxu0 %v2198
        %2219 = vmatprep.subr.bf16.mxu0 0
        %2220 = vmatpush1.bf16.msra.mxu0 0
        %2221 = vmatprep.subr.bf16.mxu0 0
        %2222 = vmatpush1.bf16.msra.mxu0 0
        %2223 = vmatprep.subr.bf16.mxu0 0
        %2224 = vmatpush1.bf16.msra.mxu0 0
        %2225 = vmatprep.subr.bf16.mxu0 0
        %2226 = vmatpush1.bf16.msra.mxu0 0
        %2227 = vmatprep.subr.bf16.mxu0 0
        %2228 = vmatpush1.bf16.msra.mxu0 0
        %2229 = vmatprep.subr.bf16.mxu0 0
        %2230 = vmatpush1.bf16.msra.mxu0 0
        %2231 = vmatprep.subr.bf16.mxu0 0
        %2232 = vmatpush1.bf16.msra.mxu0 0
        %2233 = vmatprep.subr.bf16.mxu0 0
        %2234 = vmatpush1.bf16.msra.mxu0 0
        %2235 = vmatprep.subr.bf16.mxu0 0
        %2236 = vmatpush1.bf16.msra.mxu0 0
        %2237 = vmatprep.subr.bf16.mxu0 0
        %2238 = vmatpush1.bf16.msra.mxu0 0
        %2239 = vmatprep.subr.bf16.mxu0 0
        %2240 = vmatpush1.bf16.msra.mxu0 0
        %2241 = vmatprep.subr.bf16.mxu0 0
        %2242 = vmatpush1.bf16.msra.mxu0 0
        %2243 = vmatprep.subr.bf16.mxu0 0
        %2244 = vmatpush1.bf16.msra.mxu0 0
        %2245 = vmatprep.subr.bf16.mxu0 0
        %2246 = vmatpush1.bf16.msra.mxu0 0
        %2247 = vmatprep.subr.bf16.mxu0 0
        %2248 = vmatpush1.bf16.msra.mxu0 0
        %2249 = vmatprep.mubr.bf16.mxu0 0
        %2250 = vmatmul.mubr.bf16.gmra.mrb[0].mxu0 %v2215
        %v2251 = vpop.f32.mrb[0].mxu0
        %v2252 = vadd.f32 %v2137, %v2251
        %v2253 = vpop.f32.mrb[0].mxu0
        %v2254 = vadd.f32 %v2141, %v2253
        %v2255 = vpop.f32.mrb[0].mxu0
        %v2256 = vadd.f32 %v2137, %v2255
        %v2257 = vpop.f32.mrb[0].mxu0
        %v2258 = vadd.f32 %v2141, %v2257
        %2259 = vdwg.mxu0
        %2260 = vmatprep.subr.bf16.mxu0 %v2201
        %2261 = vmatpush1.bf16.msra.mxu0 %v2200
        %2262 = vmatprep.subr.bf16.mxu0 0
        %2263 = vmatpush1.bf16.msra.mxu0 0
        %2264 = vmatprep.subr.bf16.mxu0 0
        %2265 = vmatpush1.bf16.msra.mxu0 0
        %2266 = vmatprep.subr.bf16.mxu0 0
        %2267 = vmatpush1.bf16.msra.mxu0 0
        %2268 = vmatprep.subr.bf16.mxu0 0
        %2269 = vmatpush1.bf16.msra.mxu0 0
        %2270 = vmatprep.subr.bf16.mxu0 0
        %2271 = vmatpush1.bf16.msra.mxu0 0
        %2272 = vmatprep.subr.bf16.mxu0 0
        %2273 = vmatpush1.bf16.msra.mxu0 0
        %2274 = vmatprep.subr.bf16.mxu0 0
        %2275 = vmatpush1.bf16.msra.mxu0 0
        %2276 = vmatprep.subr.bf16.mxu0 0
        %2277 = vmatpush1.bf16.msra.mxu0 0
        %2278 = vmatprep.subr.bf16.mxu0 0
        %2279 = vmatpush1.bf16.msra.mxu0 0
        %2280 = vmatprep.subr.bf16.mxu0 0
        %2281 = vmatpush1.bf16.msra.mxu0 0
        %2282 = vmatprep.subr.bf16.mxu0 0
        %2283 = vmatpush1.bf16.msra.mxu0 0
        %2284 = vmatprep.subr.bf16.mxu0 0
        %2285 = vmatpush1.bf16.msra.mxu0 0
        %2286 = vmatprep.subr.bf16.mxu0 0
        %2287 = vmatpush1.bf16.msra.mxu0 0
        %2288 = vmatprep.subr.bf16.mxu0 0
        %2289 = vmatpush1.bf16.msra.mxu0 0
        %2290 = vmatprep.subr.bf16.mxu0 0
        %2291 = vmatpush1.bf16.msra.mxu0 0
        %2292 = vmatprep.mubr.bf16.mxu0 0
        %2293 = vmatmul.mubr.bf16.gmra.mrb[0].mxu0 %v2215
        %v2294 = vpop.f32.mrb[0].mxu0
        %v2295 = vadd.f32 %v2145, %v2294
        %v2296 = vpop.f32.mrb[0].mxu0
        %v2297 = vadd.f32 %v2149, %v2296
        %v2298 = vpop.f32.mrb[0].mxu0
        %v2299 = vadd.f32 %v2145, %v2298
        %v2300 = vpop.f32.mrb[0].mxu0
        %v2301 = vadd.f32 %v2149, %v2300
        %2302 = vdwg.mxu0
        %2303 = vmatprep.subr.bf16.mxu0 %v2203
        %2304 = vmatpush1.bf16.msra.mxu0 %v2202
        %2305 = vmatprep.subr.bf16.mxu0 0
        %2306 = vmatpush1.bf16.msra.mxu0 0
        %2307 = vmatprep.subr.bf16.mxu0 0
        %2308 = vmatpush1.bf16.msra.mxu0 0
        %2309 = vmatprep.subr.bf16.mxu0 0
        %2310 = vmatpush1.bf16.msra.mxu0 0
        %2311 = vmatprep.subr.bf16.mxu0 0
        %2312 = vmatpush1.bf16.msra.mxu0 0
        %2313 = vmatprep.subr.bf16.mxu0 0
        %2314 = vmatpush1.bf16.msra.mxu0 0
        %2315 = vmatprep.subr.bf16.mxu0 0
        %2316 = vmatpush1.bf16.msra.mxu0 0
        %2317 = vmatprep.subr.bf16.mxu0 0
        %2318 = vmatpush1.bf16.msra.mxu0 0
        %2319 = vmatprep.subr.bf16.mxu0 0
        %2320 = vmatpush1.bf16.msra.mxu0 0
        %2321 = vmatprep.subr.bf16.mxu0 0
        %2322 = vmatpush1.bf16.msra.mxu0 0
        %2323 = vmatprep.subr.bf16.mxu0 0
        %2324 = vmatpush1.bf16.msra.mxu0 0
        %2325 = vmatprep.subr.bf16.mxu0 0
        %2326 = vmatpush1.bf16.msra.mxu0 0
        %2327 = vmatprep.subr.bf16.mxu0 0
        %2328 = vmatpush1.bf16.msra.mxu0 0
        %2329 = vmatprep.subr.bf16.mxu0 0
        %2330 = vmatpush1.bf16.msra.mxu0 0
        %2331 = vmatprep.subr.bf16.mxu0 0
        %2332 = vmatpush1.bf16.msra.mxu0 0
        %2333 = vmatprep.subr.bf16.mxu0 0
        %2334 = vmatpush1.bf16.msra.mxu0 0
        %2335 = vmatprep.mubr.bf16.mxu0 0
        %2336 = vmatmul.mubr.bf16.gmra.mrb[0].mxu0 %v2215
        %v2337 = vpop.f32.mrb[0].mxu0
        %v2338 = vadd.f32 %v2153, %v2337
        %v2339 = vpop.f32.mrb[0].mxu0
        %v2340 = vadd.f32 %v2157, %v2339
        %v2341 = vpop.f32.mrb[0].mxu0
        %v2342 = vadd.f32 %v2153, %v2341
        %v2343 = vpop.f32.mrb[0].mxu0
        %v2344 = vadd.f32 %v2157, %v2343
        %2345 = vdwg.mxu0
        %2346 = vmatprep.subr.bf16.mxu0 %v2205
        %2347 = vmatpush1.bf16.msra.mxu0 %v2204
        %2348 = vmatprep.subr.bf16.mxu0 0
        %2349 = vmatpush1.bf16.msra.mxu0 0
        %2350 = vmatprep.subr.bf16.mxu0 0
        %2351 = vmatpush1.bf16.msra.mxu0 0
        %2352 = vmatprep.subr.bf16.mxu0 0
        %2353 = vmatpush1.bf16.msra.mxu0 0
        %2354 = vmatprep.subr.bf16.mxu0 0
        %2355 = vmatpush1.bf16.msra.mxu0 0
        %2356 = vmatprep.subr.bf16.mxu0 0
        %2357 = vmatpush1.bf16.msra.mxu0 0
        %2358 = vmatprep.subr.bf16.mxu0 0
        %2359 = vmatpush1.bf16.msra.mxu0 0
        %2360 = vmatprep.subr.bf16.mxu0 0
        %2361 = vmatpush1.bf16.msra.mxu0 0
        %2362 = vmatprep.subr.bf16.mxu0 0
        %2363 = vmatpush1.bf16.msra.mxu0 0
        %2364 = vmatprep.subr.bf16.mxu0 0
        %2365 = vmatpush1.bf16.msra.mxu0 0
        %2366 = vmatprep.subr.bf16.mxu0 0
        %2367 = vmatpush1.bf16.msra.mxu0 0
        %2368 = vmatprep.subr.bf16.mxu0 0
        %2369 = vmatpush1.bf16.msra.mxu0 0
        %2370 = vmatprep.subr.bf16.mxu0 0
        %2371 = vmatpush1.bf16.msra.mxu0 0
        %2372 = vmatprep.subr.bf16.mxu0 0
        %2373 = vmatpush1.bf16.msra.mxu0 0
        %2374 = vmatprep.subr.bf16.mxu0 0
        %2375 = vmatpush1.bf16.msra.mxu0 0
        %2376 = vmatprep.subr.bf16.mxu0 0
        %2377 = vmatpush1.bf16.msra.mxu0 0
        %2378 = vmatprep.mubr.bf16.mxu0 0
        %2379 = vmatmul.mubr.bf16.gmra.mrb[0].mxu0 %v2215
        %v2380 = vpop.f32.mrb[0].mxu0
        %v2381 = vadd.f32 %v2161, %v2380
        %v2382 = vpop.f32.mrb[0].mxu0
        %v2383 = vadd.f32 %v2165, %v2382
        %v2384 = vpop.f32.mrb[0].mxu0
        %v2385 = vadd.f32 %v2161, %v2384
        %v2386 = vpop.f32.mrb[0].mxu0
        %v2387 = vadd.f32 %v2165, %v2386
        %2388 = vdwg.mxu0
        %v2395 = vcombine.low %v2252, %v2254
        %v2396 = vcombine.high %v2252, %v2254
        %v2397 = vcombine.low %v2295, %v2297
        %v2398 = vcombine.high %v2295, %v2297
        %v2400 = vunpack.c.l.s4 1983009808
        %v2401 = vunpack.c.0.s8 %v2400
        %v2402 = vlaneseq
        %v2403 = vshrl.u32 %v2402, 7
        %v2404 = vsub.s32 %v2401, %v2403
        %v2405 = vrot.slane %v2395, %v2404
        %v2407 = vunpack.c.l.s4 1983009808
        %v2408 = vunpack.c.0.s8 %v2407
        %v2409 = vlaneseq
        %v2410 = vshrl.u32 %v2409, 7
        %v2411 = vsub.s32 %v2408, %v2410
        %v2412 = vrot.slane %v2396, %v2411
        %v2414 = vunpack.c.l.s4 1983009808
        %v2415 = vunpack.c.0.s8 %v2414
        %v2416 = vlaneseq
        %v2417 = vshrl.u32 %v2416, 7
        %v2418 = vsub.s32 %v2415, %v2417
        %v2419 = vrot.slane %v2397, %v2418
        %v2421 = vunpack.c.l.s4 1983009808
        %v2422 = vunpack.c.0.s8 %v2421
        %v2423 = vlaneseq
        %v2424 = vshrl.u32 %v2423, 7
        %v2425 = vsub.s32 %v2422, %v2424
        %v2426 = vrot.slane %v2398, %v2425
        %v2427 = vcombine.low %v2405, %v2419
        %v2428 = vcombine.high %v2405, %v2419
        %v2429 = vcombine.low %v2412, %v2426
        %v2430 = vcombine.low %v2338, %v2340
        %v2431 = vcombine.high %v2338, %v2340
        %v2433 = vunpack.c.l.s4 1983009808
        %v2434 = vunpack.c.0.s8 %v2433
        %v2435 = vlaneseq
        %v2436 = vshrl.u32 %v2435, 7
        %v2437 = vsub.s32 %v2434, %v2436
        %v2438 = vrot.slane %v2430, %v2437
        %v2440 = vunpack.c.l.s4 1983009808
        %v2441 = vunpack.c.0.s8 %v2440
        %v2442 = vlaneseq
        %v2443 = vshrl.u32 %v2442, 7
        %v2444 = vsub.s32 %v2441, %v2443
        %v2445 = vrot.slane %v2431, %v2444
        %v2446 = vcombine.high %v2438, %v2438
        %2453 = vst [vmem:[%s692] sm:$0xff] %v2427
        %2454 = vst [vmem:[%s692 + $0x8] sm:$0xf] %v2438
        %2455 = vst [vmem:[%s692 + $0xc] sm:$0xff] %v2428
        %2456 = vst [vmem:[%s692 + $0x14] sm:$0xf] %v2446
        %2457 = vst [vmem:[%s692 + $0x18] sm:$0xff] %v2429
        %2458 = vst [vmem:[%s692 + $0x20] sm:$0xf] %v2445
        %v2461 = vcombine.low %v2381, %v2383
        %v2462 = vcombine.high %v2381, %v2383
        %v2464 = vunpack.c.l.s4 1983009808
        %v2465 = vunpack.c.0.s8 %v2464
        %v2466 = vlaneseq
        %v2467 = vshrl.u32 %v2466, 7
        %v2468 = vsub.s32 %v2465, %v2467
        %v2469 = vrot.slane %v2461, %v2468
        %v2471 = vunpack.c.l.s4 1983009808
        %v2472 = vunpack.c.0.s8 %v2471
        %v2473 = vlaneseq
        %v2474 = vshrl.u32 %v2473, 7
        %v2475 = vsub.s32 %v2472, %v2474
        %v2476 = vrot.slane %v2462, %v2475
        %v2477 = vcombine.high %v2469, %v2469
        %2481 = vst [vmem:[%s697] sm:$0xf] %v2469
        %2482 = vst [vmem:[%s697 + $0x4] sm:$0xf] %v2477
        %2483 = vst [vmem:[%s697 + $0x8] sm:$0xf] %v2476
        %v2490 = vcombine.low %v2256, %v2258
        %v2491 = vcombine.high %v2256, %v2258
        %v2492 = vcombine.low %v2299, %v2301
        %v2493 = vcombine.high %v2299, %v2301
        %v2495 = vunpack.c.l.s4 1983009808
        %v2496 = vunpack.c.0.s8 %v2495
        %v2497 = vlaneseq
        %v2498 = vshrl.u32 %v2497, 7
        %v2499 = vsub.s32 %v2496, %v2498
        %v2500 = vrot.slane %v2490, %v2499
        %v2502 = vunpack.c.l.s4 1983009808
        %v2503 = vunpack.c.0.s8 %v2502
        %v2504 = vlaneseq
        %v2505 = vshrl.u32 %v2504, 7
        %v2506 = vsub.s32 %v2503, %v2505
        %v2507 = vrot.slane %v2491, %v2506
        %v2509 = vunpack.c.l.s4 1983009808
        %v2510 = vunpack.c.0.s8 %v2509
        %v2511 = vlaneseq
        %v2512 = vshrl.u32 %v2511, 7
        %v2513 = vsub.s32 %v2510, %v2512
        %v2514 = vrot.slane %v2492, %v2513
        %v2516 = vunpack.c.l.s4 1983009808
        %v2517 = vunpack.c.0.s8 %v2516
        %v2518 = vlaneseq
        %v2519 = vshrl.u32 %v2518, 7
        %v2520 = vsub.s32 %v2517, %v2519
        %v2521 = vrot.slane %v2493, %v2520
        %v2522 = vcombine.low %v2500, %v2514
        %v2523 = vcombine.high %v2500, %v2514
        %v2524 = vcombine.low %v2507, %v2521
        %v2525 = vcombine.low %v2342, %v2344
        %v2526 = vcombine.high %v2342, %v2344
        %v2528 = vunpack.c.l.s4 1983009808
        %v2529 = vunpack.c.0.s8 %v2528
        %v2530 = vlaneseq
        %v2531 = vshrl.u32 %v2530, 7
        %v2532 = vsub.s32 %v2529, %v2531
        %v2533 = vrot.slane %v2525, %v2532
        %v2535 = vunpack.c.l.s4 1983009808
        %v2536 = vunpack.c.0.s8 %v2535
        %v2537 = vlaneseq
        %v2538 = vshrl.u32 %v2537, 7
        %v2539 = vsub.s32 %v2536, %v2538
        %v2540 = vrot.slane %v2526, %v2539
        %v2541 = vcombine.high %v2533, %v2533
        %2548 = vst [vmem:[%s702] sm:$0xff] %v2522
        %2549 = vst [vmem:[%s702 + $0x8] sm:$0xf] %v2533
        %2550 = vst [vmem:[%s702 + $0xc] sm:$0xff] %v2523
        %2551 = vst [vmem:[%s702 + $0x14] sm:$0xf] %v2541
        %2552 = vst [vmem:[%s702 + $0x18] sm:$0xff] %v2524
        %2553 = vst [vmem:[%s702 + $0x20] sm:$0xf] %v2540
        %v2556 = vcombine.low %v2385, %v2387
        %v2557 = vcombine.high %v2385, %v2387
        %v2559 = vunpack.c.l.s4 1983009808
        %v2560 = vunpack.c.0.s8 %v2559
        %v2561 = vlaneseq
        %v2562 = vshrl.u32 %v2561, 7
        %v2563 = vsub.s32 %v2560, %v2562
        %v2564 = vrot.slane %v2556, %v2563
        %v2566 = vunpack.c.l.s4 1983009808
        %v2567 = vunpack.c.0.s8 %v2566
        %v2568 = vlaneseq
        %v2569 = vshrl.u32 %v2568, 7
        %v2570 = vsub.s32 %v2567, %v2569
        %v2571 = vrot.slane %v2557, %v2570
        %v2572 = vcombine.high %v2564, %v2564
        %2576 = vst [vmem:[%s707] sm:$0xf] %v2564
        %2577 = vst [vmem:[%s707 + $0x4] sm:$0xf] %v2572
        %2578 = vst [vmem:[%s707 + $0x8] sm:$0xf] %v2571
        %2579 = vst [vmem:[#allocation2] sm:$0xf] %v2564
        %2580 = vst [vmem:[#allocation2 + $0x4] sm:$0xf] %v2572
        %2581 = vst [vmem:[#allocation2 + $0x8] sm:$0xf] %v2571
        %p2582 = scmp.lt.s32.totalorder %s35, 2
        %s2583 = scalar_select %p2582, %s35, 2
        %s2584 = smul.addr %s2583, 6
        %s2585 = smul.addr %s2584, 2
        %s2586 = scalar_lea.vmem %s16, %s2585
        %p2587 = scmp.lt.s32.totalorder %s35, 2
        %s2588 = scalar_select %p2587, %s35, 2
        %s2589 = smul.addr %s2588, 18
        %s2590 = smul.addr %s2589, 2
        %s2591 = scalar_lea.vmem %s17, %s2590
        %p2592 = scmp.lt.s32.totalorder %s35, 2
        %s2593 = scalar_select %p2592, %s35, 2
        %s2594 = smul.addr %s2593, 6
        %s2595 = smul.addr %s2594, 2
        %s2596 = scalar_lea.vmem %s18, %s2595
        %p2597 = scmp.lt.s32.totalorder %s35, 2
        %s2598 = scalar_select %p2597, %s35, 2
        %s2599 = smul.addr %s2598, 18
        %s2600 = smul.addr %s2599, 2
        %s2601 = scalar_lea.vmem %s19, %s2600
        %p2602 = scmp.lt.s32.totalorder %s35, 2
        %s2603 = scalar_select %p2602, %s35, 2
        %s2604 = smul.addr %s2603, 6
        %s2605 = smul.addr %s2604, 2
        %s2606 = scalar_lea.vmem %s20, %s2605
        %p2607 = scmp.lt.s32.totalorder %s35, 2
        %s2608 = scalar_select %p2607, %s35, 2
        %s2609 = smul.addr %s2608, 3
        %s2610 = smul.addr %s2609, 2
        %s2611 = scalar_lea.vmem %s21, %s2610
        // Predicated region
        $region97: #{vimon_forward.2} parent=83 // pred_check
          %p2612 = pneg %p389
        $region98: #{vimon_forward.2} parent=83 // pred_check_branch
          %2614 = sbr.rel (%p2612) target = $region100
        $region99: #{vimon_forward.2} parent=83 // pred_region
          _
        $region100: #{vimon_forward.2} parent=83 // pred_fallthru
          _
        // Predicated region
        $region101: #{vimon_forward.2} parent=83 // pred_check
          %p2615 = pneg %p415
        $region102: #{vimon_forward.2} parent=83 // pred_check_branch
          %2617 = sbr.rel (%p2615) target = $region104
        $region103: #{vimon_forward.2} parent=83 // pred_region
          _
        $region104: #{vimon_forward.2} parent=83 // pred_fallthru
          _
        // Predicated region
        $region105: #{vimon_forward.2} parent=83 // pred_check
          %p2618 = pneg %p441
        $region106: #{vimon_forward.2} parent=83 // pred_check_branch
          %2620 = sbr.rel (%p2618) target = $region108
        $region107: #{vimon_forward.2} parent=83 // pred_region
          _
        $region108: #{vimon_forward.2} parent=83 // pred_fallthru
          _
        // Predicated region
        $region109: #{vimon_forward.2} parent=83 // pred_check
          %p2621 = pneg %p467
        $region110: #{vimon_forward.2} parent=83 // pred_check_branch
          %2623 = sbr.rel (%p2621) target = $region112
        $region111: #{vimon_forward.2} parent=83 // pred_region
          _
        $region112: #{vimon_forward.2} parent=83 // pred_fallthru
          _
        // Predicated region
        $region113: #{vimon_forward.2} parent=83 // pred_check
          %p2624 = pneg %p493
        $region114: #{vimon_forward.2} parent=83 // pred_check_branch
          %2626 = sbr.rel (%p2624) target = $region116
        $region115: #{vimon_forward.2} parent=83 // pred_region
          _
        $region116: #{vimon_forward.2} parent=83 // pred_fallthru
          _
        // Predicated region
        $region117: #{vimon_forward.2} parent=83 // pred_check
          %p2627 = pneg %p519
        $region118: #{vimon_forward.2} parent=83 // pred_check_branch
          %2629 = sbr.rel (%p2627) target = $region120
        $region119: #{vimon_forward.2} parent=83 // pred_region
          _
        $region120: #{vimon_forward.2} parent=83 // pred_fallthru
          _
      $region84: #{vimon_forward.2} parent=5 // pred_fallthru
        _
      %p2630 = scmp.le.s32.totalorder 2, %s30
      // Predicated region
      $region121: #{vimon_forward.2} parent=5 // pred_check
        %p2631 = pneg %p2630
      $region122: #{vimon_forward.2} parent=5 // pred_check_branch
        %2633 = sbr.rel (%p2631) target = $region124
      $region123: #{vimon_forward.2} parent=5 // pred_region
        %s2634 = ssub.s32 %s30, 2
        // Predicated region
        $region125: #{vimon_forward.2} parent=123 // pred_check
          %p2635 = pneg %p395
        $region126: #{vimon_forward.2} parent=123 // pred_check_branch
          %2637 = sbr.rel (%p2635) target = $region128
        $region127: #{vimon_forward.2} parent=123 // pred_region
          %p2638 = scmp.lt.s32.totalorder %s36, 2
          %s2639 = scalar_select %p2638, %s36, 2
          %s2640 = smul.addr %s2639, 6
          %s2641 = smul.addr %s2640, 2
          %s2642 = scalar_lea.vmem %s16, %s2641
        $region128: #{vimon_forward.2} parent=123 // pred_fallthru
          _
        // Predicated region
        $region129: #{vimon_forward.2} parent=123 // pred_check
          %p2643 = pneg %p421
        $region130: #{vimon_forward.2} parent=123 // pred_check_branch
          %2645 = sbr.rel (%p2643) target = $region132
        $region131: #{vimon_forward.2} parent=123 // pred_region
          %p2646 = scmp.lt.s32.totalorder %s36, 2
          %s2647 = scalar_select %p2646, %s36, 2
          %s2648 = smul.addr %s2647, 18
          %s2649 = smul.addr %s2648, 2
          %s2650 = scalar_lea.vmem %s17, %s2649
        $region132: #{vimon_forward.2} parent=123 // pred_fallthru
          _
        // Predicated region
        $region133: #{vimon_forward.2} parent=123 // pred_check
          %p2651 = pneg %p447
        $region134: #{vimon_forward.2} parent=123 // pred_check_branch
          %2653 = sbr.rel (%p2651) target = $region136
        $region135: #{vimon_forward.2} parent=123 // pred_region
          %p2654 = scmp.lt.s32.totalorder %s36, 2
          %s2655 = scalar_select %p2654, %s36, 2
          %s2656 = smul.addr %s2655, 6
          %s2657 = smul.addr %s2656, 2
          %s2658 = scalar_lea.vmem %s18, %s2657
        $region136: #{vimon_forward.2} parent=123 // pred_fallthru
          _
        // Predicated region
        $region137: #{vimon_forward.2} parent=123 // pred_check
          %p2659 = pneg %p473
        $region138: #{vimon_forward.2} parent=123 // pred_check_branch
          %2661 = sbr.rel (%p2659) target = $region140
        $region139: #{vimon_forward.2} parent=123 // pred_region
          %p2662 = scmp.lt.s32.totalorder %s36, 2
          %s2663 = scalar_select %p2662, %s36, 2
          %s2664 = smul.addr %s2663, 18
          %s2665 = smul.addr %s2664, 2
          %s2666 = scalar_lea.vmem %s19, %s2665
        $region140: #{vimon_forward.2} parent=123 // pred_fallthru
          _
        // Predicated region
        $region141: #{vimon_forward.2} parent=123 // pred_check
          %p2667 = pneg %p499
        $region142: #{vimon_forward.2} parent=123 // pred_check_branch
          %2669 = sbr.rel (%p2667) target = $region144
        $region143: #{vimon_forward.2} parent=123 // pred_region
          %p2670 = scmp.lt.s32.totalorder %s36, 2
          %s2671 = scalar_select %p2670, %s36, 2
          %s2672 = smul.addr %s2671, 6
          %s2673 = smul.addr %s2672, 2
          %s2674 = scalar_lea.vmem %s20, %s2673
        $region144: #{vimon_forward.2} parent=123 // pred_fallthru
          _
        // Predicated region
        $region145: #{vimon_forward.2} parent=123 // pred_check
          %p2675 = pneg %p525
        $region146: #{vimon_forward.2} parent=123 // pred_check_branch
          %2677 = sbr.rel (%p2675) target = $region148
        $region147: #{vimon_forward.2} parent=123 // pred_region
          %p2678 = scmp.lt.s32.totalorder %s36, 2
          %s2679 = scalar_select %p2678, %s36, 2
          %s2680 = smul.addr %s2679, 3
          %s2681 = smul.addr %s2680, 2
          %s2682 = scalar_lea.vmem %s21, %s2681
        $region148: #{vimon_forward.2} parent=123 // pred_fallthru
          _
      $region124: #{vimon_forward.2} parent=5 // pred_fallthru
        _
    $region6: #{vimon_forward.2} parent=1 // loop_footer
      %s34 = sadd.s32 1, %s30
    $region7: #{vimon_forward.2} parent=1 // loop_footer_branch
      %29 = sbr.rel target = $region3
    $region8: #{vimon_forward.2} parent=1 // loop_exit
      _
    %2683 = vsyncpa [#allocation6], 1
    %s2684 = scalar_lea.sflag [#allocation6], 1
    %2685 = vsyncpa %s2684, 1

// kernel: vimon_forward.3
$region0: #{vimon_forward.3}
  #allocation0 [shape = 'u32[]', space=smem, size = 0x4, offset = 0x4, fixed_abs, tag = 'smem constant byte address 0x4 - core index']
  #allocation1 [shape = 'u32[144,128]{1,0:T(1,128)}', space=vmem, size = 0x12000, scoped, tag = 'internal scratch']
  %s0 = inlined_call_operand.vmem [shape: f32[4,2,768], index: 0, kind: input, shape index: {}]
  %s1 = inlined_call_operand.vmem [shape: f32[3,3,2,256], index: 1, kind: input, shape index: {}]
  %s2 = inlined_call_operand.vmem [shape: f32[3,3,2,256], index: 2, kind: input, shape index: {}]
  %s3 = inlined_call_operand.vmem [shape: f32[3,3,2,256], index: 3, kind: input, shape index: {}]
  %s4 = inlined_call_operand.vmem [shape: f32[3,3,2,768], index: 4, kind: input, shape index: {}]
  %s5 = inlined_call_operand.vmem [shape: f32[3,3,2,768], index: 5, kind: input, shape index: {}]
  %s6 = inlined_call_operand.vmem [shape: f32[3,3,2,32], index: 6, kind: input, shape index: {}]
  %s7 = inlined_call_operand.vmem [shape: f32[3,3,2,256], index: 7, kind: output, shape index: {0}]
  %s8 = inlined_call_operand.vmem [shape: f32[3,3,2,256], index: 8, kind: output, shape index: {1}]
  %s9 = inlined_call_operand.vmem [shape: f32[3,3,2,256], index: 9, kind: output, shape index: {2}]
  %s10 = inlined_call_operand.vmem [shape: f32[3,2,768], index: 10, kind: output, shape index: {3}]
  %s11 = inlined_call_operand.vmem [shape: f32[3,2,768], index: 11, kind: output, shape index: {4}]
  %s12 = inlined_call_operand.vmem [shape: f32[3,2,768], index: 12, kind: output, shape index: {5}]
  %s13 = inlined_call_operand.hbm [shape: f32[1,1], index: 13, kind: output, shape index: {6}]
  %s14 = inlined_call_operand.hbm [shape: f32[1,1], index: 14, kind: output, shape index: {7}]
  %s15 = inlined_call_operand.hbm [shape: f32[1,1], index: 15, kind: output, shape index: {8}]
  %s16 = inlined_call_operand.hbm [shape: f32[1,1], index: 16, kind: output, shape index: {9}]
  %s17 = inlined_call_operand.hbm [shape: f32[1,1], index: 17, kind: output, shape index: {10}]
  %18 = xla_tuple %s7, %s8, %s9, %s10, %s11, %s12, %s13, %s14, %s15, %s16, %s17
  %s19 = sld [smem:[#allocation0]]
  $region118: #{vimon_forward.3} parent=0
    _
  %s21 = ssub.s32 1, %s19
  %s22 = scalar_select 0, %s21, %s19
  $region1: #{vimon_forward.3} parent=0
    #allocation2 [shape = 'u8[512]{0}', space=vmem, size = 0x400, scoped, tag = 'output window, operand 6, single buffered']
    #allocation3 [shape = 's32[1]{0}', space=sflag, size = 0x4, scoped, tag = 'scoped memory for vimon_forward.3']
    #allocation4 [shape = 'u8[512]{0}', space=vmem, size = 0x400, scoped, tag = 'output window, operand 7, single buffered']
    #allocation5 [shape = 's32[1]{0}', space=sflag, size = 0x4, scoped, tag = 'scoped memory for vimon_forward.3']
    #allocation6 [shape = 'u8[512]{0}', space=vmem, size = 0x400, scoped, tag = 'output window, operand 8, single buffered']
    #allocation7 [shape = 'u8[512]{0}', space=vmem, size = 0x400, scoped, tag = 'output window, operand 9, single buffered']
    #allocation8 [shape = 's32[1]{0}', space=sflag, size = 0x4, scoped, tag = 'scoped memory for vimon_forward.3']
    #allocation9 [shape = 'u8[512]{0}', space=vmem, size = 0x400, scoped, tag = 'output window, operand 10, single buffered']
    %23 = vsyncpa [#allocation3], 0
    %24 = vsyncpa [#allocation5], 0
    %25 = vsyncpa [#allocation8], 0
    // Predicated region
    $region2: #{vimon_forward.3} parent=1 // pred_check
      _
    $region3: #{vimon_forward.3} parent=1 // pred_check_branch
      %27 = sbr.rel (0) target = $region5
    $region4: #{vimon_forward.3} parent=1 // pred_region
      _
    $region5: #{vimon_forward.3} parent=1 // pred_fallthru
      _
    // Predicated region
    $region6: #{vimon_forward.3} parent=1 // pred_check
      _
    $region7: #{vimon_forward.3} parent=1 // pred_check_branch
      %29 = sbr.rel (0) target = $region9
    $region8: #{vimon_forward.3} parent=1 // pred_region
      _
    $region9: #{vimon_forward.3} parent=1 // pred_fallthru
      _
    // Predicated region
    $region10: #{vimon_forward.3} parent=1 // pred_check
      _
    $region11: #{vimon_forward.3} parent=1 // pred_check_branch
      %31 = sbr.rel (0) target = $region13
    $region12: #{vimon_forward.3} parent=1 // pred_region
      _
    $region13: #{vimon_forward.3} parent=1 // pred_fallthru
      _
    // Predicated region
    $region14: #{vimon_forward.3} parent=1 // pred_check
      _
    $region15: #{vimon_forward.3} parent=1 // pred_check_branch
      %33 = sbr.rel (0) target = $region17
    $region16: #{vimon_forward.3} parent=1 // pred_region
      _
    $region17: #{vimon_forward.3} parent=1 // pred_fallthru
      _
    // Predicated region
    $region18: #{vimon_forward.3} parent=1 // pred_check
      _
    $region19: #{vimon_forward.3} parent=1 // pred_check_branch
      %35 = sbr.rel (0) target = $region21
    $region20: #{vimon_forward.3} parent=1 // pred_region
      _
    $region21: #{vimon_forward.3} parent=1 // pred_fallthru
      _
    // Predicated region
    $region22: #{vimon_forward.3} parent=1 // pred_check
      _
    $region23: #{vimon_forward.3} parent=1 // pred_check_branch
      %37 = sbr.rel (0) target = $region25
    $region24: #{vimon_forward.3} parent=1 // pred_region
      _
    $region25: #{vimon_forward.3} parent=1 // pred_fallthru
      _
    // Predicated region
    $region26: #{vimon_forward.3} parent=1 // pred_check
      _
    $region27: #{vimon_forward.3} parent=1 // pred_check_branch
      %39 = sbr.rel (0) target = $region29
    $region28: #{vimon_forward.3} parent=1 // pred_region
      _
    $region29: #{vimon_forward.3} parent=1 // pred_fallthru
      _
    %v40 = vld [vmem:[%s0] sm:$0xff]
    %v41 = vld [vmem:[%s0 + $0x8] sm:$0xf]
    %v42 = vld [vmem:[%s0 + $0xc] sm:$0xff]
    %v43 = vld [vmem:[%s0 + $0x14] sm:$0xf]
    %v44 = vld [vmem:[%s0 + $0x18] sm:$0xff]
    %v45 = vld [vmem:[%s0 + $0x20] sm:$0xf]
    %v46 = vld [vmem:[%s0 + $0x24] sm:$0xff]
    %v47 = vld [vmem:[%s0 + $0x2c] sm:$0xf]
    %v48 = vld [vmem:[%s1] sm:$0xf]
    %v49 = vld [vmem:[%s1 + $0x4] sm:$0xf]
    %v50 = vld [vmem:[%s1 + $0x8] sm:$0xf]
    %v51 = vld [vmem:[%s1 + $0xc] sm:$0xf]
    %v52 = vld [vmem:[%s1 + $0x10] sm:$0xf]
    %v53 = vld [vmem:[%s1 + $0x14] sm:$0xf]
    %v54 = vld [vmem:[%s1 + $0x18] sm:$0xf]
    %v55 = vld [vmem:[%s1 + $0x1c] sm:$0xf]
    %v56 = vld [vmem:[%s1 + $0x20] sm:$0xf]
    %v57 = vld [vmem:[%s2] sm:$0xf]
    %v58 = vld [vmem:[%s2 + $0x4] sm:$0xf]
    %v59 = vld [vmem:[%s2 + $0x8] sm:$0xf]
    %v60 = vld [vmem:[%s2 + $0xc] sm:$0xf]
    %v61 = vld [vmem:[%s2 + $0x10] sm:$0xf]
    %v62 = vld [vmem:[%s2 + $0x14] sm:$0xf]
    %v63 = vld [vmem:[%s2 + $0x18] sm:$0xf]
    %v64 = vld [vmem:[%s2 + $0x1c] sm:$0xf]
    %v65 = vld [vmem:[%s2 + $0x20] sm:$0xf]
    %v66 = vld [vmem:[%s3] sm:$0xf]
    %v67 = vld [vmem:[%s3 + $0x4] sm:$0xf]
    %v68 = vld [vmem:[%s3 + $0x8] sm:$0xf]
    %v69 = vld [vmem:[%s3 + $0xc] sm:$0xf]
    %v70 = vld [vmem:[%s3 + $0x10] sm:$0xf]
    %v71 = vld [vmem:[%s3 + $0x14] sm:$0xf]
    %v72 = vld [vmem:[%s3 + $0x18] sm:$0xf]
    %v73 = vld [vmem:[%s3 + $0x1c] sm:$0xf]
    %v74 = vld [vmem:[%s3 + $0x20] sm:$0xf]
    %v75 = vld [vmem:[%s4] sm:$0xff]
    %v76 = vld [vmem:[%s4 + $0x8] sm:$0xf]
    %v77 = vld [vmem:[%s4 + $0xc] sm:$0xff]
    %v78 = vld [vmem:[%s4 + $0x14] sm:$0xf]
    %v79 = vld [vmem:[%s4 + $0x18] sm:$0xff]
    %v80 = vld [vmem:[%s4 + $0x20] sm:$0xf]
    %v81 = vld [vmem:[%s4 + $0x24] sm:$0xff]
    %v82 = vld [vmem:[%s4 + $0x2c] sm:$0xf]
    %v83 = vld [vmem:[%s4 + $0x30] sm:$0xff]
    %v84 = vld [vmem:[%s4 + $0x38] sm:$0xf]
    %v85 = vld [vmem:[%s4 + $0x3c] sm:$0xff]
    %v86 = vld [vmem:[%s4 + $0x44] sm:$0xf]
    %v87 = vld [vmem:[%s4 + $0x48] sm:$0xff]
    %v88 = vld [vmem:[%s4 + $0x50] sm:$0xf]
    %v89 = vld [vmem:[%s4 + $0x54] sm:$0xff]
    %v90 = vld [vmem:[%s4 + $0x5c] sm:$0xf]
    %v91 = vld [vmem:[%s4 + $0x60] sm:$0xff]
    %v92 = vld [vmem:[%s4 + $0x68] sm:$0xf]
    %v93 = vld [vmem:[%s5] sm:$0xff]
    %v94 = vld [vmem:[%s5 + $0x8] sm:$0xf]
    %v95 = vld [vmem:[%s5 + $0xc] sm:$0xff]
    %v96 = vld [vmem:[%s5 + $0x14] sm:$0xf]
    %v97 = vld [vmem:[%s5 + $0x18] sm:$0xff]
    %v98 = vld [vmem:[%s5 + $0x20] sm:$0xf]
    %v99 = vld [vmem:[%s5 + $0x24] sm:$0xff]
    %v100 = vld [vmem:[%s5 + $0x2c] sm:$0xf]
    %v101 = vld [vmem:[%s5 + $0x30] sm:$0xff]
    %v102 = vld [vmem:[%s5 + $0x38] sm:$0xf]
    %v103 = vld [vmem:[%s5 + $0x3c] sm:$0xff]
    %v104 = vld [vmem:[%s5 + $0x44] sm:$0xf]
    %v105 = vld [vmem:[%s5 + $0x48] sm:$0xff]
    %v106 = vld [vmem:[%s5 + $0x50] sm:$0xf]
    %v107 = vld [vmem:[%s5 + $0x54] sm:$0xff]
    %v108 = vld [vmem:[%s5 + $0x5c] sm:$0xf]
    %v109 = vld [vmem:[%s5 + $0x60] sm:$0xff]
    %v110 = vld [vmem:[%s5 + $0x68] sm:$0xf]
    %v111 = vld [vmem:[%s6] sm:$0x3]
    %v112 = vld [vmem:[%s6 + $0x2] sm:$0x3]
    %v113 = vld [vmem:[%s6 + $0x4] sm:$0x3]
    %v114 = vld [vmem:[%s6 + $0x6] sm:$0x3]
    %v115 = vld [vmem:[%s6 + $0x8] sm:$0x3]
    %v116 = vld [vmem:[%s6 + $0xa] sm:$0x3]
    %v117 = vld [vmem:[%s6 + $0xc] sm:$0x3]
    %v118 = vld [vmem:[%s6 + $0xe] sm:$0x3]
    %v119 = vld [vmem:[%s6 + $0x10] sm:$0x3]
    %vm120 = vcmask 1041408
    %vm121 = vcmask 1043458
    %vm122 = vmor %vm121, %vm120
    %v123 = vsel %vm122, %v57, -inf
    %v124 = vsel %vm122, %v58, -inf
    %v125 = vsel %vm122, %v59, -inf
    %v126 = vmax.f32 %v123, %v125
    %v127 = vmax.f32 %v126, %v124
    %v128 = vsel %vm122, %v60, -inf
    %v129 = vsel %vm122, %v61, -inf
    %v130 = vsel %vm122, %v62, -inf
    %v131 = vmax.f32 %v128, %v130
    %v132 = vmax.f32 %v131, %v129
    %v133 = vsel %vm122, %v63, -inf
    %v134 = vsel %vm122, %v64, -inf
    %v135 = vsel %vm122, %v65, -inf
    %v136 = vmax.f32 %v133, %v135
    %v137 = vmax.f32 %v136, %v134
    %v138 = vsub.f32 %v57, %v127
    %v139 = vsub.f32 %v58, %v127
    %v140 = vsub.f32 %v59, %v127
    %v141 = vsub.f32 %v60, %v132
    %v142 = vsub.f32 %v61, %v132
    %v143 = vsub.f32 %v62, %v132
    %v144 = vsub.f32 %v63, %v137
    %v145 = vsub.f32 %v64, %v137
    %v146 = vsub.f32 %v65, %v137
    %v147 = vmul.f32 %v138, 1.442695
    %v148 = vpow.pop %v147
    %v149 = vmul.f32 %v139, 1.442695
    %v150 = vpow.pop %v149
    %v151 = vmul.f32 %v140, 1.442695
    %v152 = vpow.pop %v151
    %v153 = vmul.f32 %v141, 1.442695
    %v154 = vpow.pop %v153
    %v155 = vmul.f32 %v142, 1.442695
    %v156 = vpow.pop %v155
    %v157 = vmul.f32 %v143, 1.442695
    %v158 = vpow.pop %v157
    %v159 = vmul.f32 %v144, 1.442695
    %v160 = vpow.pop %v159
    %v161 = vmul.f32 %v145, 1.442695
    %v162 = vpow.pop %v161
    %v163 = vmul.f32 %v146, 1.442695
    %v164 = vpow.pop %v163
    %v175 = vunpack.c.l.s4 1983009808
    %v176 = vunpack.c.0.s8 %v175
    %v177 = vlaneseq
    %v178 = vshrl.u32 %v177, 7
    %v179 = vsub.s32 %v176, %v178
    %v180 = vrot.slane %v148, %v179
    %v181 = vcombine.high %v180, %v180
    %v183 = vunpack.c.l.s4 1983009808
    %v184 = vunpack.c.0.s8 %v183
    %v185 = vlaneseq
    %v186 = vshrl.u32 %v185, 7
    %v187 = vsub.s32 %v184, %v186
    %v188 = vrot.slane %v150, %v187
    %v189 = vcombine.high %v188, %v188
    %v191 = vunpack.c.l.s4 1983009808
    %v192 = vunpack.c.0.s8 %v191
    %v193 = vlaneseq
    %v194 = vshrl.u32 %v193, 7
    %v195 = vsub.s32 %v192, %v194
    %v196 = vrot.slane %v152, %v195
    %v197 = vcombine.high %v196, %v196
    %v199 = vunpack.c.l.s4 1983009808
    %v200 = vunpack.c.0.s8 %v199
    %v201 = vlaneseq
    %v202 = vshrl.u32 %v201, 7
    %v203 = vsub.s32 %v200, %v202
    %v204 = vrot.slane %v154, %v203
    %v205 = vcombine.high %v204, %v204
    %v207 = vunpack.c.l.s4 1983009808
    %v208 = vunpack.c.0.s8 %v207
    %v209 = vlaneseq
    %v210 = vshrl.u32 %v209, 7
    %v211 = vsub.s32 %v208, %v210
    %v212 = vrot.slane %v156, %v211
    %v213 = vcombine.high %v212, %v212
    %v215 = vunpack.c.l.s4 1983009808
    %v216 = vunpack.c.0.s8 %v215
    %v217 = vlaneseq
    %v218 = vshrl.u32 %v217, 7
    %v219 = vsub.s32 %v216, %v218
    %v220 = vrot.slane %v158, %v219
    %v221 = vcombine.high %v220, %v220
    %v223 = vunpack.c.l.s4 1983009808
    %v224 = vunpack.c.0.s8 %v223
    %v225 = vlaneseq
    %v226 = vshrl.u32 %v225, 7
    %v227 = vsub.s32 %v224, %v226
    %v228 = vrot.slane %v160, %v227
    %v229 = vcombine.high %v228, %v228
    %v231 = vunpack.c.l.s4 1983009808
    %v232 = vunpack.c.0.s8 %v231
    %v233 = vlaneseq
    %v234 = vshrl.u32 %v233, 7
    %v235 = vsub.s32 %v232, %v234
    %v236 = vrot.slane %v162, %v235
    %v237 = vcombine.high %v236, %v236
    %v239 = vunpack.c.l.s4 1983009808
    %v240 = vunpack.c.0.s8 %v239
    %v241 = vlaneseq
    %v242 = vshrl.u32 %v241, 7
    %v243 = vsub.s32 %v240, %v242
    %v244 = vrot.slane %v164, %v243
    %v245 = vcombine.high %v244, %v244
    %v264 = vsel %vm120, %v180, 0.0
    %v265 = vsel %vm120, %v188, 0.0
    %v266 = vadd.f32 %v264, %v265
    %v267 = vsel %vm120, %v196, 0.0
    %v268 = vadd.f32 %v266, %v267
    %v269 = vsel %vm120, %v181, 0.0
    %v270 = vsel %vm120, %v189, 0.0
    %v271 = vadd.f32 %v269, %v270
    %v272 = vsel %vm120, %v197, 0.0
    %v273 = vadd.f32 %v271, %v272
    %v274 = vsel %vm120, %v204, 0.0
    %v275 = vsel %vm120, %v212, 0.0
    %v276 = vadd.f32 %v274, %v275
    %v277 = vsel %vm120, %v220, 0.0
    %v278 = vadd.f32 %v276, %v277
    %v279 = vsel %vm120, %v205, 0.0
    %v280 = vsel %vm120, %v213, 0.0
    %v281 = vadd.f32 %v279, %v280
    %v282 = vsel %vm120, %v221, 0.0
    %v283 = vadd.f32 %v281, %v282
    %v284 = vsel %vm120, %v228, 0.0
    %v285 = vsel %vm120, %v236, 0.0
    %v286 = vadd.f32 %v284, %v285
    %v287 = vsel %vm120, %v244, 0.0
    %v288 = vadd.f32 %v286, %v287
    %v289 = vsel %vm120, %v229, 0.0
    %v290 = vsel %vm120, %v237, 0.0
    %v291 = vadd.f32 %v289, %v290
    %v292 = vsel %vm120, %v245, 0.0
    %v293 = vadd.f32 %v291, %v292
    %v294 = vrcp.pop %v268
    %v295 = vrcp.pop %v273
    %v296 = vrcp.pop %v278
    %v297 = vrcp.pop %v283
    %v298 = vrcp.pop %v288
    %v299 = vrcp.pop %v293
    %v306 = vcombine.low %v294, %v295
    %v308 = vunpack.c.l.s4 1983009808
    %v309 = vunpack.c.0.s8 %v308
    %v310 = vlaneseq
    %v311 = vshrl.u32 %v310, 7
    %v312 = vsub.s32 %v309, %v311
    %v313 = vrot.slane %v306, %v312
    %v314 = vcombine.low %v296, %v297
    %v316 = vunpack.c.l.s4 1983009808
    %v317 = vunpack.c.0.s8 %v316
    %v318 = vlaneseq
    %v319 = vshrl.u32 %v318, 7
    %v320 = vsub.s32 %v317, %v319
    %v321 = vrot.slane %v314, %v320
    %v322 = vcombine.low %v298, %v299
    %v324 = vunpack.c.l.s4 1983009808
    %v325 = vunpack.c.0.s8 %v324
    %v326 = vlaneseq
    %v327 = vshrl.u32 %v326, 7
    %v328 = vsub.s32 %v325, %v327
    %v329 = vrot.slane %v322, %v328
    %v333 = vmul.f32 %v148, %v313
    %v334 = vmul.f32 %v150, %v313
    %v335 = vmul.f32 %v152, %v313
    %v336 = vmul.f32 %v154, %v321
    %v337 = vmul.f32 %v156, %v321
    %v338 = vmul.f32 %v158, %v321
    %v339 = vmul.f32 %v160, %v329
    %v340 = vmul.f32 %v162, %v329
    %v341 = vmul.f32 %v164, %v329
    %v342 = vsel %vm122, %v66, -inf
    %v343 = vsel %vm122, %v67, -inf
    %v344 = vsel %vm122, %v68, -inf
    %v345 = vmax.f32 %v342, %v344
    %v346 = vmax.f32 %v345, %v343
    %v347 = vsel %vm122, %v69, -inf
    %v348 = vsel %vm122, %v70, -inf
    %v349 = vsel %vm122, %v71, -inf
    %v350 = vmax.f32 %v347, %v349
    %v351 = vmax.f32 %v350, %v348
    %v352 = vsel %vm122, %v72, -inf
    %v353 = vsel %vm122, %v73, -inf
    %v354 = vsel %vm122, %v74, -inf
    %v355 = vmax.f32 %v352, %v354
    %v356 = vmax.f32 %v355, %v353
    %v357 = vsub.f32 %v66, %v346
    %v358 = vsub.f32 %v67, %v346
    %v359 = vsub.f32 %v68, %v346
    %v360 = vsub.f32 %v69, %v351
    %v361 = vsub.f32 %v70, %v351
    %v362 = vsub.f32 %v71, %v351
    %v363 = vsub.f32 %v72, %v356
    %v364 = vsub.f32 %v73, %v356
    %v365 = vsub.f32 %v74, %v356
    %v366 = vmul.f32 %v357, 1.442695
    %v367 = vpow.pop %v366
    %v368 = vmul.f32 %v358, 1.442695
    %v369 = vpow.pop %v368
    %v370 = vmul.f32 %v359, 1.442695
    %v371 = vpow.pop %v370
    %v372 = vmul.f32 %v360, 1.442695
    %v373 = vpow.pop %v372
    %v374 = vmul.f32 %v361, 1.442695
    %v375 = vpow.pop %v374
    %v376 = vmul.f32 %v362, 1.442695
    %v377 = vpow.pop %v376
    %v378 = vmul.f32 %v363, 1.442695
    %v379 = vpow.pop %v378
    %v380 = vmul.f32 %v364, 1.442695
    %v381 = vpow.pop %v380
    %v382 = vmul.f32 %v365, 1.442695
    %v383 = vpow.pop %v382
    %v394 = vunpack.c.l.s4 1983009808
    %v395 = vunpack.c.0.s8 %v394
    %v396 = vlaneseq
    %v397 = vshrl.u32 %v396, 7
    %v398 = vsub.s32 %v395, %v397
    %v399 = vrot.slane %v367, %v398
    %v400 = vcombine.high %v399, %v399
    %v402 = vunpack.c.l.s4 1983009808
    %v403 = vunpack.c.0.s8 %v402
    %v404 = vlaneseq
    %v405 = vshrl.u32 %v404, 7
    %v406 = vsub.s32 %v403, %v405
    %v407 = vrot.slane %v369, %v406
    %v408 = vcombine.high %v407, %v407
    %v410 = vunpack.c.l.s4 1983009808
    %v411 = vunpack.c.0.s8 %v410
    %v412 = vlaneseq
    %v413 = vshrl.u32 %v412, 7
    %v414 = vsub.s32 %v411, %v413
    %v415 = vrot.slane %v371, %v414
    %v416 = vcombine.high %v415, %v415
    %v418 = vunpack.c.l.s4 1983009808
    %v419 = vunpack.c.0.s8 %v418
    %v420 = vlaneseq
    %v421 = vshrl.u32 %v420, 7
    %v422 = vsub.s32 %v419, %v421
    %v423 = vrot.slane %v373, %v422
    %v424 = vcombine.high %v423, %v423
    %v426 = vunpack.c.l.s4 1983009808
    %v427 = vunpack.c.0.s8 %v426
    %v428 = vlaneseq
    %v429 = vshrl.u32 %v428, 7
    %v430 = vsub.s32 %v427, %v429
    %v431 = vrot.slane %v375, %v430
    %v432 = vcombine.high %v431, %v431
    %v434 = vunpack.c.l.s4 1983009808
    %v435 = vunpack.c.0.s8 %v434
    %v436 = vlaneseq
    %v437 = vshrl.u32 %v436, 7
    %v438 = vsub.s32 %v435, %v437
    %v439 = vrot.slane %v377, %v438
    %v440 = vcombine.high %v439, %v439
    %v442 = vunpack.c.l.s4 1983009808
    %v443 = vunpack.c.0.s8 %v442
    %v444 = vlaneseq
    %v445 = vshrl.u32 %v444, 7
    %v446 = vsub.s32 %v443, %v445
    %v447 = vrot.slane %v379, %v446
    %v448 = vcombine.high %v447, %v447
    %v450 = vunpack.c.l.s4 1983009808
    %v451 = vunpack.c.0.s8 %v450
    %v452 = vlaneseq
    %v453 = vshrl.u32 %v452, 7
    %v454 = vsub.s32 %v451, %v453
    %v455 = vrot.slane %v381, %v454
    %v456 = vcombine.high %v455, %v455
    %v458 = vunpack.c.l.s4 1983009808
    %v459 = vunpack.c.0.s8 %v458
    %v460 = vlaneseq
    %v461 = vshrl.u32 %v460, 7
    %v462 = vsub.s32 %v459, %v461
    %v463 = vrot.slane %v383, %v462
    %v464 = vcombine.high %v463, %v463
    %v483 = vsel %vm120, %v399, 0.0
    %v484 = vsel %vm120, %v407, 0.0
    %v485 = vadd.f32 %v483, %v484
    %v486 = vsel %vm120, %v415, 0.0
    %v487 = vadd.f32 %v485, %v486
    %v488 = vsel %vm120, %v400, 0.0
    %v489 = vsel %vm120, %v408, 0.0
    %v490 = vadd.f32 %v488, %v489
    %v491 = vsel %vm120, %v416, 0.0
    %v492 = vadd.f32 %v490, %v491
    %v493 = vsel %vm120, %v423, 0.0
    %v494 = vsel %vm120, %v431, 0.0
    %v495 = vadd.f32 %v493, %v494
    %v496 = vsel %vm120, %v439, 0.0
    %v497 = vadd.f32 %v495, %v496
    %v498 = vsel %vm120, %v424, 0.0
    %v499 = vsel %vm120, %v432, 0.0
    %v500 = vadd.f32 %v498, %v499
    %v501 = vsel %vm120, %v440, 0.0
    %v502 = vadd.f32 %v500, %v501
    %v503 = vsel %vm120, %v447, 0.0
    %v504 = vsel %vm120, %v455, 0.0
    %v505 = vadd.f32 %v503, %v504
    %v506 = vsel %vm120, %v463, 0.0
    %v507 = vadd.f32 %v505, %v506
    %v508 = vsel %vm120, %v448, 0.0
    %v509 = vsel %vm120, %v456, 0.0
    %v510 = vadd.f32 %v508, %v509
    %v511 = vsel %vm120, %v464, 0.0
    %v512 = vadd.f32 %v510, %v511
    %v513 = vrcp.pop %v487
    %v514 = vrcp.pop %v492
    %v515 = vrcp.pop %v497
    %v516 = vrcp.pop %v502
    %v517 = vrcp.pop %v507
    %v518 = vrcp.pop %v512
    %v525 = vcombine.low %v513, %v514
    %v527 = vunpack.c.l.s4 1983009808
    %v528 = vunpack.c.0.s8 %v527
    %v529 = vlaneseq
    %v530 = vshrl.u32 %v529, 7
    %v531 = vsub.s32 %v528, %v530
    %v532 = vrot.slane %v525, %v531
    %v533 = vcombine.low %v515, %v516
    %v535 = vunpack.c.l.s4 1983009808
    %v536 = vunpack.c.0.s8 %v535
    %v537 = vlaneseq
    %v538 = vshrl.u32 %v537, 7
    %v539 = vsub.s32 %v536, %v538
    %v540 = vrot.slane %v533, %v539
    %v541 = vcombine.low %v517, %v518
    %v543 = vunpack.c.l.s4 1983009808
    %v544 = vunpack.c.0.s8 %v543
    %v545 = vlaneseq
    %v546 = vshrl.u32 %v545, 7
    %v547 = vsub.s32 %v544, %v546
    %v548 = vrot.slane %v541, %v547
    %v552 = vmul.f32 %v367, %v532
    %v553 = vmul.f32 %v369, %v532
    %v554 = vmul.f32 %v371, %v532
    %v555 = vmul.f32 %v373, %v540
    %v556 = vmul.f32 %v375, %v540
    %v557 = vmul.f32 %v377, %v540
    %v558 = vmul.f32 %v379, %v548
    %v559 = vmul.f32 %v381, %v548
    %v560 = vmul.f32 %v383, %v548
    %v561 = vmul.f32 %v48, 1.442695
    %v562 = vpow.pop %v561
    %v563 = vmul.f32 %v49, 1.442695
    %v564 = vpow.pop %v563
    %v565 = vmul.f32 %v50, 1.442695
    %v566 = vpow.pop %v565
    %v567 = vmul.f32 %v51, 1.442695
    %v568 = vpow.pop %v567
    %v569 = vmul.f32 %v52, 1.442695
    %v570 = vpow.pop %v569
    %v571 = vmul.f32 %v53, 1.442695
    %v572 = vpow.pop %v571
    %v573 = vmul.f32 %v54, 1.442695
    %v574 = vpow.pop %v573
    %v575 = vmul.f32 %v55, 1.442695
    %v576 = vpow.pop %v575
    %v577 = vmul.f32 %v56, 1.442695
    %v578 = vpow.pop %v577
    %579 = vst [vmem:[%s7] sm:$0xf] %v333
    %580 = vst [vmem:[%s7 + $0x4] sm:$0xf] %v334
    %581 = vst [vmem:[%s7 + $0x8] sm:$0xf] %v335
    %582 = vst [vmem:[%s7 + $0xc] sm:$0xf] %v336
    %583 = vst [vmem:[%s7 + $0x10] sm:$0xf] %v337
    %584 = vst [vmem:[%s7 + $0x14] sm:$0xf] %v338
    %585 = vst [vmem:[%s7 + $0x18] sm:$0xf] %v339
    %586 = vst [vmem:[%s7 + $0x1c] sm:$0xf] %v340
    %587 = vst [vmem:[%s7 + $0x20] sm:$0xf] %v341
    %588 = vst [vmem:[%s8] sm:$0xf] %v552
    %589 = vst [vmem:[%s8 + $0x4] sm:$0xf] %v553
    %590 = vst [vmem:[%s8 + $0x8] sm:$0xf] %v554
    %591 = vst [vmem:[%s8 + $0xc] sm:$0xf] %v555
    %592 = vst [vmem:[%s8 + $0x10] sm:$0xf] %v556
    %593 = vst [vmem:[%s8 + $0x14] sm:$0xf] %v557
    %594 = vst [vmem:[%s8 + $0x18] sm:$0xf] %v558
    %595 = vst [vmem:[%s8 + $0x1c] sm:$0xf] %v559
    %596 = vst [vmem:[%s8 + $0x20] sm:$0xf] %v560
    %597 = vst [vmem:[%s9] sm:$0xf] %v562
    %598 = vst [vmem:[%s9 + $0x4] sm:$0xf] %v564
    %599 = vst [vmem:[%s9 + $0x8] sm:$0xf] %v566
    %600 = vst [vmem:[%s9 + $0xc] sm:$0xf] %v568
    %601 = vst [vmem:[%s9 + $0x10] sm:$0xf] %v570
    %602 = vst [vmem:[%s9 + $0x14] sm:$0xf] %v572
    %603 = vst [vmem:[%s9 + $0x18] sm:$0xf] %v574
    %604 = vst [vmem:[%s9 + $0x1c] sm:$0xf] %v576
    %605 = vst [vmem:[%s9 + $0x20] sm:$0xf] %v578
    %v606 = vmul.f32 %v333, %v75
    %v607 = vmul.f32 %v334, %v77
    %v608 = vmul.f32 %v335, %v79
    %v609 = vmul.f32 %v336, %v81
    %v610 = vmul.f32 %v337, %v83
    %v611 = vmul.f32 %v338, %v85
    %v612 = vmul.f32 %v339, %v87
    %v613 = vmul.f32 %v340, %v89
    %v614 = vmul.f32 %v341, %v91
    %v625 = vunpack.c.l.s4 1983009808
    %v626 = vunpack.c.0.s8 %v625
    %v627 = vlaneseq
    %v628 = vshrl.u32 %v627, 7
    %v629 = vsub.s32 %v626, %v628
    %v630 = vrot.slane %v606, %v629
    %v631 = vcombine.high %v630, %v630
    %v633 = vunpack.c.l.s4 1983009808
    %v634 = vunpack.c.0.s8 %v633
    %v635 = vlaneseq
    %v636 = vshrl.u32 %v635, 7
    %v637 = vsub.s32 %v634, %v636
    %v638 = vrot.slane %v607, %v637
    %v639 = vcombine.high %v638, %v638
    %v641 = vunpack.c.l.s4 1983009808
    %v642 = vunpack.c.0.s8 %v641
    %v643 = vlaneseq
    %v644 = vshrl.u32 %v643, 7
    %v645 = vsub.s32 %v642, %v644
    %v646 = vrot.slane %v608, %v645
    %v647 = vcombine.high %v646, %v646
    %v649 = vunpack.c.l.s4 1983009808
    %v650 = vunpack.c.0.s8 %v649
    %v651 = vlaneseq
    %v652 = vshrl.u32 %v651, 7
    %v653 = vsub.s32 %v650, %v652
    %v654 = vrot.slane %v609, %v653
    %v655 = vcombine.high %v654, %v654
    %v657 = vunpack.c.l.s4 1983009808
    %v658 = vunpack.c.0.s8 %v657
    %v659 = vlaneseq
    %v660 = vshrl.u32 %v659, 7
    %v661 = vsub.s32 %v658, %v660
    %v662 = vrot.slane %v610, %v661
    %v663 = vcombine.high %v662, %v662
    %v665 = vunpack.c.l.s4 1983009808
    %v666 = vunpack.c.0.s8 %v665
    %v667 = vlaneseq
    %v668 = vshrl.u32 %v667, 7
    %v669 = vsub.s32 %v666, %v668
    %v670 = vrot.slane %v611, %v669
    %v671 = vcombine.high %v670, %v670
    %v673 = vunpack.c.l.s4 1983009808
    %v674 = vunpack.c.0.s8 %v673
    %v675 = vlaneseq
    %v676 = vshrl.u32 %v675, 7
    %v677 = vsub.s32 %v674, %v676
    %v678 = vrot.slane %v612, %v677
    %v679 = vcombine.high %v678, %v678
    %v681 = vunpack.c.l.s4 1983009808
    %v682 = vunpack.c.0.s8 %v681
    %v683 = vlaneseq
    %v684 = vshrl.u32 %v683, 7
    %v685 = vsub.s32 %v682, %v684
    %v686 = vrot.slane %v613, %v685
    %v687 = vcombine.high %v686, %v686
    %v689 = vunpack.c.l.s4 1983009808
    %v690 = vunpack.c.0.s8 %v689
    %v691 = vlaneseq
    %v692 = vshrl.u32 %v691, 7
    %v693 = vsub.s32 %v690, %v692
    %v694 = vrot.slane %v614, %v693
    %v695 = vcombine.high %v694, %v694
    %v714 = vsel %vm120, %v630, 0.0
    %v715 = vsel %vm120, %v638, 0.0
    %v716 = vadd.f32 %v714, %v715
    %v717 = vsel %vm120, %v646, 0.0
    %v718 = vadd.f32 %v716, %v717
    %v719 = vsel %vm120, %v631, 0.0
    %v720 = vsel %vm120, %v639, 0.0
    %v721 = vadd.f32 %v719, %v720
    %v722 = vsel %vm120, %v647, 0.0
    %v723 = vadd.f32 %v721, %v722
    %v724 = vsel %vm120, %v654, 0.0
    %v725 = vsel %vm120, %v662, 0.0
    %v726 = vadd.f32 %v724, %v725
    %v727 = vsel %vm120, %v670, 0.0
    %v728 = vadd.f32 %v726, %v727
    %v729 = vsel %vm120, %v655, 0.0
    %v730 = vsel %vm120, %v663, 0.0
    %v731 = vadd.f32 %v729, %v730
    %v732 = vsel %vm120, %v671, 0.0
    %v733 = vadd.f32 %v731, %v732
    %v734 = vsel %vm120, %v678, 0.0
    %v735 = vsel %vm120, %v686, 0.0
    %v736 = vadd.f32 %v734, %v735
    %v737 = vsel %vm120, %v694, 0.0
    %v738 = vadd.f32 %v736, %v737
    %v739 = vsel %vm120, %v679, 0.0
    %v740 = vsel %vm120, %v687, 0.0
    %v741 = vadd.f32 %v739, %v740
    %v742 = vsel %vm120, %v695, 0.0
    %v743 = vadd.f32 %v741, %v742
    %v750 = vcombine.low %v718, %v723
    %v752 = vunpack.c.l.s4 1983009808
    %v753 = vunpack.c.0.s8 %v752
    %v754 = vlaneseq
    %v755 = vshrl.u32 %v754, 7
    %v756 = vsub.s32 %v753, %v755
    %v757 = vrot.slane %v750, %v756
    %v758 = vcombine.low %v728, %v733
    %v760 = vunpack.c.l.s4 1983009808
    %v761 = vunpack.c.0.s8 %v760
    %v762 = vlaneseq
    %v763 = vshrl.u32 %v762, 7
    %v764 = vsub.s32 %v761, %v763
    %v765 = vrot.slane %v758, %v764
    %v766 = vcombine.low %v738, %v743
    %v768 = vunpack.c.l.s4 1983009808
    %v769 = vunpack.c.0.s8 %v768
    %v770 = vlaneseq
    %v771 = vshrl.u32 %v770, 7
    %v772 = vsub.s32 %v769, %v771
    %v773 = vrot.slane %v766, %v772
    %777 = vst [vmem:[%s10] sm:$0xf] %v757
    %778 = vst [vmem:[%s10 + $0xc] sm:$0xf] %v765
    %779 = vst [vmem:[%s10 + $0x18] sm:$0xf] %v773
    %v780 = vmul.f32 %v562, %v75
    %v781 = vmul.f32 %v564, %v77
    %v782 = vmul.f32 %v566, %v79
    %v783 = vmul.f32 %v568, %v81
    %v784 = vmul.f32 %v570, %v83
    %v785 = vmul.f32 %v572, %v85
    %v786 = vmul.f32 %v574, %v87
    %v787 = vmul.f32 %v576, %v89
    %v788 = vmul.f32 %v578, %v91
    %v799 = vunpack.c.l.s4 1983009808
    %v800 = vunpack.c.0.s8 %v799
    %v801 = vlaneseq
    %v802 = vshrl.u32 %v801, 7
    %v803 = vsub.s32 %v800, %v802
    %v804 = vrot.slane %v780, %v803
    %v805 = vcombine.high %v804, %v804
    %v807 = vunpack.c.l.s4 1983009808
    %v808 = vunpack.c.0.s8 %v807
    %v809 = vlaneseq
    %v810 = vshrl.u32 %v809, 7
    %v811 = vsub.s32 %v808, %v810
    %v812 = vrot.slane %v781, %v811
    %v813 = vcombine.high %v812, %v812
    %v815 = vunpack.c.l.s4 1983009808
    %v816 = vunpack.c.0.s8 %v815
    %v817 = vlaneseq
    %v818 = vshrl.u32 %v817, 7
    %v819 = vsub.s32 %v816, %v818
    %v820 = vrot.slane %v782, %v819
    %v821 = vcombine.high %v820, %v820
    %v823 = vunpack.c.l.s4 1983009808
    %v824 = vunpack.c.0.s8 %v823
    %v825 = vlaneseq
    %v826 = vshrl.u32 %v825, 7
    %v827 = vsub.s32 %v824, %v826
    %v828 = vrot.slane %v783, %v827
    %v829 = vcombine.high %v828, %v828
    %v831 = vunpack.c.l.s4 1983009808
    %v832 = vunpack.c.0.s8 %v831
    %v833 = vlaneseq
    %v834 = vshrl.u32 %v833, 7
    %v835 = vsub.s32 %v832, %v834
    %v836 = vrot.slane %v784, %v835
    %v837 = vcombine.high %v836, %v836
    %v839 = vunpack.c.l.s4 1983009808
    %v840 = vunpack.c.0.s8 %v839
    %v841 = vlaneseq
    %v842 = vshrl.u32 %v841, 7
    %v843 = vsub.s32 %v840, %v842
    %v844 = vrot.slane %v785, %v843
    %v845 = vcombine.high %v844, %v844
    %v847 = vunpack.c.l.s4 1983009808
    %v848 = vunpack.c.0.s8 %v847
    %v849 = vlaneseq
    %v850 = vshrl.u32 %v849, 7
    %v851 = vsub.s32 %v848, %v850
    %v852 = vrot.slane %v786, %v851
    %v853 = vcombine.high %v852, %v852
    %v855 = vunpack.c.l.s4 1983009808
    %v856 = vunpack.c.0.s8 %v855
    %v857 = vlaneseq
    %v858 = vshrl.u32 %v857, 7
    %v859 = vsub.s32 %v856, %v858
    %v860 = vrot.slane %v787, %v859
    %v861 = vcombine.high %v860, %v860
    %v863 = vunpack.c.l.s4 1983009808
    %v864 = vunpack.c.0.s8 %v863
    %v865 = vlaneseq
    %v866 = vshrl.u32 %v865, 7
    %v867 = vsub.s32 %v864, %v866
    %v868 = vrot.slane %v788, %v867
    %v869 = vcombine.high %v868, %v868
    %v888 = vsel %vm120, %v804, 0.0
    %v889 = vsel %vm120, %v812, 0.0
    %v890 = vadd.f32 %v888, %v889
    %v891 = vsel %vm120, %v820, 0.0
    %v892 = vadd.f32 %v890, %v891
    %v893 = vsel %vm120, %v805, 0.0
    %v894 = vsel %vm120, %v813, 0.0
    %v895 = vadd.f32 %v893, %v894
    %v896 = vsel %vm120, %v821, 0.0
    %v897 = vadd.f32 %v895, %v896
    %v898 = vsel %vm120, %v828, 0.0
    %v899 = vsel %vm120, %v836, 0.0
    %v900 = vadd.f32 %v898, %v899
    %v901 = vsel %vm120, %v844, 0.0
    %v902 = vadd.f32 %v900, %v901
    %v903 = vsel %vm120, %v829, 0.0
    %v904 = vsel %vm120, %v837, 0.0
    %v905 = vadd.f32 %v903, %v904
    %v906 = vsel %vm120, %v845, 0.0
    %v907 = vadd.f32 %v905, %v906
    %v908 = vsel %vm120, %v852, 0.0
    %v909 = vsel %vm120, %v860, 0.0
    %v910 = vadd.f32 %v908, %v909
    %v911 = vsel %vm120, %v868, 0.0
    %v912 = vadd.f32 %v910, %v911
    %v913 = vsel %vm120, %v853, 0.0
    %v914 = vsel %vm120, %v861, 0.0
    %v915 = vadd.f32 %v913, %v914
    %v916 = vsel %vm120, %v869, 0.0
    %v917 = vadd.f32 %v915, %v916
    %v924 = vcombine.low %v892, %v897
    %v926 = vunpack.c.l.s4 1983009808
    %v927 = vunpack.c.0.s8 %v926
    %v928 = vlaneseq
    %v929 = vshrl.u32 %v928, 7
    %v930 = vsub.s32 %v927, %v929
    %v931 = vrot.slane %v924, %v930
    %v932 = vcombine.low %v902, %v907
    %v934 = vunpack.c.l.s4 1983009808
    %v935 = vunpack.c.0.s8 %v934
    %v936 = vlaneseq
    %v937 = vshrl.u32 %v936, 7
    %v938 = vsub.s32 %v935, %v937
    %v939 = vrot.slane %v932, %v938
    %v940 = vcombine.low %v912, %v917
    %v942 = vunpack.c.l.s4 1983009808
    %v943 = vunpack.c.0.s8 %v942
    %v944 = vlaneseq
    %v945 = vshrl.u32 %v944, 7
    %v946 = vsub.s32 %v943, %v945
    %v947 = vrot.slane %v940, %v946
    %951 = vst [vmem:[%s11] sm:$0xf] %v931
    %952 = vst [vmem:[%s11 + $0xc] sm:$0xf] %v939
    %953 = vst [vmem:[%s11 + $0x18] sm:$0xf] %v947
    %v954 = vmul.f32 %v552, %v93
    %v955 = vmul.f32 %v553, %v95
    %v956 = vmul.f32 %v554, %v97
    %v957 = vmul.f32 %v555, %v99
    %v958 = vmul.f32 %v556, %v101
    %v959 = vmul.f32 %v557, %v103
    %v960 = vmul.f32 %v558, %v105
    %v961 = vmul.f32 %v559, %v107
    %v962 = vmul.f32 %v560, %v109
    %v973 = vunpack.c.l.s4 1983009808
    %v974 = vunpack.c.0.s8 %v973
    %v975 = vlaneseq
    %v976 = vshrl.u32 %v975, 7
    %v977 = vsub.s32 %v974, %v976
    %v978 = vrot.slane %v954, %v977
    %v979 = vcombine.high %v978, %v978
    %v981 = vunpack.c.l.s4 1983009808
    %v982 = vunpack.c.0.s8 %v981
    %v983 = vlaneseq
    %v984 = vshrl.u32 %v983, 7
    %v985 = vsub.s32 %v982, %v984
    %v986 = vrot.slane %v955, %v985
    %v987 = vcombine.high %v986, %v986
    %v989 = vunpack.c.l.s4 1983009808
    %v990 = vunpack.c.0.s8 %v989
    %v991 = vlaneseq
    %v992 = vshrl.u32 %v991, 7
    %v993 = vsub.s32 %v990, %v992
    %v994 = vrot.slane %v956, %v993
    %v995 = vcombine.high %v994, %v994
    %v997 = vunpack.c.l.s4 1983009808
    %v998 = vunpack.c.0.s8 %v997
    %v999 = vlaneseq
    %v1000 = vshrl.u32 %v999, 7
    %v1001 = vsub.s32 %v998, %v1000
    %v1002 = vrot.slane %v957, %v1001
    %v1003 = vcombine.high %v1002, %v1002
    %v1005 = vunpack.c.l.s4 1983009808
    %v1006 = vunpack.c.0.s8 %v1005
    %v1007 = vlaneseq
    %v1008 = vshrl.u32 %v1007, 7
    %v1009 = vsub.s32 %v1006, %v1008
    %v1010 = vrot.slane %v958, %v1009
    %v1011 = vcombine.high %v1010, %v1010
    %v1013 = vunpack.c.l.s4 1983009808
    %v1014 = vunpack.c.0.s8 %v1013
    %v1015 = vlaneseq
    %v1016 = vshrl.u32 %v1015, 7
    %v1017 = vsub.s32 %v1014, %v1016
    %v1018 = vrot.slane %v959, %v1017
    %v1019 = vcombine.high %v1018, %v1018
    %v1021 = vunpack.c.l.s4 1983009808
    %v1022 = vunpack.c.0.s8 %v1021
    %v1023 = vlaneseq
    %v1024 = vshrl.u32 %v1023, 7
    %v1025 = vsub.s32 %v1022, %v1024
    %v1026 = vrot.slane %v960, %v1025
    %v1027 = vcombine.high %v1026, %v1026
    %v1029 = vunpack.c.l.s4 1983009808
    %v1030 = vunpack.c.0.s8 %v1029
    %v1031 = vlaneseq
    %v1032 = vshrl.u32 %v1031, 7
    %v1033 = vsub.s32 %v1030, %v1032
    %v1034 = vrot.slane %v961, %v1033
    %v1035 = vcombine.high %v1034, %v1034
    %v1037 = vunpack.c.l.s4 1983009808
    %v1038 = vunpack.c.0.s8 %v1037
    %v1039 = vlaneseq
    %v1040 = vshrl.u32 %v1039, 7
    %v1041 = vsub.s32 %v1038, %v1040
    %v1042 = vrot.slane %v962, %v1041
    %v1043 = vcombine.high %v1042, %v1042
    %v1062 = vsel %vm120, %v978, 0.0
    %v1063 = vsel %vm120, %v986, 0.0
    %v1064 = vadd.f32 %v1062, %v1063
    %v1065 = vsel %vm120, %v994, 0.0
    %v1066 = vadd.f32 %v1064, %v1065
    %v1067 = vsel %vm120, %v979, 0.0
    %v1068 = vsel %vm120, %v987, 0.0
    %v1069 = vadd.f32 %v1067, %v1068
    %v1070 = vsel %vm120, %v995, 0.0
    %v1071 = vadd.f32 %v1069, %v1070
    %v1072 = vsel %vm120, %v1002, 0.0
    %v1073 = vsel %vm120, %v1010, 0.0
    %v1074 = vadd.f32 %v1072, %v1073
    %v1075 = vsel %vm120, %v1018, 0.0
    %v1076 = vadd.f32 %v1074, %v1075
    %v1077 = vsel %vm120, %v1003, 0.0
    %v1078 = vsel %vm120, %v1011, 0.0
    %v1079 = vadd.f32 %v1077, %v1078
    %v1080 = vsel %vm120, %v1019, 0.0
    %v1081 = vadd.f32 %v1079, %v1080
    %v1082 = vsel %vm120, %v1026, 0.0
    %v1083 = vsel %vm120, %v1034, 0.0
    %v1084 = vadd.f32 %v1082, %v1083
    %v1085 = vsel %vm120, %v1042, 0.0
    %v1086 = vadd.f32 %v1084, %v1085
    %v1087 = vsel %vm120, %v1027, 0.0
    %v1088 = vsel %vm120, %v1035, 0.0
    %v1089 = vadd.f32 %v1087, %v1088
    %v1090 = vsel %vm120, %v1043, 0.0
    %v1091 = vadd.f32 %v1089, %v1090
    %v1098 = vcombine.low %v1066, %v1071
    %v1100 = vunpack.c.l.s4 1983009808
    %v1101 = vunpack.c.0.s8 %v1100
    %v1102 = vlaneseq
    %v1103 = vshrl.u32 %v1102, 7
    %v1104 = vsub.s32 %v1101, %v1103
    %v1105 = vrot.slane %v1098, %v1104
    %v1106 = vcombine.low %v1076, %v1081
    %v1108 = vunpack.c.l.s4 1983009808
    %v1109 = vunpack.c.0.s8 %v1108
    %v1110 = vlaneseq
    %v1111 = vshrl.u32 %v1110, 7
    %v1112 = vsub.s32 %v1109, %v1111
    %v1113 = vrot.slane %v1106, %v1112
    %v1114 = vcombine.low %v1086, %v1091
    %v1116 = vunpack.c.l.s4 1983009808
    %v1117 = vunpack.c.0.s8 %v1116
    %v1118 = vlaneseq
    %v1119 = vshrl.u32 %v1118, 7
    %v1120 = vsub.s32 %v1117, %v1119
    %v1121 = vrot.slane %v1114, %v1120
    %1125 = vst [vmem:[%s12] sm:$0xf] %v1105
    %1126 = vst [vmem:[%s12 + $0xc] sm:$0xf] %v1113
    %1127 = vst [vmem:[%s12 + $0x18] sm:$0xf] %v1121
    %v1137 = vrot.slane %v75, 4
    %v1138 = vrot.slane %v77, 4
    %v1139 = vrot.slane %v79, 4
    %v1140 = vrot.slane %v81, 4
    %v1141 = vrot.slane %v83, 4
    %v1142 = vrot.slane %v85, 4
    %v1143 = vrot.slane %v87, 4
    %v1144 = vrot.slane %v89, 4
    %v1145 = vrot.slane %v91, 4
    %v1155 = vmul.f32 %v333, %v1137
    %v1156 = vmul.f32 %v334, %v1138
    %v1157 = vmul.f32 %v335, %v1139
    %v1158 = vmul.f32 %v336, %v1140
    %v1159 = vmul.f32 %v337, %v1141
    %v1160 = vmul.f32 %v338, %v1142
    %v1161 = vmul.f32 %v339, %v1143
    %v1162 = vmul.f32 %v340, %v1144
    %v1163 = vmul.f32 %v341, %v1145
    %v1174 = vunpack.c.l.s4 1983009808
    %v1175 = vunpack.c.0.s8 %v1174
    %v1176 = vlaneseq
    %v1177 = vshrl.u32 %v1176, 7
    %v1178 = vsub.s32 %v1175, %v1177
    %v1179 = vrot.slane %v1155, %v1178
    %v1180 = vcombine.high %v1179, %v1179
    %v1182 = vunpack.c.l.s4 1983009808
    %v1183 = vunpack.c.0.s8 %v1182
    %v1184 = vlaneseq
    %v1185 = vshrl.u32 %v1184, 7
    %v1186 = vsub.s32 %v1183, %v1185
    %v1187 = vrot.slane %v1156, %v1186
    %v1188 = vcombine.high %v1187, %v1187
    %v1190 = vunpack.c.l.s4 1983009808
    %v1191 = vunpack.c.0.s8 %v1190
    %v1192 = vlaneseq
    %v1193 = vshrl.u32 %v1192, 7
    %v1194 = vsub.s32 %v1191, %v1193
    %v1195 = vrot.slane %v1157, %v1194
    %v1196 = vcombine.high %v1195, %v1195
    %v1198 = vunpack.c.l.s4 1983009808
    %v1199 = vunpack.c.0.s8 %v1198
    %v1200 = vlaneseq
    %v1201 = vshrl.u32 %v1200, 7
    %v1202 = vsub.s32 %v1199, %v1201
    %v1203 = vrot.slane %v1158, %v1202
    %v1204 = vcombine.high %v1203, %v1203
    %v1206 = vunpack.c.l.s4 1983009808
    %v1207 = vunpack.c.0.s8 %v1206
    %v1208 = vlaneseq
    %v1209 = vshrl.u32 %v1208, 7
    %v1210 = vsub.s32 %v1207, %v1209
    %v1211 = vrot.slane %v1159, %v1210
    %v1212 = vcombine.high %v1211, %v1211
    %v1214 = vunpack.c.l.s4 1983009808
    %v1215 = vunpack.c.0.s8 %v1214
    %v1216 = vlaneseq
    %v1217 = vshrl.u32 %v1216, 7
    %v1218 = vsub.s32 %v1215, %v1217
    %v1219 = vrot.slane %v1160, %v1218
    %v1220 = vcombine.high %v1219, %v1219
    %v1222 = vunpack.c.l.s4 1983009808
    %v1223 = vunpack.c.0.s8 %v1222
    %v1224 = vlaneseq
    %v1225 = vshrl.u32 %v1224, 7
    %v1226 = vsub.s32 %v1223, %v1225
    %v1227 = vrot.slane %v1161, %v1226
    %v1228 = vcombine.high %v1227, %v1227
    %v1230 = vunpack.c.l.s4 1983009808
    %v1231 = vunpack.c.0.s8 %v1230
    %v1232 = vlaneseq
    %v1233 = vshrl.u32 %v1232, 7
    %v1234 = vsub.s32 %v1231, %v1233
    %v1235 = vrot.slane %v1162, %v1234
    %v1236 = vcombine.high %v1235, %v1235
    %v1238 = vunpack.c.l.s4 1983009808
    %v1239 = vunpack.c.0.s8 %v1238
    %v1240 = vlaneseq
    %v1241 = vshrl.u32 %v1240, 7
    %v1242 = vsub.s32 %v1239, %v1241
    %v1243 = vrot.slane %v1163, %v1242
    %v1244 = vcombine.high %v1243, %v1243
    %v1263 = vsel %vm120, %v1179, 0.0
    %v1264 = vsel %vm120, %v1187, 0.0
    %v1265 = vadd.f32 %v1263, %v1264
    %v1266 = vsel %vm120, %v1195, 0.0
    %v1267 = vadd.f32 %v1265, %v1266
    %v1268 = vsel %vm120, %v1180, 0.0
    %v1269 = vsel %vm120, %v1188, 0.0
    %v1270 = vadd.f32 %v1268, %v1269
    %v1271 = vsel %vm120, %v1196, 0.0
    %v1272 = vadd.f32 %v1270, %v1271
    %v1273 = vsel %vm120, %v1203, 0.0
    %v1274 = vsel %vm120, %v1211, 0.0
    %v1275 = vadd.f32 %v1273, %v1274
    %v1276 = vsel %vm120, %v1219, 0.0
    %v1277 = vadd.f32 %v1275, %v1276
    %v1278 = vsel %vm120, %v1204, 0.0
    %v1279 = vsel %vm120, %v1212, 0.0
    %v1280 = vadd.f32 %v1278, %v1279
    %v1281 = vsel %vm120, %v1220, 0.0
    %v1282 = vadd.f32 %v1280, %v1281
    %v1283 = vsel %vm120, %v1227, 0.0
    %v1284 = vsel %vm120, %v1235, 0.0
    %v1285 = vadd.f32 %v1283, %v1284
    %v1286 = vsel %vm120, %v1243, 0.0
    %v1287 = vadd.f32 %v1285, %v1286
    %v1288 = vsel %vm120, %v1228, 0.0
    %v1289 = vsel %vm120, %v1236, 0.0
    %v1290 = vadd.f32 %v1288, %v1289
    %v1291 = vsel %vm120, %v1244, 0.0
    %v1292 = vadd.f32 %v1290, %v1291
    %v1299 = vcombine.low %v1267, %v1272
    %v1301 = vunpack.c.l.s4 1983009808
    %v1302 = vunpack.c.0.s8 %v1301
    %v1303 = vlaneseq
    %v1304 = vshrl.u32 %v1303, 7
    %v1305 = vsub.s32 %v1302, %v1304
    %v1306 = vrot.slane %v1299, %v1305
    %v1307 = vcombine.low %v1277, %v1282
    %v1309 = vunpack.c.l.s4 1983009808
    %v1310 = vunpack.c.0.s8 %v1309
    %v1311 = vlaneseq
    %v1312 = vshrl.u32 %v1311, 7
    %v1313 = vsub.s32 %v1310, %v1312
    %v1314 = vrot.slane %v1307, %v1313
    %v1315 = vcombine.low %v1287, %v1292
    %v1317 = vunpack.c.l.s4 1983009808
    %v1318 = vunpack.c.0.s8 %v1317
    %v1319 = vlaneseq
    %v1320 = vshrl.u32 %v1319, 7
    %v1321 = vsub.s32 %v1318, %v1320
    %v1322 = vrot.slane %v1315, %v1321
    %1326 = vst [vmem:[%s10 + $0x4] sm:$0xf] %v1306
    %1327 = vst [vmem:[%s10 + $0x10] sm:$0xf] %v1314
    %1328 = vst [vmem:[%s10 + $0x1c] sm:$0xf] %v1322
    %v1329 = vmul.f32 %v562, %v1137
    %v1330 = vmul.f32 %v564, %v1138
    %v1331 = vmul.f32 %v566, %v1139
    %v1332 = vmul.f32 %v568, %v1140
    %v1333 = vmul.f32 %v570, %v1141
    %v1334 = vmul.f32 %v572, %v1142
    %v1335 = vmul.f32 %v574, %v1143
    %v1336 = vmul.f32 %v576, %v1144
    %v1337 = vmul.f32 %v578, %v1145
    %v1348 = vunpack.c.l.s4 1983009808
    %v1349 = vunpack.c.0.s8 %v1348
    %v1350 = vlaneseq
    %v1351 = vshrl.u32 %v1350, 7
    %v1352 = vsub.s32 %v1349, %v1351
    %v1353 = vrot.slane %v1329, %v1352
    %v1354 = vcombine.high %v1353, %v1353
    %v1356 = vunpack.c.l.s4 1983009808
    %v1357 = vunpack.c.0.s8 %v1356
    %v1358 = vlaneseq
    %v1359 = vshrl.u32 %v1358, 7
    %v1360 = vsub.s32 %v1357, %v1359
    %v1361 = vrot.slane %v1330, %v1360
    %v1362 = vcombine.high %v1361, %v1361
    %v1364 = vunpack.c.l.s4 1983009808
    %v1365 = vunpack.c.0.s8 %v1364
    %v1366 = vlaneseq
    %v1367 = vshrl.u32 %v1366, 7
    %v1368 = vsub.s32 %v1365, %v1367
    %v1369 = vrot.slane %v1331, %v1368
    %v1370 = vcombine.high %v1369, %v1369
    %v1372 = vunpack.c.l.s4 1983009808
    %v1373 = vunpack.c.0.s8 %v1372
    %v1374 = vlaneseq
    %v1375 = vshrl.u32 %v1374, 7
    %v1376 = vsub.s32 %v1373, %v1375
    %v1377 = vrot.slane %v1332, %v1376
    %v1378 = vcombine.high %v1377, %v1377
    %v1380 = vunpack.c.l.s4 1983009808
    %v1381 = vunpack.c.0.s8 %v1380
    %v1382 = vlaneseq
    %v1383 = vshrl.u32 %v1382, 7
    %v1384 = vsub.s32 %v1381, %v1383
    %v1385 = vrot.slane %v1333, %v1384
    %v1386 = vcombine.high %v1385, %v1385
    %v1388 = vunpack.c.l.s4 1983009808
    %v1389 = vunpack.c.0.s8 %v1388
    %v1390 = vlaneseq
    %v1391 = vshrl.u32 %v1390, 7
    %v1392 = vsub.s32 %v1389, %v1391
    %v1393 = vrot.slane %v1334, %v1392
    %v1394 = vcombine.high %v1393, %v1393
    %v1396 = vunpack.c.l.s4 1983009808
    %v1397 = vunpack.c.0.s8 %v1396
    %v1398 = vlaneseq
    %v1399 = vshrl.u32 %v1398, 7
    %v1400 = vsub.s32 %v1397, %v1399
    %v1401 = vrot.slane %v1335, %v1400
    %v1402 = vcombine.high %v1401, %v1401
    %v1404 = vunpack.c.l.s4 1983009808
    %v1405 = vunpack.c.0.s8 %v1404
    %v1406 = vlaneseq
    %v1407 = vshrl.u32 %v1406, 7
    %v1408 = vsub.s32 %v1405, %v1407
    %v1409 = vrot.slane %v1336, %v1408
    %v1410 = vcombine.high %v1409, %v1409
    %v1412 = vunpack.c.l.s4 1983009808
    %v1413 = vunpack.c.0.s8 %v1412
    %v1414 = vlaneseq
    %v1415 = vshrl.u32 %v1414, 7
    %v1416 = vsub.s32 %v1413, %v1415
    %v1417 = vrot.slane %v1337, %v1416
    %v1418 = vcombine.high %v1417, %v1417
    %v1437 = vsel %vm120, %v1353, 0.0
    %v1438 = vsel %vm120, %v1361, 0.0
    %v1439 = vadd.f32 %v1437, %v1438
    %v1440 = vsel %vm120, %v1369, 0.0
    %v1441 = vadd.f32 %v1439, %v1440
    %v1442 = vsel %vm120, %v1354, 0.0
    %v1443 = vsel %vm120, %v1362, 0.0
    %v1444 = vadd.f32 %v1442, %v1443
    %v1445 = vsel %vm120, %v1370, 0.0
    %v1446 = vadd.f32 %v1444, %v1445
    %v1447 = vsel %vm120, %v1377, 0.0
    %v1448 = vsel %vm120, %v1385, 0.0
    %v1449 = vadd.f32 %v1447, %v1448
    %v1450 = vsel %vm120, %v1393, 0.0
    %v1451 = vadd.f32 %v1449, %v1450
    %v1452 = vsel %vm120, %v1378, 0.0
    %v1453 = vsel %vm120, %v1386, 0.0
    %v1454 = vadd.f32 %v1452, %v1453
    %v1455 = vsel %vm120, %v1394, 0.0
    %v1456 = vadd.f32 %v1454, %v1455
    %v1457 = vsel %vm120, %v1401, 0.0
    %v1458 = vsel %vm120, %v1409, 0.0
    %v1459 = vadd.f32 %v1457, %v1458
    %v1460 = vsel %vm120, %v1417, 0.0
    %v1461 = vadd.f32 %v1459, %v1460
    %v1462 = vsel %vm120, %v1402, 0.0
    %v1463 = vsel %vm120, %v1410, 0.0
    %v1464 = vadd.f32 %v1462, %v1463
    %v1465 = vsel %vm120, %v1418, 0.0
    %v1466 = vadd.f32 %v1464, %v1465
    %v1473 = vcombine.low %v1441, %v1446
    %v1475 = vunpack.c.l.s4 1983009808
    %v1476 = vunpack.c.0.s8 %v1475
    %v1477 = vlaneseq
    %v1478 = vshrl.u32 %v1477, 7
    %v1479 = vsub.s32 %v1476, %v1478
    %v1480 = vrot.slane %v1473, %v1479
    %v1481 = vcombine.low %v1451, %v1456
    %v1483 = vunpack.c.l.s4 1983009808
    %v1484 = vunpack.c.0.s8 %v1483
    %v1485 = vlaneseq
    %v1486 = vshrl.u32 %v1485, 7
    %v1487 = vsub.s32 %v1484, %v1486
    %v1488 = vrot.slane %v1481, %v1487
    %v1489 = vcombine.low %v1461, %v1466
    %v1491 = vunpack.c.l.s4 1983009808
    %v1492 = vunpack.c.0.s8 %v1491
    %v1493 = vlaneseq
    %v1494 = vshrl.u32 %v1493, 7
    %v1495 = vsub.s32 %v1492, %v1494
    %v1496 = vrot.slane %v1489, %v1495
    %1500 = vst [vmem:[%s11 + $0x4] sm:$0xf] %v1480
    %1501 = vst [vmem:[%s11 + $0x10] sm:$0xf] %v1488
    %1502 = vst [vmem:[%s11 + $0x1c] sm:$0xf] %v1496
    %v1512 = vrot.slane %v93, 4
    %v1513 = vrot.slane %v95, 4
    %v1514 = vrot.slane %v97, 4
    %v1515 = vrot.slane %v99, 4
    %v1516 = vrot.slane %v101, 4
    %v1517 = vrot.slane %v103, 4
    %v1518 = vrot.slane %v105, 4
    %v1519 = vrot.slane %v107, 4
    %v1520 = vrot.slane %v109, 4
    %v1530 = vmul.f32 %v552, %v1512
    %v1531 = vmul.f32 %v553, %v1513
    %v1532 = vmul.f32 %v554, %v1514
    %v1533 = vmul.f32 %v555, %v1515
    %v1534 = vmul.f32 %v556, %v1516
    %v1535 = vmul.f32 %v557, %v1517
    %v1536 = vmul.f32 %v558, %v1518
    %v1537 = vmul.f32 %v559, %v1519
    %v1538 = vmul.f32 %v560, %v1520
    %v1549 = vunpack.c.l.s4 1983009808
    %v1550 = vunpack.c.0.s8 %v1549
    %v1551 = vlaneseq
    %v1552 = vshrl.u32 %v1551, 7
    %v1553 = vsub.s32 %v1550, %v1552
    %v1554 = vrot.slane %v1530, %v1553
    %v1555 = vcombine.high %v1554, %v1554
    %v1557 = vunpack.c.l.s4 1983009808
    %v1558 = vunpack.c.0.s8 %v1557
    %v1559 = vlaneseq
    %v1560 = vshrl.u32 %v1559, 7
    %v1561 = vsub.s32 %v1558, %v1560
    %v1562 = vrot.slane %v1531, %v1561
    %v1563 = vcombine.high %v1562, %v1562
    %v1565 = vunpack.c.l.s4 1983009808
    %v1566 = vunpack.c.0.s8 %v1565
    %v1567 = vlaneseq
    %v1568 = vshrl.u32 %v1567, 7
    %v1569 = vsub.s32 %v1566, %v1568
    %v1570 = vrot.slane %v1532, %v1569
    %v1571 = vcombine.high %v1570, %v1570
    %v1573 = vunpack.c.l.s4 1983009808
    %v1574 = vunpack.c.0.s8 %v1573
    %v1575 = vlaneseq
    %v1576 = vshrl.u32 %v1575, 7
    %v1577 = vsub.s32 %v1574, %v1576
    %v1578 = vrot.slane %v1533, %v1577
    %v1579 = vcombine.high %v1578, %v1578
    %v1581 = vunpack.c.l.s4 1983009808
    %v1582 = vunpack.c.0.s8 %v1581
    %v1583 = vlaneseq
    %v1584 = vshrl.u32 %v1583, 7
    %v1585 = vsub.s32 %v1582, %v1584
    %v1586 = vrot.slane %v1534, %v1585
    %v1587 = vcombine.high %v1586, %v1586
    %v1589 = vunpack.c.l.s4 1983009808
    %v1590 = vunpack.c.0.s8 %v1589
    %v1591 = vlaneseq
    %v1592 = vshrl.u32 %v1591, 7
    %v1593 = vsub.s32 %v1590, %v1592
    %v1594 = vrot.slane %v1535, %v1593
    %v1595 = vcombine.high %v1594, %v1594
    %v1597 = vunpack.c.l.s4 1983009808
    %v1598 = vunpack.c.0.s8 %v1597
    %v1599 = vlaneseq
    %v1600 = vshrl.u32 %v1599, 7
    %v1601 = vsub.s32 %v1598, %v1600
    %v1602 = vrot.slane %v1536, %v1601
    %v1603 = vcombine.high %v1602, %v1602
    %v1605 = vunpack.c.l.s4 1983009808
    %v1606 = vunpack.c.0.s8 %v1605
    %v1607 = vlaneseq
    %v1608 = vshrl.u32 %v1607, 7
    %v1609 = vsub.s32 %v1606, %v1608
    %v1610 = vrot.slane %v1537, %v1609
    %v1611 = vcombine.high %v1610, %v1610
    %v1613 = vunpack.c.l.s4 1983009808
    %v1614 = vunpack.c.0.s8 %v1613
    %v1615 = vlaneseq
    %v1616 = vshrl.u32 %v1615, 7
    %v1617 = vsub.s32 %v1614, %v1616
    %v1618 = vrot.slane %v1538, %v1617
    %v1619 = vcombine.high %v1618, %v1618
    %v1638 = vsel %vm120, %v1554, 0.0
    %v1639 = vsel %vm120, %v1562, 0.0
    %v1640 = vadd.f32 %v1638, %v1639
    %v1641 = vsel %vm120, %v1570, 0.0
    %v1642 = vadd.f32 %v1640, %v1641
    %v1643 = vsel %vm120, %v1555, 0.0
    %v1644 = vsel %vm120, %v1563, 0.0
    %v1645 = vadd.f32 %v1643, %v1644
    %v1646 = vsel %vm120, %v1571, 0.0
    %v1647 = vadd.f32 %v1645, %v1646
    %v1648 = vsel %vm120, %v1578, 0.0
    %v1649 = vsel %vm120, %v1586, 0.0
    %v1650 = vadd.f32 %v1648, %v1649
    %v1651 = vsel %vm120, %v1594, 0.0
    %v1652 = vadd.f32 %v1650, %v1651
    %v1653 = vsel %vm120, %v1579, 0.0
    %v1654 = vsel %vm120, %v1587, 0.0
    %v1655 = vadd.f32 %v1653, %v1654
    %v1656 = vsel %vm120, %v1595, 0.0
    %v1657 = vadd.f32 %v1655, %v1656
    %v1658 = vsel %vm120, %v1602, 0.0
    %v1659 = vsel %vm120, %v1610, 0.0
    %v1660 = vadd.f32 %v1658, %v1659
    %v1661 = vsel %vm120, %v1618, 0.0
    %v1662 = vadd.f32 %v1660, %v1661
    %v1663 = vsel %vm120, %v1603, 0.0
    %v1664 = vsel %vm120, %v1611, 0.0
    %v1665 = vadd.f32 %v1663, %v1664
    %v1666 = vsel %vm120, %v1619, 0.0
    %v1667 = vadd.f32 %v1665, %v1666
    %v1674 = vcombine.low %v1642, %v1647
    %v1676 = vunpack.c.l.s4 1983009808
    %v1677 = vunpack.c.0.s8 %v1676
    %v1678 = vlaneseq
    %v1679 = vshrl.u32 %v1678, 7
    %v1680 = vsub.s32 %v1677, %v1679
    %v1681 = vrot.slane %v1674, %v1680
    %v1682 = vcombine.low %v1652, %v1657
    %v1684 = vunpack.c.l.s4 1983009808
    %v1685 = vunpack.c.0.s8 %v1684
    %v1686 = vlaneseq
    %v1687 = vshrl.u32 %v1686, 7
    %v1688 = vsub.s32 %v1685, %v1687
    %v1689 = vrot.slane %v1682, %v1688
    %v1690 = vcombine.low %v1662, %v1667
    %v1692 = vunpack.c.l.s4 1983009808
    %v1693 = vunpack.c.0.s8 %v1692
    %v1694 = vlaneseq
    %v1695 = vshrl.u32 %v1694, 7
    %v1696 = vsub.s32 %v1693, %v1695
    %v1697 = vrot.slane %v1690, %v1696
    %1701 = vst [vmem:[%s12 + $0x4] sm:$0xf] %v1681
    %1702 = vst [vmem:[%s12 + $0x10] sm:$0xf] %v1689
    %1703 = vst [vmem:[%s12 + $0x1c] sm:$0xf] %v1697
    %v1704 = vmul.f32 %v333, %v76
    %v1705 = vmul.f32 %v334, %v78
    %v1706 = vmul.f32 %v335, %v80
    %v1707 = vmul.f32 %v336, %v82
    %v1708 = vmul.f32 %v337, %v84
    %v1709 = vmul.f32 %v338, %v86
    %v1710 = vmul.f32 %v339, %v88
    %v1711 = vmul.f32 %v340, %v90
    %v1712 = vmul.f32 %v341, %v92
    %v1723 = vunpack.c.l.s4 1983009808
    %v1724 = vunpack.c.0.s8 %v1723
    %v1725 = vlaneseq
    %v1726 = vshrl.u32 %v1725, 7
    %v1727 = vsub.s32 %v1724, %v1726
    %v1728 = vrot.slane %v1704, %v1727
    %v1729 = vcombine.high %v1728, %v1728
    %v1731 = vunpack.c.l.s4 1983009808
    %v1732 = vunpack.c.0.s8 %v1731
    %v1733 = vlaneseq
    %v1734 = vshrl.u32 %v1733, 7
    %v1735 = vsub.s32 %v1732, %v1734
    %v1736 = vrot.slane %v1705, %v1735
    %v1737 = vcombine.high %v1736, %v1736
    %v1739 = vunpack.c.l.s4 1983009808
    %v1740 = vunpack.c.0.s8 %v1739
    %v1741 = vlaneseq
    %v1742 = vshrl.u32 %v1741, 7
    %v1743 = vsub.s32 %v1740, %v1742
    %v1744 = vrot.slane %v1706, %v1743
    %v1745 = vcombine.high %v1744, %v1744
    %v1747 = vunpack.c.l.s4 1983009808
    %v1748 = vunpack.c.0.s8 %v1747
    %v1749 = vlaneseq
    %v1750 = vshrl.u32 %v1749, 7
    %v1751 = vsub.s32 %v1748, %v1750
    %v1752 = vrot.slane %v1707, %v1751
    %v1753 = vcombine.high %v1752, %v1752
    %v1755 = vunpack.c.l.s4 1983009808
    %v1756 = vunpack.c.0.s8 %v1755
    %v1757 = vlaneseq
    %v1758 = vshrl.u32 %v1757, 7
    %v1759 = vsub.s32 %v1756, %v1758
    %v1760 = vrot.slane %v1708, %v1759
    %v1761 = vcombine.high %v1760, %v1760
    %v1763 = vunpack.c.l.s4 1983009808
    %v1764 = vunpack.c.0.s8 %v1763
    %v1765 = vlaneseq
    %v1766 = vshrl.u32 %v1765, 7
    %v1767 = vsub.s32 %v1764, %v1766
    %v1768 = vrot.slane %v1709, %v1767
    %v1769 = vcombine.high %v1768, %v1768
    %v1771 = vunpack.c.l.s4 1983009808
    %v1772 = vunpack.c.0.s8 %v1771
    %v1773 = vlaneseq
    %v1774 = vshrl.u32 %v1773, 7
    %v1775 = vsub.s32 %v1772, %v1774
    %v1776 = vrot.slane %v1710, %v1775
    %v1777 = vcombine.high %v1776, %v1776
    %v1779 = vunpack.c.l.s4 1983009808
    %v1780 = vunpack.c.0.s8 %v1779
    %v1781 = vlaneseq
    %v1782 = vshrl.u32 %v1781, 7
    %v1783 = vsub.s32 %v1780, %v1782
    %v1784 = vrot.slane %v1711, %v1783
    %v1785 = vcombine.high %v1784, %v1784
    %v1787 = vunpack.c.l.s4 1983009808
    %v1788 = vunpack.c.0.s8 %v1787
    %v1789 = vlaneseq
    %v1790 = vshrl.u32 %v1789, 7
    %v1791 = vsub.s32 %v1788, %v1790
    %v1792 = vrot.slane %v1712, %v1791
    %v1793 = vcombine.high %v1792, %v1792
    %v1812 = vsel %vm120, %v1728, 0.0
    %v1813 = vsel %vm120, %v1736, 0.0
    %v1814 = vadd.f32 %v1812, %v1813
    %v1815 = vsel %vm120, %v1744, 0.0
    %v1816 = vadd.f32 %v1814, %v1815
    %v1817 = vsel %vm120, %v1729, 0.0
    %v1818 = vsel %vm120, %v1737, 0.0
    %v1819 = vadd.f32 %v1817, %v1818
    %v1820 = vsel %vm120, %v1745, 0.0
    %v1821 = vadd.f32 %v1819, %v1820
    %v1822 = vsel %vm120, %v1752, 0.0
    %v1823 = vsel %vm120, %v1760, 0.0
    %v1824 = vadd.f32 %v1822, %v1823
    %v1825 = vsel %vm120, %v1768, 0.0
    %v1826 = vadd.f32 %v1824, %v1825
    %v1827 = vsel %vm120, %v1753, 0.0
    %v1828 = vsel %vm120, %v1761, 0.0
    %v1829 = vadd.f32 %v1827, %v1828
    %v1830 = vsel %vm120, %v1769, 0.0
    %v1831 = vadd.f32 %v1829, %v1830
    %v1832 = vsel %vm120, %v1776, 0.0
    %v1833 = vsel %vm120, %v1784, 0.0
    %v1834 = vadd.f32 %v1832, %v1833
    %v1835 = vsel %vm120, %v1792, 0.0
    %v1836 = vadd.f32 %v1834, %v1835
    %v1837 = vsel %vm120, %v1777, 0.0
    %v1838 = vsel %vm120, %v1785, 0.0
    %v1839 = vadd.f32 %v1837, %v1838
    %v1840 = vsel %vm120, %v1793, 0.0
    %v1841 = vadd.f32 %v1839, %v1840
    %v1848 = vcombine.low %v1816, %v1821
    %v1850 = vunpack.c.l.s4 1983009808
    %v1851 = vunpack.c.0.s8 %v1850
    %v1852 = vlaneseq
    %v1853 = vshrl.u32 %v1852, 7
    %v1854 = vsub.s32 %v1851, %v1853
    %v1855 = vrot.slane %v1848, %v1854
    %v1856 = vcombine.low %v1826, %v1831
    %v1858 = vunpack.c.l.s4 1983009808
    %v1859 = vunpack.c.0.s8 %v1858
    %v1860 = vlaneseq
    %v1861 = vshrl.u32 %v1860, 7
    %v1862 = vsub.s32 %v1859, %v1861
    %v1863 = vrot.slane %v1856, %v1862
    %v1864 = vcombine.low %v1836, %v1841
    %v1866 = vunpack.c.l.s4 1983009808
    %v1867 = vunpack.c.0.s8 %v1866
    %v1868 = vlaneseq
    %v1869 = vshrl.u32 %v1868, 7
    %v1870 = vsub.s32 %v1867, %v1869
    %v1871 = vrot.slane %v1864, %v1870
    %1875 = vst [vmem:[%s10 + $0x8] sm:$0xf] %v1855
    %1876 = vst [vmem:[%s10 + $0x14] sm:$0xf] %v1863
    %1877 = vst [vmem:[%s10 + $0x20] sm:$0xf] %v1871
    %v1878 = vmul.f32 %v562, %v76
    %v1879 = vmul.f32 %v564, %v78
    %v1880 = vmul.f32 %v566, %v80
    %v1881 = vmul.f32 %v568, %v82
    %v1882 = vmul.f32 %v570, %v84
    %v1883 = vmul.f32 %v572, %v86
    %v1884 = vmul.f32 %v574, %v88
    %v1885 = vmul.f32 %v576, %v90
    %v1886 = vmul.f32 %v578, %v92
    %v1897 = vunpack.c.l.s4 1983009808
    %v1898 = vunpack.c.0.s8 %v1897
    %v1899 = vlaneseq
    %v1900 = vshrl.u32 %v1899, 7
    %v1901 = vsub.s32 %v1898, %v1900
    %v1902 = vrot.slane %v1878, %v1901
    %v1903 = vcombine.high %v1902, %v1902
    %v1905 = vunpack.c.l.s4 1983009808
    %v1906 = vunpack.c.0.s8 %v1905
    %v1907 = vlaneseq
    %v1908 = vshrl.u32 %v1907, 7
    %v1909 = vsub.s32 %v1906, %v1908
    %v1910 = vrot.slane %v1879, %v1909
    %v1911 = vcombine.high %v1910, %v1910
    %v1913 = vunpack.c.l.s4 1983009808
    %v1914 = vunpack.c.0.s8 %v1913
    %v1915 = vlaneseq
    %v1916 = vshrl.u32 %v1915, 7
    %v1917 = vsub.s32 %v1914, %v1916
    %v1918 = vrot.slane %v1880, %v1917
    %v1919 = vcombine.high %v1918, %v1918
    %v1921 = vunpack.c.l.s4 1983009808
    %v1922 = vunpack.c.0.s8 %v1921
    %v1923 = vlaneseq
    %v1924 = vshrl.u32 %v1923, 7
    %v1925 = vsub.s32 %v1922, %v1924
    %v1926 = vrot.slane %v1881, %v1925
    %v1927 = vcombine.high %v1926, %v1926
    %v1929 = vunpack.c.l.s4 1983009808
    %v1930 = vunpack.c.0.s8 %v1929
    %v1931 = vlaneseq
    %v1932 = vshrl.u32 %v1931, 7
    %v1933 = vsub.s32 %v1930, %v1932
    %v1934 = vrot.slane %v1882, %v1933
    %v1935 = vcombine.high %v1934, %v1934
    %v1937 = vunpack.c.l.s4 1983009808
    %v1938 = vunpack.c.0.s8 %v1937
    %v1939 = vlaneseq
    %v1940 = vshrl.u32 %v1939, 7
    %v1941 = vsub.s32 %v1938, %v1940
    %v1942 = vrot.slane %v1883, %v1941
    %v1943 = vcombine.high %v1942, %v1942
    %v1945 = vunpack.c.l.s4 1983009808
    %v1946 = vunpack.c.0.s8 %v1945
    %v1947 = vlaneseq
    %v1948 = vshrl.u32 %v1947, 7
    %v1949 = vsub.s32 %v1946, %v1948
    %v1950 = vrot.slane %v1884, %v1949
    %v1951 = vcombine.high %v1950, %v1950
    %v1953 = vunpack.c.l.s4 1983009808
    %v1954 = vunpack.c.0.s8 %v1953
    %v1955 = vlaneseq
    %v1956 = vshrl.u32 %v1955, 7
    %v1957 = vsub.s32 %v1954, %v1956
    %v1958 = vrot.slane %v1885, %v1957
    %v1959 = vcombine.high %v1958, %v1958
    %v1961 = vunpack.c.l.s4 1983009808
    %v1962 = vunpack.c.0.s8 %v1961
    %v1963 = vlaneseq
    %v1964 = vshrl.u32 %v1963, 7
    %v1965 = vsub.s32 %v1962, %v1964
    %v1966 = vrot.slane %v1886, %v1965
    %v1967 = vcombine.high %v1966, %v1966
    %v1986 = vsel %vm120, %v1902, 0.0
    %v1987 = vsel %vm120, %v1910, 0.0
    %v1988 = vadd.f32 %v1986, %v1987
    %v1989 = vsel %vm120, %v1918, 0.0
    %v1990 = vadd.f32 %v1988, %v1989
    %v1991 = vsel %vm120, %v1903, 0.0
    %v1992 = vsel %vm120, %v1911, 0.0
    %v1993 = vadd.f32 %v1991, %v1992
    %v1994 = vsel %vm120, %v1919, 0.0
    %v1995 = vadd.f32 %v1993, %v1994
    %v1996 = vsel %vm120, %v1926, 0.0
    %v1997 = vsel %vm120, %v1934, 0.0
    %v1998 = vadd.f32 %v1996, %v1997
    %v1999 = vsel %vm120, %v1942, 0.0
    %v2000 = vadd.f32 %v1998, %v1999
    %v2001 = vsel %vm120, %v1927, 0.0
    %v2002 = vsel %vm120, %v1935, 0.0
    %v2003 = vadd.f32 %v2001, %v2002
    %v2004 = vsel %vm120, %v1943, 0.0
    %v2005 = vadd.f32 %v2003, %v2004
    %v2006 = vsel %vm120, %v1950, 0.0
    %v2007 = vsel %vm120, %v1958, 0.0
    %v2008 = vadd.f32 %v2006, %v2007
    %v2009 = vsel %vm120, %v1966, 0.0
    %v2010 = vadd.f32 %v2008, %v2009
    %v2011 = vsel %vm120, %v1951, 0.0
    %v2012 = vsel %vm120, %v1959, 0.0
    %v2013 = vadd.f32 %v2011, %v2012
    %v2014 = vsel %vm120, %v1967, 0.0
    %v2015 = vadd.f32 %v2013, %v2014
    %v2022 = vcombine.low %v1990, %v1995
    %v2024 = vunpack.c.l.s4 1983009808
    %v2025 = vunpack.c.0.s8 %v2024
    %v2026 = vlaneseq
    %v2027 = vshrl.u32 %v2026, 7
    %v2028 = vsub.s32 %v2025, %v2027
    %v2029 = vrot.slane %v2022, %v2028
    %v2030 = vcombine.low %v2000, %v2005
    %v2032 = vunpack.c.l.s4 1983009808
    %v2033 = vunpack.c.0.s8 %v2032
    %v2034 = vlaneseq
    %v2035 = vshrl.u32 %v2034, 7
    %v2036 = vsub.s32 %v2033, %v2035
    %v2037 = vrot.slane %v2030, %v2036
    %v2038 = vcombine.low %v2010, %v2015
    %v2040 = vunpack.c.l.s4 1983009808
    %v2041 = vunpack.c.0.s8 %v2040
    %v2042 = vlaneseq
    %v2043 = vshrl.u32 %v2042, 7
    %v2044 = vsub.s32 %v2041, %v2043
    %v2045 = vrot.slane %v2038, %v2044
    %2049 = vst [vmem:[%s11 + $0x8] sm:$0xf] %v2029
    %2050 = vst [vmem:[%s11 + $0x14] sm:$0xf] %v2037
    %2051 = vst [vmem:[%s11 + $0x20] sm:$0xf] %v2045
    %v2052 = vmul.f32 %v552, %v94
    %v2053 = vmul.f32 %v553, %v96
    %v2054 = vmul.f32 %v554, %v98
    %v2055 = vmul.f32 %v555, %v100
    %v2056 = vmul.f32 %v556, %v102
    %v2057 = vmul.f32 %v557, %v104
    %v2058 = vmul.f32 %v558, %v106
    %v2059 = vmul.f32 %v559, %v108
    %v2060 = vmul.f32 %v560, %v110
    %v2071 = vunpack.c.l.s4 1983009808
    %v2072 = vunpack.c.0.s8 %v2071
    %v2073 = vlaneseq
    %v2074 = vshrl.u32 %v2073, 7
    %v2075 = vsub.s32 %v2072, %v2074
    %v2076 = vrot.slane %v2052, %v2075
    %v2077 = vcombine.high %v2076, %v2076
    %v2079 = vunpack.c.l.s4 1983009808
    %v2080 = vunpack.c.0.s8 %v2079
    %v2081 = vlaneseq
    %v2082 = vshrl.u32 %v2081, 7
    %v2083 = vsub.s32 %v2080, %v2082
    %v2084 = vrot.slane %v2053, %v2083
    %v2085 = vcombine.high %v2084, %v2084
    %v2087 = vunpack.c.l.s4 1983009808
    %v2088 = vunpack.c.0.s8 %v2087
    %v2089 = vlaneseq
    %v2090 = vshrl.u32 %v2089, 7
    %v2091 = vsub.s32 %v2088, %v2090
    %v2092 = vrot.slane %v2054, %v2091
    %v2093 = vcombine.high %v2092, %v2092
    %v2095 = vunpack.c.l.s4 1983009808
    %v2096 = vunpack.c.0.s8 %v2095
    %v2097 = vlaneseq
    %v2098 = vshrl.u32 %v2097, 7
    %v2099 = vsub.s32 %v2096, %v2098
    %v2100 = vrot.slane %v2055, %v2099
    %v2101 = vcombine.high %v2100, %v2100
    %v2103 = vunpack.c.l.s4 1983009808
    %v2104 = vunpack.c.0.s8 %v2103
    %v2105 = vlaneseq
    %v2106 = vshrl.u32 %v2105, 7
    %v2107 = vsub.s32 %v2104, %v2106
    %v2108 = vrot.slane %v2056, %v2107
    %v2109 = vcombine.high %v2108, %v2108
    %v2111 = vunpack.c.l.s4 1983009808
    %v2112 = vunpack.c.0.s8 %v2111
    %v2113 = vlaneseq
    %v2114 = vshrl.u32 %v2113, 7
    %v2115 = vsub.s32 %v2112, %v2114
    %v2116 = vrot.slane %v2057, %v2115
    %v2117 = vcombine.high %v2116, %v2116
    %v2119 = vunpack.c.l.s4 1983009808
    %v2120 = vunpack.c.0.s8 %v2119
    %v2121 = vlaneseq
    %v2122 = vshrl.u32 %v2121, 7
    %v2123 = vsub.s32 %v2120, %v2122
    %v2124 = vrot.slane %v2058, %v2123
    %v2125 = vcombine.high %v2124, %v2124
    %v2127 = vunpack.c.l.s4 1983009808
    %v2128 = vunpack.c.0.s8 %v2127
    %v2129 = vlaneseq
    %v2130 = vshrl.u32 %v2129, 7
    %v2131 = vsub.s32 %v2128, %v2130
    %v2132 = vrot.slane %v2059, %v2131
    %v2133 = vcombine.high %v2132, %v2132
    %v2135 = vunpack.c.l.s4 1983009808
    %v2136 = vunpack.c.0.s8 %v2135
    %v2137 = vlaneseq
    %v2138 = vshrl.u32 %v2137, 7
    %v2139 = vsub.s32 %v2136, %v2138
    %v2140 = vrot.slane %v2060, %v2139
    %v2141 = vcombine.high %v2140, %v2140
    %v2160 = vsel %vm120, %v2076, 0.0
    %v2161 = vsel %vm120, %v2084, 0.0
    %v2162 = vadd.f32 %v2160, %v2161
    %v2163 = vsel %vm120, %v2092, 0.0
    %v2164 = vadd.f32 %v2162, %v2163
    %v2165 = vsel %vm120, %v2077, 0.0
    %v2166 = vsel %vm120, %v2085, 0.0
    %v2167 = vadd.f32 %v2165, %v2166
    %v2168 = vsel %vm120, %v2093, 0.0
    %v2169 = vadd.f32 %v2167, %v2168
    %v2170 = vsel %vm120, %v2100, 0.0
    %v2171 = vsel %vm120, %v2108, 0.0
    %v2172 = vadd.f32 %v2170, %v2171
    %v2173 = vsel %vm120, %v2116, 0.0
    %v2174 = vadd.f32 %v2172, %v2173
    %v2175 = vsel %vm120, %v2101, 0.0
    %v2176 = vsel %vm120, %v2109, 0.0
    %v2177 = vadd.f32 %v2175, %v2176
    %v2178 = vsel %vm120, %v2117, 0.0
    %v2179 = vadd.f32 %v2177, %v2178
    %v2180 = vsel %vm120, %v2124, 0.0
    %v2181 = vsel %vm120, %v2132, 0.0
    %v2182 = vadd.f32 %v2180, %v2181
    %v2183 = vsel %vm120, %v2140, 0.0
    %v2184 = vadd.f32 %v2182, %v2183
    %v2185 = vsel %vm120, %v2125, 0.0
    %v2186 = vsel %vm120, %v2133, 0.0
    %v2187 = vadd.f32 %v2185, %v2186
    %v2188 = vsel %vm120, %v2141, 0.0
    %v2189 = vadd.f32 %v2187, %v2188
    %v2196 = vcombine.low %v2164, %v2169
    %v2198 = vunpack.c.l.s4 1983009808
    %v2199 = vunpack.c.0.s8 %v2198
    %v2200 = vlaneseq
    %v2201 = vshrl.u32 %v2200, 7
    %v2202 = vsub.s32 %v2199, %v2201
    %v2203 = vrot.slane %v2196, %v2202
    %v2204 = vcombine.low %v2174, %v2179
    %v2206 = vunpack.c.l.s4 1983009808
    %v2207 = vunpack.c.0.s8 %v2206
    %v2208 = vlaneseq
    %v2209 = vshrl.u32 %v2208, 7
    %v2210 = vsub.s32 %v2207, %v2209
    %v2211 = vrot.slane %v2204, %v2210
    %v2212 = vcombine.low %v2184, %v2189
    %v2214 = vunpack.c.l.s4 1983009808
    %v2215 = vunpack.c.0.s8 %v2214
    %v2216 = vlaneseq
    %v2217 = vshrl.u32 %v2216, 7
    %v2218 = vsub.s32 %v2215, %v2217
    %v2219 = vrot.slane %v2212, %v2218
    %2223 = vst [vmem:[%s12 + $0x8] sm:$0xf] %v2203
    %2224 = vst [vmem:[%s12 + $0x14] sm:$0xf] %v2211
    %2225 = vst [vmem:[%s12 + $0x20] sm:$0xf] %v2219
    %v2226 = vsub.f32 %v75, %v40
    %v2227 = vsub.f32 %v76, %v41
    %v2228 = vsub.f32 %v81, %v42
    %v2229 = vsub.f32 %v82, %v43
    %v2230 = vsub.f32 %v87, %v44
    %v2231 = vsub.f32 %v88, %v45
    %v2232 = vmul.f32 %v2226, %v2226
    %v2233 = vmul.f32 %v2227, %v2227
    %v2234 = vmul.f32 %v2228, %v2228
    %v2235 = vmul.f32 %v2229, %v2229
    %v2236 = vmul.f32 %v2230, %v2230
    %v2237 = vmul.f32 %v2231, %v2231
    %v2238 = vsub.f32 0.0, %v2232
    %v2239 = vsub.f32 0.0, %v2233
    %v2240 = vsub.f32 0.0, %v2234
    %v2241 = vsub.f32 0.0, %v2235
    %v2242 = vsub.f32 0.0, %v2236
    %v2243 = vsub.f32 0.0, %v2237
    %v2244 = vmul.f32 %v2238, 61.728394
    %v2245 = vmul.f32 %v2239, 61.728394
    %v2246 = vmul.f32 %v2240, 61.728394
    %v2247 = vmul.f32 %v2241, 61.728394
    %v2248 = vmul.f32 %v2242, 61.728394
    %v2249 = vmul.f32 %v2243, 61.728394
    %v2250 = vmul.f32 %v2244, 1.442695
    %v2251 = vpow.pop %v2250
    %v2252 = vmul.f32 %v2245, 1.442695
    %v2253 = vpow.pop %v2252
    %v2254 = vmul.f32 %v2246, 1.442695
    %v2255 = vpow.pop %v2254
    %v2256 = vmul.f32 %v2247, 1.442695
    %v2257 = vpow.pop %v2256
    %v2258 = vmul.f32 %v2248, 1.442695
    %v2259 = vpow.pop %v2258
    %v2260 = vmul.f32 %v2249, 1.442695
    %v2261 = vpow.pop %v2260
    %v2262 = vmul.f32 %v2251, 4.432692
    %v2263 = vmul.f32 %v2253, 4.432692
    %v2264 = vmul.f32 %v2255, 4.432692
    %v2265 = vmul.f32 %v2257, 4.432692
    %v2266 = vmul.f32 %v2259, 4.432692
    %v2267 = vmul.f32 %v2261, 4.432692
    %v2272 = vunpack.c.l.s4 1983009808
    %v2273 = vunpack.c.0.s8 %v2272
    %v2274 = vlaneseq
    %v2275 = vshrl.u32 %v2274, 7
    %v2276 = vsub.s32 %v2273, %v2275
    %v2277 = vrot.slane %v333, %v2276
    %v2278 = vcombine.high %v2277, %v2277
    %v2280 = vunpack.c.l.s4 1983009808
    %v2281 = vunpack.c.0.s8 %v2280
    %v2282 = vlaneseq
    %v2283 = vshrl.u32 %v2282, 7
    %v2284 = vsub.s32 %v2281, %v2283
    %v2285 = vrot.slane %v336, %v2284
    %v2286 = vcombine.high %v2285, %v2285
    %v2288 = vunpack.c.l.s4 1983009808
    %v2289 = vunpack.c.0.s8 %v2288
    %v2290 = vlaneseq
    %v2291 = vshrl.u32 %v2290, 7
    %v2292 = vsub.s32 %v2289, %v2291
    %v2293 = vrot.slane %v339, %v2292
    %v2294 = vcombine.high %v2293, %v2293
    %v2307 = vcombine.high %v2262, %v2262
    %v2309 = vunpack.c.l.s4 1983009808
    %v2310 = vunpack.c.0.s8 %v2309
    %v2311 = vlaneseq
    %v2312 = vshrl.u32 %v2311, 7
    %v2313 = vsub.s32 %v2310, %v2312
    %v2314 = vrot.slane %v2262, %v2313
    %v2316 = vunpack.c.l.s4 1983009808
    %v2317 = vunpack.c.0.s8 %v2316
    %v2318 = vlaneseq
    %v2319 = vshrl.u32 %v2318, 7
    %v2320 = vsub.s32 %v2317, %v2319
    %v2321 = vrot.slane %v2307, %v2320
    %v2322 = vcombine.high %v2314, %v2314
    %v2323 = vcombine.high %v2321, %v2321
    %v2325 = vunpack.c.l.s4 1983009808
    %v2326 = vunpack.c.0.s8 %v2325
    %v2327 = vlaneseq
    %v2328 = vshrl.u32 %v2327, 7
    %v2329 = vsub.s32 %v2326, %v2328
    %v2330 = vrot.slane %v2263, %v2329
    %v2331 = vcombine.high %v2330, %v2330
    %v2332 = vcombine.high %v2264, %v2264
    %v2334 = vunpack.c.l.s4 1983009808
    %v2335 = vunpack.c.0.s8 %v2334
    %v2336 = vlaneseq
    %v2337 = vshrl.u32 %v2336, 7
    %v2338 = vsub.s32 %v2335, %v2337
    %v2339 = vrot.slane %v2264, %v2338
    %v2341 = vunpack.c.l.s4 1983009808
    %v2342 = vunpack.c.0.s8 %v2341
    %v2343 = vlaneseq
    %v2344 = vshrl.u32 %v2343, 7
    %v2345 = vsub.s32 %v2342, %v2344
    %v2346 = vrot.slane %v2332, %v2345
    %v2347 = vcombine.high %v2339, %v2339
    %v2348 = vcombine.high %v2346, %v2346
    %v2350 = vunpack.c.l.s4 1983009808
    %v2351 = vunpack.c.0.s8 %v2350
    %v2352 = vlaneseq
    %v2353 = vshrl.u32 %v2352, 7
    %v2354 = vsub.s32 %v2351, %v2353
    %v2355 = vrot.slane %v2265, %v2354
    %v2356 = vcombine.high %v2355, %v2355
    %v2357 = vcombine.high %v2266, %v2266
    %v2359 = vunpack.c.l.s4 1983009808
    %v2360 = vunpack.c.0.s8 %v2359
    %v2361 = vlaneseq
    %v2362 = vshrl.u32 %v2361, 7
    %v2363 = vsub.s32 %v2360, %v2362
    %v2364 = vrot.slane %v2266, %v2363
    %v2366 = vunpack.c.l.s4 1983009808
    %v2367 = vunpack.c.0.s8 %v2366
    %v2368 = vlaneseq
    %v2369 = vshrl.u32 %v2368, 7
    %v2370 = vsub.s32 %v2367, %v2369
    %v2371 = vrot.slane %v2357, %v2370
    %v2372 = vcombine.high %v2364, %v2364
    %v2373 = vcombine.high %v2371, %v2371
    %v2375 = vunpack.c.l.s4 1983009808
    %v2376 = vunpack.c.0.s8 %v2375
    %v2377 = vlaneseq
    %v2378 = vshrl.u32 %v2377, 7
    %v2379 = vsub.s32 %v2376, %v2378
    %v2380 = vrot.slane %v2267, %v2379
    %v2381 = vcombine.high %v2380, %v2380
    %v2400 = vmul.f32 %v2277, %v2314
    %v2401 = vmul.f32 %v2278, %v2322
    %v2402 = vmul.f32 %v2277, %v2321
    %v2403 = vmul.f32 %v2278, %v2323
    %v2404 = vmul.f32 %v2277, %v2330
    %v2405 = vmul.f32 %v2278, %v2331
    %v2406 = vmul.f32 %v2285, %v2339
    %v2407 = vmul.f32 %v2286, %v2347
    %v2408 = vmul.f32 %v2285, %v2346
    %v2409 = vmul.f32 %v2286, %v2348
    %v2410 = vmul.f32 %v2285, %v2355
    %v2411 = vmul.f32 %v2286, %v2356
    %v2412 = vmul.f32 %v2293, %v2364
    %v2413 = vmul.f32 %v2294, %v2372
    %v2414 = vmul.f32 %v2293, %v2371
    %v2415 = vmul.f32 %v2294, %v2373
    %v2416 = vmul.f32 %v2293, %v2380
    %v2417 = vmul.f32 %v2294, %v2381
    %v2418 = vadd.f32 %v2400, 0.0
    %v2419 = vadd.f32 %v2401, 0.0
    %v2420 = vadd.f32 %v2402, 0.0
    %v2421 = vadd.f32 %v2403, 0.0
    %v2422 = vadd.f32 %v2404, 0.0
    %v2423 = vadd.f32 %v2405, 0.0
    %v2424 = vadd.f32 %v2406, 0.0
    %v2425 = vadd.f32 %v2407, 0.0
    %v2426 = vadd.f32 %v2408, 0.0
    %v2427 = vadd.f32 %v2409, 0.0
    %v2428 = vadd.f32 %v2410, 0.0
    %v2429 = vadd.f32 %v2411, 0.0
    %v2430 = vadd.f32 %v2412, 0.0
    %v2431 = vadd.f32 %v2413, 0.0
    %v2432 = vadd.f32 %v2414, 0.0
    %v2433 = vadd.f32 %v2415, 0.0
    %v2434 = vadd.f32 %v2416, 0.0
    %v2435 = vadd.f32 %v2417, 0.0
    %v2436 = vsub.f32 %v77, %v40
    %v2437 = vsub.f32 %v78, %v41
    %v2438 = vsub.f32 %v83, %v42
    %v2439 = vsub.f32 %v84, %v43
    %v2440 = vsub.f32 %v89, %v44
    %v2441 = vsub.f32 %v90, %v45
    %v2442 = vmul.f32 %v2436, %v2436
    %v2443 = vmul.f32 %v2437, %v2437
    %v2444 = vmul.f32 %v2438, %v2438
    %v2445 = vmul.f32 %v2439, %v2439
    %v2446 = vmul.f32 %v2440, %v2440
    %v2447 = vmul.f32 %v2441, %v2441
    %v2448 = vsub.f32 0.0, %v2442
    %v2449 = vsub.f32 0.0, %v2443
    %v2450 = vsub.f32 0.0, %v2444
    %v2451 = vsub.f32 0.0, %v2445
    %v2452 = vsub.f32 0.0, %v2446
    %v2453 = vsub.f32 0.0, %v2447
    %v2454 = vmul.f32 %v2448, 41.322315
    %v2455 = vmul.f32 %v2449, 41.322315
    %v2456 = vmul.f32 %v2450, 41.322315
    %v2457 = vmul.f32 %v2451, 41.322315
    %v2458 = vmul.f32 %v2452, 41.322315
    %v2459 = vmul.f32 %v2453, 41.322315
    %v2460 = vmul.f32 %v2454, 1.442695
    %v2461 = vpow.pop %v2460
    %v2462 = vmul.f32 %v2455, 1.442695
    %v2463 = vpow.pop %v2462
    %v2464 = vmul.f32 %v2456, 1.442695
    %v2465 = vpow.pop %v2464
    %v2466 = vmul.f32 %v2457, 1.442695
    %v2467 = vpow.pop %v2466
    %v2468 = vmul.f32 %v2458, 1.442695
    %v2469 = vpow.pop %v2468
    %v2470 = vmul.f32 %v2459, 1.442695
    %v2471 = vpow.pop %v2470
    %v2472 = vmul.f32 %v2461, 3.626748
    %v2473 = vmul.f32 %v2463, 3.626748
    %v2474 = vmul.f32 %v2465, 3.626748
    %v2475 = vmul.f32 %v2467, 3.626748
    %v2476 = vmul.f32 %v2469, 3.626748
    %v2477 = vmul.f32 %v2471, 3.626748
    %v2482 = vunpack.c.l.s4 1983009808
    %v2483 = vunpack.c.0.s8 %v2482
    %v2484 = vlaneseq
    %v2485 = vshrl.u32 %v2484, 7
    %v2486 = vsub.s32 %v2483, %v2485
    %v2487 = vrot.slane %v334, %v2486
    %v2488 = vcombine.high %v2487, %v2487
    %v2490 = vunpack.c.l.s4 1983009808
    %v2491 = vunpack.c.0.s8 %v2490
    %v2492 = vlaneseq
    %v2493 = vshrl.u32 %v2492, 7
    %v2494 = vsub.s32 %v2491, %v2493
    %v2495 = vrot.slane %v337, %v2494
    %v2496 = vcombine.high %v2495, %v2495
    %v2498 = vunpack.c.l.s4 1983009808
    %v2499 = vunpack.c.0.s8 %v2498
    %v2500 = vlaneseq
    %v2501 = vshrl.u32 %v2500, 7
    %v2502 = vsub.s32 %v2499, %v2501
    %v2503 = vrot.slane %v340, %v2502
    %v2504 = vcombine.high %v2503, %v2503
    %v2517 = vcombine.high %v2472, %v2472
    %v2519 = vunpack.c.l.s4 1983009808
    %v2520 = vunpack.c.0.s8 %v2519
    %v2521 = vlaneseq
    %v2522 = vshrl.u32 %v2521, 7
    %v2523 = vsub.s32 %v2520, %v2522
    %v2524 = vrot.slane %v2472, %v2523
    %v2526 = vunpack.c.l.s4 1983009808
    %v2527 = vunpack.c.0.s8 %v2526
    %v2528 = vlaneseq
    %v2529 = vshrl.u32 %v2528, 7
    %v2530 = vsub.s32 %v2527, %v2529
    %v2531 = vrot.slane %v2517, %v2530
    %v2532 = vcombine.high %v2524, %v2524
    %v2533 = vcombine.high %v2531, %v2531
    %v2535 = vunpack.c.l.s4 1983009808
    %v2536 = vunpack.c.0.s8 %v2535
    %v2537 = vlaneseq
    %v2538 = vshrl.u32 %v2537, 7
    %v2539 = vsub.s32 %v2536, %v2538
    %v2540 = vrot.slane %v2473, %v2539
    %v2541 = vcombine.high %v2540, %v2540
    %v2542 = vcombine.high %v2474, %v2474
    %v2544 = vunpack.c.l.s4 1983009808
    %v2545 = vunpack.c.0.s8 %v2544
    %v2546 = vlaneseq
    %v2547 = vshrl.u32 %v2546, 7
    %v2548 = vsub.s32 %v2545, %v2547
    %v2549 = vrot.slane %v2474, %v2548
    %v2551 = vunpack.c.l.s4 1983009808
    %v2552 = vunpack.c.0.s8 %v2551
    %v2553 = vlaneseq
    %v2554 = vshrl.u32 %v2553, 7
    %v2555 = vsub.s32 %v2552, %v2554
    %v2556 = vrot.slane %v2542, %v2555
    %v2557 = vcombine.high %v2549, %v2549
    %v2558 = vcombine.high %v2556, %v2556
    %v2560 = vunpack.c.l.s4 1983009808
    %v2561 = vunpack.c.0.s8 %v2560
    %v2562 = vlaneseq
    %v2563 = vshrl.u32 %v2562, 7
    %v2564 = vsub.s32 %v2561, %v2563
    %v2565 = vrot.slane %v2475, %v2564
    %v2566 = vcombine.high %v2565, %v2565
    %v2567 = vcombine.high %v2476, %v2476
    %v2569 = vunpack.c.l.s4 1983009808
    %v2570 = vunpack.c.0.s8 %v2569
    %v2571 = vlaneseq
    %v2572 = vshrl.u32 %v2571, 7
    %v2573 = vsub.s32 %v2570, %v2572
    %v2574 = vrot.slane %v2476, %v2573
    %v2576 = vunpack.c.l.s4 1983009808
    %v2577 = vunpack.c.0.s8 %v2576
    %v2578 = vlaneseq
    %v2579 = vshrl.u32 %v2578, 7
    %v2580 = vsub.s32 %v2577, %v2579
    %v2581 = vrot.slane %v2567, %v2580
    %v2582 = vcombine.high %v2574, %v2574
    %v2583 = vcombine.high %v2581, %v2581
    %v2585 = vunpack.c.l.s4 1983009808
    %v2586 = vunpack.c.0.s8 %v2585
    %v2587 = vlaneseq
    %v2588 = vshrl.u32 %v2587, 7
    %v2589 = vsub.s32 %v2586, %v2588
    %v2590 = vrot.slane %v2477, %v2589
    %v2591 = vcombine.high %v2590, %v2590
    %v2610 = vmul.f32 %v2487, %v2524
    %v2611 = vmul.f32 %v2488, %v2532
    %v2612 = vmul.f32 %v2487, %v2531
    %v2613 = vmul.f32 %v2488, %v2533
    %v2614 = vmul.f32 %v2487, %v2540
    %v2615 = vmul.f32 %v2488, %v2541
    %v2616 = vmul.f32 %v2495, %v2549
    %v2617 = vmul.f32 %v2496, %v2557
    %v2618 = vmul.f32 %v2495, %v2556
    %v2619 = vmul.f32 %v2496, %v2558
    %v2620 = vmul.f32 %v2495, %v2565
    %v2621 = vmul.f32 %v2496, %v2566
    %v2622 = vmul.f32 %v2503, %v2574
    %v2623 = vmul.f32 %v2504, %v2582
    %v2624 = vmul.f32 %v2503, %v2581
    %v2625 = vmul.f32 %v2504, %v2583
    %v2626 = vmul.f32 %v2503, %v2590
    %v2627 = vmul.f32 %v2504, %v2591
    %v2628 = vadd.f32 %v2418, %v2610
    %v2629 = vadd.f32 %v2419, %v2611
    %v2630 = vadd.f32 %v2420, %v2612
    %v2631 = vadd.f32 %v2421, %v2613
    %v2632 = vadd.f32 %v2422, %v2614
    %v2633 = vadd.f32 %v2423, %v2615
    %v2634 = vadd.f32 %v2424, %v2616
    %v2635 = vadd.f32 %v2425, %v2617
    %v2636 = vadd.f32 %v2426, %v2618
    %v2637 = vadd.f32 %v2427, %v2619
    %v2638 = vadd.f32 %v2428, %v2620
    %v2639 = vadd.f32 %v2429, %v2621
    %v2640 = vadd.f32 %v2430, %v2622
    %v2641 = vadd.f32 %v2431, %v2623
    %v2642 = vadd.f32 %v2432, %v2624
    %v2643 = vadd.f32 %v2433, %v2625
    %v2644 = vadd.f32 %v2434, %v2626
    %v2645 = vadd.f32 %v2435, %v2627
    %v2646 = vsub.f32 %v79, %v40
    %v2647 = vsub.f32 %v80, %v41
    %v2648 = vsub.f32 %v85, %v42
    %v2649 = vsub.f32 %v86, %v43
    %v2650 = vsub.f32 %v91, %v44
    %v2651 = vsub.f32 %v92, %v45
    %v2652 = vmul.f32 %v2646, %v2646
    %v2653 = vmul.f32 %v2647, %v2647
    %v2654 = vmul.f32 %v2648, %v2648
    %v2655 = vmul.f32 %v2649, %v2649
    %v2656 = vmul.f32 %v2650, %v2650
    %v2657 = vmul.f32 %v2651, %v2651
    %v2658 = vsub.f32 0.0, %v2652
    %v2659 = vsub.f32 0.0, %v2653
    %v2660 = vsub.f32 0.0, %v2654
    %v2661 = vsub.f32 0.0, %v2655
    %v2662 = vsub.f32 0.0, %v2656
    %v2663 = vsub.f32 0.0, %v2657
    %v2664 = vmul.f32 %v2658, 41.322315
    %v2665 = vmul.f32 %v2659, 41.322315
    %v2666 = vmul.f32 %v2660, 41.322315
    %v2667 = vmul.f32 %v2661, 41.322315
    %v2668 = vmul.f32 %v2662, 41.322315
    %v2669 = vmul.f32 %v2663, 41.322315
    %v2670 = vmul.f32 %v2664, 1.442695
    %v2671 = vpow.pop %v2670
    %v2672 = vmul.f32 %v2665, 1.442695
    %v2673 = vpow.pop %v2672
    %v2674 = vmul.f32 %v2666, 1.442695
    %v2675 = vpow.pop %v2674
    %v2676 = vmul.f32 %v2667, 1.442695
    %v2677 = vpow.pop %v2676
    %v2678 = vmul.f32 %v2668, 1.442695
    %v2679 = vpow.pop %v2678
    %v2680 = vmul.f32 %v2669, 1.442695
    %v2681 = vpow.pop %v2680
    %v2682 = vmul.f32 %v2671, 3.626748
    %v2683 = vmul.f32 %v2673, 3.626748
    %v2684 = vmul.f32 %v2675, 3.626748
    %v2685 = vmul.f32 %v2677, 3.626748
    %v2686 = vmul.f32 %v2679, 3.626748
    %v2687 = vmul.f32 %v2681, 3.626748
    %v2692 = vunpack.c.l.s4 1983009808
    %v2693 = vunpack.c.0.s8 %v2692
    %v2694 = vlaneseq
    %v2695 = vshrl.u32 %v2694, 7
    %v2696 = vsub.s32 %v2693, %v2695
    %v2697 = vrot.slane %v335, %v2696
    %v2698 = vcombine.high %v2697, %v2697
    %v2700 = vunpack.c.l.s4 1983009808
    %v2701 = vunpack.c.0.s8 %v2700
    %v2702 = vlaneseq
    %v2703 = vshrl.u32 %v2702, 7
    %v2704 = vsub.s32 %v2701, %v2703
    %v2705 = vrot.slane %v338, %v2704
    %v2706 = vcombine.high %v2705, %v2705
    %v2708 = vunpack.c.l.s4 1983009808
    %v2709 = vunpack.c.0.s8 %v2708
    %v2710 = vlaneseq
    %v2711 = vshrl.u32 %v2710, 7
    %v2712 = vsub.s32 %v2709, %v2711
    %v2713 = vrot.slane %v341, %v2712
    %v2714 = vcombine.high %v2713, %v2713
    %v2727 = vcombine.high %v2682, %v2682
    %v2729 = vunpack.c.l.s4 1983009808
    %v2730 = vunpack.c.0.s8 %v2729
    %v2731 = vlaneseq
    %v2732 = vshrl.u32 %v2731, 7
    %v2733 = vsub.s32 %v2730, %v2732
    %v2734 = vrot.slane %v2682, %v2733
    %v2736 = vunpack.c.l.s4 1983009808
    %v2737 = vunpack.c.0.s8 %v2736
    %v2738 = vlaneseq
    %v2739 = vshrl.u32 %v2738, 7
    %v2740 = vsub.s32 %v2737, %v2739
    %v2741 = vrot.slane %v2727, %v2740
    %v2742 = vcombine.high %v2734, %v2734
    %v2743 = vcombine.high %v2741, %v2741
    %v2745 = vunpack.c.l.s4 1983009808
    %v2746 = vunpack.c.0.s8 %v2745
    %v2747 = vlaneseq
    %v2748 = vshrl.u32 %v2747, 7
    %v2749 = vsub.s32 %v2746, %v2748
    %v2750 = vrot.slane %v2683, %v2749
    %v2751 = vcombine.high %v2750, %v2750
    %v2752 = vcombine.high %v2684, %v2684
    %v2754 = vunpack.c.l.s4 1983009808
    %v2755 = vunpack.c.0.s8 %v2754
    %v2756 = vlaneseq
    %v2757 = vshrl.u32 %v2756, 7
    %v2758 = vsub.s32 %v2755, %v2757
    %v2759 = vrot.slane %v2684, %v2758
    %v2761 = vunpack.c.l.s4 1983009808
    %v2762 = vunpack.c.0.s8 %v2761
    %v2763 = vlaneseq
    %v2764 = vshrl.u32 %v2763, 7
    %v2765 = vsub.s32 %v2762, %v2764
    %v2766 = vrot.slane %v2752, %v2765
    %v2767 = vcombine.high %v2759, %v2759
    %v2768 = vcombine.high %v2766, %v2766
    %v2770 = vunpack.c.l.s4 1983009808
    %v2771 = vunpack.c.0.s8 %v2770
    %v2772 = vlaneseq
    %v2773 = vshrl.u32 %v2772, 7
    %v2774 = vsub.s32 %v2771, %v2773
    %v2775 = vrot.slane %v2685, %v2774
    %v2776 = vcombine.high %v2775, %v2775
    %v2777 = vcombine.high %v2686, %v2686
    %v2779 = vunpack.c.l.s4 1983009808
    %v2780 = vunpack.c.0.s8 %v2779
    %v2781 = vlaneseq
    %v2782 = vshrl.u32 %v2781, 7
    %v2783 = vsub.s32 %v2780, %v2782
    %v2784 = vrot.slane %v2686, %v2783
    %v2786 = vunpack.c.l.s4 1983009808
    %v2787 = vunpack.c.0.s8 %v2786
    %v2788 = vlaneseq
    %v2789 = vshrl.u32 %v2788, 7
    %v2790 = vsub.s32 %v2787, %v2789
    %v2791 = vrot.slane %v2777, %v2790
    %v2792 = vcombine.high %v2784, %v2784
    %v2793 = vcombine.high %v2791, %v2791
    %v2795 = vunpack.c.l.s4 1983009808
    %v2796 = vunpack.c.0.s8 %v2795
    %v2797 = vlaneseq
    %v2798 = vshrl.u32 %v2797, 7
    %v2799 = vsub.s32 %v2796, %v2798
    %v2800 = vrot.slane %v2687, %v2799
    %v2801 = vcombine.high %v2800, %v2800
    %v2820 = vmul.f32 %v2697, %v2734
    %v2821 = vmul.f32 %v2698, %v2742
    %v2822 = vmul.f32 %v2697, %v2741
    %v2823 = vmul.f32 %v2698, %v2743
    %v2824 = vmul.f32 %v2697, %v2750
    %v2825 = vmul.f32 %v2698, %v2751
    %v2826 = vmul.f32 %v2705, %v2759
    %v2827 = vmul.f32 %v2706, %v2767
    %v2828 = vmul.f32 %v2705, %v2766
    %v2829 = vmul.f32 %v2706, %v2768
    %v2830 = vmul.f32 %v2705, %v2775
    %v2831 = vmul.f32 %v2706, %v2776
    %v2832 = vmul.f32 %v2713, %v2784
    %v2833 = vmul.f32 %v2714, %v2792
    %v2834 = vmul.f32 %v2713, %v2791
    %v2835 = vmul.f32 %v2714, %v2793
    %v2836 = vmul.f32 %v2713, %v2800
    %v2837 = vmul.f32 %v2714, %v2801
    %v2838 = vadd.f32 %v2628, %v2820
    %v2839 = vadd.f32 %v2629, %v2821
    %v2840 = vadd.f32 %v2630, %v2822
    %v2841 = vadd.f32 %v2631, %v2823
    %v2842 = vadd.f32 %v2632, %v2824
    %v2843 = vadd.f32 %v2633, %v2825
    %v2844 = vadd.f32 %v2634, %v2826
    %v2845 = vadd.f32 %v2635, %v2827
    %v2846 = vadd.f32 %v2636, %v2828
    %v2847 = vadd.f32 %v2637, %v2829
    %v2848 = vadd.f32 %v2638, %v2830
    %v2849 = vadd.f32 %v2639, %v2831
    %v2850 = vadd.f32 %v2640, %v2832
    %v2851 = vadd.f32 %v2641, %v2833
    %v2852 = vadd.f32 %v2642, %v2834
    %v2853 = vadd.f32 %v2643, %v2835
    %v2854 = vadd.f32 %v2644, %v2836
    %v2855 = vadd.f32 %v2645, %v2837
    %v2856 = vmax.f32 %v2838, 1e-05
    %v2857 = vmax.f32 %v2839, 1e-05
    %v2858 = vmax.f32 %v2840, 1e-05
    %v2859 = vmax.f32 %v2841, 1e-05
    %v2860 = vmax.f32 %v2842, 1e-05
    %v2861 = vmax.f32 %v2843, 1e-05
    %v2862 = vmax.f32 %v2844, 1e-05
    %v2863 = vmax.f32 %v2845, 1e-05
    %v2864 = vmax.f32 %v2846, 1e-05
    %v2865 = vmax.f32 %v2847, 1e-05
    %v2866 = vmax.f32 %v2848, 1e-05
    %v2867 = vmax.f32 %v2849, 1e-05
    %v2868 = vmax.f32 %v2850, 1e-05
    %v2869 = vmax.f32 %v2851, 1e-05
    %v2870 = vmax.f32 %v2852, 1e-05
    %v2871 = vmax.f32 %v2853, 1e-05
    %v2872 = vmax.f32 %v2854, 1e-05
    %v2873 = vmax.f32 %v2855, 1e-05
    %v2874 = vlog2.pop %v2856
    %v2875 = vmul.f32 %v2874, 0.6931472
    %v2876 = vlog2.pop %v2857
    %v2877 = vmul.f32 %v2876, 0.6931472
    %v2878 = vlog2.pop %v2858
    %v2879 = vmul.f32 %v2878, 0.6931472
    %v2880 = vlog2.pop %v2859
    %v2881 = vmul.f32 %v2880, 0.6931472
    %v2882 = vlog2.pop %v2860
    %v2883 = vmul.f32 %v2882, 0.6931472
    %v2884 = vlog2.pop %v2861
    %v2885 = vmul.f32 %v2884, 0.6931472
    %v2886 = vlog2.pop %v2862
    %v2887 = vmul.f32 %v2886, 0.6931472
    %v2888 = vlog2.pop %v2863
    %v2889 = vmul.f32 %v2888, 0.6931472
    %v2890 = vlog2.pop %v2864
    %v2891 = vmul.f32 %v2890, 0.6931472
    %v2892 = vlog2.pop %v2865
    %v2893 = vmul.f32 %v2892, 0.6931472
    %v2894 = vlog2.pop %v2866
    %v2895 = vmul.f32 %v2894, 0.6931472
    %v2896 = vlog2.pop %v2867
    %v2897 = vmul.f32 %v2896, 0.6931472
    %v2898 = vlog2.pop %v2868
    %v2899 = vmul.f32 %v2898, 0.6931472
    %v2900 = vlog2.pop %v2869
    %v2901 = vmul.f32 %v2900, 0.6931472
    %v2902 = vlog2.pop %v2870
    %v2903 = vmul.f32 %v2902, 0.6931472
    %v2904 = vlog2.pop %v2871
    %v2905 = vmul.f32 %v2904, 0.6931472
    %v2906 = vlog2.pop %v2872
    %v2907 = vmul.f32 %v2906, 0.6931472
    %v2908 = vlog2.pop %v2873
    %v2909 = vmul.f32 %v2908, 0.6931472
    %v2910 = vsel %vm120, %v2875, 0.0
    %v2911 = vsel %vm120, %v2877, 0.0
    %v2912 = vadd.f32 %v2910, %v2911
    %v2913 = vsel %vm120, %v2879, 0.0
    %v2914 = vadd.f32 %v2912, %v2913
    %v2915 = vsel %vm120, %v2881, 0.0
    %v2916 = vadd.f32 %v2914, %v2915
    %v2917 = vsel %vm120, %v2883, 0.0
    %v2918 = vadd.f32 %v2916, %v2917
    %v2919 = vsel %vm120, %v2885, 0.0
    %v2920 = vadd.f32 %v2918, %v2919
    %v2921 = vsel %vm120, %v2887, 0.0
    %v2922 = vadd.f32 %v2920, %v2921
    %v2923 = vsel %vm120, %v2889, 0.0
    %v2924 = vadd.f32 %v2922, %v2923
    %v2925 = vsel %vm120, %v2891, 0.0
    %v2926 = vadd.f32 %v2924, %v2925
    %v2927 = vsel %vm120, %v2893, 0.0
    %v2928 = vadd.f32 %v2926, %v2927
    %v2929 = vsel %vm120, %v2895, 0.0
    %v2930 = vadd.f32 %v2928, %v2929
    %v2931 = vsel %vm120, %v2897, 0.0
    %v2932 = vadd.f32 %v2930, %v2931
    %v2933 = vsel %vm120, %v2899, 0.0
    %v2934 = vadd.f32 %v2932, %v2933
    %v2935 = vsel %vm120, %v2901, 0.0
    %v2936 = vadd.f32 %v2934, %v2935
    %v2937 = vsel %vm120, %v2903, 0.0
    %v2938 = vadd.f32 %v2936, %v2937
    %v2939 = vsel %vm120, %v2905, 0.0
    %v2940 = vadd.f32 %v2938, %v2939
    %v2941 = vsel %vm120, %v2907, 0.0
    %v2942 = vadd.f32 %v2940, %v2941
    %v2943 = vsel %vm120, %v2909, 0.0
    %v2944 = vadd.f32 %v2942, %v2943
    %2945 = vadd.xlane.f32.xlu0 %v2944
    %v2946 = vpop.xlane.xlu0 %2945
    %v2947 = vrot.slane %v2946, 4
    %v2948 = vadd.f32 %v2946, %v2947
    %v2949 = vrot.slane %v2948, 2
    %v2950 = vadd.f32 %v2948, %v2949
    %v2951 = vrot.slane %v2950, 1
    %v2952 = vadd.f32 %v2950, %v2951
    %s2953 = vtos %v2952
    %s2954 = ssub.f32 0.0, %s2953
    %v2955 = vrcp.pop 6.0
    %s2956 = vtos %v2955
    %s2957 = smul.f32 %s2954, %s2956
    %v2958 = vsub.f32 %v99, %v44
    %v2959 = vsub.f32 %v100, %v45
    %v2960 = vsub.f32 %v105, %v46
    %v2961 = vsub.f32 %v106, %v47
    %v2962 = vmul.f32 %v2958, %v2958
    %v2963 = vmul.f32 %v2959, %v2959
    %v2964 = vmul.f32 %v2960, %v2960
    %v2965 = vmul.f32 %v2961, %v2961
    %v2966 = vsub.f32 0.0, %v2962
    %v2967 = vsub.f32 0.0, %v2963
    %v2968 = vsub.f32 0.0, %v2964
    %v2969 = vsub.f32 0.0, %v2965
    %v2970 = vmul.f32 %v2966, 61.728394
    %v2971 = vmul.f32 %v2967, 61.728394
    %v2972 = vmul.f32 %v2968, 61.728394
    %v2973 = vmul.f32 %v2969, 61.728394
    %v2974 = vmul.f32 %v2970, 1.442695
    %v2975 = vpow.pop %v2974
    %v2976 = vmul.f32 %v2971, 1.442695
    %v2977 = vpow.pop %v2976
    %v2978 = vmul.f32 %v2972, 1.442695
    %v2979 = vpow.pop %v2978
    %v2980 = vmul.f32 %v2973, 1.442695
    %v2981 = vpow.pop %v2980
    %v2982 = vmul.f32 %v2975, 4.432692
    %v2983 = vmul.f32 %v2977, 4.432692
    %v2984 = vmul.f32 %v2979, 4.432692
    %v2985 = vmul.f32 %v2981, 4.432692
    %v2989 = vunpack.c.l.s4 1983009808
    %v2990 = vunpack.c.0.s8 %v2989
    %v2991 = vlaneseq
    %v2992 = vshrl.u32 %v2991, 7
    %v2993 = vsub.s32 %v2990, %v2992
    %v2994 = vrot.slane %v555, %v2993
    %v2995 = vcombine.high %v2994, %v2994
    %v2997 = vunpack.c.l.s4 1983009808
    %v2998 = vunpack.c.0.s8 %v2997
    %v2999 = vlaneseq
    %v3000 = vshrl.u32 %v2999, 7
    %v3001 = vsub.s32 %v2998, %v3000
    %v3002 = vrot.slane %v558, %v3001
    %v3003 = vcombine.high %v3002, %v3002
    %v3012 = vcombine.high %v2982, %v2982
    %v3014 = vunpack.c.l.s4 1983009808
    %v3015 = vunpack.c.0.s8 %v3014
    %v3016 = vlaneseq
    %v3017 = vshrl.u32 %v3016, 7
    %v3018 = vsub.s32 %v3015, %v3017
    %v3019 = vrot.slane %v2982, %v3018
    %v3021 = vunpack.c.l.s4 1983009808
    %v3022 = vunpack.c.0.s8 %v3021
    %v3023 = vlaneseq
    %v3024 = vshrl.u32 %v3023, 7
    %v3025 = vsub.s32 %v3022, %v3024
    %v3026 = vrot.slane %v3012, %v3025
    %v3027 = vcombine.high %v3019, %v3019
    %v3028 = vcombine.high %v3026, %v3026
    %v3030 = vunpack.c.l.s4 1983009808
    %v3031 = vunpack.c.0.s8 %v3030
    %v3032 = vlaneseq
    %v3033 = vshrl.u32 %v3032, 7
    %v3034 = vsub.s32 %v3031, %v3033
    %v3035 = vrot.slane %v2983, %v3034
    %v3036 = vcombine.high %v3035, %v3035
    %v3037 = vcombine.high %v2984, %v2984
    %v3039 = vunpack.c.l.s4 1983009808
    %v3040 = vunpack.c.0.s8 %v3039
    %v3041 = vlaneseq
    %v3042 = vshrl.u32 %v3041, 7
    %v3043 = vsub.s32 %v3040, %v3042
    %v3044 = vrot.slane %v2984, %v3043
    %v3046 = vunpack.c.l.s4 1983009808
    %v3047 = vunpack.c.0.s8 %v3046
    %v3048 = vlaneseq
    %v3049 = vshrl.u32 %v3048, 7
    %v3050 = vsub.s32 %v3047, %v3049
    %v3051 = vrot.slane %v3037, %v3050
    %v3052 = vcombine.high %v3044, %v3044
    %v3053 = vcombine.high %v3051, %v3051
    %v3055 = vunpack.c.l.s4 1983009808
    %v3056 = vunpack.c.0.s8 %v3055
    %v3057 = vlaneseq
    %v3058 = vshrl.u32 %v3057, 7
    %v3059 = vsub.s32 %v3056, %v3058
    %v3060 = vrot.slane %v2985, %v3059
    %v3061 = vcombine.high %v3060, %v3060
    %v3074 = vmul.f32 %v2994, %v3019
    %v3075 = vmul.f32 %v2995, %v3027
    %v3076 = vmul.f32 %v2994, %v3026
    %v3077 = vmul.f32 %v2995, %v3028
    %v3078 = vmul.f32 %v2994, %v3035
    %v3079 = vmul.f32 %v2995, %v3036
    %v3080 = vmul.f32 %v3002, %v3044
    %v3081 = vmul.f32 %v3003, %v3052
    %v3082 = vmul.f32 %v3002, %v3051
    %v3083 = vmul.f32 %v3003, %v3053
    %v3084 = vmul.f32 %v3002, %v3060
    %v3085 = vmul.f32 %v3003, %v3061
    %v3086 = vadd.f32 %v3074, 0.0
    %v3087 = vadd.f32 %v3075, 0.0
    %v3088 = vadd.f32 %v3076, 0.0
    %v3089 = vadd.f32 %v3077, 0.0
    %v3090 = vadd.f32 %v3078, 0.0
    %v3091 = vadd.f32 %v3079, 0.0
    %v3092 = vadd.f32 %v3080, 0.0
    %v3093 = vadd.f32 %v3081, 0.0
    %v3094 = vadd.f32 %v3082, 0.0
    %v3095 = vadd.f32 %v3083, 0.0
    %v3096 = vadd.f32 %v3084, 0.0
    %v3097 = vadd.f32 %v3085, 0.0
    %v3098 = vsub.f32 %v101, %v44
    %v3099 = vsub.f32 %v102, %v45
    %v3100 = vsub.f32 %v107, %v46
    %v3101 = vsub.f32 %v108, %v47
    %v3102 = vmul.f32 %v3098, %v3098
    %v3103 = vmul.f32 %v3099, %v3099
    %v3104 = vmul.f32 %v3100, %v3100
    %v3105 = vmul.f32 %v3101, %v3101
    %v3106 = vsub.f32 0.0, %v3102
    %v3107 = vsub.f32 0.0, %v3103
    %v3108 = vsub.f32 0.0, %v3104
    %v3109 = vsub.f32 0.0, %v3105
    %v3110 = vmul.f32 %v3106, 41.322315
    %v3111 = vmul.f32 %v3107, 41.322315
    %v3112 = vmul.f32 %v3108, 41.322315
    %v3113 = vmul.f32 %v3109, 41.322315
    %v3114 = vmul.f32 %v3110, 1.442695
    %v3115 = vpow.pop %v3114
    %v3116 = vmul.f32 %v3111, 1.442695
    %v3117 = vpow.pop %v3116
    %v3118 = vmul.f32 %v3112, 1.442695
    %v3119 = vpow.pop %v3118
    %v3120 = vmul.f32 %v3113, 1.442695
    %v3121 = vpow.pop %v3120
    %v3122 = vmul.f32 %v3115, 3.626748
    %v3123 = vmul.f32 %v3117, 3.626748
    %v3124 = vmul.f32 %v3119, 3.626748
    %v3125 = vmul.f32 %v3121, 3.626748
    %v3129 = vunpack.c.l.s4 1983009808
    %v3130 = vunpack.c.0.s8 %v3129
    %v3131 = vlaneseq
    %v3132 = vshrl.u32 %v3131, 7
    %v3133 = vsub.s32 %v3130, %v3132
    %v3134 = vrot.slane %v556, %v3133
    %v3135 = vcombine.high %v3134, %v3134
    %v3137 = vunpack.c.l.s4 1983009808
    %v3138 = vunpack.c.0.s8 %v3137
    %v3139 = vlaneseq
    %v3140 = vshrl.u32 %v3139, 7
    %v3141 = vsub.s32 %v3138, %v3140
    %v3142 = vrot.slane %v559, %v3141
    %v3143 = vcombine.high %v3142, %v3142
    %v3152 = vcombine.high %v3122, %v3122
    %v3154 = vunpack.c.l.s4 1983009808
    %v3155 = vunpack.c.0.s8 %v3154
    %v3156 = vlaneseq
    %v3157 = vshrl.u32 %v3156, 7
    %v3158 = vsub.s32 %v3155, %v3157
    %v3159 = vrot.slane %v3122, %v3158
    %v3161 = vunpack.c.l.s4 1983009808
    %v3162 = vunpack.c.0.s8 %v3161
    %v3163 = vlaneseq
    %v3164 = vshrl.u32 %v3163, 7
    %v3165 = vsub.s32 %v3162, %v3164
    %v3166 = vrot.slane %v3152, %v3165
    %v3167 = vcombine.high %v3159, %v3159
    %v3168 = vcombine.high %v3166, %v3166
    %v3170 = vunpack.c.l.s4 1983009808
    %v3171 = vunpack.c.0.s8 %v3170
    %v3172 = vlaneseq
    %v3173 = vshrl.u32 %v3172, 7
    %v3174 = vsub.s32 %v3171, %v3173
    %v3175 = vrot.slane %v3123, %v3174
    %v3176 = vcombine.high %v3175, %v3175
    %v3177 = vcombine.high %v3124, %v3124
    %v3179 = vunpack.c.l.s4 1983009808
    %v3180 = vunpack.c.0.s8 %v3179
    %v3181 = vlaneseq
    %v3182 = vshrl.u32 %v3181, 7
    %v3183 = vsub.s32 %v3180, %v3182
    %v3184 = vrot.slane %v3124, %v3183
    %v3186 = vunpack.c.l.s4 1983009808
    %v3187 = vunpack.c.0.s8 %v3186
    %v3188 = vlaneseq
    %v3189 = vshrl.u32 %v3188, 7
    %v3190 = vsub.s32 %v3187, %v3189
    %v3191 = vrot.slane %v3177, %v3190
    %v3192 = vcombine.high %v3184, %v3184
    %v3193 = vcombine.high %v3191, %v3191
    %v3195 = vunpack.c.l.s4 1983009808
    %v3196 = vunpack.c.0.s8 %v3195
    %v3197 = vlaneseq
    %v3198 = vshrl.u32 %v3197, 7
    %v3199 = vsub.s32 %v3196, %v3198
    %v3200 = vrot.slane %v3125, %v3199
    %v3201 = vcombine.high %v3200, %v3200
    %v3214 = vmul.f32 %v3134, %v3159
    %v3215 = vmul.f32 %v3135, %v3167
    %v3216 = vmul.f32 %v3134, %v3166
    %v3217 = vmul.f32 %v3135, %v3168
    %v3218 = vmul.f32 %v3134, %v3175
    %v3219 = vmul.f32 %v3135, %v3176
    %v3220 = vmul.f32 %v3142, %v3184
    %v3221 = vmul.f32 %v3143, %v3192
    %v3222 = vmul.f32 %v3142, %v3191
    %v3223 = vmul.f32 %v3143, %v3193
    %v3224 = vmul.f32 %v3142, %v3200
    %v3225 = vmul.f32 %v3143, %v3201
    %v3226 = vadd.f32 %v3086, %v3214
    %v3227 = vadd.f32 %v3087, %v3215
    %v3228 = vadd.f32 %v3088, %v3216
    %v3229 = vadd.f32 %v3089, %v3217
    %v3230 = vadd.f32 %v3090, %v3218
    %v3231 = vadd.f32 %v3091, %v3219
    %v3232 = vadd.f32 %v3092, %v3220
    %v3233 = vadd.f32 %v3093, %v3221
    %v3234 = vadd.f32 %v3094, %v3222
    %v3235 = vadd.f32 %v3095, %v3223
    %v3236 = vadd.f32 %v3096, %v3224
    %v3237 = vadd.f32 %v3097, %v3225
    %v3238 = vsub.f32 %v103, %v44
    %v3239 = vsub.f32 %v104, %v45
    %v3240 = vsub.f32 %v109, %v46
    %v3241 = vsub.f32 %v110, %v47
    %v3242 = vmul.f32 %v3238, %v3238
    %v3243 = vmul.f32 %v3239, %v3239
    %v3244 = vmul.f32 %v3240, %v3240
    %v3245 = vmul.f32 %v3241, %v3241
    %v3246 = vsub.f32 0.0, %v3242
    %v3247 = vsub.f32 0.0, %v3243
    %v3248 = vsub.f32 0.0, %v3244
    %v3249 = vsub.f32 0.0, %v3245
    %v3250 = vmul.f32 %v3246, 41.322315
    %v3251 = vmul.f32 %v3247, 41.322315
    %v3252 = vmul.f32 %v3248, 41.322315
    %v3253 = vmul.f32 %v3249, 41.322315
    %v3254 = vmul.f32 %v3250, 1.442695
    %v3255 = vpow.pop %v3254
    %v3256 = vmul.f32 %v3251, 1.442695
    %v3257 = vpow.pop %v3256
    %v3258 = vmul.f32 %v3252, 1.442695
    %v3259 = vpow.pop %v3258
    %v3260 = vmul.f32 %v3253, 1.442695
    %v3261 = vpow.pop %v3260
    %v3262 = vmul.f32 %v3255, 3.626748
    %v3263 = vmul.f32 %v3257, 3.626748
    %v3264 = vmul.f32 %v3259, 3.626748
    %v3265 = vmul.f32 %v3261, 3.626748
    %v3269 = vunpack.c.l.s4 1983009808
    %v3270 = vunpack.c.0.s8 %v3269
    %v3271 = vlaneseq
    %v3272 = vshrl.u32 %v3271, 7
    %v3273 = vsub.s32 %v3270, %v3272
    %v3274 = vrot.slane %v557, %v3273
    %v3275 = vcombine.high %v3274, %v3274
    %v3277 = vunpack.c.l.s4 1983009808
    %v3278 = vunpack.c.0.s8 %v3277
    %v3279 = vlaneseq
    %v3280 = vshrl.u32 %v3279, 7
    %v3281 = vsub.s32 %v3278, %v3280
    %v3282 = vrot.slane %v560, %v3281
    %v3283 = vcombine.high %v3282, %v3282
    %v3292 = vcombine.high %v3262, %v3262
    %v3294 = vunpack.c.l.s4 1983009808
    %v3295 = vunpack.c.0.s8 %v3294
    %v3296 = vlaneseq
    %v3297 = vshrl.u32 %v3296, 7
    %v3298 = vsub.s32 %v3295, %v3297
    %v3299 = vrot.slane %v3262, %v3298
    %v3301 = vunpack.c.l.s4 1983009808
    %v3302 = vunpack.c.0.s8 %v3301
    %v3303 = vlaneseq
    %v3304 = vshrl.u32 %v3303, 7
    %v3305 = vsub.s32 %v3302, %v3304
    %v3306 = vrot.slane %v3292, %v3305
    %v3307 = vcombine.high %v3299, %v3299
    %v3308 = vcombine.high %v3306, %v3306
    %v3310 = vunpack.c.l.s4 1983009808
    %v3311 = vunpack.c.0.s8 %v3310
    %v3312 = vlaneseq
    %v3313 = vshrl.u32 %v3312, 7
    %v3314 = vsub.s32 %v3311, %v3313
    %v3315 = vrot.slane %v3263, %v3314
    %v3316 = vcombine.high %v3315, %v3315
    %v3317 = vcombine.high %v3264, %v3264
    %v3319 = vunpack.c.l.s4 1983009808
    %v3320 = vunpack.c.0.s8 %v3319
    %v3321 = vlaneseq
    %v3322 = vshrl.u32 %v3321, 7
    %v3323 = vsub.s32 %v3320, %v3322
    %v3324 = vrot.slane %v3264, %v3323
    %v3326 = vunpack.c.l.s4 1983009808
    %v3327 = vunpack.c.0.s8 %v3326
    %v3328 = vlaneseq
    %v3329 = vshrl.u32 %v3328, 7
    %v3330 = vsub.s32 %v3327, %v3329
    %v3331 = vrot.slane %v3317, %v3330
    %v3332 = vcombine.high %v3324, %v3324
    %v3333 = vcombine.high %v3331, %v3331
    %v3335 = vunpack.c.l.s4 1983009808
    %v3336 = vunpack.c.0.s8 %v3335
    %v3337 = vlaneseq
    %v3338 = vshrl.u32 %v3337, 7
    %v3339 = vsub.s32 %v3336, %v3338
    %v3340 = vrot.slane %v3265, %v3339
    %v3341 = vcombine.high %v3340, %v3340
    %v3354 = vmul.f32 %v3274, %v3299
    %v3355 = vmul.f32 %v3275, %v3307
    %v3356 = vmul.f32 %v3274, %v3306
    %v3357 = vmul.f32 %v3275, %v3308
    %v3358 = vmul.f32 %v3274, %v3315
    %v3359 = vmul.f32 %v3275, %v3316
    %v3360 = vmul.f32 %v3282, %v3324
    %v3361 = vmul.f32 %v3283, %v3332
    %v3362 = vmul.f32 %v3282, %v3331
    %v3363 = vmul.f32 %v3283, %v3333
    %v3364 = vmul.f32 %v3282, %v3340
    %v3365 = vmul.f32 %v3283, %v3341
    %v3366 = vadd.f32 %v3226, %v3354
    %v3367 = vadd.f32 %v3227, %v3355
    %v3368 = vadd.f32 %v3228, %v3356
    %v3369 = vadd.f32 %v3229, %v3357
    %v3370 = vadd.f32 %v3230, %v3358
    %v3371 = vadd.f32 %v3231, %v3359
    %v3372 = vadd.f32 %v3232, %v3360
    %v3373 = vadd.f32 %v3233, %v3361
    %v3374 = vadd.f32 %v3234, %v3362
    %v3375 = vadd.f32 %v3235, %v3363
    %v3376 = vadd.f32 %v3236, %v3364
    %v3377 = vadd.f32 %v3237, %v3365
    %v3378 = vmax.f32 %v3366, 1e-05
    %v3379 = vmax.f32 %v3367, 1e-05
    %v3380 = vmax.f32 %v3368, 1e-05
    %v3381 = vmax.f32 %v3369, 1e-05
    %v3382 = vmax.f32 %v3370, 1e-05
    %v3383 = vmax.f32 %v3371, 1e-05
    %v3384 = vmax.f32 %v3372, 1e-05
    %v3385 = vmax.f32 %v3373, 1e-05
    %v3386 = vmax.f32 %v3374, 1e-05
    %v3387 = vmax.f32 %v3375, 1e-05
    %v3388 = vmax.f32 %v3376, 1e-05
    %v3389 = vmax.f32 %v3377, 1e-05
    %v3390 = vlog2.pop %v3378
    %v3391 = vmul.f32 %v3390, 0.6931472
    %v3392 = vlog2.pop %v3379
    %v3393 = vmul.f32 %v3392, 0.6931472
    %v3394 = vlog2.pop %v3380
    %v3395 = vmul.f32 %v3394, 0.6931472
    %v3396 = vlog2.pop %v3381
    %v3397 = vmul.f32 %v3396, 0.6931472
    %v3398 = vlog2.pop %v3382
    %v3399 = vmul.f32 %v3398, 0.6931472
    %v3400 = vlog2.pop %v3383
    %v3401 = vmul.f32 %v3400, 0.6931472
    %v3402 = vlog2.pop %v3384
    %v3403 = vmul.f32 %v3402, 0.6931472
    %v3404 = vlog2.pop %v3385
    %v3405 = vmul.f32 %v3404, 0.6931472
    %v3406 = vlog2.pop %v3386
    %v3407 = vmul.f32 %v3406, 0.6931472
    %v3408 = vlog2.pop %v3387
    %v3409 = vmul.f32 %v3408, 0.6931472
    %v3410 = vlog2.pop %v3388
    %v3411 = vmul.f32 %v3410, 0.6931472
    %v3412 = vlog2.pop %v3389
    %v3413 = vmul.f32 %v3412, 0.6931472
    %v3414 = vsel %vm120, %v3391, 0.0
    %v3415 = vsel %vm120, %v3393, 0.0
    %v3416 = vadd.f32 %v3414, %v3415
    %v3417 = vsel %vm120, %v3395, 0.0
    %v3418 = vadd.f32 %v3416, %v3417
    %v3419 = vsel %vm120, %v3397, 0.0
    %v3420 = vadd.f32 %v3418, %v3419
    %v3421 = vsel %vm120, %v3399, 0.0
    %v3422 = vadd.f32 %v3420, %v3421
    %v3423 = vsel %vm120, %v3401, 0.0
    %v3424 = vadd.f32 %v3422, %v3423
    %v3425 = vsel %vm120, %v3403, 0.0
    %v3426 = vadd.f32 %v3424, %v3425
    %v3427 = vsel %vm120, %v3405, 0.0
    %v3428 = vadd.f32 %v3426, %v3427
    %v3429 = vsel %vm120, %v3407, 0.0
    %v3430 = vadd.f32 %v3428, %v3429
    %v3431 = vsel %vm120, %v3409, 0.0
    %v3432 = vadd.f32 %v3430, %v3431
    %v3433 = vsel %vm120, %v3411, 0.0
    %v3434 = vadd.f32 %v3432, %v3433
    %v3435 = vsel %vm120, %v3413, 0.0
    %v3436 = vadd.f32 %v3434, %v3435
    %3437 = vadd.xlane.f32.xlu0 %v3436
    %v3438 = vpop.xlane.xlu0 %3437
    %v3439 = vrot.slane %v3438, 4
    %v3440 = vadd.f32 %v3438, %v3439
    %v3441 = vrot.slane %v3440, 2
    %v3442 = vadd.f32 %v3440, %v3441
    %v3443 = vrot.slane %v3442, 1
    %v3444 = vadd.f32 %v3442, %v3443
    %s3445 = vtos %v3444
    %s3446 = ssub.f32 0.0, %s3445
    %v3447 = vrcp.pop 4.0
    %s3448 = vtos %v3447
    %s3449 = smul.f32 %s3446, %s3448
    %v3450 = vlog2.pop %v268
    %v3451 = vmul.f32 %v3450, 0.6931472
    %v3452 = vlog2.pop %v273
    %v3453 = vmul.f32 %v3452, 0.6931472
    %v3454 = vlog2.pop %v278
    %v3455 = vmul.f32 %v3454, 0.6931472
    %v3456 = vlog2.pop %v283
    %v3457 = vmul.f32 %v3456, 0.6931472
    %v3458 = vlog2.pop %v288
    %v3459 = vmul.f32 %v3458, 0.6931472
    %v3460 = vlog2.pop %v293
    %v3461 = vmul.f32 %v3460, 0.6931472
    %v3468 = vcombine.low %v3451, %v3453
    %v3470 = vunpack.c.l.s4 1983009808
    %v3471 = vunpack.c.0.s8 %v3470
    %v3472 = vlaneseq
    %v3473 = vshrl.u32 %v3472, 7
    %v3474 = vsub.s32 %v3471, %v3473
    %v3475 = vrot.slane %v3468, %v3474
    %v3476 = vcombine.low %v3455, %v3457
    %v3478 = vunpack.c.l.s4 1983009808
    %v3479 = vunpack.c.0.s8 %v3478
    %v3480 = vlaneseq
    %v3481 = vshrl.u32 %v3480, 7
    %v3482 = vsub.s32 %v3479, %v3481
    %v3483 = vrot.slane %v3476, %v3482
    %v3484 = vcombine.low %v3459, %v3461
    %v3486 = vunpack.c.l.s4 1983009808
    %v3487 = vunpack.c.0.s8 %v3486
    %v3488 = vlaneseq
    %v3489 = vshrl.u32 %v3488, 7
    %v3490 = vsub.s32 %v3487, %v3489
    %v3491 = vrot.slane %v3484, %v3490
    %v3495 = vsub.f32 %v138, %v3475
    %v3496 = vsub.f32 %v139, %v3475
    %v3497 = vsub.f32 %v140, %v3475
    %v3498 = vsub.f32 %v141, %v3483
    %v3499 = vsub.f32 %v142, %v3483
    %v3500 = vsub.f32 %v143, %v3483
    %v3501 = vsub.f32 %v144, %v3491
    %v3502 = vsub.f32 %v145, %v3491
    %v3503 = vsub.f32 %v146, %v3491
    %v3504 = vsub.f32 %v48, %v3495
    %v3505 = vsub.f32 %v49, %v3496
    %v3506 = vsub.f32 %v50, %v3497
    %v3507 = vsub.f32 %v51, %v3498
    %v3508 = vsub.f32 %v52, %v3499
    %v3509 = vsub.f32 %v53, %v3500
    %v3510 = vsub.f32 %v54, %v3501
    %v3511 = vsub.f32 %v55, %v3502
    %v3512 = vsub.f32 %v56, %v3503
    %v3513 = vmul.f32 %v562, %v3504
    %v3514 = vmul.f32 %v564, %v3505
    %v3515 = vmul.f32 %v566, %v3506
    %v3516 = vmul.f32 %v568, %v3507
    %v3517 = vmul.f32 %v570, %v3508
    %v3518 = vmul.f32 %v572, %v3509
    %v3519 = vmul.f32 %v574, %v3510
    %v3520 = vmul.f32 %v576, %v3511
    %v3521 = vmul.f32 %v578, %v3512
    %v3532 = vunpack.c.l.s4 1983009808
    %v3533 = vunpack.c.0.s8 %v3532
    %v3534 = vlaneseq
    %v3535 = vshrl.u32 %v3534, 7
    %v3536 = vsub.s32 %v3533, %v3535
    %v3537 = vrot.slane %v3513, %v3536
    %v3538 = vcombine.high %v3537, %v3537
    %v3540 = vunpack.c.l.s4 1983009808
    %v3541 = vunpack.c.0.s8 %v3540
    %v3542 = vlaneseq
    %v3543 = vshrl.u32 %v3542, 7
    %v3544 = vsub.s32 %v3541, %v3543
    %v3545 = vrot.slane %v3514, %v3544
    %v3546 = vcombine.high %v3545, %v3545
    %v3548 = vunpack.c.l.s4 1983009808
    %v3549 = vunpack.c.0.s8 %v3548
    %v3550 = vlaneseq
    %v3551 = vshrl.u32 %v3550, 7
    %v3552 = vsub.s32 %v3549, %v3551
    %v3553 = vrot.slane %v3515, %v3552
    %v3554 = vcombine.high %v3553, %v3553
    %v3556 = vunpack.c.l.s4 1983009808
    %v3557 = vunpack.c.0.s8 %v3556
    %v3558 = vlaneseq
    %v3559 = vshrl.u32 %v3558, 7
    %v3560 = vsub.s32 %v3557, %v3559
    %v3561 = vrot.slane %v3516, %v3560
    %v3562 = vcombine.high %v3561, %v3561
    %v3564 = vunpack.c.l.s4 1983009808
    %v3565 = vunpack.c.0.s8 %v3564
    %v3566 = vlaneseq
    %v3567 = vshrl.u32 %v3566, 7
    %v3568 = vsub.s32 %v3565, %v3567
    %v3569 = vrot.slane %v3517, %v3568
    %v3570 = vcombine.high %v3569, %v3569
    %v3572 = vunpack.c.l.s4 1983009808
    %v3573 = vunpack.c.0.s8 %v3572
    %v3574 = vlaneseq
    %v3575 = vshrl.u32 %v3574, 7
    %v3576 = vsub.s32 %v3573, %v3575
    %v3577 = vrot.slane %v3518, %v3576
    %v3578 = vcombine.high %v3577, %v3577
    %v3580 = vunpack.c.l.s4 1983009808
    %v3581 = vunpack.c.0.s8 %v3580
    %v3582 = vlaneseq
    %v3583 = vshrl.u32 %v3582, 7
    %v3584 = vsub.s32 %v3581, %v3583
    %v3585 = vrot.slane %v3519, %v3584
    %v3586 = vcombine.high %v3585, %v3585
    %v3588 = vunpack.c.l.s4 1983009808
    %v3589 = vunpack.c.0.s8 %v3588
    %v3590 = vlaneseq
    %v3591 = vshrl.u32 %v3590, 7
    %v3592 = vsub.s32 %v3589, %v3591
    %v3593 = vrot.slane %v3520, %v3592
    %v3594 = vcombine.high %v3593, %v3593
    %v3596 = vunpack.c.l.s4 1983009808
    %v3597 = vunpack.c.0.s8 %v3596
    %v3598 = vlaneseq
    %v3599 = vshrl.u32 %v3598, 7
    %v3600 = vsub.s32 %v3597, %v3599
    %v3601 = vrot.slane %v3521, %v3600
    %v3602 = vcombine.high %v3601, %v3601
    %v3621 = vsel %vm120, %v3537, 0.0
    %v3622 = vsel %vm120, %v3538, 0.0
    %v3623 = vadd.f32 %v3621, %v3622
    %v3624 = vsel %vm120, %v3545, 0.0
    %v3625 = vadd.f32 %v3623, %v3624
    %v3626 = vsel %vm120, %v3546, 0.0
    %v3627 = vadd.f32 %v3625, %v3626
    %v3628 = vsel %vm120, %v3553, 0.0
    %v3629 = vadd.f32 %v3627, %v3628
    %v3630 = vsel %vm120, %v3554, 0.0
    %v3631 = vadd.f32 %v3629, %v3630
    %v3632 = vsel %vm120, %v3561, 0.0
    %v3633 = vadd.f32 %v3631, %v3632
    %v3634 = vsel %vm120, %v3562, 0.0
    %v3635 = vadd.f32 %v3633, %v3634
    %v3636 = vsel %vm120, %v3569, 0.0
    %v3637 = vadd.f32 %v3635, %v3636
    %v3638 = vsel %vm120, %v3570, 0.0
    %v3639 = vadd.f32 %v3637, %v3638
    %v3640 = vsel %vm120, %v3577, 0.0
    %v3641 = vadd.f32 %v3639, %v3640
    %v3642 = vsel %vm120, %v3578, 0.0
    %v3643 = vadd.f32 %v3641, %v3642
    %v3644 = vsel %vm120, %v3585, 0.0
    %v3645 = vadd.f32 %v3643, %v3644
    %v3646 = vsel %vm120, %v3586, 0.0
    %v3647 = vadd.f32 %v3645, %v3646
    %v3648 = vsel %vm120, %v3593, 0.0
    %v3649 = vadd.f32 %v3647, %v3648
    %v3650 = vsel %vm120, %v3594, 0.0
    %v3651 = vadd.f32 %v3649, %v3650
    %v3652 = vsel %vm120, %v3601, 0.0
    %v3653 = vadd.f32 %v3651, %v3652
    %v3654 = vsel %vm120, %v3602, 0.0
    %v3655 = vadd.f32 %v3653, %v3654
    %3656 = vadd.xlane.f32.xlu0 %v3655
    %v3657 = vpop.xlane.xlu0 %3656
    %v3658 = vrot.slane %v3657, 4
    %v3659 = vadd.f32 %v3657, %v3658
    %v3660 = vrot.slane %v3659, 2
    %v3661 = vadd.f32 %v3659, %v3660
    %v3662 = vrot.slane %v3661, 1
    %v3663 = vadd.f32 %v3661, %v3662
    %s3664 = vtos %v3663
    %v3665 = vrcp.pop 6.0
    %s3666 = vtos %v3665
    %s3667 = smul.f32 %s3664, %s3666
    %v3668 = vlog2.pop %v497
    %v3669 = vmul.f32 %v3668, 0.6931472
    %v3670 = vlog2.pop %v502
    %v3671 = vmul.f32 %v3670, 0.6931472
    %v3674 = vcombine.low %v3669, %v3671
    %v3676 = vunpack.c.l.s4 1983009808
    %v3677 = vunpack.c.0.s8 %v3676
    %v3678 = vlaneseq
    %v3679 = vshrl.u32 %v3678, 7
    %v3680 = vsub.s32 %v3677, %v3679
    %v3681 = vrot.slane %v3674, %v3680
    %v3683 = vsub.f32 %v360, %v3681
    %v3684 = vsub.f32 %v361, %v3681
    %v3685 = vsub.f32 %v362, %v3681
    %v3686 = vsub.f32 %v54, %v3683
    %v3687 = vsub.f32 %v55, %v3684
    %v3688 = vsub.f32 %v56, %v3685
    %v3689 = vmul.f32 %v574, %v3686
    %v3690 = vmul.f32 %v576, %v3687
    %v3691 = vmul.f32 %v578, %v3688
    %v3696 = vunpack.c.l.s4 1983009808
    %v3697 = vunpack.c.0.s8 %v3696
    %v3698 = vlaneseq
    %v3699 = vshrl.u32 %v3698, 7
    %v3700 = vsub.s32 %v3697, %v3699
    %v3701 = vrot.slane %v3689, %v3700
    %v3702 = vcombine.high %v3701, %v3701
    %v3704 = vunpack.c.l.s4 1983009808
    %v3705 = vunpack.c.0.s8 %v3704
    %v3706 = vlaneseq
    %v3707 = vshrl.u32 %v3706, 7
    %v3708 = vsub.s32 %v3705, %v3707
    %v3709 = vrot.slane %v3690, %v3708
    %v3710 = vcombine.high %v3709, %v3709
    %v3712 = vunpack.c.l.s4 1983009808
    %v3713 = vunpack.c.0.s8 %v3712
    %v3714 = vlaneseq
    %v3715 = vshrl.u32 %v3714, 7
    %v3716 = vsub.s32 %v3713, %v3715
    %v3717 = vrot.slane %v3691, %v3716
    %v3718 = vcombine.high %v3717, %v3717
    %v3725 = vsel %vm120, %v3701, 0.0
    %v3726 = vsel %vm120, %v3702, 0.0
    %v3727 = vadd.f32 %v3725, %v3726
    %v3728 = vsel %vm120, %v3709, 0.0
    %v3729 = vadd.f32 %v3727, %v3728
    %v3730 = vsel %vm120, %v3710, 0.0
    %v3731 = vadd.f32 %v3729, %v3730
    %v3732 = vsel %vm120, %v3717, 0.0
    %v3733 = vadd.f32 %v3731, %v3732
    %v3734 = vsel %vm120, %v3718, 0.0
    %v3735 = vadd.f32 %v3733, %v3734
    %3736 = vadd.xlane.f32.xlu0 %v3735
    %v3737 = vpop.xlane.xlu0 %3736
    %v3738 = vrot.slane %v3737, 4
    %v3739 = vadd.f32 %v3737, %v3738
    %v3740 = vrot.slane %v3739, 2
    %v3741 = vadd.f32 %v3739, %v3740
    %v3742 = vrot.slane %v3741, 1
    %v3743 = vadd.f32 %v3741, %v3742
    %s3744 = vtos %v3743
    %v3745 = vrcp.pop 4.0
    %s3746 = vtos %v3745
    %s3747 = smul.f32 %s3744, %s3746
    %v3748 = vadd.f32 %v111, 1.0
    %v3749 = vadd.f32 %v112, 1.0
    %v3750 = vadd.f32 %v113, 1.0
    %v3751 = vadd.f32 %v114, 1.0
    %v3752 = vadd.f32 %v115, 1.0
    %v3753 = vadd.f32 %v116, 1.0
    %v3754 = vadd.f32 %v117, 1.0
    %v3755 = vadd.f32 %v118, 1.0
    %v3756 = vadd.f32 %v119, 1.0
    %v3757 = vmul.f32 %v111, %v111
    %v3758 = vmul.f32 %v112, %v112
    %v3759 = vmul.f32 %v113, %v113
    %v3760 = vmul.f32 %v114, %v114
    %v3761 = vmul.f32 %v115, %v115
    %v3762 = vmul.f32 %v116, %v116
    %v3763 = vmul.f32 %v117, %v117
    %v3764 = vmul.f32 %v118, %v118
    %v3765 = vmul.f32 %v119, %v119
    %3775 = vrot.lane.b32.xlu0 %v3757, 16
    %v3776 = vpop.permute.xlu0 %3775
    %3777 = vrot.lane.b32.xlu0 %v3758, 16
    %v3778 = vpop.permute.xlu0 %3777
    %3779 = vrot.lane.b32.xlu0 %v3759, 16
    %v3780 = vpop.permute.xlu0 %3779
    %3781 = vrot.lane.b32.xlu0 %v3760, 16
    %v3782 = vpop.permute.xlu0 %3781
    %3783 = vrot.lane.b32.xlu0 %v3761, 16
    %v3784 = vpop.permute.xlu0 %3783
    %3785 = vrot.lane.b32.xlu0 %v3762, 16
    %v3786 = vpop.permute.xlu0 %3785
    %3787 = vrot.lane.b32.xlu0 %v3763, 16
    %v3788 = vpop.permute.xlu0 %3787
    %3789 = vrot.lane.b32.xlu0 %v3764, 16
    %v3790 = vpop.permute.xlu0 %3789
    %3791 = vrot.lane.b32.xlu0 %v3765, 16
    %v3792 = vpop.permute.xlu0 %3791
    %v3802 = vsub.f32 %v3748, %v3776
    %v3803 = vsub.f32 %v3749, %v3778
    %v3804 = vsub.f32 %v3750, %v3780
    %v3805 = vsub.f32 %v3751, %v3782
    %v3806 = vsub.f32 %v3752, %v3784
    %v3807 = vsub.f32 %v3753, %v3786
    %v3808 = vsub.f32 %v3754, %v3788
    %v3809 = vsub.f32 %v3755, %v3790
    %v3810 = vsub.f32 %v3756, %v3792
    %v3811 = vmul.f32 %v111, 1.442695
    %v3812 = vpow.pop %v3811
    %v3813 = vmul.f32 %v112, 1.442695
    %v3814 = vpow.pop %v3813
    %v3815 = vmul.f32 %v113, 1.442695
    %v3816 = vpow.pop %v3815
    %v3817 = vmul.f32 %v114, 1.442695
    %v3818 = vpow.pop %v3817
    %v3819 = vmul.f32 %v115, 1.442695
    %v3820 = vpow.pop %v3819
    %v3821 = vmul.f32 %v116, 1.442695
    %v3822 = vpow.pop %v3821
    %v3823 = vmul.f32 %v117, 1.442695
    %v3824 = vpow.pop %v3823
    %v3825 = vmul.f32 %v118, 1.442695
    %v3826 = vpow.pop %v3825
    %v3827 = vmul.f32 %v119, 1.442695
    %v3828 = vpow.pop %v3827
    %v3829 = vsub.f32 %v3802, %v3812
    %v3830 = vsub.f32 %v3803, %v3814
    %v3831 = vsub.f32 %v3804, %v3816
    %v3832 = vsub.f32 %v3805, %v3818
    %v3833 = vsub.f32 %v3806, %v3820
    %v3834 = vsub.f32 %v3807, %v3822
    %v3835 = vsub.f32 %v3808, %v3824
    %v3836 = vsub.f32 %v3809, %v3826
    %v3837 = vsub.f32 %v3810, %v3828
    %3847 = vrot.lane.b32.xlu0 %v3829, 112
    %v3848 = vpop.permute.xlu0 %3847
    %3849 = vrot.lane.b32.xlu0 %v3830, 112
    %v3850 = vpop.permute.xlu0 %3849
    %3851 = vrot.lane.b32.xlu0 %v3831, 112
    %v3852 = vpop.permute.xlu0 %3851
    %3853 = vrot.lane.b32.xlu0 %v3832, 112
    %v3854 = vpop.permute.xlu0 %3853
    %3855 = vrot.lane.b32.xlu0 %v3833, 112
    %v3856 = vpop.permute.xlu0 %3855
    %3857 = vrot.lane.b32.xlu0 %v3834, 112
    %v3858 = vpop.permute.xlu0 %3857
    %3859 = vrot.lane.b32.xlu0 %v3835, 112
    %v3860 = vpop.permute.xlu0 %3859
    %3861 = vrot.lane.b32.xlu0 %v3836, 112
    %v3862 = vpop.permute.xlu0 %3861
    %3863 = vrot.lane.b32.xlu0 %v3837, 112
    %v3864 = vpop.permute.xlu0 %3863
    %vm3874 = vcmask 123904
    %v3875 = vsel %vm3874, %v3848, 0.0
    %v3876 = vsel %vm3874, %v3850, 0.0
    %v3877 = vadd.f32 %v3875, %v3876
    %v3878 = vsel %vm3874, %v3852, 0.0
    %v3879 = vadd.f32 %v3877, %v3878
    %v3880 = vsel %vm3874, %v3854, 0.0
    %v3881 = vadd.f32 %v3879, %v3880
    %v3882 = vsel %vm3874, %v3856, 0.0
    %v3883 = vadd.f32 %v3881, %v3882
    %v3884 = vsel %vm3874, %v3858, 0.0
    %v3885 = vadd.f32 %v3883, %v3884
    %v3886 = vsel %vm3874, %v3860, 0.0
    %v3887 = vadd.f32 %v3885, %v3886
    %v3888 = vsel %vm3874, %v3862, 0.0
    %v3889 = vadd.f32 %v3887, %v3888
    %v3890 = vsel %vm3874, %v3864, 0.0
    %v3891 = vadd.f32 %v3889, %v3890
    %3892 = vadd.xlane.f32.xlu0 %v3891
    %v3893 = vpop.xlane.xlu0 %3892
    %v3894 = vrot.slane %v3893, 4
    %v3895 = vadd.f32 %v3893, %v3894
    %v3896 = vrot.slane %v3895, 2
    %v3897 = vadd.f32 %v3895, %v3896
    %v3898 = vrot.slane %v3897, 1
    %v3899 = vadd.f32 %v3897, %v3898
    %s3900 = vtos %v3899
    %s3901 = smul.f32 %s3900, -0.5
    %v3902 = vrcp.pop 6.0
    %s3903 = vtos %v3902
    %s3904 = smul.f32 %s3901, %s3903
    %v3905 = vstv %s2957
    %vm3906 = vcmask 0
    %3907 = vst.msk [vmem:[#allocation2] sm:$0x1] %vm3906, %v3905
    %v3908 = vstv %s3449
    %3909 = vst.msk [vmem:[#allocation4] sm:$0x1] %vm3906, %v3908
    %v3910 = vstv %s3667
    %3911 = vst.msk [vmem:[#allocation6] sm:$0x1] %vm3906, %v3910
    %v3912 = vstv %s3747
    %3913 = vst.msk [vmem:[#allocation7] sm:$0x1] %vm3906, %v3912
    %v3914 = vstv %s3904
    %3915 = vst.msk [vmem:[#allocation9] sm:$0x1] %vm3906, %v3914
    // Predicated region
    $region30: #{vimon_forward.3} parent=1 // pred_check
      _
    $region31: #{vimon_forward.3} parent=1 // pred_check_branch
      %3917 = sbr.rel (0) target = $region33
    $region32: #{vimon_forward.3} parent=1 // pred_region
      _
    $region33: #{vimon_forward.3} parent=1 // pred_fallthru
      _
    // Predicated region
    $region34: #{vimon_forward.3} parent=1 // pred_check
      _
    $region35: #{vimon_forward.3} parent=1 // pred_check_branch
      %3919 = sbr.rel (0) target = $region37
    $region36: #{vimon_forward.3} parent=1 // pred_region
      _
    $region37: #{vimon_forward.3} parent=1 // pred_fallthru
      _
    // Predicated region
    $region38: #{vimon_forward.3} parent=1 // pred_check
      _
    $region39: #{vimon_forward.3} parent=1 // pred_check_branch
      %3921 = sbr.rel (0) target = $region41
    $region40: #{vimon_forward.3} parent=1 // pred_region
      _
    $region41: #{vimon_forward.3} parent=1 // pred_fallthru
      _
    // Predicated region
    $region42: #{vimon_forward.3} parent=1 // pred_check
      _
    $region43: #{vimon_forward.3} parent=1 // pred_check_branch
      %3923 = sbr.rel (0) target = $region45
    $region44: #{vimon_forward.3} parent=1 // pred_region
      _
    $region45: #{vimon_forward.3} parent=1 // pred_fallthru
      _
    // Predicated region
    $region46: #{vimon_forward.3} parent=1 // pred_check
      _
    $region47: #{vimon_forward.3} parent=1 // pred_check_branch
      %3925 = sbr.rel (0) target = $region49
    $region48: #{vimon_forward.3} parent=1 // pred_region
      _
    $region49: #{vimon_forward.3} parent=1 // pred_fallthru
      _
    // Predicated region
    $region50: #{vimon_forward.3} parent=1 // pred_check
      _
    $region51: #{vimon_forward.3} parent=1 // pred_check_branch
      %3927 = sbr.rel (0) target = $region53
    $region52: #{vimon_forward.3} parent=1 // pred_region
      _
    $region53: #{vimon_forward.3} parent=1 // pred_fallthru
      _
    // Predicated region
    $region54: #{vimon_forward.3} parent=1 // pred_check
      _
    $region55: #{vimon_forward.3} parent=1 // pred_check_branch
      %3929 = sbr.rel (0) target = $region57
    $region56: #{vimon_forward.3} parent=1 // pred_region
      %s3931 = ssub.s32 16, 16
      %3932 = vsyncadd [#allocation3], %s3931
      %s3934 = sshll.u32 [#allocation2], 4
      %s3935 = int_to_ptr.vmem [resolvable:$true] %s3934
      %3937 = dma.vmem_to_hbm [thread:$0]  %s3935, 16, %s13, [#allocation3]
    $region57: #{vimon_forward.3} parent=1 // pred_fallthru
      _
    // Predicated region
    $region58: #{vimon_forward.3} parent=1 // pred_check
      _
    $region59: #{vimon_forward.3} parent=1 // pred_check_branch
      %3939 = sbr.rel (0) target = $region61
    $region60: #{vimon_forward.3} parent=1 // pred_region
      %s3941 = ssub.s32 16, 16
      %3942 = vsyncadd [#allocation5], %s3941
      %s3944 = sshll.u32 [#allocation4], 4
      %s3945 = int_to_ptr.vmem [resolvable:$true] %s3944
      %3947 = dma.vmem_to_hbm [thread:$0]  %s3945, 16, %s14, [#allocation5]
    $region61: #{vimon_forward.3} parent=1 // pred_fallthru
      _
    // Predicated region
    $region62: #{vimon_forward.3} parent=1 // pred_check
      _
    $region63: #{vimon_forward.3} parent=1 // pred_check_branch
      %3949 = sbr.rel (0) target = $region65
    $region64: #{vimon_forward.3} parent=1 // pred_region
      %s3951 = ssub.s32 16, 16
      %3952 = vsyncadd [#allocation5], %s3951
      %s3954 = sshll.u32 [#allocation6], 4
      %s3955 = int_to_ptr.vmem [resolvable:$true] %s3954
      %3957 = dma.vmem_to_hbm [thread:$0]  %s3955, 16, %s15, [#allocation5]
    $region65: #{vimon_forward.3} parent=1 // pred_fallthru
      _
    // Predicated region
    $region66: #{vimon_forward.3} parent=1 // pred_check
      _
    $region67: #{vimon_forward.3} parent=1 // pred_check_branch
      %3959 = sbr.rel (0) target = $region69
    $region68: #{vimon_forward.3} parent=1 // pred_region
      %s3961 = ssub.s32 16, 16
      %3962 = vsyncadd [#allocation8], %s3961
      %s3964 = sshll.u32 [#allocation7], 4
      %s3965 = int_to_ptr.vmem [resolvable:$true] %s3964
      %3967 = dma.vmem_to_hbm [thread:$0]  %s3965, 16, %s16, [#allocation8]
    $region69: #{vimon_forward.3} parent=1 // pred_fallthru
      _
    // Predicated region
    $region70: #{vimon_forward.3} parent=1 // pred_check
      _
    $region71: #{vimon_forward.3} parent=1 // pred_check_branch
      %3969 = sbr.rel (0) target = $region73
    $region72: #{vimon_forward.3} parent=1 // pred_region
      %s3971 = ssub.s32 16, 16
      %3972 = vsyncadd [#allocation8], %s3971
      %s3974 = sshll.u32 [#allocation9], 4
      %s3975 = int_to_ptr.vmem [resolvable:$true] %s3974
      %3977 = dma.vmem_to_hbm [thread:$0]  %s3975, 16, %s17, [#allocation8]
    $region73: #{vimon_forward.3} parent=1 // pred_fallthru
      _
    // Predicated region
    $region74: #{vimon_forward.3} parent=1 // pred_check
      _
    $region75: #{vimon_forward.3} parent=1 // pred_check_branch
      %3979 = sbr.rel (0) target = $region77
    $region76: #{vimon_forward.3} parent=1 // pred_region
      _
    $region77: #{vimon_forward.3} parent=1 // pred_fallthru
      _
    // Predicated region
    $region78: #{vimon_forward.3} parent=1 // pred_check
      _
    $region79: #{vimon_forward.3} parent=1 // pred_check_branch
      %3981 = sbr.rel (0) target = $region81
    $region80: #{vimon_forward.3} parent=1 // pred_region
      _
    $region81: #{vimon_forward.3} parent=1 // pred_fallthru
      _
    // Predicated region
    $region82: #{vimon_forward.3} parent=1 // pred_check
      _
    $region83: #{vimon_forward.3} parent=1 // pred_check_branch
      %3983 = sbr.rel (0) target = $region85
    $region84: #{vimon_forward.3} parent=1 // pred_region
      _
    $region85: #{vimon_forward.3} parent=1 // pred_fallthru
      _
    // Predicated region
    $region86: #{vimon_forward.3} parent=1 // pred_check
      _
    $region87: #{vimon_forward.3} parent=1 // pred_check_branch
      %3985 = sbr.rel (0) target = $region89
    $region88: #{vimon_forward.3} parent=1 // pred_region
      _
    $region89: #{vimon_forward.3} parent=1 // pred_fallthru
      _
    // Predicated region
    $region90: #{vimon_forward.3} parent=1 // pred_check
      _
    $region91: #{vimon_forward.3} parent=1 // pred_check_branch
      %3987 = sbr.rel (0) target = $region93
    $region92: #{vimon_forward.3} parent=1 // pred_region
      _
    $region93: #{vimon_forward.3} parent=1 // pred_fallthru
      _
    // Predicated region
    $region94: #{vimon_forward.3} parent=1 // pred_check
      _
    $region95: #{vimon_forward.3} parent=1 // pred_check_branch
      %3989 = sbr.rel (0) target = $region97
    $region96: #{vimon_forward.3} parent=1 // pred_region
      _
    $region97: #{vimon_forward.3} parent=1 // pred_fallthru
      _
    // Predicated region
    $region98: #{vimon_forward.3} parent=1 // pred_check
      _
    $region99: #{vimon_forward.3} parent=1 // pred_check_branch
      %3991 = sbr.rel (0) target = $region101
    $region100: #{vimon_forward.3} parent=1 // pred_region
      %3992 = dma.done [#allocation3], 16
    $region101: #{vimon_forward.3} parent=1 // pred_fallthru
      _
    // Predicated region
    $region102: #{vimon_forward.3} parent=1 // pred_check
      _
    $region103: #{vimon_forward.3} parent=1 // pred_check_branch
      %3994 = sbr.rel (0) target = $region105
    $region104: #{vimon_forward.3} parent=1 // pred_region
      %3995 = dma.done [#allocation5], 16
    $region105: #{vimon_forward.3} parent=1 // pred_fallthru
      _
    // Predicated region
    $region106: #{vimon_forward.3} parent=1 // pred_check
      _
    $region107: #{vimon_forward.3} parent=1 // pred_check_branch
      %3997 = sbr.rel (0) target = $region109
    $region108: #{vimon_forward.3} parent=1 // pred_region
      %3998 = dma.done [#allocation5], 16
    $region109: #{vimon_forward.3} parent=1 // pred_fallthru
      _
    // Predicated region
    $region110: #{vimon_forward.3} parent=1 // pred_check
      _
    $region111: #{vimon_forward.3} parent=1 // pred_check_branch
      %4000 = sbr.rel (0) target = $region113
    $region112: #{vimon_forward.3} parent=1 // pred_region
      %4001 = dma.done [#allocation8], 16
    $region113: #{vimon_forward.3} parent=1 // pred_fallthru
      _
    // Predicated region
    $region114: #{vimon_forward.3} parent=1 // pred_check
      _
    $region115: #{vimon_forward.3} parent=1 // pred_check_branch
      %4003 = sbr.rel (0) target = $region117
    $region116: #{vimon_forward.3} parent=1 // pred_region
      %4004 = dma.done [#allocation8], 16
    $region117: #{vimon_forward.3} parent=1 // pred_fallthru
      _
    %4005 = vsyncpa [#allocation3], 1
    %4006 = vsyncpa [#allocation5], 1
    %4007 = vsyncpa [#allocation8], 1

</llo_original>
